<compile_context>
chip_gen: v5e
topology: v5e:2x2
jax: 0.10.0
libtpu: 0.0.40
codegen_flags: <defaults>
</compile_context>

<pallas_src>
import functools
import numpy as np
import jax
import jax.numpy as jnp
from jax import lax
from jax.experimental import pallas as pl
from jax.experimental.pallas import tpu as pltpu

_EPS = 1e-5                      # PyTorch nn.LayerNorm default eps
_HI = jax.lax.Precision.HIGHEST  # reference-only precision


# ----------------------------- kernel helpers -----------------------------

def _layer_norm(x, g, b):
    mu = jnp.mean(x, axis=-1, keepdims=True)
    var = jnp.mean(jnp.square(x - mu), axis=-1, keepdims=True)
    return (x - mu) * lax.rsqrt(var + _EPS) * g + b


def _rel_shift(bd):
    """Vectorized Transformer-XL `_rel_shift` on a (H, S, S) score block.

    Reproduces the zero-pad / view / slice / view trick exactly, including the
    wrap-around values for j > i + 1 (the reference module does not mask them,
    so they participate in the softmax):
        out[h, i, j] = bd[h, i, j + S - 1 - i]    for j <= i
        out[h, i, j] = 0                          for j == i + 1
        out[h, i, j] = bd[h, i + 1, j - i - 2]    for j >  i + 1
    Implemented with O(log S) static pltpu.roll lane rotations (XLU slot) plus
    one sublane rotation and iota/where selects -- no slice+concat copies.
    """
    H, S, _ = bd.shape
    row = lax.broadcasted_iota(jnp.int32, (S, S), 0)          # query index i
    col = lax.broadcasted_iota(jnp.int32, (S, S), 1)          # key index j
    # per-row right-roll amount (i + 1); row S-1 rolls by S == identity
    shift = jnp.where(row == S - 1, 0, row + 1)

    rolled = bd
    for bit in range((S - 1).bit_length()):                   # O(log S) rolls
        amt = 1 << bit
        cand = pltpu.roll(rolled, amt, 2)                      # lane rotation
        take = jnp.bitwise_and(shift >> bit, 1) == 1
        rolled = jnp.where(take, cand, rolled)
    # rolled[h, i, j]    == bd[h, i,           (j - i - 1) mod S]
    # rolled_up[h, i, j] == bd[h, (i+1) mod S, (j - i - 2) mod S]
    rolled_up = pltpu.roll(rolled, S - 1, 1)                   # sublane rotation
    zero = jnp.zeros_like(rolled)
    return jnp.where(col <= row, rolled,
                     jnp.where(col == row + 1, zero, rolled_up))


# -------------------------------- kernel -----------------------------------

def _transformer_unit_kernel(x_ref, r_ref, u_ref, v_ref, wqkv_ref, wo_ref,
                             g1_ref, be1_ref, w1_ref, b1_ref,
                             w2_ref, b2_ref, g2_ref, be2_ref,
                             out_ref, *, theta):
    # one grid step == one batch element (grid axis is "parallel")
    _, S, D = x_ref.shape
    H, _, Dh = u_ref.shape
    HD = H * Dh
    scale = theta / (Dh ** 0.5)
    f32 = jnp.float32
    bf16 = jnp.bfloat16

    x_f32 = x_ref[0]                                   # (S, D) f32 (residual)
    xb = x_f32.astype(bf16)

    # fused q/k/v projection: one wide MXU matmul, f32 accumulation
    qkv = jnp.dot(xb, wqkv_ref[...], preferred_element_type=f32)  # (S, 3*HD)

    def to_heads(flat):                                # (S, HD) -> (H, S, Dh)
        return jnp.stack([flat[:, h * Dh:(h + 1) * Dh] for h in range(H)],
                         axis=0)

    qh = to_heads(qkv[:, :HD])                         # (H, S, Dh) f32
    kh = to_heads(qkv[:, HD:2 * HD]).astype(bf16)
    vh = to_heads(qkv[:, 2 * HD:]).astype(bf16)

    # fold the softmax scale into the q-side (S*Dh instead of S*S multiply)
    qu = ((qh + u_ref[...]) * scale).astype(bf16)      # (H, S, Dh)
    qv = ((qh + v_ref[...]) * scale).astype(bf16)

    ac = jnp.einsum('hse,hte->hst', qu, kh, preferred_element_type=f32)
    bd = jnp.einsum('hse,hte->hst', qv, r_ref[...], preferred_element_type=f32)
    score = ac + _rel_shift(bd)                        # (H, S, S) f32

    # softmax over the key axis
    m = jnp.max(score, axis=-1, keepdims=True)
    e = jnp.exp(score - m)
    denom = jnp.sum(e, axis=-1, keepdims=True)
    prob = (e * pl.reciprocal(denom, approx=True)).astype(bf16)

    ctx = jnp.einsum('hst,hte->hse', prob, vh,
                     preferred_element_type=f32)       # (H, S, Dh)
    ctxb = ctx.astype(bf16)
    # fused output projection: flatten heads to lanes, single (S,HD)x(HD,D)
    ctx_flat = jnp.concatenate([ctxb[h] for h in range(H)], axis=-1)  # (S, HD)
    attn_out = jnp.dot(ctx_flat, wo_ref[...], preferred_element_type=f32)

    x1 = _layer_norm(x_f32 + attn_out, g1_ref[...], be1_ref[...])

    # position-wise FFN (see TODO: tile over d_ff for large F on v7x)
    h1 = jnp.dot(x1.astype(bf16), w1_ref[...], preferred_element_type=f32)
    h1 = jnp.maximum(h1 + b1_ref[...], 0.0)
    ff = jnp.dot(h1.astype(bf16), w2_ref[...], preferred_element_type=f32)
    ff = ff + b2_ref[...]

    out_ref[0] = _layer_norm(x1 + ff, g2_ref[...], be2_ref[...])


# -------------------------------- wrapper -----------------------------------

def transformer_unit_forward(x_sbd, pos_emb, pos_bias_u, pos_bias_v, p,
                             theta=1.0):
    S, B, D = x_sbd.shape
    H, Dh = pos_bias_u.shape
    HD = H * Dh
    F = p['w1'].shape[0]

    x_bsd = jnp.transpose(x_sbd, (1, 0, 2)).astype(jnp.float32)

    # batch-invariant relative-position projection, hoisted out of the kernel
    rel = jnp.dot(pos_emb.astype(jnp.float32), jnp.transpose(p['wr']))  # (S, HD)
    r_heads = jnp.transpose(rel.reshape(S, H, Dh), (1, 0, 2)).astype(jnp.bfloat16)

    # fused (D, 3*H*Dh) qkv weight, pre-transposed to (in, out) layout
    wqkv = jnp.concatenate(
        [jnp.transpose(p['wq']),
         jnp.transpose(p['wkv'][:HD]),
         jnp.transpose(p['wkv'][HD:])], axis=1).astype(jnp.bfloat16)
    wo_t = jnp.transpose(p['wo']).astype(jnp.bfloat16)   # (HD, D)
    w1t = jnp.transpose(p['w1']).astype(jnp.bfloat16)    # (D, F)
    w2t = jnp.transpose(p['w2']).astype(jnp.bfloat16)    # (F, D)
    u3 = pos_bias_u.reshape(H, 1, Dh).astype(jnp.float32)
    v3 = pos_bias_v.reshape(H, 1, Dh).astype(jnp.float32)

    args = [x_bsd, r_heads, u3, v3, wqkv, wo_t,
            p['g1'], p['be1'], w1t, p['bf1'], w2t, p['bf2'], p['g2'], p['be2']]

    # constant-index (weight / bias) inputs: no point double-buffering them
    def const_spec(shape):
        nd = len(shape)
        return pl.BlockSpec(shape, lambda b, _nd=nd: (0,) * _nd,
                            pipeline_mode=pl.Buffered(1))

    in_specs = [
        pl.BlockSpec((1, S, D), lambda b: (b, 0, 0)),      # x (per-batch tile)
        const_spec((H, S, Dh)),                            # r (rel projection)
        const_spec((H, 1, Dh)),                            # pos_bias_u
        const_spec((H, 1, Dh)),                            # pos_bias_v
        const_spec((D, 3 * HD)),                           # fused Wqkv
        const_spec((HD, D)),                               # Wo
        const_spec((1, D)),                                # g1
        const_spec((1, D)),                                # be1
        const_spec((D, F)),                                # W1 (in, out)
        const_spec((1, F)),                                # b1
        const_spec((F, D)),                                # W2 (in, out)
        const_spec((1, D)),                                # b2
        const_spec((1, D)),                                # g2
        const_spec((1, D)),                                # be2
    ]

    flops = int(B * (2 * S * D * 3 * HD        # fused qkv projection
                     + 6 * H * S * S * Dh      # ac + bd + ctx
                     + 2 * S * HD * D          # output projection
                     + 4 * S * D * F))         # FFN
    transcendentals = int(B * H * S * S)       # softmax exp
    bytes_accessed = int(B * S * D * 4 * 2
                         + 2 * (D * 3 * HD + HD * D + D * F + F * D + H * S * Dh)
                         + 4 * (2 * H * Dh + 6 * D + F))

    kernel = functools.partial(_transformer_unit_kernel, theta=float(theta))
    out = pl.pallas_call(
        kernel,
        out_shape=jax.ShapeDtypeStruct((B, S, D), jnp.float32),
        grid=(B,),
        in_specs=in_specs,
        out_specs=pl.BlockSpec((1, S, D), lambda b: (b, 0, 0)),
        compiler_params=pltpu.CompilerParams(
            dimension_semantics=("parallel",),
            vmem_limit_bytes=48 * 1024 * 1024),
        cost_estimate=pl.CostEstimate(flops=flops,
                                      transcendentals=transcendentals,
                                      bytes_accessed=bytes_accessed),
    )(*args)
    return jnp.transpose(out, (1, 0, 2))


# ----------------------- deterministic parameter init -----------------------

def init_params(key, num_head, d_model, d_head, d_ff):
    ks = jax.random.split(key, 8)

    def lin(k, out_dim, in_dim):
        bound = 1.0 / np.sqrt(in_dim)
        return jax.random.uniform(k, (out_dim, in_dim), jnp.float32, -bound, bound)

    HD = num_head * d_head
    return dict(
        wq=lin(ks[0], HD, d_model),
        wkv=lin(ks[1], 2 * HD, d_model),
        wr=lin(ks[2], HD, d_model),
        wo=lin(ks[3], d_model, HD),
        g1=jnp.ones((1, d_model), jnp.float32),
        be1=jnp.zeros((1, d_model), jnp.float32),
        w1=lin(ks[4], d_ff, d_model),
        bf1=jax.random.uniform(ks[5], (1, d_ff), jnp.float32,
                               -1.0 / np.sqrt(d_model), 1.0 / np.sqrt(d_model)),
        w2=lin(ks[6], d_model, d_ff),
        bf2=jax.random.uniform(ks[7], (1, d_model), jnp.float32,
                               -1.0 / np.sqrt(d_ff), 1.0 / np.sqrt(d_ff)),
        g2=jnp.ones((1, d_model), jnp.float32),
        be2=jnp.zeros((1, d_model), jnp.float32),
    )


# --------------------------- pure-JAX reference ------------------------------
# Faithful f32 re-implementation of the PyTorch module (eval mode, no mask /
# memory).  Kept in full f32 / HIGHEST precision; the kernel runs its matmuls
# in bf16 on the MXU, so the test tolerance below is bf16-level.

def reference_forward(x, pos_emb, u, v, p, theta=1.0):
    S, B, D = x.shape
    H, Dh = u.shape
    hq = jnp.einsum('sbd,od->sbo', x, p['wq'], precision=_HI)
    hkv = jnp.einsum('sbd,od->sbo', x, p['wkv'], precision=_HI)
    hk, hv = jnp.split(hkv, 2, axis=-1)
    rel = jnp.einsum('sd,od->so', pos_emb, p['wr'], precision=_HI)
    hq = hq.reshape(S, B, H, Dh)
    hk = hk.reshape(S, B, H, Dh)
    hv = hv.reshape(S, B, H, Dh)
    rel = rel.reshape(S, H, Dh)
    qu, qv = hq + u, hq + v
    rel_e = jnp.broadcast_to(rel[:, None], (S, B, H, Dh))
    AC = jnp.einsum('ibnd,jbnd->ijbn', qu, hk, precision=_HI)
    BD = jnp.einsum('ibnd,jbnd->ijbn', qv, rel_e, precision=_HI)
    zero_pad = jnp.zeros((S, 1, B, H), BD.dtype)
    BD = jnp.concatenate([zero_pad, BD], axis=1).reshape(S + 1, S, B, H)[1:] \
           .reshape(S, S, B, H)
    score = (AC + BD) * (1.0 / Dh ** 0.5) * theta
    prob = jax.nn.softmax(score, axis=1)
    av = jnp.einsum('ijbn,jbnd->ibnd', prob, hv, precision=_HI).reshape(S, B, H * Dh)
    ao = jnp.einsum('sbo,do->sbd', av, p['wo'], precision=_HI)

    def ln(t, g, b):
        mu = t.mean(-1, keepdims=True)
        var = ((t - mu) ** 2).mean(-1, keepdims=True)
        return (t - mu) / jnp.sqrt(var + _EPS) * g + b

    x1 = ln(x + ao, p['g1'], p['be1'])
    h = jax.nn.relu(jnp.einsum('sbd,fd->sbf', x1, p['w1'], precision=_HI) + p['bf1'])
    ff = jnp.einsum('sbf,df->sbd', h, p['w2'], precision=_HI) + p['bf2']
    return ln(x1 + ff, p['g2'], p['be2'])


# ----------------------------------- main ------------------------------------

if __name__ == "__main__":
    # Small but (8,128)-friendly shapes: seq/d_model multiples of 128 keep the
    # lane dims native for the XLU rolls and the MXU matmuls.
    S, B, H, Dh, d_model, d_ff = 128, 2, 4, 32, 128, 256
    key = jax.random.PRNGKey(0)
    kx, kp, ku, kv, kw = jax.random.split(key, 5)

    x = jax.random.normal(kx, (S, B, d_model), jnp.float32)       # seq-first
    pos_emb = jax.random.normal(kp, (S, d_model), jnp.float32)
    pos_bias_u = 0.1 * jax.random.normal(ku, (H, Dh), jnp.float32)
    pos_bias_v = 0.1 * jax.random.normal(kv, (H, Dh), jnp.float32)
    params = init_params(kw, H, d_model, Dh, d_ff)

    out = transformer_unit_forward(x, pos_emb, pos_bias_u, pos_bias_v, params,
                                   theta=1.0)
    out = jax.block_until_ready(out)

    ref = reference_forward(x, pos_emb, pos_bias_u, pos_bias_v, params,
                            theta=1.0)
    # tolerance accounts for bf16 matmul operands (f32 accumulation) and the
    # approximate-reciprocal softmax denominator inside the kernel.
    np.testing.assert_allclose(np.asarray(out), np.asarray(ref),
                               rtol=2e-2, atol=4e-2)
    print("KERNEL_OK")
</pallas_src>

<mosaic_0001>
module attributes {stable_mosaic.version = 11 : i64} {
  func.func @_transformer_unit_kernel(%arg0: i32, %arg1: memref<1x128x128xf32, #tpu.memory_space<vmem>>, %arg2: memref<4x128x32xbf16, #tpu.memory_space<vmem>>, %arg3: memref<4x1x32xf32, #tpu.memory_space<vmem>>, %arg4: memref<4x1x32xf32, #tpu.memory_space<vmem>>, %arg5: memref<128x384xbf16, #tpu.memory_space<vmem>>, %arg6: memref<128x128xbf16, #tpu.memory_space<vmem>>, %arg7: memref<1x128xf32, #tpu.memory_space<vmem>>, %arg8: memref<1x128xf32, #tpu.memory_space<vmem>>, %arg9: memref<128x256xbf16, #tpu.memory_space<vmem>>, %arg10: memref<1x256xf32, #tpu.memory_space<vmem>>, %arg11: memref<256x128xbf16, #tpu.memory_space<vmem>>, %arg12: memref<1x128xf32, #tpu.memory_space<vmem>>, %arg13: memref<1x128xf32, #tpu.memory_space<vmem>>, %arg14: memref<1x128xf32, #tpu.memory_space<vmem>>, %arg15: memref<1x128x128xf32, #tpu.memory_space<vmem>>) attributes {dimension_semantics = [#tpu.dimension_semantics<parallel>], iteration_bounds = array<i64: 2>, scalar_prefetch = 0 : i64, scratch_operands = 0 : i64, tpu.core_type = #tpu.core_type<tc>, window_params = [{transform_indices = @transform_0, window_bounds = array<i64: 1, 128, 128>}, {pipeline_mode = #tpu.pipeline_mode<synchronous>, transform_indices = @transform_1, window_bounds = array<i64: 4, 128, 32>}, {pipeline_mode = #tpu.pipeline_mode<synchronous>, transform_indices = @transform_2, window_bounds = array<i64: 4, 1, 32>}, {pipeline_mode = #tpu.pipeline_mode<synchronous>, transform_indices = @transform_3, window_bounds = array<i64: 4, 1, 32>}, {pipeline_mode = #tpu.pipeline_mode<synchronous>, transform_indices = @transform_4, window_bounds = array<i64: 128, 384>}, {pipeline_mode = #tpu.pipeline_mode<synchronous>, transform_indices = @transform_5, window_bounds = array<i64: 128, 128>}, {pipeline_mode = #tpu.pipeline_mode<synchronous>, transform_indices = @transform_6, window_bounds = array<i64: 1, 128>}, {pipeline_mode = #tpu.pipeline_mode<synchronous>, transform_indices = @transform_7, window_bounds = array<i64: 1, 128>}, {pipeline_mode = #tpu.pipeline_mode<synchronous>, transform_indices = @transform_8, window_bounds = array<i64: 128, 256>}, {pipeline_mode = #tpu.pipeline_mode<synchronous>, transform_indices = @transform_9, window_bounds = array<i64: 1, 256>}, {pipeline_mode = #tpu.pipeline_mode<synchronous>, transform_indices = @transform_10, window_bounds = array<i64: 256, 128>}, {pipeline_mode = #tpu.pipeline_mode<synchronous>, transform_indices = @transform_11, window_bounds = array<i64: 1, 128>}, {pipeline_mode = #tpu.pipeline_mode<synchronous>, transform_indices = @transform_12, window_bounds = array<i64: 1, 128>}, {pipeline_mode = #tpu.pipeline_mode<synchronous>, transform_indices = @transform_13, window_bounds = array<i64: 1, 128>}, {transform_indices = @transform_14, window_bounds = array<i64: 1, 128, 128>}]} {
    %c0 = arith.constant 0 : index
    %c0_0 = arith.constant 0 : index
    %c0_1 = arith.constant 0 : index
    %0 = vector.load %arg1[%c0, %c0_0, %c0_1] : memref<1x128x128xf32, #tpu.memory_space<vmem>>, vector<1x128x128xf32>
    %1 = vector.shape_cast %0 : vector<1x128x128xf32> to vector<128x128xf32>
    %2 = arith.truncf %1 : vector<128x128xf32> to vector<128x128xbf16>
    %c0_2 = arith.constant 0 : index
    %c0_3 = arith.constant 0 : index
    %3 = vector.load %arg5[%c0_2, %c0_3] : memref<128x384xbf16, #tpu.memory_space<vmem>>, vector<128x384xbf16>
    %cst = arith.constant dense<0.000000e+00> : vector<128x384xf32>
    %4 = tpu.matmul %2, %3, %cst {dimension_numbers = #tpu.dot_dimension_numbers<[1], [0], [0], [1], [0, 0, 1, 1], [], []>} : vector<128x128xbf16>, vector<128x384xbf16>, vector<128x384xf32> -> vector<128x384xf32>
    %5 = vector.extract_strided_slice %4 {offsets = [0, 0], sizes = [128, 128], strides = [1, 1]} : vector<128x384xf32> to vector<128x128xf32>
    %6 = vector.extract_strided_slice %5 {offsets = [0, 0], sizes = [128, 32], strides = [1, 1]} : vector<128x128xf32> to vector<128x32xf32>
    %7 = vector.extract_strided_slice %5 {offsets = [0, 32], sizes = [128, 32], strides = [1, 1]} : vector<128x128xf32> to vector<128x32xf32>
    %8 = vector.extract_strided_slice %5 {offsets = [0, 64], sizes = [128, 32], strides = [1, 1]} : vector<128x128xf32> to vector<128x32xf32>
    %9 = vector.extract_strided_slice %5 {offsets = [0, 96], sizes = [128, 32], strides = [1, 1]} : vector<128x128xf32> to vector<128x32xf32>
    %10 = vector.shape_cast %6 : vector<128x32xf32> to vector<1x128x32xf32>
    %11 = vector.shape_cast %7 : vector<128x32xf32> to vector<1x128x32xf32>
    %12 = vector.shape_cast %8 : vector<128x32xf32> to vector<1x128x32xf32>
    %13 = vector.shape_cast %9 : vector<128x32xf32> to vector<1x128x32xf32>
    %14 = tpu.concatenate %10, %11, %12, %13 in 0 : vector<1x128x32xf32>, vector<1x128x32xf32>, vector<1x128x32xf32>, vector<1x128x32xf32> -> vector<4x128x32xf32>
    %15 = vector.extract_strided_slice %4 {offsets = [0, 128], sizes = [128, 128], strides = [1, 1]} : vector<128x384xf32> to vector<128x128xf32>
    %16 = vector.extract_strided_slice %15 {offsets = [0, 0], sizes = [128, 32], strides = [1, 1]} : vector<128x128xf32> to vector<128x32xf32>
    %17 = vector.extract_strided_slice %15 {offsets = [0, 32], sizes = [128, 32], strides = [1, 1]} : vector<128x128xf32> to vector<128x32xf32>
    %18 = vector.extract_strided_slice %15 {offsets = [0, 64], sizes = [128, 32], strides = [1, 1]} : vector<128x128xf32> to vector<128x32xf32>
    %19 = vector.extract_strided_slice %15 {offsets = [0, 96], sizes = [128, 32], strides = [1, 1]} : vector<128x128xf32> to vector<128x32xf32>
    %20 = vector.shape_cast %16 : vector<128x32xf32> to vector<1x128x32xf32>
    %21 = vector.shape_cast %17 : vector<128x32xf32> to vector<1x128x32xf32>
    %22 = vector.shape_cast %18 : vector<128x32xf32> to vector<1x128x32xf32>
    %23 = vector.shape_cast %19 : vector<128x32xf32> to vector<1x128x32xf32>
    %24 = tpu.concatenate %20, %21, %22, %23 in 0 : vector<1x128x32xf32>, vector<1x128x32xf32>, vector<1x128x32xf32>, vector<1x128x32xf32> -> vector<4x128x32xf32>
    %25 = arith.truncf %24 : vector<4x128x32xf32> to vector<4x128x32xbf16>
    %26 = vector.extract_strided_slice %4 {offsets = [0, 256], sizes = [128, 128], strides = [1, 1]} : vector<128x384xf32> to vector<128x128xf32>
    %27 = vector.extract_strided_slice %26 {offsets = [0, 0], sizes = [128, 32], strides = [1, 1]} : vector<128x128xf32> to vector<128x32xf32>
    %28 = vector.extract_strided_slice %26 {offsets = [0, 32], sizes = [128, 32], strides = [1, 1]} : vector<128x128xf32> to vector<128x32xf32>
    %29 = vector.extract_strided_slice %26 {offsets = [0, 64], sizes = [128, 32], strides = [1, 1]} : vector<128x128xf32> to vector<128x32xf32>
    %30 = vector.extract_strided_slice %26 {offsets = [0, 96], sizes = [128, 32], strides = [1, 1]} : vector<128x128xf32> to vector<128x32xf32>
    %31 = vector.shape_cast %27 : vector<128x32xf32> to vector<1x128x32xf32>
    %32 = vector.shape_cast %28 : vector<128x32xf32> to vector<1x128x32xf32>
    %33 = vector.shape_cast %29 : vector<128x32xf32> to vector<1x128x32xf32>
    %34 = vector.shape_cast %30 : vector<128x32xf32> to vector<1x128x32xf32>
    %35 = tpu.concatenate %31, %32, %33, %34 in 0 : vector<1x128x32xf32>, vector<1x128x32xf32>, vector<1x128x32xf32>, vector<1x128x32xf32> -> vector<4x128x32xf32>
    %36 = arith.truncf %35 : vector<4x128x32xf32> to vector<4x128x32xbf16>
    %c0_4 = arith.constant 0 : index
    %c0_5 = arith.constant 0 : index
    %c0_6 = arith.constant 0 : index
    %37 = vector.load %arg3[%c0_4, %c0_5, %c0_6] : memref<4x1x32xf32, #tpu.memory_space<vmem>>, vector<4x1x32xf32>
    %38 = vector.broadcast %37 : vector<4x1x32xf32> to vector<4x128x32xf32>
    %39 = arith.addf %14, %38 : vector<4x128x32xf32>
    %cst_7 = arith.constant 0.176776692 : f32
    %40 = vector.broadcast %cst_7 : f32 to vector<4x128x32xf32>
    %41 = arith.mulf %39, %40 : vector<4x128x32xf32>
    %42 = arith.truncf %41 : vector<4x128x32xf32> to vector<4x128x32xbf16>
    %c0_8 = arith.constant 0 : index
    %c0_9 = arith.constant 0 : index
    %c0_10 = arith.constant 0 : index
    %43 = vector.load %arg4[%c0_8, %c0_9, %c0_10] : memref<4x1x32xf32, #tpu.memory_space<vmem>>, vector<4x1x32xf32>
    %44 = vector.broadcast %43 : vector<4x1x32xf32> to vector<4x128x32xf32>
    %45 = arith.addf %14, %44 : vector<4x128x32xf32>
    %cst_11 = arith.constant 0.176776692 : f32
    %46 = vector.broadcast %cst_11 : f32 to vector<4x128x32xf32>
    %47 = arith.mulf %45, %46 : vector<4x128x32xf32>
    %48 = arith.truncf %47 : vector<4x128x32xf32> to vector<4x128x32xbf16>
    "tpu.trace_start"() <{level = 10 : i32, message = "hse,hte->hst"}> : () -> ()
    %cst_12 = arith.constant dense<0.000000e+00> : vector<4x128x128xf32>
    %49 = tpu.matmul %42, %25, %cst_12 {dimension_numbers = #tpu.dot_dimension_numbers<[2], [2], [1], [1], [0, 0, 0, 1, 1, 1], [0], [0]>} : vector<4x128x32xbf16>, vector<4x128x32xbf16>, vector<4x128x128xf32> -> vector<4x128x128xf32>
    "tpu.trace_stop"() : () -> ()
    %c0_13 = arith.constant 0 : index
    %c0_14 = arith.constant 0 : index
    %c0_15 = arith.constant 0 : index
    %50 = vector.load %arg2[%c0_13, %c0_14, %c0_15] : memref<4x128x32xbf16, #tpu.memory_space<vmem>>, vector<4x128x32xbf16>
    "tpu.trace_start"() <{level = 10 : i32, message = "hse,hte->hst"}> : () -> ()
    %cst_16 = arith.constant dense<0.000000e+00> : vector<4x128x128xf32>
    %51 = tpu.matmul %48, %50, %cst_16 {dimension_numbers = #tpu.dot_dimension_numbers<[2], [2], [1], [1], [0, 0, 0, 1, 1, 1], [0], [0]>} : vector<4x128x32xbf16>, vector<4x128x32xbf16>, vector<4x128x128xf32> -> vector<4x128x128xf32>
    "tpu.trace_stop"() : () -> ()
    %52 = tpu.iota {dimensions = array<i32: 0>} : vector<128x128xi32>
    %53 = tpu.iota {dimensions = array<i32: 1>} : vector<128x128xi32>
    %c127_i32 = arith.constant 127 : i32
    %54 = vector.broadcast %c127_i32 : i32 to vector<128x128xi32>
    %55 = arith.cmpi eq, %52, %54 : vector<128x128xi32>
    %c1_i32 = arith.constant 1 : i32
    %56 = vector.broadcast %c1_i32 : i32 to vector<128x128xi32>
    %57 = arith.addi %52, %56 : vector<128x128xi32>
    %c0_i32 = arith.constant 0 : i32
    %58 = vector.broadcast %c0_i32 : i32 to vector<128x128xi32>
    %59 = arith.select %55, %58, %57 : vector<128x128xi1>, vector<128x128xi32>
    %c1_i32_17 = arith.constant 1 : i32
    %60 = tpu.dynamic_rotate %51 by %c1_i32_17 dim 2 : vector<4x128x128xf32>, i32 -> vector<4x128x128xf32>
    %c0_i32_18 = arith.constant 0 : i32
    %61 = vector.broadcast %c0_i32_18 : i32 to vector<128x128xi32>
    %62 = arith.shrsi %59, %61 : vector<128x128xi32>
    %c1_i32_19 = arith.constant 1 : i32
    %63 = vector.broadcast %c1_i32_19 : i32 to vector<128x128xi32>
    %64 = arith.andi %62, %63 : vector<128x128xi32>
    %c1_i32_20 = arith.constant 1 : i32
    %65 = vector.broadcast %c1_i32_20 : i32 to vector<128x128xi32>
    %66 = arith.cmpi eq, %64, %65 : vector<128x128xi32>
    %67 = vector.shape_cast %66 : vector<128x128xi1> to vector<1x128x128xi1>
    %68 = vector.broadcast %67 : vector<1x128x128xi1> to vector<4x128x128xi1>
    %69 = arith.select %68, %60, %51 : vector<4x128x128xi1>, vector<4x128x128xf32>
    %c2_i32 = arith.constant 2 : i32
    %70 = tpu.dynamic_rotate %69 by %c2_i32 dim 2 : vector<4x128x128xf32>, i32 -> vector<4x128x128xf32>
    %c1_i32_21 = arith.constant 1 : i32
    %71 = vector.broadcast %c1_i32_21 : i32 to vector<128x128xi32>
    %72 = arith.shrsi %59, %71 : vector<128x128xi32>
    %c1_i32_22 = arith.constant 1 : i32
    %73 = vector.broadcast %c1_i32_22 : i32 to vector<128x128xi32>
    %74 = arith.andi %72, %73 : vector<128x128xi32>
    %c1_i32_23 = arith.constant 1 : i32
    %75 = vector.broadcast %c1_i32_23 : i32 to vector<128x128xi32>
    %76 = arith.cmpi eq, %74, %75 : vector<128x128xi32>
    %77 = vector.shape_cast %76 : vector<128x128xi1> to vector<1x128x128xi1>
    %78 = vector.broadcast %77 : vector<1x128x128xi1> to vector<4x128x128xi1>
    %79 = arith.select %78, %70, %69 : vector<4x128x128xi1>, vector<4x128x128xf32>
    %c4_i32 = arith.constant 4 : i32
    %80 = tpu.dynamic_rotate %79 by %c4_i32 dim 2 : vector<4x128x128xf32>, i32 -> vector<4x128x128xf32>
    %c2_i32_24 = arith.constant 2 : i32
    %81 = vector.broadcast %c2_i32_24 : i32 to vector<128x128xi32>
    %82 = arith.shrsi %59, %81 : vector<128x128xi32>
    %c1_i32_25 = arith.constant 1 : i32
    %83 = vector.broadcast %c1_i32_25 : i32 to vector<128x128xi32>
    %84 = arith.andi %82, %83 : vector<128x128xi32>
    %c1_i32_26 = arith.constant 1 : i32
    %85 = vector.broadcast %c1_i32_26 : i32 to vector<128x128xi32>
    %86 = arith.cmpi eq, %84, %85 : vector<128x128xi32>
    %87 = vector.shape_cast %86 : vector<128x128xi1> to vector<1x128x128xi1>
    %88 = vector.broadcast %87 : vector<1x128x128xi1> to vector<4x128x128xi1>
    %89 = arith.select %88, %80, %79 : vector<4x128x128xi1>, vector<4x128x128xf32>
    %c8_i32 = arith.constant 8 : i32
    %90 = tpu.dynamic_rotate %89 by %c8_i32 dim 2 : vector<4x128x128xf32>, i32 -> vector<4x128x128xf32>
    %c3_i32 = arith.constant 3 : i32
    %91 = vector.broadcast %c3_i32 : i32 to vector<128x128xi32>
    %92 = arith.shrsi %59, %91 : vector<128x128xi32>
    %c1_i32_27 = arith.constant 1 : i32
    %93 = vector.broadcast %c1_i32_27 : i32 to vector<128x128xi32>
    %94 = arith.andi %92, %93 : vector<128x128xi32>
    %c1_i32_28 = arith.constant 1 : i32
    %95 = vector.broadcast %c1_i32_28 : i32 to vector<128x128xi32>
    %96 = arith.cmpi eq, %94, %95 : vector<128x128xi32>
    %97 = vector.shape_cast %96 : vector<128x128xi1> to vector<1x128x128xi1>
    %98 = vector.broadcast %97 : vector<1x128x128xi1> to vector<4x128x128xi1>
    %99 = arith.select %98, %90, %89 : vector<4x128x128xi1>, vector<4x128x128xf32>
    %c16_i32 = arith.constant 16 : i32
    %100 = tpu.dynamic_rotate %99 by %c16_i32 dim 2 : vector<4x128x128xf32>, i32 -> vector<4x128x128xf32>
    %c4_i32_29 = arith.constant 4 : i32
    %101 = vector.broadcast %c4_i32_29 : i32 to vector<128x128xi32>
    %102 = arith.shrsi %59, %101 : vector<128x128xi32>
    %c1_i32_30 = arith.constant 1 : i32
    %103 = vector.broadcast %c1_i32_30 : i32 to vector<128x128xi32>
    %104 = arith.andi %102, %103 : vector<128x128xi32>
    %c1_i32_31 = arith.constant 1 : i32
    %105 = vector.broadcast %c1_i32_31 : i32 to vector<128x128xi32>
    %106 = arith.cmpi eq, %104, %105 : vector<128x128xi32>
    %107 = vector.shape_cast %106 : vector<128x128xi1> to vector<1x128x128xi1>
    %108 = vector.broadcast %107 : vector<1x128x128xi1> to vector<4x128x128xi1>
    %109 = arith.select %108, %100, %99 : vector<4x128x128xi1>, vector<4x128x128xf32>
    %c32_i32 = arith.constant 32 : i32
    %110 = tpu.dynamic_rotate %109 by %c32_i32 dim 2 : vector<4x128x128xf32>, i32 -> vector<4x128x128xf32>
    %c5_i32 = arith.constant 5 : i32
    %111 = vector.broadcast %c5_i32 : i32 to vector<128x128xi32>
    %112 = arith.shrsi %59, %111 : vector<128x128xi32>
    %c1_i32_32 = arith.constant 1 : i32
    %113 = vector.broadcast %c1_i32_32 : i32 to vector<128x128xi32>
    %114 = arith.andi %112, %113 : vector<128x128xi32>
    %c1_i32_33 = arith.constant 1 : i32
    %115 = vector.broadcast %c1_i32_33 : i32 to vector<128x128xi32>
    %116 = arith.cmpi eq, %114, %115 : vector<128x128xi32>
    %117 = vector.shape_cast %116 : vector<128x128xi1> to vector<1x128x128xi1>
    %118 = vector.broadcast %117 : vector<1x128x128xi1> to vector<4x128x128xi1>
    %119 = arith.select %118, %110, %109 : vector<4x128x128xi1>, vector<4x128x128xf32>
    %c64_i32 = arith.constant 64 : i32
    %120 = tpu.dynamic_rotate %119 by %c64_i32 dim 2 : vector<4x128x128xf32>, i32 -> vector<4x128x128xf32>
    %c6_i32 = arith.constant 6 : i32
    %121 = vector.broadcast %c6_i32 : i32 to vector<128x128xi32>
    %122 = arith.shrsi %59, %121 : vector<128x128xi32>
    %c1_i32_34 = arith.constant 1 : i32
    %123 = vector.broadcast %c1_i32_34 : i32 to vector<128x128xi32>
    %124 = arith.andi %122, %123 : vector<128x128xi32>
    %c1_i32_35 = arith.constant 1 : i32
    %125 = vector.broadcast %c1_i32_35 : i32 to vector<128x128xi32>
    %126 = arith.cmpi eq, %124, %125 : vector<128x128xi32>
    %127 = vector.shape_cast %126 : vector<128x128xi1> to vector<1x128x128xi1>
    %128 = vector.broadcast %127 : vector<1x128x128xi1> to vector<4x128x128xi1>
    %129 = arith.select %128, %120, %119 : vector<4x128x128xi1>, vector<4x128x128xf32>
    %c127_i32_36 = arith.constant 127 : i32
    %130 = tpu.dynamic_rotate %129 by %c127_i32_36 dim 1 : vector<4x128x128xf32>, i32 -> vector<4x128x128xf32>
    %cst_37 = arith.constant 0.000000e+00 : f32
    %131 = vector.broadcast %cst_37 : f32 to vector<4x128x128xf32>
    %132 = arith.cmpi sle, %53, %52 : vector<128x128xi32>
    %c1_i32_38 = arith.constant 1 : i32
    %133 = vector.broadcast %c1_i32_38 : i32 to vector<128x128xi32>
    %134 = arith.addi %52, %133 : vector<128x128xi32>
    %135 = arith.cmpi eq, %53, %134 : vector<128x128xi32>
    %136 = vector.shape_cast %135 : vector<128x128xi1> to vector<1x128x128xi1>
    %137 = vector.broadcast %136 : vector<1x128x128xi1> to vector<4x128x128xi1>
    %138 = arith.select %137, %131, %130 : vector<4x128x128xi1>, vector<4x128x128xf32>
    %139 = vector.shape_cast %132 : vector<128x128xi1> to vector<1x128x128xi1>
    %140 = vector.broadcast %139 : vector<1x128x128xi1> to vector<4x128x128xi1>
    %141 = arith.select %140, %129, %138 : vector<4x128x128xi1>, vector<4x128x128xf32>
    %142 = arith.addf %49, %141 : vector<4x128x128xf32>
    %cst_39 = arith.constant dense<0xFF800000> : vector<4x128xf32>
    %143 = vector.multi_reduction <maximumf>, %142, %cst_39 [2] : vector<4x128x128xf32> to vector<4x128xf32>
    %144 = vector.shape_cast %143 : vector<4x128xf32> to vector<4x128x1xf32>
    %145 = vector.broadcast %144 : vector<4x128x1xf32> to vector<4x128x128xf32>
    %146 = arith.subf %142, %145 : vector<4x128x128xf32>
    %147 = math.exp %146 : vector<4x128x128xf32>
    %cst_40 = arith.constant dense<0.000000e+00> : vector<4x128xf32>
    %148 = vector.multi_reduction <add>, %147, %cst_40 [2] : vector<4x128x128xf32> to vector<4x128xf32>
    %149 = vector.shape_cast %148 : vector<4x128xf32> to vector<4x128x1xf32>
    %150 = tpu.reciprocal %149 {approx = true} : vector<4x128x1xf32> -> vector<4x128x1xf32>
    %151 = vector.broadcast %150 : vector<4x128x1xf32> to vector<4x128x128xf32>
    %152 = arith.mulf %147, %151 : vector<4x128x128xf32>
    %153 = arith.truncf %152 : vector<4x128x128xf32> to vector<4x128x128xbf16>
    "tpu.trace_start"() <{level = 10 : i32, message = "hst,hte->hse"}> : () -> ()
    %cst_41 = arith.constant dense<0.000000e+00> : vector<4x128x32xf32>
    %154 = tpu.matmul %153, %36, %cst_41 {dimension_numbers = #tpu.dot_dimension_numbers<[2], [1], [1], [2], [0, 0, 0, 1, 1, 2], [0], [0]>} : vector<4x128x128xbf16>, vector<4x128x32xbf16>, vector<4x128x32xf32> -> vector<4x128x32xf32>
    "tpu.trace_stop"() : () -> ()
    %155 = arith.truncf %154 : vector<4x128x32xf32> to vector<4x128x32xbf16>
    %156 = vector.extract_strided_slice %155 {offsets = [0, 0, 0], sizes = [1, 128, 32], strides = [1, 1, 1]} : vector<4x128x32xbf16> to vector<1x128x32xbf16>
    %157 = vector.shape_cast %156 : vector<1x128x32xbf16> to vector<128x32xbf16>
    %158 = vector.extract_strided_slice %155 {offsets = [1, 0, 0], sizes = [1, 128, 32], strides = [1, 1, 1]} : vector<4x128x32xbf16> to vector<1x128x32xbf16>
    %159 = vector.shape_cast %158 : vector<1x128x32xbf16> to vector<128x32xbf16>
    %160 = vector.extract_strided_slice %155 {offsets = [2, 0, 0], sizes = [1, 128, 32], strides = [1, 1, 1]} : vector<4x128x32xbf16> to vector<1x128x32xbf16>
    %161 = vector.shape_cast %160 : vector<1x128x32xbf16> to vector<128x32xbf16>
    %162 = vector.extract_strided_slice %155 {offsets = [3, 0, 0], sizes = [1, 128, 32], strides = [1, 1, 1]} : vector<4x128x32xbf16> to vector<1x128x32xbf16>
    %163 = vector.shape_cast %162 : vector<1x128x32xbf16> to vector<128x32xbf16>
    %164 = tpu.concatenate %157, %159, %161, %163 in 1 : vector<128x32xbf16>, vector<128x32xbf16>, vector<128x32xbf16>, vector<128x32xbf16> -> vector<128x128xbf16>
    %c0_42 = arith.constant 0 : index
    %c0_43 = arith.constant 0 : index
    %165 = vector.load %arg6[%c0_42, %c0_43] : memref<128x128xbf16, #tpu.memory_space<vmem>>, vector<128x128xbf16>
    %cst_44 = arith.constant dense<0.000000e+00> : vector<128x128xf32>
    %166 = tpu.matmul %164, %165, %cst_44 {dimension_numbers = #tpu.dot_dimension_numbers<[1], [0], [0], [1], [0, 0, 1, 1], [], []>} : vector<128x128xbf16>, vector<128x128xbf16>, vector<128x128xf32> -> vector<128x128xf32>
    %167 = arith.addf %1, %166 : vector<128x128xf32>
    %c0_45 = arith.constant 0 : index
    %c0_46 = arith.constant 0 : index
    %168 = vector.load %arg7[%c0_45, %c0_46] : memref<1x128xf32, #tpu.memory_space<vmem>>, vector<1x128xf32>
    %c0_47 = arith.constant 0 : index
    %c0_48 = arith.constant 0 : index
    %169 = vector.load %arg8[%c0_47, %c0_48] : memref<1x128xf32, #tpu.memory_space<vmem>>, vector<1x128xf32>
    %cst_49 = arith.constant dense<0.000000e+00> : vector<128xf32>
    %170 = vector.multi_reduction <add>, %167, %cst_49 [1] : vector<128x128xf32> to vector<128xf32>
    %171 = vector.shape_cast %170 : vector<128xf32> to vector<128x1xf32>
    %cst_50 = arith.constant 1.280000e+02 : f32
    %172 = vector.broadcast %cst_50 : f32 to vector<128x1xf32>
    %173 = arith.divf %171, %172 : vector<128x1xf32>
    %174 = vector.broadcast %173 : vector<128x1xf32> to vector<128x128xf32>
    %175 = arith.subf %167, %174 : vector<128x128xf32>
    %176 = arith.mulf %175, %175 : vector<128x128xf32>
    %cst_51 = arith.constant dense<0.000000e+00> : vector<128xf32>
    %177 = vector.multi_reduction <add>, %176, %cst_51 [1] : vector<128x128xf32> to vector<128xf32>
    %178 = vector.shape_cast %177 : vector<128xf32> to vector<128x1xf32>
    %cst_52 = arith.constant 1.280000e+02 : f32
    %179 = vector.broadcast %cst_52 : f32 to vector<128x1xf32>
    %180 = arith.divf %178, %179 : vector<128x1xf32>
    %181 = vector.broadcast %173 : vector<128x1xf32> to vector<128x128xf32>
    %182 = arith.subf %167, %181 : vector<128x128xf32>
    %cst_53 = arith.constant 9.99999974E-6 : f32
    %183 = vector.broadcast %cst_53 : f32 to vector<128x1xf32>
    %184 = arith.addf %180, %183 : vector<128x1xf32>
    %185 = math.rsqrt %184 : vector<128x1xf32>
    %186 = vector.broadcast %185 : vector<128x1xf32> to vector<128x128xf32>
    %187 = arith.mulf %182, %186 : vector<128x128xf32>
    %188 = vector.broadcast %168 : vector<1x128xf32> to vector<128x128xf32>
    %189 = arith.mulf %187, %188 : vector<128x128xf32>
    %190 = vector.broadcast %169 : vector<1x128xf32> to vector<128x128xf32>
    %191 = arith.addf %189, %190 : vector<128x128xf32>
    %192 = arith.truncf %191 : vector<128x128xf32> to vector<128x128xbf16>
    %c0_54 = arith.constant 0 : index
    %c0_55 = arith.constant 0 : index
    %193 = vector.load %arg9[%c0_54, %c0_55] : memref<128x256xbf16, #tpu.memory_space<vmem>>, vector<128x256xbf16>
    %cst_56 = arith.constant dense<0.000000e+00> : vector<128x256xf32>
    %194 = tpu.matmul %192, %193, %cst_56 {dimension_numbers = #tpu.dot_dimension_numbers<[1], [0], [0], [1], [0, 0, 1, 1], [], []>} : vector<128x128xbf16>, vector<128x256xbf16>, vector<128x256xf32> -> vector<128x256xf32>
    %c0_57 = arith.constant 0 : index
    %c0_58 = arith.constant 0 : index
    %195 = vector.load %arg10[%c0_57, %c0_58] : memref<1x256xf32, #tpu.memory_space<vmem>>, vector<1x256xf32>
    %196 = vector.broadcast %195 : vector<1x256xf32> to vector<128x256xf32>
    %197 = arith.addf %194, %196 : vector<128x256xf32>
    %cst_59 = arith.constant 0.000000e+00 : f32
    %198 = vector.broadcast %cst_59 : f32 to vector<128x256xf32>
    %199 = arith.maximumf %197, %198 : vector<128x256xf32>
    %200 = arith.truncf %199 : vector<128x256xf32> to vector<128x256xbf16>
    %c0_60 = arith.constant 0 : index
    %c0_61 = arith.constant 0 : index
    %201 = vector.load %arg11[%c0_60, %c0_61] : memref<256x128xbf16, #tpu.memory_space<vmem>>, vector<256x128xbf16>
    %cst_62 = arith.constant dense<0.000000e+00> : vector<128x128xf32>
    %202 = tpu.matmul %200, %201, %cst_62 {dimension_numbers = #tpu.dot_dimension_numbers<[1], [0], [0], [1], [0, 0, 1, 1], [], []>} : vector<128x256xbf16>, vector<256x128xbf16>, vector<128x128xf32> -> vector<128x128xf32>
    %c0_63 = arith.constant 0 : index
    %c0_64 = arith.constant 0 : index
    %203 = vector.load %arg12[%c0_63, %c0_64] : memref<1x128xf32, #tpu.memory_space<vmem>>, vector<1x128xf32>
    %204 = vector.broadcast %203 : vector<1x128xf32> to vector<128x128xf32>
    %205 = arith.addf %202, %204 : vector<128x128xf32>
    %206 = arith.addf %191, %205 : vector<128x128xf32>
    %c0_65 = arith.constant 0 : index
    %c0_66 = arith.constant 0 : index
    %207 = vector.load %arg13[%c0_65, %c0_66] : memref<1x128xf32, #tpu.memory_space<vmem>>, vector<1x128xf32>
    %c0_67 = arith.constant 0 : index
    %c0_68 = arith.constant 0 : index
    %208 = vector.load %arg14[%c0_67, %c0_68] : memref<1x128xf32, #tpu.memory_space<vmem>>, vector<1x128xf32>
    %cst_69 = arith.constant dense<0.000000e+00> : vector<128xf32>
    %209 = vector.multi_reduction <add>, %206, %cst_69 [1] : vector<128x128xf32> to vector<128xf32>
    %210 = vector.shape_cast %209 : vector<128xf32> to vector<128x1xf32>
    %cst_70 = arith.constant 1.280000e+02 : f32
    %211 = vector.broadcast %cst_70 : f32 to vector<128x1xf32>
    %212 = arith.divf %210, %211 : vector<128x1xf32>
    %213 = vector.broadcast %212 : vector<128x1xf32> to vector<128x128xf32>
    %214 = arith.subf %206, %213 : vector<128x128xf32>
    %215 = arith.mulf %214, %214 : vector<128x128xf32>
    %cst_71 = arith.constant dense<0.000000e+00> : vector<128xf32>
    %216 = vector.multi_reduction <add>, %215, %cst_71 [1] : vector<128x128xf32> to vector<128xf32>
    %217 = vector.shape_cast %216 : vector<128xf32> to vector<128x1xf32>
    %cst_72 = arith.constant 1.280000e+02 : f32
    %218 = vector.broadcast %cst_72 : f32 to vector<128x1xf32>
    %219 = arith.divf %217, %218 : vector<128x1xf32>
    %220 = vector.broadcast %212 : vector<128x1xf32> to vector<128x128xf32>
    %221 = arith.subf %206, %220 : vector<128x128xf32>
    %cst_73 = arith.constant 9.99999974E-6 : f32
    %222 = vector.broadcast %cst_73 : f32 to vector<128x1xf32>
    %223 = arith.addf %219, %222 : vector<128x1xf32>
    %224 = math.rsqrt %223 : vector<128x1xf32>
    %225 = vector.broadcast %224 : vector<128x1xf32> to vector<128x128xf32>
    %226 = arith.mulf %221, %225 : vector<128x128xf32>
    %227 = vector.broadcast %207 : vector<1x128xf32> to vector<128x128xf32>
    %228 = arith.mulf %226, %227 : vector<128x128xf32>
    %229 = vector.broadcast %208 : vector<1x128xf32> to vector<128x128xf32>
    %230 = arith.addf %228, %229 : vector<128x128xf32>
    %c0_74 = arith.constant 0 : index
    %c0_75 = arith.constant 0 : index
    %c0_76 = arith.constant 0 : index
    %231 = vector.load %arg15[%c0_74, %c0_75, %c0_76] : memref<1x128x128xf32, #tpu.memory_space<vmem>>, vector<1x128x128xf32>
    %232 = vector.shape_cast %231 : vector<1x128x128xf32> to vector<128x128xf32>
    %233 = vector.shape_cast %230 : vector<128x128xf32> to vector<1x128x128xf32>
    tpu.vector_store %arg15[%c0_74, %c0_75, %c0_76], %233 {strides = array<i32>} : memref<1x128x128xf32, #tpu.memory_space<vmem>>, vector<1x128x128xf32>,
    return
  }
  func.func @transform_0(%arg0: i32) -> (i32, i32, i32) {
    %c0_i32 = arith.constant 0 : i32
    %c0_i32_0 = arith.constant 0 : i32
    %c0_i32_1 = arith.constant 0 : i32
    return %arg0, %c0_i32, %c0_i32_0 : i32, i32, i32
  }
  func.func @transform_1(%arg0: i32) -> (i32, i32, i32) {
    %c0_i32 = arith.constant 0 : i32
    %c0_i32_0 = arith.constant 0 : i32
    %c0_i32_1 = arith.constant 0 : i32
    %c0_i32_2 = arith.constant 0 : i32
    return %c0_i32, %c0_i32_0, %c0_i32_1 : i32, i32, i32
  }
  func.func @transform_2(%arg0: i32) -> (i32, i32, i32) {
    %c0_i32 = arith.constant 0 : i32
    %c0_i32_0 = arith.constant 0 : i32
    %c0_i32_1 = arith.constant 0 : i32
    %c0_i32_2 = arith.constant 0 : i32
    return %c0_i32, %c0_i32_0, %c0_i32_1 : i32, i32, i32
  }
  func.func @transform_3(%arg0: i32) -> (i32, i32, i32) {
    %c0_i32 = arith.constant 0 : i32
    %c0_i32_0 = arith.constant 0 : i32
    %c0_i32_1 = arith.constant 0 : i32
    %c0_i32_2 = arith.constant 0 : i32
    return %c0_i32, %c0_i32_0, %c0_i32_1 : i32, i32, i32
  }
  func.func @transform_4(%arg0: i32) -> (i32, i32) {
    %c0_i32 = arith.constant 0 : i32
    %c0_i32_0 = arith.constant 0 : i32
    %c0_i32_1 = arith.constant 0 : i32
    return %c0_i32, %c0_i32_0 : i32, i32
  }
  func.func @transform_5(%arg0: i32) -> (i32, i32) {
    %c0_i32 = arith.constant 0 : i32
    %c0_i32_0 = arith.constant 0 : i32
    %c0_i32_1 = arith.constant 0 : i32
    return %c0_i32, %c0_i32_0 : i32, i32
  }
  func.func @transform_6(%arg0: i32) -> (i32, i32) {
    %c0_i32 = arith.constant 0 : i32
    %c0_i32_0 = arith.constant 0 : i32
    %c0_i32_1 = arith.constant 0 : i32
    return %c0_i32, %c0_i32_0 : i32, i32
  }
  func.func @transform_7(%arg0: i32) -> (i32, i32) {
    %c0_i32 = arith.constant 0 : i32
    %c0_i32_0 = arith.constant 0 : i32
    %c0_i32_1 = arith.constant 0 : i32
    return %c0_i32, %c0_i32_0 : i32, i32
  }
  func.func @transform_8(%arg0: i32) -> (i32, i32) {
    %c0_i32 = arith.constant 0 : i32
    %c0_i32_0 = arith.constant 0 : i32
    %c0_i32_1 = arith.constant 0 : i32
    return %c0_i32, %c0_i32_0 : i32, i32
  }
  func.func @transform_9(%arg0: i32) -> (i32, i32) {
    %c0_i32 = arith.constant 0 : i32
    %c0_i32_0 = arith.constant 0 : i32
    %c0_i32_1 = arith.constant 0 : i32
    return %c0_i32, %c0_i32_0 : i32, i32
  }
  func.func @transform_10(%arg0: i32) -> (i32, i32) {
    %c0_i32 = arith.constant 0 : i32
    %c0_i32_0 = arith.constant 0 : i32
    %c0_i32_1 = arith.constant 0 : i32
    return %c0_i32, %c0_i32_0 : i32, i32
  }
  func.func @transform_11(%arg0: i32) -> (i32, i32) {
    %c0_i32 = arith.constant 0 : i32
    %c0_i32_0 = arith.constant 0 : i32
    %c0_i32_1 = arith.constant 0 : i32
    return %c0_i32, %c0_i32_0 : i32, i32
  }
  func.func @transform_12(%arg0: i32) -> (i32, i32) {
    %c0_i32 = arith.constant 0 : i32
    %c0_i32_0 = arith.constant 0 : i32
    %c0_i32_1 = arith.constant 0 : i32
    return %c0_i32, %c0_i32_0 : i32, i32
  }
  func.func @transform_13(%arg0: i32) -> (i32, i32) {
    %c0_i32 = arith.constant 0 : i32
    %c0_i32_0 = arith.constant 0 : i32
    %c0_i32_1 = arith.constant 0 : i32
    return %c0_i32, %c0_i32_0 : i32, i32
  }
  func.func @transform_14(%arg0: i32) -> (i32, i32, i32) {
    %c0_i32 = arith.constant 0 : i32
    %c0_i32_0 = arith.constant 0 : i32
    %c0_i32_1 = arith.constant 0 : i32
    return %arg0, %c0_i32, %c0_i32_0 : i32, i32, i32
  }
}

</mosaic_0001>

<llo_original>
// kernel: tpu_custom_call.1
$region0: #{tpu_custom_call.1}
  #allocation0 [shape = 'u32[]', space=smem, size = 0x4, offset = 0x4, fixed_abs, tag = 'smem constant byte address 0x4 - core index']
  #allocation1 [shape = 'u32[72,128]{1,0:T(1,128)}', space=vmem, size = 0x9000, scoped, tag = 'internal scratch']
  %s0 = inlined_call_operand.vmem [shape: f32[2,128,128], index: 0, kind: input, shape index: {}]
  %s1 = inlined_call_operand.vmem [shape: bf16[4,128,32], index: 1, kind: input, shape index: {}]
  %s2 = inlined_call_operand.hbm [shape: f32[4,1,32], index: 2, kind: input, shape index: {}]
  %s3 = inlined_call_operand.hbm [shape: f32[4,1,32], index: 3, kind: input, shape index: {}]
  %s4 = inlined_call_operand.hbm [shape: bf16[128,384], index: 4, kind: input, shape index: {}]
  %s5 = inlined_call_operand.vmem [shape: bf16[128,128], index: 5, kind: input, shape index: {}]
  %s6 = inlined_call_operand.vmem [shape: f32[1,128], index: 6, kind: input, shape index: {}]
  %s7 = inlined_call_operand.hbm [shape: f32[1,128], index: 7, kind: input, shape index: {}]
  %s8 = inlined_call_operand.hbm [shape: bf16[128,256], index: 8, kind: input, shape index: {}]
  %s9 = inlined_call_operand.vmem [shape: f32[1,256], index: 9, kind: input, shape index: {}]
  %s10 = inlined_call_operand.hbm [shape: bf16[256,128], index: 10, kind: input, shape index: {}]
  %s11 = inlined_call_operand.vmem [shape: f32[1,128], index: 11, kind: input, shape index: {}]
  %s12 = inlined_call_operand.vmem [shape: f32[1,128], index: 12, kind: input, shape index: {}]
  %s13 = inlined_call_operand.vmem [shape: f32[1,128], index: 13, kind: input, shape index: {}]
  %s14 = inlined_call_operand.hbm [shape: f32[2,128,128], index: 14, kind: output, shape index: {}]
  %s15 = sld [smem:[#allocation0]]
  $region113: #{tpu_custom_call.1} parent=0
    _
  %s17 = ssub.s32 1, %s15
  %s18 = scalar_select 0, %s17, %s15
  $region1: #{tpu_custom_call.1} parent=0
    #allocation2 [shape = 'u8[2048]{0}', space=vmem, size = 0x800, scoped, tag = 'input window, operand 2, single buffered']
    #allocation3 [shape = 's32[2]{0}', space=sflag, size = 0x8, scoped, tag = 'scoped memory for tpu_custom_call.1']
    #allocation4 [shape = 's32[2]{0}', space=sflag, size = 0x8, scoped, tag = 'scoped memory for tpu_custom_call.1']
    #allocation5 [shape = 'u8[2048]{0}', space=vmem, size = 0x800, scoped, tag = 'input window, operand 3, single buffered']
    #allocation6 [shape = 's32[1]{0}', space=sflag, size = 0x4, scoped, tag = 'scoped memory for tpu_custom_call.1']
    #allocation7 [shape = 'u8[98304]{0}', space=vmem, size = 0x18000, scoped, tag = 'input window, operand 4, single buffered']
    #allocation8 [shape = 'u8[512]{0}', space=vmem, size = 0x400, scoped, tag = 'input window, operand 7, single buffered']
    #allocation9 [shape = 's32[1]{0}', space=sflag, size = 0x4, scoped, tag = 'scoped memory for tpu_custom_call.1']
    #allocation10 [shape = 'u8[65536]{0}', space=vmem, size = 0x10000, scoped, tag = 'input window, operand 8, single buffered']
    #allocation11 [shape = 'u8[65536]{0}', space=vmem, size = 0x10000, scoped, tag = 'input window, operand 10, single buffered']
    #allocation12 [shape = 's32[1]{0}', space=sflag, size = 0x4, scoped, tag = 'scoped memory for tpu_custom_call.1']
    #allocation13 [shape = 'u8[131072]{0}', space=vmem, size = 0x20000, scoped, tag = 'output window, operand 0']
    %19 = vsyncpa [#allocation3], 0
    %20 = vsyncpa [#allocation6], 0
    %21 = vsyncpa [#allocation9], 0
    %22 = vsyncpa [#allocation12], 0
    %23 = vsyncpa [#allocation4], 0
    %s24 = scalar_lea.sflag [#allocation4], 1
    %25 = vsyncpa %s24, 0
    loop: start=0, step=1, limit=4
    $region2: #{tpu_custom_call.1} parent=1 // loop_pre_header
      _
    $region3: #{tpu_custom_call.1} parent=1 // loop_header
      %s27 = sphi 0, %s31
      %p28 = scmp.ge.s32.totalorder %s27, 4
      %s37 = sphi 0, %s39
      %s40 = sphi 0, %s37
      %s41 = sphi 0, %s40
      %s57 = sphi 0, %s41
      %s61 = sphi 0, %s61
      %s63 = sphi 0, %s61
      %s64 = sphi 0, %s63
      %s78 = sphi 0, %s64
      %s82 = sphi 0, %s82
      %s84 = sphi 0, %s82
      %s85 = sphi 0, %s84
      %s99 = sphi 0, %s85
      %s103 = sphi 0, %s103
      %s105 = sphi 0, %s103
      %s106 = sphi 0, %s105
      %s120 = sphi 0, %s106
      %s124 = sphi 0, %s124
      %s126 = sphi 0, %s124
      %s127 = sphi 0, %s126
      %s141 = sphi 0, %s127
      %s145 = sphi 0, %s145
      %s147 = sphi 0, %s145
      %s148 = sphi 0, %s147
      %s162 = sphi 0, %s148
      %s166 = sphi 0, %s166
      %s168 = sphi 0, %s166
      %s169 = sphi 0, %s168
      %s183 = sphi 0, %s169
      %s187 = sphi 0, %s187
      %s189 = sphi 0, %s187
      %s190 = sphi 0, %s189
      %s204 = sphi 0, %s190
      %s208 = sphi 0, %s208
      %s210 = sphi 0, %s208
      %s211 = sphi 0, %s210
      %s225 = sphi 0, %s211
      %s229 = sphi 0, %s229
      %s231 = sphi 0, %s229
      %s232 = sphi 0, %s231
      %s246 = sphi 0, %s232
      %s250 = sphi 0, %s250
      %s252 = sphi 0, %s250
      %s253 = sphi 0, %s252
      %s267 = sphi 0, %s253
      %s271 = sphi 0, %s271
      %s273 = sphi 0, %s271
      %s274 = sphi 0, %s273
      %s288 = sphi 0, %s274
      %s292 = sphi 0, %s292
      %s294 = sphi 0, %s292
      %s295 = sphi 0, %s294
      %s309 = sphi 0, %s295
      %s313 = sphi 0, %s313
      %s315 = sphi 0, %s313
      %s316 = sphi 0, %s315
      %s330 = sphi 0, %s316
      %s336 = sphi 0, %s338
      %s339 = sphi 0, %s336
      %s340 = sphi 0, %s339
      %s356 = sphi 0, %s340
    $region4: #{tpu_custom_call.1} parent=1 // loop_header_branch
      %30 = sbr.rel (%p28) target = $region8
    $region5: #{tpu_custom_call.1} parent=1 // loop_body
      %s32 = ssub.s32 %s27, 1
      %s33 = ssub.s32 %s27, 2
      %s34 = sadd.s32 %s27, 1
      %s35 = ssub.s32 %s27, %s34
      %p36 = scmp.eq.s32.totalorder %s35, 0
      %s38 = sadd.s32 %s37, 1
      %s39 = scalar_select %p36, %s37, %s38
      %p42 = pneg %p36
      %p43 = scmp.eq.s32.totalorder %s27, 1
      %p44 = por %p42, %p43
      %p45 = scmp.ne.s32.totalorder %s37, %s40
      %p46 = scmp.eq.s32.totalorder %s27, 0
      %p47 = por %p45, %p46
      %p48 = scmp.ne.s32.totalorder %s37, %s40
      %p49 = scmp.eq.s32.totalorder %s32, 1
      %p50 = por %p48, %p49
      %p51 = scmp.ne.s32.totalorder %s40, %s41
      %p52 = scmp.eq.s32.totalorder %s32, 0
      %p53 = por %p51, %p52
      %p54 = scmp.ne.s32.totalorder %s40, %s41
      %p55 = scmp.eq.s32.totalorder %s33, 1
      %p56 = por %p54, %p55
      %p58 = scmp.ne.s32.totalorder %s41, %s57
      %p59 = scmp.eq.s32.totalorder %s33, 0
      %p60 = por %p58, %p59
      %s62 = sadd.s32 %s61, 1
      %p65 = scmp.eq.s32.totalorder %s27, 1
      %p66 = scmp.ne.s32.totalorder %s61, %s63
      %p67 = scmp.eq.s32.totalorder %s27, 0
      %p68 = por %p66, %p67
      %p69 = scmp.ne.s32.totalorder %s61, %s63
      %p70 = scmp.eq.s32.totalorder %s32, 1
      %p71 = por %p69, %p70
      %p72 = scmp.ne.s32.totalorder %s63, %s64
      %p73 = scmp.eq.s32.totalorder %s32, 0
      %p74 = por %p72, %p73
      %p75 = scmp.ne.s32.totalorder %s63, %s64
      %p76 = scmp.eq.s32.totalorder %s33, 1
      %p77 = por %p75, %p76
      %p79 = scmp.ne.s32.totalorder %s64, %s78
      %p80 = scmp.eq.s32.totalorder %s33, 0
      %p81 = por %p79, %p80
      %s83 = sadd.s32 %s82, 1
      %p86 = scmp.eq.s32.totalorder %s27, 1
      %p87 = scmp.ne.s32.totalorder %s82, %s84
      %p88 = scmp.eq.s32.totalorder %s27, 0
      %p89 = por %p87, %p88
      %p90 = scmp.ne.s32.totalorder %s82, %s84
      %p91 = scmp.eq.s32.totalorder %s32, 1
      %p92 = por %p90, %p91
      %p93 = scmp.ne.s32.totalorder %s84, %s85
      %p94 = scmp.eq.s32.totalorder %s32, 0
      %p95 = por %p93, %p94
      %p96 = scmp.ne.s32.totalorder %s84, %s85
      %p97 = scmp.eq.s32.totalorder %s33, 1
      %p98 = por %p96, %p97
      %p100 = scmp.ne.s32.totalorder %s85, %s99
      %p101 = scmp.eq.s32.totalorder %s33, 0
      %p102 = por %p100, %p101
      %s104 = sadd.s32 %s103, 1
      %p107 = scmp.eq.s32.totalorder %s27, 1
      %p108 = scmp.ne.s32.totalorder %s103, %s105
      %p109 = scmp.eq.s32.totalorder %s27, 0
      %p110 = por %p108, %p109
      %p111 = scmp.ne.s32.totalorder %s103, %s105
      %p112 = scmp.eq.s32.totalorder %s32, 1
      %p113 = por %p111, %p112
      %p114 = scmp.ne.s32.totalorder %s105, %s106
      %p115 = scmp.eq.s32.totalorder %s32, 0
      %p116 = por %p114, %p115
      %p117 = scmp.ne.s32.totalorder %s105, %s106
      %p118 = scmp.eq.s32.totalorder %s33, 1
      %p119 = por %p117, %p118
      %p121 = scmp.ne.s32.totalorder %s106, %s120
      %p122 = scmp.eq.s32.totalorder %s33, 0
      %p123 = por %p121, %p122
      %s125 = sadd.s32 %s124, 1
      %p128 = scmp.eq.s32.totalorder %s27, 1
      %p129 = scmp.ne.s32.totalorder %s124, %s126
      %p130 = scmp.eq.s32.totalorder %s27, 0
      %p131 = por %p129, %p130
      %p132 = scmp.ne.s32.totalorder %s124, %s126
      %p133 = scmp.eq.s32.totalorder %s32, 1
      %p134 = por %p132, %p133
      %p135 = scmp.ne.s32.totalorder %s126, %s127
      %p136 = scmp.eq.s32.totalorder %s32, 0
      %p137 = por %p135, %p136
      %p138 = scmp.ne.s32.totalorder %s126, %s127
      %p139 = scmp.eq.s32.totalorder %s33, 1
      %p140 = por %p138, %p139
      %p142 = scmp.ne.s32.totalorder %s127, %s141
      %p143 = scmp.eq.s32.totalorder %s33, 0
      %p144 = por %p142, %p143
      %s146 = sadd.s32 %s145, 1
      %p149 = scmp.eq.s32.totalorder %s27, 1
      %p150 = scmp.ne.s32.totalorder %s145, %s147
      %p151 = scmp.eq.s32.totalorder %s27, 0
      %p152 = por %p150, %p151
      %p153 = scmp.ne.s32.totalorder %s145, %s147
      %p154 = scmp.eq.s32.totalorder %s32, 1
      %p155 = por %p153, %p154
      %p156 = scmp.ne.s32.totalorder %s147, %s148
      %p157 = scmp.eq.s32.totalorder %s32, 0
      %p158 = por %p156, %p157
      %p159 = scmp.ne.s32.totalorder %s147, %s148
      %p160 = scmp.eq.s32.totalorder %s33, 1
      %p161 = por %p159, %p160
      %p163 = scmp.ne.s32.totalorder %s148, %s162
      %p164 = scmp.eq.s32.totalorder %s33, 0
      %p165 = por %p163, %p164
      %s167 = sadd.s32 %s166, 1
      %p170 = scmp.eq.s32.totalorder %s27, 1
      %p171 = scmp.ne.s32.totalorder %s166, %s168
      %p172 = scmp.eq.s32.totalorder %s27, 0
      %p173 = por %p171, %p172
      %p174 = scmp.ne.s32.totalorder %s166, %s168
      %p175 = scmp.eq.s32.totalorder %s32, 1
      %p176 = por %p174, %p175
      %p177 = scmp.ne.s32.totalorder %s168, %s169
      %p178 = scmp.eq.s32.totalorder %s32, 0
      %p179 = por %p177, %p178
      %p180 = scmp.ne.s32.totalorder %s168, %s169
      %p181 = scmp.eq.s32.totalorder %s33, 1
      %p182 = por %p180, %p181
      %p184 = scmp.ne.s32.totalorder %s169, %s183
      %p185 = scmp.eq.s32.totalorder %s33, 0
      %p186 = por %p184, %p185
      %s188 = sadd.s32 %s187, 1
      %p191 = scmp.eq.s32.totalorder %s27, 1
      %p192 = scmp.ne.s32.totalorder %s187, %s189
      %p193 = scmp.eq.s32.totalorder %s27, 0
      %p194 = por %p192, %p193
      %p195 = scmp.ne.s32.totalorder %s187, %s189
      %p196 = scmp.eq.s32.totalorder %s32, 1
      %p197 = por %p195, %p196
      %p198 = scmp.ne.s32.totalorder %s189, %s190
      %p199 = scmp.eq.s32.totalorder %s32, 0
      %p200 = por %p198, %p199
      %p201 = scmp.ne.s32.totalorder %s189, %s190
      %p202 = scmp.eq.s32.totalorder %s33, 1
      %p203 = por %p201, %p202
      %p205 = scmp.ne.s32.totalorder %s190, %s204
      %p206 = scmp.eq.s32.totalorder %s33, 0
      %p207 = por %p205, %p206
      %s209 = sadd.s32 %s208, 1
      %p212 = scmp.eq.s32.totalorder %s27, 1
      %p213 = scmp.ne.s32.totalorder %s208, %s210
      %p214 = scmp.eq.s32.totalorder %s27, 0
      %p215 = por %p213, %p214
      %p216 = scmp.ne.s32.totalorder %s208, %s210
      %p217 = scmp.eq.s32.totalorder %s32, 1
      %p218 = por %p216, %p217
      %p219 = scmp.ne.s32.totalorder %s210, %s211
      %p220 = scmp.eq.s32.totalorder %s32, 0
      %p221 = por %p219, %p220
      %p222 = scmp.ne.s32.totalorder %s210, %s211
      %p223 = scmp.eq.s32.totalorder %s33, 1
      %p224 = por %p222, %p223
      %p226 = scmp.ne.s32.totalorder %s211, %s225
      %p227 = scmp.eq.s32.totalorder %s33, 0
      %p228 = por %p226, %p227
      %s230 = sadd.s32 %s229, 1
      %p233 = scmp.eq.s32.totalorder %s27, 1
      %p234 = scmp.ne.s32.totalorder %s229, %s231
      %p235 = scmp.eq.s32.totalorder %s27, 0
      %p236 = por %p234, %p235
      %p237 = scmp.ne.s32.totalorder %s229, %s231
      %p238 = scmp.eq.s32.totalorder %s32, 1
      %p239 = por %p237, %p238
      %p240 = scmp.ne.s32.totalorder %s231, %s232
      %p241 = scmp.eq.s32.totalorder %s32, 0
      %p242 = por %p240, %p241
      %p243 = scmp.ne.s32.totalorder %s231, %s232
      %p244 = scmp.eq.s32.totalorder %s33, 1
      %p245 = por %p243, %p244
      %p247 = scmp.ne.s32.totalorder %s232, %s246
      %p248 = scmp.eq.s32.totalorder %s33, 0
      %p249 = por %p247, %p248
      %s251 = sadd.s32 %s250, 1
      %p254 = scmp.eq.s32.totalorder %s27, 1
      %p255 = scmp.ne.s32.totalorder %s250, %s252
      %p256 = scmp.eq.s32.totalorder %s27, 0
      %p257 = por %p255, %p256
      %p258 = scmp.ne.s32.totalorder %s250, %s252
      %p259 = scmp.eq.s32.totalorder %s32, 1
      %p260 = por %p258, %p259
      %p261 = scmp.ne.s32.totalorder %s252, %s253
      %p262 = scmp.eq.s32.totalorder %s32, 0
      %p263 = por %p261, %p262
      %p264 = scmp.ne.s32.totalorder %s252, %s253
      %p265 = scmp.eq.s32.totalorder %s33, 1
      %p266 = por %p264, %p265
      %p268 = scmp.ne.s32.totalorder %s253, %s267
      %p269 = scmp.eq.s32.totalorder %s33, 0
      %p270 = por %p268, %p269
      %s272 = sadd.s32 %s271, 1
      %p275 = scmp.eq.s32.totalorder %s27, 1
      %p276 = scmp.ne.s32.totalorder %s271, %s273
      %p277 = scmp.eq.s32.totalorder %s27, 0
      %p278 = por %p276, %p277
      %p279 = scmp.ne.s32.totalorder %s271, %s273
      %p280 = scmp.eq.s32.totalorder %s32, 1
      %p281 = por %p279, %p280
      %p282 = scmp.ne.s32.totalorder %s273, %s274
      %p283 = scmp.eq.s32.totalorder %s32, 0
      %p284 = por %p282, %p283
      %p285 = scmp.ne.s32.totalorder %s273, %s274
      %p286 = scmp.eq.s32.totalorder %s33, 1
      %p287 = por %p285, %p286
      %p289 = scmp.ne.s32.totalorder %s274, %s288
      %p290 = scmp.eq.s32.totalorder %s33, 0
      %p291 = por %p289, %p290
      %s293 = sadd.s32 %s292, 1
      %p296 = scmp.eq.s32.totalorder %s27, 1
      %p297 = scmp.ne.s32.totalorder %s292, %s294
      %p298 = scmp.eq.s32.totalorder %s27, 0
      %p299 = por %p297, %p298
      %p300 = scmp.ne.s32.totalorder %s292, %s294
      %p301 = scmp.eq.s32.totalorder %s32, 1
      %p302 = por %p300, %p301
      %p303 = scmp.ne.s32.totalorder %s294, %s295
      %p304 = scmp.eq.s32.totalorder %s32, 0
      %p305 = por %p303, %p304
      %p306 = scmp.ne.s32.totalorder %s294, %s295
      %p307 = scmp.eq.s32.totalorder %s33, 1
      %p308 = por %p306, %p307
      %p310 = scmp.ne.s32.totalorder %s295, %s309
      %p311 = scmp.eq.s32.totalorder %s33, 0
      %p312 = por %p310, %p311
      %s314 = sadd.s32 %s313, 1
      %p317 = scmp.eq.s32.totalorder %s27, 1
      %p318 = scmp.ne.s32.totalorder %s313, %s315
      %p319 = scmp.eq.s32.totalorder %s27, 0
      %p320 = por %p318, %p319
      %p321 = scmp.ne.s32.totalorder %s313, %s315
      %p322 = scmp.eq.s32.totalorder %s32, 1
      %p323 = por %p321, %p322
      %p324 = scmp.ne.s32.totalorder %s315, %s316
      %p325 = scmp.eq.s32.totalorder %s32, 0
      %p326 = por %p324, %p325
      %p327 = scmp.ne.s32.totalorder %s315, %s316
      %p328 = scmp.eq.s32.totalorder %s33, 1
      %p329 = por %p327, %p328
      %p331 = scmp.ne.s32.totalorder %s316, %s330
      %p332 = scmp.eq.s32.totalorder %s33, 0
      %p333 = por %p331, %p332
      %s334 = ssub.s32 %s27, %s34
      %p335 = scmp.eq.s32.totalorder %s334, 0
      %s337 = sadd.s32 %s336, 1
      %s338 = scalar_select %p335, %s336, %s337
      %p341 = pneg %p335
      %p342 = scmp.eq.s32.totalorder %s27, 1
      %p343 = por %p341, %p342
      %p344 = scmp.ne.s32.totalorder %s336, %s339
      %p345 = scmp.eq.s32.totalorder %s27, 0
      %p346 = por %p344, %p345
      %p347 = scmp.ne.s32.totalorder %s336, %s339
      %p348 = scmp.eq.s32.totalorder %s32, 1
      %p349 = por %p347, %p348
      %p350 = scmp.ne.s32.totalorder %s339, %s340
      %p351 = scmp.eq.s32.totalorder %s32, 0
      %p352 = por %p350, %p351
      %p353 = scmp.ne.s32.totalorder %s339, %s340
      %p354 = scmp.eq.s32.totalorder %s33, 1
      %p355 = por %p353, %p354
      %p357 = scmp.ne.s32.totalorder %s340, %s356
      %p358 = scmp.eq.s32.totalorder %s33, 0
      %p359 = por %p357, %p358
      %p360 = scmp.le.s32.totalorder 1, %s27
      %p361 = scmp.lt.s32.totalorder %s27, 3
      %p362 = pnand %p360, %p361
      %p363 = pneg %p362
      // Predicated region
      $region9: #{tpu_custom_call.1} parent=5 // pred_check
        _
      $region10: #{tpu_custom_call.1} parent=5 // pred_check_branch
        %365 = sbr.rel (%p362) target = $region12
      $region11: #{tpu_custom_call.1} parent=5 // pred_region
        %s366 = ssub.s32 %s27, 1
        // Predicated region
        $region13: #{tpu_custom_call.1} parent=11 // pred_check
          %p367 = pneg %p74
        $region14: #{tpu_custom_call.1} parent=11 // pred_check_branch
          %369 = sbr.rel (%p367) target = $region16
        $region15: #{tpu_custom_call.1} parent=11 // pred_region
          _
        $region16: #{tpu_custom_call.1} parent=11 // pred_fallthru
          _
        // Predicated region
        $region17: #{tpu_custom_call.1} parent=11 // pred_check
          %p370 = pneg %p95
        $region18: #{tpu_custom_call.1} parent=11 // pred_check_branch
          %372 = sbr.rel (%p370) target = $region20
        $region19: #{tpu_custom_call.1} parent=11 // pred_region
          %374 = vsyncadd [#allocation3], 0
          %s375 = sshll.u32 %s2, 4
          %s376 = int_to_ptr.hbm [resolvable:$true] %s375
          %s377 = sshll.u32 [#allocation2], 4
          %s378 = int_to_ptr.vmem [resolvable:$true] %s377
          %383 = dma.hbm_to_vmem [thread:$0]  %s376, 64, %s378, [#allocation3], 16, 16, 1
        $region20: #{tpu_custom_call.1} parent=11 // pred_fallthru
          _
        // Predicated region
        $region21: #{tpu_custom_call.1} parent=11 // pred_check
          %p384 = pneg %p116
        $region22: #{tpu_custom_call.1} parent=11 // pred_check_branch
          %386 = sbr.rel (%p384) target = $region24
        $region23: #{tpu_custom_call.1} parent=11 // pred_region
          %388 = vsyncadd [#allocation6], 0
          %s389 = sshll.u32 %s3, 4
          %s390 = int_to_ptr.hbm [resolvable:$true] %s389
          %s391 = sshll.u32 [#allocation5], 4
          %s392 = int_to_ptr.vmem [resolvable:$true] %s391
          %397 = dma.hbm_to_vmem [thread:$0]  %s390, 64, %s392, [#allocation6], 16, 16, 1
        $region24: #{tpu_custom_call.1} parent=11 // pred_fallthru
          _
        // Predicated region
        $region25: #{tpu_custom_call.1} parent=11 // pred_check
          %p398 = pneg %p137
        $region26: #{tpu_custom_call.1} parent=11 // pred_check_branch
          %400 = sbr.rel (%p398) target = $region28
        $region27: #{tpu_custom_call.1} parent=11 // pred_region
          %402 = vsyncadd [#allocation6], 0
          %s403 = sshll.u32 %s4, 4
          %s404 = int_to_ptr.hbm [resolvable:$true] %s403
          %s405 = sshll.u32 [#allocation7], 4
          %s406 = int_to_ptr.vmem [resolvable:$true] %s405
          %411 = dma.hbm_to_vmem [thread:$0]  %s404, 3072, %s406, [#allocation6], 192, 192, 12
        $region28: #{tpu_custom_call.1} parent=11 // pred_fallthru
          _
        // Predicated region
        $region29: #{tpu_custom_call.1} parent=11 // pred_check
          %p412 = pneg %p158
        $region30: #{tpu_custom_call.1} parent=11 // pred_check_branch
          %414 = sbr.rel (%p412) target = $region32
        $region31: #{tpu_custom_call.1} parent=11 // pred_region
          _
        $region32: #{tpu_custom_call.1} parent=11 // pred_fallthru
          _
        // Predicated region
        $region33: #{tpu_custom_call.1} parent=11 // pred_check
          %p415 = pneg %p179
        $region34: #{tpu_custom_call.1} parent=11 // pred_check_branch
          %417 = sbr.rel (%p415) target = $region36
        $region35: #{tpu_custom_call.1} parent=11 // pred_region
          _
        $region36: #{tpu_custom_call.1} parent=11 // pred_fallthru
          _
        // Predicated region
        $region37: #{tpu_custom_call.1} parent=11 // pred_check
          %p418 = pneg %p200
        $region38: #{tpu_custom_call.1} parent=11 // pred_check_branch
          %420 = sbr.rel (%p418) target = $region40
        $region39: #{tpu_custom_call.1} parent=11 // pred_region
          %422 = vsyncadd [#allocation9], 0
          %s424 = sshll.u32 %s7, 4
          %s425 = int_to_ptr.hbm [resolvable:$true] %s424
          %s426 = sshll.u32 [#allocation8], 4
          %s427 = int_to_ptr.vmem [resolvable:$true] %s426
          %429 = dma.hbm_to_vmem [thread:$0]  %s425, 16, %s427, [#allocation9]
        $region40: #{tpu_custom_call.1} parent=11 // pred_fallthru
          _
        // Predicated region
        $region41: #{tpu_custom_call.1} parent=11 // pred_check
          %p430 = pneg %p221
        $region42: #{tpu_custom_call.1} parent=11 // pred_check_branch
          %432 = sbr.rel (%p430) target = $region44
        $region43: #{tpu_custom_call.1} parent=11 // pred_region
          %434 = vsyncadd [#allocation9], 0
          %s435 = sshll.u32 %s8, 4
          %s436 = int_to_ptr.hbm [resolvable:$true] %s435
          %s437 = sshll.u32 [#allocation10], 4
          %s438 = int_to_ptr.vmem [resolvable:$true] %s437
          %443 = dma.hbm_to_vmem [thread:$0]  %s436, 2048, %s438, [#allocation9], 128, 128, 8
        $region44: #{tpu_custom_call.1} parent=11 // pred_fallthru
          _
        // Predicated region
        $region45: #{tpu_custom_call.1} parent=11 // pred_check
          %p444 = pneg %p242
        $region46: #{tpu_custom_call.1} parent=11 // pred_check_branch
          %446 = sbr.rel (%p444) target = $region48
        $region47: #{tpu_custom_call.1} parent=11 // pred_region
          _
        $region48: #{tpu_custom_call.1} parent=11 // pred_fallthru
          _
        // Predicated region
        $region49: #{tpu_custom_call.1} parent=11 // pred_check
          %p447 = pneg %p263
        $region50: #{tpu_custom_call.1} parent=11 // pred_check_branch
          %449 = sbr.rel (%p447) target = $region52
        $region51: #{tpu_custom_call.1} parent=11 // pred_region
          %451 = vsyncadd [#allocation12], 0
          %s452 = sshll.u32 %s10, 4
          %s453 = int_to_ptr.hbm [resolvable:$true] %s452
          %s454 = sshll.u32 [#allocation11], 4
          %s455 = int_to_ptr.vmem [resolvable:$true] %s454
          %460 = dma.hbm_to_vmem [thread:$0]  %s453, 2048, %s455, [#allocation12], 64, 64, 4
        $region52: #{tpu_custom_call.1} parent=11 // pred_fallthru
          _
        // Predicated region
        $region53: #{tpu_custom_call.1} parent=11 // pred_check
          %p461 = pneg %p284
        $region54: #{tpu_custom_call.1} parent=11 // pred_check_branch
          %463 = sbr.rel (%p461) target = $region56
        $region55: #{tpu_custom_call.1} parent=11 // pred_region
          _
        $region56: #{tpu_custom_call.1} parent=11 // pred_fallthru
          _
        // Predicated region
        $region57: #{tpu_custom_call.1} parent=11 // pred_check
          %p464 = pneg %p305
        $region58: #{tpu_custom_call.1} parent=11 // pred_check_branch
          %466 = sbr.rel (%p464) target = $region60
        $region59: #{tpu_custom_call.1} parent=11 // pred_region
          _
        $region60: #{tpu_custom_call.1} parent=11 // pred_fallthru
          _
        // Predicated region
        $region61: #{tpu_custom_call.1} parent=11 // pred_check
          %p467 = pneg %p326
        $region62: #{tpu_custom_call.1} parent=11 // pred_check_branch
          %469 = sbr.rel (%p467) target = $region64
        $region63: #{tpu_custom_call.1} parent=11 // pred_region
          _
        $region64: #{tpu_custom_call.1} parent=11 // pred_fallthru
          _
      $region12: #{tpu_custom_call.1} parent=5 // pred_fallthru
        _
      %p470 = scmp.lt.s32.totalorder %s27, 2
      // Predicated region
      $region65: #{tpu_custom_call.1} parent=5 // pred_check
        %p471 = pneg %p470
      $region66: #{tpu_custom_call.1} parent=5 // pred_check_branch
        %473 = sbr.rel (%p471) target = $region68
      $region67: #{tpu_custom_call.1} parent=5 // pred_region
        // Predicated region
        $region69: #{tpu_custom_call.1} parent=67 // pred_check
          %p474 = pneg %p47
        $region70: #{tpu_custom_call.1} parent=67 // pred_check_branch
          %476 = sbr.rel (%p474) target = $region72
        $region71: #{tpu_custom_call.1} parent=67 // pred_region
          %p477 = scmp.lt.s32.totalorder %s27, 1
          %s478 = scalar_select %p477, %s27, 1
          %s479 = smul.addr %s478, 16
          %s480 = smul.addr %s479, 8
          %s481 = scalar_lea.vmem %s0, %s480
        $region72: #{tpu_custom_call.1} parent=67 // pred_fallthru
          _
      $region68: #{tpu_custom_call.1} parent=5 // pred_fallthru
        _
      %p482 = scmp.le.s32.totalorder 1, %s27
      %p483 = scmp.lt.s32.totalorder %s27, 3
      %p484 = pnand %p482, %p483
      %p485 = pneg %p484
      // Predicated region
      $region73: #{tpu_custom_call.1} parent=5 // pred_check
        _
      $region74: #{tpu_custom_call.1} parent=5 // pred_check_branch
        %487 = sbr.rel (%p484) target = $region76
      $region75: #{tpu_custom_call.1} parent=5 // pred_region
        %s488 = ssub.s32 %s27, 1
        // Predicated region
        $region77: #{tpu_custom_call.1} parent=75 // pred_check
          %p489 = pneg %p95
        $region78: #{tpu_custom_call.1} parent=75 // pred_check_branch
          %491 = sbr.rel (%p489) target = $region80
        $region79: #{tpu_custom_call.1} parent=75 // pred_region
          %493 = dma.done [#allocation3], 64
        $region80: #{tpu_custom_call.1} parent=75 // pred_fallthru
          _
        // Predicated region
        $region81: #{tpu_custom_call.1} parent=75 // pred_check
          %p494 = pneg %p116
        $region82: #{tpu_custom_call.1} parent=75 // pred_check_branch
          %496 = sbr.rel (%p494) target = $region84
        $region83: #{tpu_custom_call.1} parent=75 // pred_region
          %498 = dma.done [#allocation6], 64
        $region84: #{tpu_custom_call.1} parent=75 // pred_fallthru
          _
        // Predicated region
        $region85: #{tpu_custom_call.1} parent=75 // pred_check
          %p499 = pneg %p137
        $region86: #{tpu_custom_call.1} parent=75 // pred_check_branch
          %501 = sbr.rel (%p499) target = $region88
        $region87: #{tpu_custom_call.1} parent=75 // pred_region
          %503 = dma.done [#allocation6], 3072
        $region88: #{tpu_custom_call.1} parent=75 // pred_fallthru
          _
        // Predicated region
        $region89: #{tpu_custom_call.1} parent=75 // pred_check
          %p504 = pneg %p200
        $region90: #{tpu_custom_call.1} parent=75 // pred_check_branch
          %506 = sbr.rel (%p504) target = $region92
        $region91: #{tpu_custom_call.1} parent=75 // pred_region
          %508 = dma.done [#allocation9], 16
        $region92: #{tpu_custom_call.1} parent=75 // pred_fallthru
          _
        // Predicated region
        $region93: #{tpu_custom_call.1} parent=75 // pred_check
          %p509 = pneg %p221
        $region94: #{tpu_custom_call.1} parent=75 // pred_check_branch
          %511 = sbr.rel (%p509) target = $region96
        $region95: #{tpu_custom_call.1} parent=75 // pred_region
          %513 = dma.done [#allocation9], 2048
        $region96: #{tpu_custom_call.1} parent=75 // pred_fallthru
          _
        // Predicated region
        $region97: #{tpu_custom_call.1} parent=75 // pred_check
          %p514 = pneg %p263
        $region98: #{tpu_custom_call.1} parent=75 // pred_check_branch
          %516 = sbr.rel (%p514) target = $region100
        $region99: #{tpu_custom_call.1} parent=75 // pred_region
          %518 = dma.done [#allocation12], 2048
        $region100: #{tpu_custom_call.1} parent=75 // pred_fallthru
          _
        %p519 = scmp.lt.s32.totalorder %s32, 1
        %s520 = scalar_select %p519, %s32, 1
        %s521 = smul.addr %s520, 16
        %s522 = smul.addr %s521, 8
        %s523 = scalar_lea.vmem %s0, %s522
        %p524 = pneg %p53
        %p525 = pneg %p50
        %p526 = pneg %p74
        %p527 = pneg %p71
        %p528 = pneg %p95
        %p529 = pneg %p92
        %p530 = pneg %p116
        %p531 = pneg %p113
        %p532 = pneg %p137
        %p533 = pneg %p134
        %p534 = pneg %p158
        %p535 = pneg %p155
        %p536 = pneg %p179
        %p537 = pneg %p176
        %p538 = pneg %p200
        %p539 = pneg %p197
        %p540 = pneg %p221
        %p541 = pneg %p218
        %p542 = pneg %p242
        %p543 = pneg %p239
        %p544 = pneg %p263
        %p545 = pneg %p260
        %p546 = pneg %p284
        %p547 = pneg %p281
        %p548 = pneg %p305
        %p549 = pneg %p302
        %p550 = pneg %p326
        %p551 = pneg %p323
        %p552 = pneg %p352
        %p553 = pneg %p349
        %s554 = sand.u32 %s339, 1
        %s555 = scalar_lea.sflag [#allocation4], %s554
        %s556 = sand.u32 %s339, 1
        %s557 = smul.addr %s556, 128
        %s558 = scalar_lea.vmem [#allocation13], %s557
        %p559 = scmp.lt.s32.totalorder %s32, 1
        %s560 = scalar_select %p559, %s32, 1
        %s561 = smul.addr %s560, 16
        %s562 = smul.addr %s561, 8
        %s563 = scalar_lea.vmem %s0, %s562
        %v564 = vld [vmem:[%s563] sm:$0xff]
        %v565 = vld [vmem:[%s563 + $0x8] sm:$0xff]
        %v566 = vld [vmem:[%s563 + $0x10] sm:$0xff]
        %v567 = vld [vmem:[%s563 + $0x18] sm:$0xff]
        %v568 = vld [vmem:[%s563 + $0x20] sm:$0xff]
        %v569 = vld [vmem:[%s563 + $0x28] sm:$0xff]
        %v570 = vld [vmem:[%s563 + $0x30] sm:$0xff]
        %v571 = vld [vmem:[%s563 + $0x38] sm:$0xff]
        %v572 = vld [vmem:[%s563 + $0x40] sm:$0xff]
        %v573 = vld [vmem:[%s563 + $0x48] sm:$0xff]
        %v574 = vld [vmem:[%s563 + $0x50] sm:$0xff]
        %v575 = vld [vmem:[%s563 + $0x58] sm:$0xff]
        %v576 = vld [vmem:[%s563 + $0x60] sm:$0xff]
        %v577 = vld [vmem:[%s563 + $0x68] sm:$0xff]
        %v578 = vld [vmem:[%s563 + $0x70] sm:$0xff]
        %v579 = vld [vmem:[%s563 + $0x78] sm:$0xff]
        %v580 = vpack.c.bf16 %v565, %v564
        %v581 = vpack.c.bf16 %v567, %v566
        %v582 = vpack.c.bf16 %v569, %v568
        %v583 = vpack.c.bf16 %v571, %v570
        %v584 = vpack.c.bf16 %v573, %v572
        %v585 = vpack.c.bf16 %v575, %v574
        %v586 = vpack.c.bf16 %v577, %v576
        %v587 = vpack.c.bf16 %v579, %v578
        %v588 = vld [vmem:[#allocation7] sm:$0xff]
        %v589 = vld [vmem:[#allocation7 + $0x8] sm:$0xf]
        %v590 = vld [vmem:[#allocation7 + $0xc] sm:$0xff]
        %v591 = vld [vmem:[#allocation7 + $0x14] sm:$0xf]
        %v592 = vld [vmem:[#allocation7 + $0x18] sm:$0xff]
        %v593 = vld [vmem:[#allocation7 + $0x20] sm:$0xf]
        %v594 = vld [vmem:[#allocation7 + $0x24] sm:$0xff]
        %v595 = vld [vmem:[#allocation7 + $0x2c] sm:$0xf]
        %v596 = vld [vmem:[#allocation7 + $0x30] sm:$0xff]
        %v597 = vld [vmem:[#allocation7 + $0x38] sm:$0xf]
        %v598 = vld [vmem:[#allocation7 + $0x3c] sm:$0xff]
        %v599 = vld [vmem:[#allocation7 + $0x44] sm:$0xf]
        %v600 = vld [vmem:[#allocation7 + $0x48] sm:$0xff]
        %v601 = vld [vmem:[#allocation7 + $0x50] sm:$0xf]
        %v602 = vld [vmem:[#allocation7 + $0x54] sm:$0xff]
        %v603 = vld [vmem:[#allocation7 + $0x5c] sm:$0xf]
        %v604 = vld [vmem:[#allocation7 + $0x60] sm:$0xff]
        %v605 = vld [vmem:[#allocation7 + $0x68] sm:$0xf]
        %v606 = vld [vmem:[#allocation7 + $0x6c] sm:$0xff]
        %v607 = vld [vmem:[#allocation7 + $0x74] sm:$0xf]
        %v608 = vld [vmem:[#allocation7 + $0x78] sm:$0xff]
        %v609 = vld [vmem:[#allocation7 + $0x80] sm:$0xf]
        %v610 = vld [vmem:[#allocation7 + $0x84] sm:$0xff]
        %v611 = vld [vmem:[#allocation7 + $0x8c] sm:$0xf]
        %v612 = vld [vmem:[#allocation7 + $0x90] sm:$0xff]
        %v613 = vld [vmem:[#allocation7 + $0x98] sm:$0xf]
        %v614 = vld [vmem:[#allocation7 + $0x9c] sm:$0xff]
        %v615 = vld [vmem:[#allocation7 + $0xa4] sm:$0xf]
        %v616 = vld [vmem:[#allocation7 + $0xa8] sm:$0xff]
        %v617 = vld [vmem:[#allocation7 + $0xb0] sm:$0xf]
        %v618 = vld [vmem:[#allocation7 + $0xb4] sm:$0xff]
        %v619 = vld [vmem:[#allocation7 + $0xbc] sm:$0xf]
        %v652 = vunpack.c.l.b16 %v588
        %v653 = vunpack.c.h.b16 %v588
        %v654 = vunpack.c.l.b16 %v589
        %v655 = vunpack.c.l.b16 %v590
        %v656 = vunpack.c.h.b16 %v590
        %v657 = vunpack.c.l.b16 %v591
        %v658 = vunpack.c.l.b16 %v592
        %v659 = vunpack.c.h.b16 %v592
        %v660 = vunpack.c.l.b16 %v593
        %v661 = vunpack.c.l.b16 %v594
        %v662 = vunpack.c.h.b16 %v594
        %v663 = vunpack.c.l.b16 %v595
        %v664 = vunpack.c.l.b16 %v596
        %v665 = vunpack.c.h.b16 %v596
        %v666 = vunpack.c.l.b16 %v597
        %v667 = vunpack.c.l.b16 %v598
        %v668 = vunpack.c.h.b16 %v598
        %v669 = vunpack.c.l.b16 %v599
        %v670 = vunpack.c.l.b16 %v600
        %v671 = vunpack.c.h.b16 %v600
        %v672 = vunpack.c.l.b16 %v601
        %v673 = vunpack.c.l.b16 %v602
        %v674 = vunpack.c.h.b16 %v602
        %v675 = vunpack.c.l.b16 %v603
        %v676 = vunpack.c.l.b16 %v604
        %v677 = vunpack.c.h.b16 %v604
        %v678 = vunpack.c.l.b16 %v605
        %v679 = vunpack.c.l.b16 %v606
        %v680 = vunpack.c.h.b16 %v606
        %v681 = vunpack.c.l.b16 %v607
        %v682 = vunpack.c.l.b16 %v608
        %v683 = vunpack.c.h.b16 %v608
        %v684 = vunpack.c.l.b16 %v609
        %v685 = vunpack.c.l.b16 %v610
        %v686 = vunpack.c.h.b16 %v610
        %v687 = vunpack.c.l.b16 %v611
        %v688 = vunpack.c.l.b16 %v612
        %v689 = vunpack.c.h.b16 %v612
        %v690 = vunpack.c.l.b16 %v613
        %v691 = vunpack.c.l.b16 %v614
        %v692 = vunpack.c.h.b16 %v614
        %v693 = vunpack.c.l.b16 %v615
        %v694 = vunpack.c.l.b16 %v616
        %v695 = vunpack.c.h.b16 %v616
        %v696 = vunpack.c.l.b16 %v617
        %v697 = vunpack.c.l.b16 %v618
        %v698 = vunpack.c.h.b16 %v618
        %v699 = vunpack.c.l.b16 %v619
        %v700 = vpack.c.b16 %v655, %v652
        %v701 = vpack.c.b16 %v656, %v653
        %v702 = vpack.c.b16 %v657, %v654
        %v703 = vpack.c.b16 %v661, %v658
        %v704 = vpack.c.b16 %v662, %v659
        %v705 = vpack.c.b16 %v663, %v660
        %v706 = vpack.c.b16 %v667, %v664
        %v707 = vpack.c.b16 %v668, %v665
        %v708 = vpack.c.b16 %v669, %v666
        %v709 = vpack.c.b16 %v673, %v670
        %v710 = vpack.c.b16 %v674, %v671
        %v711 = vpack.c.b16 %v675, %v672
        %v712 = vpack.c.b16 %v679, %v676
        %v713 = vpack.c.b16 %v680, %v677
        %v714 = vpack.c.b16 %v681, %v678
        %v715 = vpack.c.b16 %v685, %v682
        %v716 = vpack.c.b16 %v686, %v683
        %v717 = vpack.c.b16 %v687, %v684
        %v718 = vpack.c.b16 %v691, %v688
        %v719 = vpack.c.b16 %v692, %v689
        %v720 = vpack.c.b16 %v693, %v690
        %v721 = vpack.c.b16 %v697, %v694
        %v722 = vpack.c.b16 %v698, %v695
        %v723 = vpack.c.b16 %v699, %v696
        %748 = vmatpush.bf16.msra.mxu0 %v721
        %749 = vmatpush.bf16.msra.mxu0 %v718
        %750 = vmatpush.bf16.msra.mxu0 %v715
        %751 = vmatpush.bf16.msra.mxu0 %v712
        %752 = vmatpush.bf16.msra.mxu0 %v709
        %753 = vmatpush.bf16.msra.mxu0 %v706
        %754 = vmatpush.bf16.msra.mxu0 %v703
        %755 = vmatpush.bf16.msra.mxu0 %v700
        %756 = vmatmul.bf16.gmra.mxu0 %v580
        %v757 = vpop.f32.mrf.mxu0
        %v758 = vadd.f32 0.0, %v757
        %v759 = vpop.f32.mrf.mxu0
        %v760 = vadd.f32 0.0, %v759
        %761 = vmatmul.bf16.gmra.mxu0 %v581
        %v762 = vpop.f32.mrf.mxu0
        %v763 = vadd.f32 0.0, %v762
        %v764 = vpop.f32.mrf.mxu0
        %v765 = vadd.f32 0.0, %v764
        %766 = vmatmul.bf16.gmra.mxu0 %v582
        %v767 = vpop.f32.mrf.mxu0
        %v768 = vadd.f32 0.0, %v767
        %v769 = vpop.f32.mrf.mxu0
        %v770 = vadd.f32 0.0, %v769
        %771 = vmatmul.bf16.gmra.mxu0 %v583
        %v772 = vpop.f32.mrf.mxu0
        %v773 = vadd.f32 0.0, %v772
        %v774 = vpop.f32.mrf.mxu0
        %v775 = vadd.f32 0.0, %v774
        %776 = vmatmul.bf16.gmra.mxu0 %v584
        %v777 = vpop.f32.mrf.mxu0
        %v778 = vadd.f32 0.0, %v777
        %v779 = vpop.f32.mrf.mxu0
        %v780 = vadd.f32 0.0, %v779
        %781 = vmatmul.bf16.gmra.mxu0 %v585
        %v782 = vpop.f32.mrf.mxu0
        %v783 = vadd.f32 0.0, %v782
        %v784 = vpop.f32.mrf.mxu0
        %v785 = vadd.f32 0.0, %v784
        %786 = vmatmul.bf16.gmra.mxu0 %v586
        %v787 = vpop.f32.mrf.mxu0
        %v788 = vadd.f32 0.0, %v787
        %v789 = vpop.f32.mrf.mxu0
        %v790 = vadd.f32 0.0, %v789
        %791 = vmatmul.bf16.gmra.mxu0 %v587
        %v792 = vpop.f32.mrf.mxu0
        %v793 = vadd.f32 0.0, %v792
        %v794 = vpop.f32.mrf.mxu0
        %v795 = vadd.f32 0.0, %v794
        %796 = vdwg.mxu0
        %797 = vmatpush.bf16.msra.mxu0 %v722
        %798 = vmatpush.bf16.msra.mxu0 %v719
        %799 = vmatpush.bf16.msra.mxu0 %v716
        %800 = vmatpush.bf16.msra.mxu0 %v713
        %801 = vmatpush.bf16.msra.mxu0 %v710
        %802 = vmatpush.bf16.msra.mxu0 %v707
        %803 = vmatpush.bf16.msra.mxu0 %v704
        %804 = vmatpush.bf16.msra.mxu0 %v701
        %805 = vmatmul.bf16.gmra.mxu0 %v580
        %v806 = vpop.f32.mrf.mxu0
        %v807 = vadd.f32 0.0, %v806
        %v808 = vpop.f32.mrf.mxu0
        %v809 = vadd.f32 0.0, %v808
        %810 = vmatmul.bf16.gmra.mxu0 %v581
        %v811 = vpop.f32.mrf.mxu0
        %v812 = vadd.f32 0.0, %v811
        %v813 = vpop.f32.mrf.mxu0
        %v814 = vadd.f32 0.0, %v813
        %815 = vmatmul.bf16.gmra.mxu0 %v582
        %v816 = vpop.f32.mrf.mxu0
        %v817 = vadd.f32 0.0, %v816
        %v818 = vpop.f32.mrf.mxu0
        %v819 = vadd.f32 0.0, %v818
        %820 = vmatmul.bf16.gmra.mxu0 %v583
        %v821 = vpop.f32.mrf.mxu0
        %v822 = vadd.f32 0.0, %v821
        %v823 = vpop.f32.mrf.mxu0
        %v824 = vadd.f32 0.0, %v823
        %825 = vmatmul.bf16.gmra.mxu0 %v584
        %v826 = vpop.f32.mrf.mxu0
        %v827 = vadd.f32 0.0, %v826
        %v828 = vpop.f32.mrf.mxu0
        %v829 = vadd.f32 0.0, %v828
        %830 = vmatmul.bf16.gmra.mxu0 %v585
        %v831 = vpop.f32.mrf.mxu0
        %v832 = vadd.f32 0.0, %v831
        %v833 = vpop.f32.mrf.mxu0
        %v834 = vadd.f32 0.0, %v833
        %835 = vmatmul.bf16.gmra.mxu0 %v586
        %v836 = vpop.f32.mrf.mxu0
        %v837 = vadd.f32 0.0, %v836
        %v838 = vpop.f32.mrf.mxu0
        %v839 = vadd.f32 0.0, %v838
        %840 = vmatmul.bf16.gmra.mxu0 %v587
        %v841 = vpop.f32.mrf.mxu0
        %v842 = vadd.f32 0.0, %v841
        %v843 = vpop.f32.mrf.mxu0
        %v844 = vadd.f32 0.0, %v843
        %845 = vdwg.mxu0
        %846 = vmatpush.bf16.msra.mxu0 %v723
        %847 = vmatpush.bf16.msra.mxu0 %v720
        %848 = vmatpush.bf16.msra.mxu0 %v717
        %849 = vmatpush.bf16.msra.mxu0 %v714
        %850 = vmatpush.bf16.msra.mxu0 %v711
        %851 = vmatpush.bf16.msra.mxu0 %v708
        %852 = vmatpush.bf16.msra.mxu0 %v705
        %853 = vmatpush.bf16.msra.mxu0 %v702
        %854 = vmatmul.bf16.gmra.mxu0 %v580
        %v855 = vpop.f32.mrf.mxu0
        %v856 = vadd.f32 0.0, %v855
        %v857 = vpop.f32.mrf.mxu0
        %v858 = vadd.f32 0.0, %v857
        %859 = vmatmul.bf16.gmra.mxu0 %v581
        %v860 = vpop.f32.mrf.mxu0
        %v861 = vadd.f32 0.0, %v860
        %v862 = vpop.f32.mrf.mxu0
        %v863 = vadd.f32 0.0, %v862
        %864 = vmatmul.bf16.gmra.mxu0 %v582
        %v865 = vpop.f32.mrf.mxu0
        %v866 = vadd.f32 0.0, %v865
        %v867 = vpop.f32.mrf.mxu0
        %v868 = vadd.f32 0.0, %v867
        %869 = vmatmul.bf16.gmra.mxu0 %v583
        %v870 = vpop.f32.mrf.mxu0
        %v871 = vadd.f32 0.0, %v870
        %v872 = vpop.f32.mrf.mxu0
        %v873 = vadd.f32 0.0, %v872
        %874 = vmatmul.bf16.gmra.mxu0 %v584
        %v875 = vpop.f32.mrf.mxu0
        %v876 = vadd.f32 0.0, %v875
        %v877 = vpop.f32.mrf.mxu0
        %v878 = vadd.f32 0.0, %v877
        %879 = vmatmul.bf16.gmra.mxu0 %v585
        %v880 = vpop.f32.mrf.mxu0
        %v881 = vadd.f32 0.0, %v880
        %v882 = vpop.f32.mrf.mxu0
        %v883 = vadd.f32 0.0, %v882
        %884 = vmatmul.bf16.gmra.mxu0 %v586
        %v885 = vpop.f32.mrf.mxu0
        %v886 = vadd.f32 0.0, %v885
        %v887 = vpop.f32.mrf.mxu0
        %v888 = vadd.f32 0.0, %v887
        %889 = vmatmul.bf16.gmra.mxu0 %v587
        %v890 = vpop.f32.mrf.mxu0
        %v891 = vadd.f32 0.0, %v890
        %v892 = vpop.f32.mrf.mxu0
        %v893 = vadd.f32 0.0, %v892
        %894 = vdwg.mxu0
        %911 = vrot.lane.b32.xlu0 %v758, 96
        %v912 = vpop.permute.xlu0 %911
        %913 = vrot.lane.b32.xlu0 %v760, 96
        %v914 = vpop.permute.xlu0 %913
        %915 = vrot.lane.b32.xlu0 %v763, 96
        %v916 = vpop.permute.xlu0 %915
        %917 = vrot.lane.b32.xlu0 %v765, 96
        %v918 = vpop.permute.xlu0 %917
        %919 = vrot.lane.b32.xlu0 %v768, 96
        %v920 = vpop.permute.xlu0 %919
        %921 = vrot.lane.b32.xlu0 %v770, 96
        %v922 = vpop.permute.xlu0 %921
        %923 = vrot.lane.b32.xlu0 %v773, 96
        %v924 = vpop.permute.xlu0 %923
        %925 = vrot.lane.b32.xlu0 %v775, 96
        %v926 = vpop.permute.xlu0 %925
        %927 = vrot.lane.b32.xlu0 %v778, 96
        %v928 = vpop.permute.xlu0 %927
        %929 = vrot.lane.b32.xlu0 %v780, 96
        %v930 = vpop.permute.xlu0 %929
        %931 = vrot.lane.b32.xlu0 %v783, 96
        %v932 = vpop.permute.xlu0 %931
        %933 = vrot.lane.b32.xlu0 %v785, 96
        %v934 = vpop.permute.xlu0 %933
        %935 = vrot.lane.b32.xlu0 %v788, 96
        %v936 = vpop.permute.xlu0 %935
        %937 = vrot.lane.b32.xlu0 %v790, 96
        %v938 = vpop.permute.xlu0 %937
        %939 = vrot.lane.b32.xlu0 %v793, 96
        %v940 = vpop.permute.xlu0 %939
        %941 = vrot.lane.b32.xlu0 %v795, 96
        %v942 = vpop.permute.xlu0 %941
        %959 = vrot.lane.b32.xlu0 %v758, 64
        %v960 = vpop.permute.xlu0 %959
        %961 = vrot.lane.b32.xlu0 %v760, 64
        %v962 = vpop.permute.xlu0 %961
        %963 = vrot.lane.b32.xlu0 %v763, 64
        %v964 = vpop.permute.xlu0 %963
        %965 = vrot.lane.b32.xlu0 %v765, 64
        %v966 = vpop.permute.xlu0 %965
        %967 = vrot.lane.b32.xlu0 %v768, 64
        %v968 = vpop.permute.xlu0 %967
        %969 = vrot.lane.b32.xlu0 %v770, 64
        %v970 = vpop.permute.xlu0 %969
        %971 = vrot.lane.b32.xlu0 %v773, 64
        %v972 = vpop.permute.xlu0 %971
        %973 = vrot.lane.b32.xlu0 %v775, 64
        %v974 = vpop.permute.xlu0 %973
        %975 = vrot.lane.b32.xlu0 %v778, 64
        %v976 = vpop.permute.xlu0 %975
        %977 = vrot.lane.b32.xlu0 %v780, 64
        %v978 = vpop.permute.xlu0 %977
        %979 = vrot.lane.b32.xlu0 %v783, 64
        %v980 = vpop.permute.xlu0 %979
        %981 = vrot.lane.b32.xlu0 %v785, 64
        %v982 = vpop.permute.xlu0 %981
        %983 = vrot.lane.b32.xlu0 %v788, 64
        %v984 = vpop.permute.xlu0 %983
        %985 = vrot.lane.b32.xlu0 %v790, 64
        %v986 = vpop.permute.xlu0 %985
        %987 = vrot.lane.b32.xlu0 %v793, 64
        %v988 = vpop.permute.xlu0 %987
        %989 = vrot.lane.b32.xlu0 %v795, 64
        %v990 = vpop.permute.xlu0 %989
        %1007 = vrot.lane.b32.xlu0 %v758, 32
        %v1008 = vpop.permute.xlu0 %1007
        %1009 = vrot.lane.b32.xlu0 %v760, 32
        %v1010 = vpop.permute.xlu0 %1009
        %1011 = vrot.lane.b32.xlu0 %v763, 32
        %v1012 = vpop.permute.xlu0 %1011
        %1013 = vrot.lane.b32.xlu0 %v765, 32
        %v1014 = vpop.permute.xlu0 %1013
        %1015 = vrot.lane.b32.xlu0 %v768, 32
        %v1016 = vpop.permute.xlu0 %1015
        %1017 = vrot.lane.b32.xlu0 %v770, 32
        %v1018 = vpop.permute.xlu0 %1017
        %1019 = vrot.lane.b32.xlu0 %v773, 32
        %v1020 = vpop.permute.xlu0 %1019
        %1021 = vrot.lane.b32.xlu0 %v775, 32
        %v1022 = vpop.permute.xlu0 %1021
        %1023 = vrot.lane.b32.xlu0 %v778, 32
        %v1024 = vpop.permute.xlu0 %1023
        %1025 = vrot.lane.b32.xlu0 %v780, 32
        %v1026 = vpop.permute.xlu0 %1025
        %1027 = vrot.lane.b32.xlu0 %v783, 32
        %v1028 = vpop.permute.xlu0 %1027
        %1029 = vrot.lane.b32.xlu0 %v785, 32
        %v1030 = vpop.permute.xlu0 %1029
        %1031 = vrot.lane.b32.xlu0 %v788, 32
        %v1032 = vpop.permute.xlu0 %1031
        %1033 = vrot.lane.b32.xlu0 %v790, 32
        %v1034 = vpop.permute.xlu0 %1033
        %1035 = vrot.lane.b32.xlu0 %v793, 32
        %v1036 = vpop.permute.xlu0 %1035
        %1037 = vrot.lane.b32.xlu0 %v795, 32
        %v1038 = vpop.permute.xlu0 %1037
        %1071 = vrot.lane.b32.xlu0 %v807, 96
        %v1072 = vpop.permute.xlu0 %1071
        %1073 = vrot.lane.b32.xlu0 %v809, 96
        %v1074 = vpop.permute.xlu0 %1073
        %1075 = vrot.lane.b32.xlu0 %v812, 96
        %v1076 = vpop.permute.xlu0 %1075
        %1077 = vrot.lane.b32.xlu0 %v814, 96
        %v1078 = vpop.permute.xlu0 %1077
        %1079 = vrot.lane.b32.xlu0 %v817, 96
        %v1080 = vpop.permute.xlu0 %1079
        %1081 = vrot.lane.b32.xlu0 %v819, 96
        %v1082 = vpop.permute.xlu0 %1081
        %1083 = vrot.lane.b32.xlu0 %v822, 96
        %v1084 = vpop.permute.xlu0 %1083
        %1085 = vrot.lane.b32.xlu0 %v824, 96
        %v1086 = vpop.permute.xlu0 %1085
        %1087 = vrot.lane.b32.xlu0 %v827, 96
        %v1088 = vpop.permute.xlu0 %1087
        %1089 = vrot.lane.b32.xlu0 %v829, 96
        %v1090 = vpop.permute.xlu0 %1089
        %1091 = vrot.lane.b32.xlu0 %v832, 96
        %v1092 = vpop.permute.xlu0 %1091
        %1093 = vrot.lane.b32.xlu0 %v834, 96
        %v1094 = vpop.permute.xlu0 %1093
        %1095 = vrot.lane.b32.xlu0 %v837, 96
        %v1096 = vpop.permute.xlu0 %1095
        %1097 = vrot.lane.b32.xlu0 %v839, 96
        %v1098 = vpop.permute.xlu0 %1097
        %1099 = vrot.lane.b32.xlu0 %v842, 96
        %v1100 = vpop.permute.xlu0 %1099
        %1101 = vrot.lane.b32.xlu0 %v844, 96
        %v1102 = vpop.permute.xlu0 %1101
        %1119 = vrot.lane.b32.xlu0 %v807, 64
        %v1120 = vpop.permute.xlu0 %1119
        %1121 = vrot.lane.b32.xlu0 %v809, 64
        %v1122 = vpop.permute.xlu0 %1121
        %1123 = vrot.lane.b32.xlu0 %v812, 64
        %v1124 = vpop.permute.xlu0 %1123
        %1125 = vrot.lane.b32.xlu0 %v814, 64
        %v1126 = vpop.permute.xlu0 %1125
        %1127 = vrot.lane.b32.xlu0 %v817, 64
        %v1128 = vpop.permute.xlu0 %1127
        %1129 = vrot.lane.b32.xlu0 %v819, 64
        %v1130 = vpop.permute.xlu0 %1129
        %1131 = vrot.lane.b32.xlu0 %v822, 64
        %v1132 = vpop.permute.xlu0 %1131
        %1133 = vrot.lane.b32.xlu0 %v824, 64
        %v1134 = vpop.permute.xlu0 %1133
        %1135 = vrot.lane.b32.xlu0 %v827, 64
        %v1136 = vpop.permute.xlu0 %1135
        %1137 = vrot.lane.b32.xlu0 %v829, 64
        %v1138 = vpop.permute.xlu0 %1137
        %1139 = vrot.lane.b32.xlu0 %v832, 64
        %v1140 = vpop.permute.xlu0 %1139
        %1141 = vrot.lane.b32.xlu0 %v834, 64
        %v1142 = vpop.permute.xlu0 %1141
        %1143 = vrot.lane.b32.xlu0 %v837, 64
        %v1144 = vpop.permute.xlu0 %1143
        %1145 = vrot.lane.b32.xlu0 %v839, 64
        %v1146 = vpop.permute.xlu0 %1145
        %1147 = vrot.lane.b32.xlu0 %v842, 64
        %v1148 = vpop.permute.xlu0 %1147
        %1149 = vrot.lane.b32.xlu0 %v844, 64
        %v1150 = vpop.permute.xlu0 %1149
        %1167 = vrot.lane.b32.xlu0 %v807, 32
        %v1168 = vpop.permute.xlu0 %1167
        %1169 = vrot.lane.b32.xlu0 %v809, 32
        %v1170 = vpop.permute.xlu0 %1169
        %1171 = vrot.lane.b32.xlu0 %v812, 32
        %v1172 = vpop.permute.xlu0 %1171
        %1173 = vrot.lane.b32.xlu0 %v814, 32
        %v1174 = vpop.permute.xlu0 %1173
        %1175 = vrot.lane.b32.xlu0 %v817, 32
        %v1176 = vpop.permute.xlu0 %1175
        %1177 = vrot.lane.b32.xlu0 %v819, 32
        %v1178 = vpop.permute.xlu0 %1177
        %1179 = vrot.lane.b32.xlu0 %v822, 32
        %v1180 = vpop.permute.xlu0 %1179
        %1181 = vrot.lane.b32.xlu0 %v824, 32
        %v1182 = vpop.permute.xlu0 %1181
        %1183 = vrot.lane.b32.xlu0 %v827, 32
        %v1184 = vpop.permute.xlu0 %1183
        %1185 = vrot.lane.b32.xlu0 %v829, 32
        %v1186 = vpop.permute.xlu0 %1185
        %1187 = vrot.lane.b32.xlu0 %v832, 32
        %v1188 = vpop.permute.xlu0 %1187
        %1189 = vrot.lane.b32.xlu0 %v834, 32
        %v1190 = vpop.permute.xlu0 %1189
        %1191 = vrot.lane.b32.xlu0 %v837, 32
        %v1192 = vpop.permute.xlu0 %1191
        %1193 = vrot.lane.b32.xlu0 %v839, 32
        %v1194 = vpop.permute.xlu0 %1193
        %1195 = vrot.lane.b32.xlu0 %v842, 32
        %v1196 = vpop.permute.xlu0 %1195
        %1197 = vrot.lane.b32.xlu0 %v844, 32
        %v1198 = vpop.permute.xlu0 %1197
        %v1215 = vpack.c.bf16 %v807, %v807
        %v1216 = vpack.c.bf16 %v809, %v809
        %v1217 = vpack.c.bf16 %v812, %v812
        %v1218 = vpack.c.bf16 %v814, %v814
        %v1219 = vpack.c.bf16 %v817, %v817
        %v1220 = vpack.c.bf16 %v819, %v819
        %v1221 = vpack.c.bf16 %v822, %v822
        %v1222 = vpack.c.bf16 %v824, %v824
        %v1223 = vpack.c.bf16 %v827, %v827
        %v1224 = vpack.c.bf16 %v829, %v829
        %v1225 = vpack.c.bf16 %v832, %v832
        %v1226 = vpack.c.bf16 %v834, %v834
        %v1227 = vpack.c.bf16 %v837, %v837
        %v1228 = vpack.c.bf16 %v839, %v839
        %v1229 = vpack.c.bf16 %v842, %v842
        %v1230 = vpack.c.bf16 %v844, %v844
        %v1231 = vpack.c.bf16 %v1072, %v1072
        %v1232 = vpack.c.bf16 %v1074, %v1074
        %v1233 = vpack.c.bf16 %v1076, %v1076
        %v1234 = vpack.c.bf16 %v1078, %v1078
        %v1235 = vpack.c.bf16 %v1080, %v1080
        %v1236 = vpack.c.bf16 %v1082, %v1082
        %v1237 = vpack.c.bf16 %v1084, %v1084
        %v1238 = vpack.c.bf16 %v1086, %v1086
        %v1239 = vpack.c.bf16 %v1088, %v1088
        %v1240 = vpack.c.bf16 %v1090, %v1090
        %v1241 = vpack.c.bf16 %v1092, %v1092
        %v1242 = vpack.c.bf16 %v1094, %v1094
        %v1243 = vpack.c.bf16 %v1096, %v1096
        %v1244 = vpack.c.bf16 %v1098, %v1098
        %v1245 = vpack.c.bf16 %v1100, %v1100
        %v1246 = vpack.c.bf16 %v1102, %v1102
        %v1247 = vpack.c.bf16 %v1120, %v1120
        %v1248 = vpack.c.bf16 %v1122, %v1122
        %v1249 = vpack.c.bf16 %v1124, %v1124
        %v1250 = vpack.c.bf16 %v1126, %v1126
        %v1251 = vpack.c.bf16 %v1128, %v1128
        %v1252 = vpack.c.bf16 %v1130, %v1130
        %v1253 = vpack.c.bf16 %v1132, %v1132
        %v1254 = vpack.c.bf16 %v1134, %v1134
        %v1255 = vpack.c.bf16 %v1136, %v1136
        %v1256 = vpack.c.bf16 %v1138, %v1138
        %v1257 = vpack.c.bf16 %v1140, %v1140
        %v1258 = vpack.c.bf16 %v1142, %v1142
        %v1259 = vpack.c.bf16 %v1144, %v1144
        %v1260 = vpack.c.bf16 %v1146, %v1146
        %v1261 = vpack.c.bf16 %v1148, %v1148
        %v1262 = vpack.c.bf16 %v1150, %v1150
        %v1263 = vpack.c.bf16 %v1168, %v1168
        %v1264 = vpack.c.bf16 %v1170, %v1170
        %v1265 = vpack.c.bf16 %v1172, %v1172
        %v1266 = vpack.c.bf16 %v1174, %v1174
        %v1267 = vpack.c.bf16 %v1176, %v1176
        %v1268 = vpack.c.bf16 %v1178, %v1178
        %v1269 = vpack.c.bf16 %v1180, %v1180
        %v1270 = vpack.c.bf16 %v1182, %v1182
        %v1271 = vpack.c.bf16 %v1184, %v1184
        %v1272 = vpack.c.bf16 %v1186, %v1186
        %v1273 = vpack.c.bf16 %v1188, %v1188
        %v1274 = vpack.c.bf16 %v1190, %v1190
        %v1275 = vpack.c.bf16 %v1192, %v1192
        %v1276 = vpack.c.bf16 %v1194, %v1194
        %v1277 = vpack.c.bf16 %v1196, %v1196
        %v1278 = vpack.c.bf16 %v1198, %v1198
        %1295 = vrot.lane.b32.xlu0 %v856, 96
        %v1296 = vpop.permute.xlu0 %1295
        %1297 = vrot.lane.b32.xlu0 %v858, 96
        %v1298 = vpop.permute.xlu0 %1297
        %1299 = vrot.lane.b32.xlu0 %v861, 96
        %v1300 = vpop.permute.xlu0 %1299
        %1301 = vrot.lane.b32.xlu0 %v863, 96
        %v1302 = vpop.permute.xlu0 %1301
        %1303 = vrot.lane.b32.xlu0 %v866, 96
        %v1304 = vpop.permute.xlu0 %1303
        %1305 = vrot.lane.b32.xlu0 %v868, 96
        %v1306 = vpop.permute.xlu0 %1305
        %1307 = vrot.lane.b32.xlu0 %v871, 96
        %v1308 = vpop.permute.xlu0 %1307
        %1309 = vrot.lane.b32.xlu0 %v873, 96
        %v1310 = vpop.permute.xlu0 %1309
        %1311 = vrot.lane.b32.xlu0 %v876, 96
        %v1312 = vpop.permute.xlu0 %1311
        %1313 = vrot.lane.b32.xlu0 %v878, 96
        %v1314 = vpop.permute.xlu0 %1313
        %1315 = vrot.lane.b32.xlu0 %v881, 96
        %v1316 = vpop.permute.xlu0 %1315
        %1317 = vrot.lane.b32.xlu0 %v883, 96
        %v1318 = vpop.permute.xlu0 %1317
        %1319 = vrot.lane.b32.xlu0 %v886, 96
        %v1320 = vpop.permute.xlu0 %1319
        %1321 = vrot.lane.b32.xlu0 %v888, 96
        %v1322 = vpop.permute.xlu0 %1321
        %1323 = vrot.lane.b32.xlu0 %v891, 96
        %v1324 = vpop.permute.xlu0 %1323
        %1325 = vrot.lane.b32.xlu0 %v893, 96
        %v1326 = vpop.permute.xlu0 %1325
        %1343 = vrot.lane.b32.xlu0 %v856, 64
        %v1344 = vpop.permute.xlu0 %1343
        %1345 = vrot.lane.b32.xlu0 %v858, 64
        %v1346 = vpop.permute.xlu0 %1345
        %1347 = vrot.lane.b32.xlu0 %v861, 64
        %v1348 = vpop.permute.xlu0 %1347
        %1349 = vrot.lane.b32.xlu0 %v863, 64
        %v1350 = vpop.permute.xlu0 %1349
        %1351 = vrot.lane.b32.xlu0 %v866, 64
        %v1352 = vpop.permute.xlu0 %1351
        %1353 = vrot.lane.b32.xlu0 %v868, 64
        %v1354 = vpop.permute.xlu0 %1353
        %1355 = vrot.lane.b32.xlu0 %v871, 64
        %v1356 = vpop.permute.xlu0 %1355
        %1357 = vrot.lane.b32.xlu0 %v873, 64
        %v1358 = vpop.permute.xlu0 %1357
        %1359 = vrot.lane.b32.xlu0 %v876, 64
        %v1360 = vpop.permute.xlu0 %1359
        %1361 = vrot.lane.b32.xlu0 %v878, 64
        %v1362 = vpop.permute.xlu0 %1361
        %1363 = vrot.lane.b32.xlu0 %v881, 64
        %v1364 = vpop.permute.xlu0 %1363
        %1365 = vrot.lane.b32.xlu0 %v883, 64
        %v1366 = vpop.permute.xlu0 %1365
        %1367 = vrot.lane.b32.xlu0 %v886, 64
        %v1368 = vpop.permute.xlu0 %1367
        %1369 = vrot.lane.b32.xlu0 %v888, 64
        %v1370 = vpop.permute.xlu0 %1369
        %1371 = vrot.lane.b32.xlu0 %v891, 64
        %v1372 = vpop.permute.xlu0 %1371
        %1373 = vrot.lane.b32.xlu0 %v893, 64
        %v1374 = vpop.permute.xlu0 %1373
        %1391 = vrot.lane.b32.xlu0 %v856, 32
        %v1392 = vpop.permute.xlu0 %1391
        %1393 = vrot.lane.b32.xlu0 %v858, 32
        %v1394 = vpop.permute.xlu0 %1393
        %1395 = vrot.lane.b32.xlu0 %v861, 32
        %v1396 = vpop.permute.xlu0 %1395
        %1397 = vrot.lane.b32.xlu0 %v863, 32
        %v1398 = vpop.permute.xlu0 %1397
        %1399 = vrot.lane.b32.xlu0 %v866, 32
        %v1400 = vpop.permute.xlu0 %1399
        %1401 = vrot.lane.b32.xlu0 %v868, 32
        %v1402 = vpop.permute.xlu0 %1401
        %1403 = vrot.lane.b32.xlu0 %v871, 32
        %v1404 = vpop.permute.xlu0 %1403
        %1405 = vrot.lane.b32.xlu0 %v873, 32
        %v1406 = vpop.permute.xlu0 %1405
        %1407 = vrot.lane.b32.xlu0 %v876, 32
        %v1408 = vpop.permute.xlu0 %1407
        %1409 = vrot.lane.b32.xlu0 %v878, 32
        %v1410 = vpop.permute.xlu0 %1409
        %1411 = vrot.lane.b32.xlu0 %v881, 32
        %v1412 = vpop.permute.xlu0 %1411
        %1413 = vrot.lane.b32.xlu0 %v883, 32
        %v1414 = vpop.permute.xlu0 %1413
        %1415 = vrot.lane.b32.xlu0 %v886, 32
        %v1416 = vpop.permute.xlu0 %1415
        %1417 = vrot.lane.b32.xlu0 %v888, 32
        %v1418 = vpop.permute.xlu0 %1417
        %1419 = vrot.lane.b32.xlu0 %v891, 32
        %v1420 = vpop.permute.xlu0 %1419
        %1421 = vrot.lane.b32.xlu0 %v893, 32
        %v1422 = vpop.permute.xlu0 %1421
        %v1439 = vpack.c.bf16 %v856, %v856
        %v1440 = vpack.c.bf16 %v858, %v858
        %v1441 = vpack.c.bf16 %v861, %v861
        %v1442 = vpack.c.bf16 %v863, %v863
        %v1443 = vpack.c.bf16 %v866, %v866
        %v1444 = vpack.c.bf16 %v868, %v868
        %v1445 = vpack.c.bf16 %v871, %v871
        %v1446 = vpack.c.bf16 %v873, %v873
        %v1447 = vpack.c.bf16 %v876, %v876
        %v1448 = vpack.c.bf16 %v878, %v878
        %v1449 = vpack.c.bf16 %v881, %v881
        %v1450 = vpack.c.bf16 %v883, %v883
        %v1451 = vpack.c.bf16 %v886, %v886
        %v1452 = vpack.c.bf16 %v888, %v888
        %v1453 = vpack.c.bf16 %v891, %v891
        %v1454 = vpack.c.bf16 %v893, %v893
        %v1455 = vpack.c.bf16 %v1296, %v1296
        %v1456 = vpack.c.bf16 %v1298, %v1298
        %v1457 = vpack.c.bf16 %v1300, %v1300
        %v1458 = vpack.c.bf16 %v1302, %v1302
        %v1459 = vpack.c.bf16 %v1304, %v1304
        %v1460 = vpack.c.bf16 %v1306, %v1306
        %v1461 = vpack.c.bf16 %v1308, %v1308
        %v1462 = vpack.c.bf16 %v1310, %v1310
        %v1463 = vpack.c.bf16 %v1312, %v1312
        %v1464 = vpack.c.bf16 %v1314, %v1314
        %v1465 = vpack.c.bf16 %v1316, %v1316
        %v1466 = vpack.c.bf16 %v1318, %v1318
        %v1467 = vpack.c.bf16 %v1320, %v1320
        %v1468 = vpack.c.bf16 %v1322, %v1322
        %v1469 = vpack.c.bf16 %v1324, %v1324
        %v1470 = vpack.c.bf16 %v1326, %v1326
        %v1471 = vpack.c.bf16 %v1344, %v1344
        %v1472 = vpack.c.bf16 %v1346, %v1346
        %v1473 = vpack.c.bf16 %v1348, %v1348
        %v1474 = vpack.c.bf16 %v1350, %v1350
        %v1475 = vpack.c.bf16 %v1352, %v1352
        %v1476 = vpack.c.bf16 %v1354, %v1354
        %v1477 = vpack.c.bf16 %v1356, %v1356
        %v1478 = vpack.c.bf16 %v1358, %v1358
        %v1479 = vpack.c.bf16 %v1360, %v1360
        %v1480 = vpack.c.bf16 %v1362, %v1362
        %v1481 = vpack.c.bf16 %v1364, %v1364
        %v1482 = vpack.c.bf16 %v1366, %v1366
        %v1483 = vpack.c.bf16 %v1368, %v1368
        %v1484 = vpack.c.bf16 %v1370, %v1370
        %v1485 = vpack.c.bf16 %v1372, %v1372
        %v1486 = vpack.c.bf16 %v1374, %v1374
        %v1487 = vpack.c.bf16 %v1392, %v1392
        %v1488 = vpack.c.bf16 %v1394, %v1394
        %v1489 = vpack.c.bf16 %v1396, %v1396
        %v1490 = vpack.c.bf16 %v1398, %v1398
        %v1491 = vpack.c.bf16 %v1400, %v1400
        %v1492 = vpack.c.bf16 %v1402, %v1402
        %v1493 = vpack.c.bf16 %v1404, %v1404
        %v1494 = vpack.c.bf16 %v1406, %v1406
        %v1495 = vpack.c.bf16 %v1408, %v1408
        %v1496 = vpack.c.bf16 %v1410, %v1410
        %v1497 = vpack.c.bf16 %v1412, %v1412
        %v1498 = vpack.c.bf16 %v1414, %v1414
        %v1499 = vpack.c.bf16 %v1416, %v1416
        %v1500 = vpack.c.bf16 %v1418, %v1418
        %v1501 = vpack.c.bf16 %v1420, %v1420
        %v1502 = vpack.c.bf16 %v1422, %v1422
        %v1503 = vld [vmem:[#allocation2] sm:$0x1]
        %v1504 = vld [vmem:[#allocation2 + $0x1] sm:$0x1]
        %v1505 = vld [vmem:[#allocation2 + $0x2] sm:$0x1]
        %v1506 = vld [vmem:[#allocation2 + $0x3] sm:$0x1]
        %v1511 = vperm.slane %v1503, 0
        %v1512 = vperm.slane %v1504, 0
        %v1513 = vperm.slane %v1505, 0
        %v1514 = vperm.slane %v1506, 0
        %v1519 = vadd.f32 %v758, %v1511
        %v1520 = vadd.f32 %v760, %v1511
        %v1521 = vadd.f32 %v763, %v1511
        %v1522 = vadd.f32 %v765, %v1511
        %v1523 = vadd.f32 %v768, %v1511
        %v1524 = vadd.f32 %v770, %v1511
        %v1525 = vadd.f32 %v773, %v1511
        %v1526 = vadd.f32 %v775, %v1511
        %v1527 = vadd.f32 %v778, %v1511
        %v1528 = vadd.f32 %v780, %v1511
        %v1529 = vadd.f32 %v783, %v1511
        %v1530 = vadd.f32 %v785, %v1511
        %v1531 = vadd.f32 %v788, %v1511
        %v1532 = vadd.f32 %v790, %v1511
        %v1533 = vadd.f32 %v793, %v1511
        %v1534 = vadd.f32 %v795, %v1511
        %v1535 = vadd.f32 %v912, %v1512
        %v1536 = vadd.f32 %v914, %v1512
        %v1537 = vadd.f32 %v916, %v1512
        %v1538 = vadd.f32 %v918, %v1512
        %v1539 = vadd.f32 %v920, %v1512
        %v1540 = vadd.f32 %v922, %v1512
        %v1541 = vadd.f32 %v924, %v1512
        %v1542 = vadd.f32 %v926, %v1512
        %v1543 = vadd.f32 %v928, %v1512
        %v1544 = vadd.f32 %v930, %v1512
        %v1545 = vadd.f32 %v932, %v1512
        %v1546 = vadd.f32 %v934, %v1512
        %v1547 = vadd.f32 %v936, %v1512
        %v1548 = vadd.f32 %v938, %v1512
        %v1549 = vadd.f32 %v940, %v1512
        %v1550 = vadd.f32 %v942, %v1512
        %v1551 = vadd.f32 %v960, %v1513
        %v1552 = vadd.f32 %v962, %v1513
        %v1553 = vadd.f32 %v964, %v1513
        %v1554 = vadd.f32 %v966, %v1513
        %v1555 = vadd.f32 %v968, %v1513
        %v1556 = vadd.f32 %v970, %v1513
        %v1557 = vadd.f32 %v972, %v1513
        %v1558 = vadd.f32 %v974, %v1513
        %v1559 = vadd.f32 %v976, %v1513
        %v1560 = vadd.f32 %v978, %v1513
        %v1561 = vadd.f32 %v980, %v1513
        %v1562 = vadd.f32 %v982, %v1513
        %v1563 = vadd.f32 %v984, %v1513
        %v1564 = vadd.f32 %v986, %v1513
        %v1565 = vadd.f32 %v988, %v1513
        %v1566 = vadd.f32 %v990, %v1513
        %v1567 = vadd.f32 %v1008, %v1514
        %v1568 = vadd.f32 %v1010, %v1514
        %v1569 = vadd.f32 %v1012, %v1514
        %v1570 = vadd.f32 %v1014, %v1514
        %v1571 = vadd.f32 %v1016, %v1514
        %v1572 = vadd.f32 %v1018, %v1514
        %v1573 = vadd.f32 %v1020, %v1514
        %v1574 = vadd.f32 %v1022, %v1514
        %v1575 = vadd.f32 %v1024, %v1514
        %v1576 = vadd.f32 %v1026, %v1514
        %v1577 = vadd.f32 %v1028, %v1514
        %v1578 = vadd.f32 %v1030, %v1514
        %v1579 = vadd.f32 %v1032, %v1514
        %v1580 = vadd.f32 %v1034, %v1514
        %v1581 = vadd.f32 %v1036, %v1514
        %v1582 = vadd.f32 %v1038, %v1514
        %v1583 = vmul.f32 %v1519, 0.17677669
        %v1584 = vmul.f32 %v1520, 0.17677669
        %v1585 = vmul.f32 %v1521, 0.17677669
        %v1586 = vmul.f32 %v1522, 0.17677669
        %v1587 = vmul.f32 %v1523, 0.17677669
        %v1588 = vmul.f32 %v1524, 0.17677669
        %v1589 = vmul.f32 %v1525, 0.17677669
        %v1590 = vmul.f32 %v1526, 0.17677669
        %v1591 = vmul.f32 %v1527, 0.17677669
        %v1592 = vmul.f32 %v1528, 0.17677669
        %v1593 = vmul.f32 %v1529, 0.17677669
        %v1594 = vmul.f32 %v1530, 0.17677669
        %v1595 = vmul.f32 %v1531, 0.17677669
        %v1596 = vmul.f32 %v1532, 0.17677669
        %v1597 = vmul.f32 %v1533, 0.17677669
        %v1598 = vmul.f32 %v1534, 0.17677669
        %v1599 = vmul.f32 %v1535, 0.17677669
        %v1600 = vmul.f32 %v1536, 0.17677669
        %v1601 = vmul.f32 %v1537, 0.17677669
        %v1602 = vmul.f32 %v1538, 0.17677669
        %v1603 = vmul.f32 %v1539, 0.17677669
        %v1604 = vmul.f32 %v1540, 0.17677669
        %v1605 = vmul.f32 %v1541, 0.17677669
        %v1606 = vmul.f32 %v1542, 0.17677669
        %v1607 = vmul.f32 %v1543, 0.17677669
        %v1608 = vmul.f32 %v1544, 0.17677669
        %v1609 = vmul.f32 %v1545, 0.17677669
        %v1610 = vmul.f32 %v1546, 0.17677669
        %v1611 = vmul.f32 %v1547, 0.17677669
        %v1612 = vmul.f32 %v1548, 0.17677669
        %v1613 = vmul.f32 %v1549, 0.17677669
        %v1614 = vmul.f32 %v1550, 0.17677669
        %v1615 = vmul.f32 %v1551, 0.17677669
        %v1616 = vmul.f32 %v1552, 0.17677669
        %v1617 = vmul.f32 %v1553, 0.17677669
        %v1618 = vmul.f32 %v1554, 0.17677669
        %v1619 = vmul.f32 %v1555, 0.17677669
        %v1620 = vmul.f32 %v1556, 0.17677669
        %v1621 = vmul.f32 %v1557, 0.17677669
        %v1622 = vmul.f32 %v1558, 0.17677669
        %v1623 = vmul.f32 %v1559, 0.17677669
        %v1624 = vmul.f32 %v1560, 0.17677669
        %v1625 = vmul.f32 %v1561, 0.17677669
        %v1626 = vmul.f32 %v1562, 0.17677669
        %v1627 = vmul.f32 %v1563, 0.17677669
        %v1628 = vmul.f32 %v1564, 0.17677669
        %v1629 = vmul.f32 %v1565, 0.17677669
        %v1630 = vmul.f32 %v1566, 0.17677669
        %v1631 = vmul.f32 %v1567, 0.17677669
        %v1632 = vmul.f32 %v1568, 0.17677669
        %v1633 = vmul.f32 %v1569, 0.17677669
        %v1634 = vmul.f32 %v1570, 0.17677669
        %v1635 = vmul.f32 %v1571, 0.17677669
        %v1636 = vmul.f32 %v1572, 0.17677669
        %v1637 = vmul.f32 %v1573, 0.17677669
        %v1638 = vmul.f32 %v1574, 0.17677669
        %v1639 = vmul.f32 %v1575, 0.17677669
        %v1640 = vmul.f32 %v1576, 0.17677669
        %v1641 = vmul.f32 %v1577, 0.17677669
        %v1642 = vmul.f32 %v1578, 0.17677669
        %v1643 = vmul.f32 %v1579, 0.17677669
        %v1644 = vmul.f32 %v1580, 0.17677669
        %v1645 = vmul.f32 %v1581, 0.17677669
        %v1646 = vmul.f32 %v1582, 0.17677669
        %v1647 = vpack.c.bf16 %v1583, %v1583
        %v1648 = vpack.c.bf16 %v1584, %v1584
        %v1649 = vpack.c.bf16 %v1585, %v1585
        %v1650 = vpack.c.bf16 %v1586, %v1586
        %v1651 = vpack.c.bf16 %v1587, %v1587
        %v1652 = vpack.c.bf16 %v1588, %v1588
        %v1653 = vpack.c.bf16 %v1589, %v1589
        %v1654 = vpack.c.bf16 %v1590, %v1590
        %v1655 = vpack.c.bf16 %v1591, %v1591
        %v1656 = vpack.c.bf16 %v1592, %v1592
        %v1657 = vpack.c.bf16 %v1593, %v1593
        %v1658 = vpack.c.bf16 %v1594, %v1594
        %v1659 = vpack.c.bf16 %v1595, %v1595
        %v1660 = vpack.c.bf16 %v1596, %v1596
        %v1661 = vpack.c.bf16 %v1597, %v1597
        %v1662 = vpack.c.bf16 %v1598, %v1598
        %v1663 = vpack.c.bf16 %v1599, %v1599
        %v1664 = vpack.c.bf16 %v1600, %v1600
        %v1665 = vpack.c.bf16 %v1601, %v1601
        %v1666 = vpack.c.bf16 %v1602, %v1602
        %v1667 = vpack.c.bf16 %v1603, %v1603
        %v1668 = vpack.c.bf16 %v1604, %v1604
        %v1669 = vpack.c.bf16 %v1605, %v1605
        %v1670 = vpack.c.bf16 %v1606, %v1606
        %v1671 = vpack.c.bf16 %v1607, %v1607
        %v1672 = vpack.c.bf16 %v1608, %v1608
        %v1673 = vpack.c.bf16 %v1609, %v1609
        %v1674 = vpack.c.bf16 %v1610, %v1610
        %v1675 = vpack.c.bf16 %v1611, %v1611
        %v1676 = vpack.c.bf16 %v1612, %v1612
        %v1677 = vpack.c.bf16 %v1613, %v1613
        %v1678 = vpack.c.bf16 %v1614, %v1614
        %v1679 = vpack.c.bf16 %v1615, %v1615
        %v1680 = vpack.c.bf16 %v1616, %v1616
        %v1681 = vpack.c.bf16 %v1617, %v1617
        %v1682 = vpack.c.bf16 %v1618, %v1618
        %v1683 = vpack.c.bf16 %v1619, %v1619
        %v1684 = vpack.c.bf16 %v1620, %v1620
        %v1685 = vpack.c.bf16 %v1621, %v1621
        %v1686 = vpack.c.bf16 %v1622, %v1622
        %v1687 = vpack.c.bf16 %v1623, %v1623
        %v1688 = vpack.c.bf16 %v1624, %v1624
        %v1689 = vpack.c.bf16 %v1625, %v1625
        %v1690 = vpack.c.bf16 %v1626, %v1626
        %v1691 = vpack.c.bf16 %v1627, %v1627
        %v1692 = vpack.c.bf16 %v1628, %v1628
        %v1693 = vpack.c.bf16 %v1629, %v1629
        %v1694 = vpack.c.bf16 %v1630, %v1630
        %v1695 = vpack.c.bf16 %v1631, %v1631
        %v1696 = vpack.c.bf16 %v1632, %v1632
        %v1697 = vpack.c.bf16 %v1633, %v1633
        %v1698 = vpack.c.bf16 %v1634, %v1634
        %v1699 = vpack.c.bf16 %v1635, %v1635
        %v1700 = vpack.c.bf16 %v1636, %v1636
        %v1701 = vpack.c.bf16 %v1637, %v1637
        %v1702 = vpack.c.bf16 %v1638, %v1638
        %v1703 = vpack.c.bf16 %v1639, %v1639
        %v1704 = vpack.c.bf16 %v1640, %v1640
        %v1705 = vpack.c.bf16 %v1641, %v1641
        %v1706 = vpack.c.bf16 %v1642, %v1642
        %v1707 = vpack.c.bf16 %v1643, %v1643
        %v1708 = vpack.c.bf16 %v1644, %v1644
        %v1709 = vpack.c.bf16 %v1645, %v1645
        %v1710 = vpack.c.bf16 %v1646, %v1646
        %v1711 = vld [vmem:[#allocation5] sm:$0x1]
        %v1712 = vld [vmem:[#allocation5 + $0x1] sm:$0x1]
        %v1713 = vld [vmem:[#allocation5 + $0x2] sm:$0x1]
        %v1714 = vld [vmem:[#allocation5 + $0x3] sm:$0x1]
        %v1719 = vperm.slane %v1711, 0
        %v1720 = vperm.slane %v1712, 0
        %v1721 = vperm.slane %v1713, 0
        %v1722 = vperm.slane %v1714, 0
        %v1727 = vadd.f32 %v758, %v1719
        %v1728 = vadd.f32 %v760, %v1719
        %v1729 = vadd.f32 %v763, %v1719
        %v1730 = vadd.f32 %v765, %v1719
        %v1731 = vadd.f32 %v768, %v1719
        %v1732 = vadd.f32 %v770, %v1719
        %v1733 = vadd.f32 %v773, %v1719
        %v1734 = vadd.f32 %v775, %v1719
        %v1735 = vadd.f32 %v778, %v1719
        %v1736 = vadd.f32 %v780, %v1719
        %v1737 = vadd.f32 %v783, %v1719
        %v1738 = vadd.f32 %v785, %v1719
        %v1739 = vadd.f32 %v788, %v1719
        %v1740 = vadd.f32 %v790, %v1719
        %v1741 = vadd.f32 %v793, %v1719
        %v1742 = vadd.f32 %v795, %v1719
        %v1743 = vadd.f32 %v912, %v1720
        %v1744 = vadd.f32 %v914, %v1720
        %v1745 = vadd.f32 %v916, %v1720
        %v1746 = vadd.f32 %v918, %v1720
        %v1747 = vadd.f32 %v920, %v1720
        %v1748 = vadd.f32 %v922, %v1720
        %v1749 = vadd.f32 %v924, %v1720
        %v1750 = vadd.f32 %v926, %v1720
        %v1751 = vadd.f32 %v928, %v1720
        %v1752 = vadd.f32 %v930, %v1720
        %v1753 = vadd.f32 %v932, %v1720
        %v1754 = vadd.f32 %v934, %v1720
        %v1755 = vadd.f32 %v936, %v1720
        %v1756 = vadd.f32 %v938, %v1720
        %v1757 = vadd.f32 %v940, %v1720
        %v1758 = vadd.f32 %v942, %v1720
        %v1759 = vadd.f32 %v960, %v1721
        %v1760 = vadd.f32 %v962, %v1721
        %v1761 = vadd.f32 %v964, %v1721
        %v1762 = vadd.f32 %v966, %v1721
        %v1763 = vadd.f32 %v968, %v1721
        %v1764 = vadd.f32 %v970, %v1721
        %v1765 = vadd.f32 %v972, %v1721
        %v1766 = vadd.f32 %v974, %v1721
        %v1767 = vadd.f32 %v976, %v1721
        %v1768 = vadd.f32 %v978, %v1721
        %v1769 = vadd.f32 %v980, %v1721
        %v1770 = vadd.f32 %v982, %v1721
        %v1771 = vadd.f32 %v984, %v1721
        %v1772 = vadd.f32 %v986, %v1721
        %v1773 = vadd.f32 %v988, %v1721
        %v1774 = vadd.f32 %v990, %v1721
        %v1775 = vadd.f32 %v1008, %v1722
        %v1776 = vadd.f32 %v1010, %v1722
        %v1777 = vadd.f32 %v1012, %v1722
        %v1778 = vadd.f32 %v1014, %v1722
        %v1779 = vadd.f32 %v1016, %v1722
        %v1780 = vadd.f32 %v1018, %v1722
        %v1781 = vadd.f32 %v1020, %v1722
        %v1782 = vadd.f32 %v1022, %v1722
        %v1783 = vadd.f32 %v1024, %v1722
        %v1784 = vadd.f32 %v1026, %v1722
        %v1785 = vadd.f32 %v1028, %v1722
        %v1786 = vadd.f32 %v1030, %v1722
        %v1787 = vadd.f32 %v1032, %v1722
        %v1788 = vadd.f32 %v1034, %v1722
        %v1789 = vadd.f32 %v1036, %v1722
        %v1790 = vadd.f32 %v1038, %v1722
        %v1791 = vmul.f32 %v1727, 0.17677669
        %v1792 = vmul.f32 %v1728, 0.17677669
        %v1793 = vmul.f32 %v1729, 0.17677669
        %v1794 = vmul.f32 %v1730, 0.17677669
        %v1795 = vmul.f32 %v1731, 0.17677669
        %v1796 = vmul.f32 %v1732, 0.17677669
        %v1797 = vmul.f32 %v1733, 0.17677669
        %v1798 = vmul.f32 %v1734, 0.17677669
        %v1799 = vmul.f32 %v1735, 0.17677669
        %v1800 = vmul.f32 %v1736, 0.17677669
        %v1801 = vmul.f32 %v1737, 0.17677669
        %v1802 = vmul.f32 %v1738, 0.17677669
        %v1803 = vmul.f32 %v1739, 0.17677669
        %v1804 = vmul.f32 %v1740, 0.17677669
        %v1805 = vmul.f32 %v1741, 0.17677669
        %v1806 = vmul.f32 %v1742, 0.17677669
        %v1807 = vmul.f32 %v1743, 0.17677669
        %v1808 = vmul.f32 %v1744, 0.17677669
        %v1809 = vmul.f32 %v1745, 0.17677669
        %v1810 = vmul.f32 %v1746, 0.17677669
        %v1811 = vmul.f32 %v1747, 0.17677669
        %v1812 = vmul.f32 %v1748, 0.17677669
        %v1813 = vmul.f32 %v1749, 0.17677669
        %v1814 = vmul.f32 %v1750, 0.17677669
        %v1815 = vmul.f32 %v1751, 0.17677669
        %v1816 = vmul.f32 %v1752, 0.17677669
        %v1817 = vmul.f32 %v1753, 0.17677669
        %v1818 = vmul.f32 %v1754, 0.17677669
        %v1819 = vmul.f32 %v1755, 0.17677669
        %v1820 = vmul.f32 %v1756, 0.17677669
        %v1821 = vmul.f32 %v1757, 0.17677669
        %v1822 = vmul.f32 %v1758, 0.17677669
        %v1823 = vmul.f32 %v1759, 0.17677669
        %v1824 = vmul.f32 %v1760, 0.17677669
        %v1825 = vmul.f32 %v1761, 0.17677669
        %v1826 = vmul.f32 %v1762, 0.17677669
        %v1827 = vmul.f32 %v1763, 0.17677669
        %v1828 = vmul.f32 %v1764, 0.17677669
        %v1829 = vmul.f32 %v1765, 0.17677669
        %v1830 = vmul.f32 %v1766, 0.17677669
        %v1831 = vmul.f32 %v1767, 0.17677669
        %v1832 = vmul.f32 %v1768, 0.17677669
        %v1833 = vmul.f32 %v1769, 0.17677669
        %v1834 = vmul.f32 %v1770, 0.17677669
        %v1835 = vmul.f32 %v1771, 0.17677669
        %v1836 = vmul.f32 %v1772, 0.17677669
        %v1837 = vmul.f32 %v1773, 0.17677669
        %v1838 = vmul.f32 %v1774, 0.17677669
        %v1839 = vmul.f32 %v1775, 0.17677669
        %v1840 = vmul.f32 %v1776, 0.17677669
        %v1841 = vmul.f32 %v1777, 0.17677669
        %v1842 = vmul.f32 %v1778, 0.17677669
        %v1843 = vmul.f32 %v1779, 0.17677669
        %v1844 = vmul.f32 %v1780, 0.17677669
        %v1845 = vmul.f32 %v1781, 0.17677669
        %v1846 = vmul.f32 %v1782, 0.17677669
        %v1847 = vmul.f32 %v1783, 0.17677669
        %v1848 = vmul.f32 %v1784, 0.17677669
        %v1849 = vmul.f32 %v1785, 0.17677669
        %v1850 = vmul.f32 %v1786, 0.17677669
        %v1851 = vmul.f32 %v1787, 0.17677669
        %v1852 = vmul.f32 %v1788, 0.17677669
        %v1853 = vmul.f32 %v1789, 0.17677669
        %v1854 = vmul.f32 %v1790, 0.17677669
        %v1855 = vpack.c.bf16 %v1791, %v1791
        %v1856 = vpack.c.bf16 %v1792, %v1792
        %v1857 = vpack.c.bf16 %v1793, %v1793
        %v1858 = vpack.c.bf16 %v1794, %v1794
        %v1859 = vpack.c.bf16 %v1795, %v1795
        %v1860 = vpack.c.bf16 %v1796, %v1796
        %v1861 = vpack.c.bf16 %v1797, %v1797
        %v1862 = vpack.c.bf16 %v1798, %v1798
        %v1863 = vpack.c.bf16 %v1799, %v1799
        %v1864 = vpack.c.bf16 %v1800, %v1800
        %v1865 = vpack.c.bf16 %v1801, %v1801
        %v1866 = vpack.c.bf16 %v1802, %v1802
        %v1867 = vpack.c.bf16 %v1803, %v1803
        %v1868 = vpack.c.bf16 %v1804, %v1804
        %v1869 = vpack.c.bf16 %v1805, %v1805
        %v1870 = vpack.c.bf16 %v1806, %v1806
        %v1871 = vpack.c.bf16 %v1807, %v1807
        %v1872 = vpack.c.bf16 %v1808, %v1808
        %v1873 = vpack.c.bf16 %v1809, %v1809
        %v1874 = vpack.c.bf16 %v1810, %v1810
        %v1875 = vpack.c.bf16 %v1811, %v1811
        %v1876 = vpack.c.bf16 %v1812, %v1812
        %v1877 = vpack.c.bf16 %v1813, %v1813
        %v1878 = vpack.c.bf16 %v1814, %v1814
        %v1879 = vpack.c.bf16 %v1815, %v1815
        %v1880 = vpack.c.bf16 %v1816, %v1816
        %v1881 = vpack.c.bf16 %v1817, %v1817
        %v1882 = vpack.c.bf16 %v1818, %v1818
        %v1883 = vpack.c.bf16 %v1819, %v1819
        %v1884 = vpack.c.bf16 %v1820, %v1820
        %v1885 = vpack.c.bf16 %v1821, %v1821
        %v1886 = vpack.c.bf16 %v1822, %v1822
        %v1887 = vpack.c.bf16 %v1823, %v1823
        %v1888 = vpack.c.bf16 %v1824, %v1824
        %v1889 = vpack.c.bf16 %v1825, %v1825
        %v1890 = vpack.c.bf16 %v1826, %v1826
        %v1891 = vpack.c.bf16 %v1827, %v1827
        %v1892 = vpack.c.bf16 %v1828, %v1828
        %v1893 = vpack.c.bf16 %v1829, %v1829
        %v1894 = vpack.c.bf16 %v1830, %v1830
        %v1895 = vpack.c.bf16 %v1831, %v1831
        %v1896 = vpack.c.bf16 %v1832, %v1832
        %v1897 = vpack.c.bf16 %v1833, %v1833
        %v1898 = vpack.c.bf16 %v1834, %v1834
        %v1899 = vpack.c.bf16 %v1835, %v1835
        %v1900 = vpack.c.bf16 %v1836, %v1836
        %v1901 = vpack.c.bf16 %v1837, %v1837
        %v1902 = vpack.c.bf16 %v1838, %v1838
        %v1903 = vpack.c.bf16 %v1839, %v1839
        %v1904 = vpack.c.bf16 %v1840, %v1840
        %v1905 = vpack.c.bf16 %v1841, %v1841
        %v1906 = vpack.c.bf16 %v1842, %v1842
        %v1907 = vpack.c.bf16 %v1843, %v1843
        %v1908 = vpack.c.bf16 %v1844, %v1844
        %v1909 = vpack.c.bf16 %v1845, %v1845
        %v1910 = vpack.c.bf16 %v1846, %v1846
        %v1911 = vpack.c.bf16 %v1847, %v1847
        %v1912 = vpack.c.bf16 %v1848, %v1848
        %v1913 = vpack.c.bf16 %v1849, %v1849
        %v1914 = vpack.c.bf16 %v1850, %v1850
        %v1915 = vpack.c.bf16 %v1851, %v1851
        %v1916 = vpack.c.bf16 %v1852, %v1852
        %v1917 = vpack.c.bf16 %v1853, %v1853
        %v1918 = vpack.c.bf16 %v1854, %v1854
        %v1919 = vld [vmem:[%s1] sm:$0xf]
        %v1920 = vld [vmem:[%s1 + $0x4] sm:$0xf]
        %v1921 = vld [vmem:[%s1 + $0x8] sm:$0xf]
        %v1922 = vld [vmem:[%s1 + $0xc] sm:$0xf]
        %v1923 = vld [vmem:[%s1 + $0x10] sm:$0xf]
        %v1924 = vld [vmem:[%s1 + $0x14] sm:$0xf]
        %v1925 = vld [vmem:[%s1 + $0x18] sm:$0xf]
        %v1926 = vld [vmem:[%s1 + $0x1c] sm:$0xf]
        %v1927 = vld [vmem:[%s1 + $0x20] sm:$0xf]
        %v1928 = vld [vmem:[%s1 + $0x24] sm:$0xf]
        %v1929 = vld [vmem:[%s1 + $0x28] sm:$0xf]
        %v1930 = vld [vmem:[%s1 + $0x2c] sm:$0xf]
        %v1931 = vld [vmem:[%s1 + $0x30] sm:$0xf]
        %v1932 = vld [vmem:[%s1 + $0x34] sm:$0xf]
        %v1933 = vld [vmem:[%s1 + $0x38] sm:$0xf]
        %v1934 = vld [vmem:[%s1 + $0x3c] sm:$0xf]
        %v1935 = vld [vmem:[%s1 + $0x40] sm:$0xf]
        %v1936 = vld [vmem:[%s1 + $0x44] sm:$0xf]
        %v1937 = vld [vmem:[%s1 + $0x48] sm:$0xf]
        %v1938 = vld [vmem:[%s1 + $0x4c] sm:$0xf]
        %v1939 = vld [vmem:[%s1 + $0x50] sm:$0xf]
        %v1940 = vld [vmem:[%s1 + $0x54] sm:$0xf]
        %v1941 = vld [vmem:[%s1 + $0x58] sm:$0xf]
        %v1942 = vld [vmem:[%s1 + $0x5c] sm:$0xf]
        %v1943 = vld [vmem:[%s1 + $0x60] sm:$0xf]
        %v1944 = vld [vmem:[%s1 + $0x64] sm:$0xf]
        %v1945 = vld [vmem:[%s1 + $0x68] sm:$0xf]
        %v1946 = vld [vmem:[%s1 + $0x6c] sm:$0xf]
        %v1947 = vld [vmem:[%s1 + $0x70] sm:$0xf]
        %v1948 = vld [vmem:[%s1 + $0x74] sm:$0xf]
        %v1949 = vld [vmem:[%s1 + $0x78] sm:$0xf]
        %v1950 = vld [vmem:[%s1 + $0x7c] sm:$0xf]
        %v1951 = vld [vmem:[%s1 + $0x80] sm:$0xf]
        %v1952 = vld [vmem:[%s1 + $0x84] sm:$0xf]
        %v1953 = vld [vmem:[%s1 + $0x88] sm:$0xf]
        %v1954 = vld [vmem:[%s1 + $0x8c] sm:$0xf]
        %v1955 = vld [vmem:[%s1 + $0x90] sm:$0xf]
        %v1956 = vld [vmem:[%s1 + $0x94] sm:$0xf]
        %v1957 = vld [vmem:[%s1 + $0x98] sm:$0xf]
        %v1958 = vld [vmem:[%s1 + $0x9c] sm:$0xf]
        %v1959 = vld [vmem:[%s1 + $0xa0] sm:$0xf]
        %v1960 = vld [vmem:[%s1 + $0xa4] sm:$0xf]
        %v1961 = vld [vmem:[%s1 + $0xa8] sm:$0xf]
        %v1962 = vld [vmem:[%s1 + $0xac] sm:$0xf]
        %v1963 = vld [vmem:[%s1 + $0xb0] sm:$0xf]
        %v1964 = vld [vmem:[%s1 + $0xb4] sm:$0xf]
        %v1965 = vld [vmem:[%s1 + $0xb8] sm:$0xf]
        %v1966 = vld [vmem:[%s1 + $0xbc] sm:$0xf]
        %v1967 = vld [vmem:[%s1 + $0xc0] sm:$0xf]
        %v1968 = vld [vmem:[%s1 + $0xc4] sm:$0xf]
        %v1969 = vld [vmem:[%s1 + $0xc8] sm:$0xf]
        %v1970 = vld [vmem:[%s1 + $0xcc] sm:$0xf]
        %v1971 = vld [vmem:[%s1 + $0xd0] sm:$0xf]
        %v1972 = vld [vmem:[%s1 + $0xd4] sm:$0xf]
        %v1973 = vld [vmem:[%s1 + $0xd8] sm:$0xf]
        %v1974 = vld [vmem:[%s1 + $0xdc] sm:$0xf]
        %v1975 = vld [vmem:[%s1 + $0xe0] sm:$0xf]
        %v1976 = vld [vmem:[%s1 + $0xe4] sm:$0xf]
        %v1977 = vld [vmem:[%s1 + $0xe8] sm:$0xf]
        %v1978 = vld [vmem:[%s1 + $0xec] sm:$0xf]
        %v1979 = vld [vmem:[%s1 + $0xf0] sm:$0xf]
        %v1980 = vld [vmem:[%s1 + $0xf4] sm:$0xf]
        %v1981 = vld [vmem:[%s1 + $0xf8] sm:$0xf]
        %v1982 = vld [vmem:[%s1 + $0xfc] sm:$0xf]
        %v1999 = vunpack.c.l.b16 %v1855
        %v2000 = vunpack.c.l.b16 %v1856
        %v2001 = vunpack.c.l.b16 %v1857
        %v2002 = vunpack.c.l.b16 %v1858
        %v2003 = vunpack.c.l.b16 %v1859
        %v2004 = vunpack.c.l.b16 %v1860
        %v2005 = vunpack.c.l.b16 %v1861
        %v2006 = vunpack.c.l.b16 %v1862
        %v2007 = vunpack.c.l.b16 %v1863
        %v2008 = vunpack.c.l.b16 %v1864
        %v2009 = vunpack.c.l.b16 %v1865
        %v2010 = vunpack.c.l.b16 %v1866
        %v2011 = vunpack.c.l.b16 %v1867
        %v2012 = vunpack.c.l.b16 %v1868
        %v2013 = vunpack.c.l.b16 %v1869
        %v2014 = vunpack.c.l.b16 %v1870
        %v2015 = vpack.c.b16 %v2000, %v1999
        %v2016 = vpack.c.b16 %v2002, %v2001
        %v2017 = vpack.c.b16 %v2004, %v2003
        %v2018 = vpack.c.b16 %v2006, %v2005
        %v2019 = vpack.c.b16 %v2008, %v2007
        %v2020 = vpack.c.b16 %v2010, %v2009
        %v2021 = vpack.c.b16 %v2012, %v2011
        %v2022 = vpack.c.b16 %v2014, %v2013
        %v2039 = vunpack.c.l.b16 %v1919
        %v2040 = vunpack.c.l.b16 %v1920
        %v2041 = vunpack.c.l.b16 %v1921
        %v2042 = vunpack.c.l.b16 %v1922
        %v2043 = vunpack.c.l.b16 %v1923
        %v2044 = vunpack.c.l.b16 %v1924
        %v2045 = vunpack.c.l.b16 %v1925
        %v2046 = vunpack.c.l.b16 %v1926
        %v2047 = vunpack.c.l.b16 %v1927
        %v2048 = vunpack.c.l.b16 %v1928
        %v2049 = vunpack.c.l.b16 %v1929
        %v2050 = vunpack.c.l.b16 %v1930
        %v2051 = vunpack.c.l.b16 %v1931
        %v2052 = vunpack.c.l.b16 %v1932
        %v2053 = vunpack.c.l.b16 %v1933
        %v2054 = vunpack.c.l.b16 %v1934
        %v2055 = vpack.c.b16 %v2040, %v2039
        %v2056 = vpack.c.b16 %v2042, %v2041
        %v2057 = vpack.c.b16 %v2044, %v2043
        %v2058 = vpack.c.b16 %v2046, %v2045
        %v2059 = vpack.c.b16 %v2048, %v2047
        %v2060 = vpack.c.b16 %v2050, %v2049
        %v2061 = vpack.c.b16 %v2052, %v2051
        %v2062 = vpack.c.b16 %v2054, %v2053
        %vm2063 = vcmask 261120
        %v2065 = vsel %vm2063, %v2015, 0
        %v2068 = vsel %vm2063, %v2016, 0
        %v2071 = vsel %vm2063, %v2017, 0
        %v2074 = vsel %vm2063, %v2018, 0
        %v2077 = vsel %vm2063, %v2019, 0
        %v2080 = vsel %vm2063, %v2020, 0
        %v2083 = vsel %vm2063, %v2021, 0
        %v2086 = vsel %vm2063, %v2022, 0
        %v2089 = vsel %vm2063, %v2055, 0
        %v2092 = vsel %vm2063, %v2056, 0
        %v2095 = vsel %vm2063, %v2057, 0
        %v2098 = vsel %vm2063, %v2058, 0
        %v2101 = vsel %vm2063, %v2059, 0
        %v2104 = vsel %vm2063, %v2060, 0
        %v2107 = vsel %vm2063, %v2061, 0
        %v2110 = vsel %vm2063, %v2062, 0
        %2112 = vmatpush.bf16.xpose.msra.mxu0 %v2110
        %2113 = vmatpush.bf16.xpose.msra.mxu0 %v2107
        %2114 = vmatpush.bf16.xpose.msra.mxu0 %v2104
        %2115 = vmatpush.bf16.xpose.msra.mxu0 %v2101
        %2116 = vmatpush.bf16.xpose.msra.mxu0 %v2098
        %2117 = vmatpush.bf16.xpose.msra.mxu0 %v2095
        %2118 = vmatpush.bf16.xpose.msra.mxu0 %v2092
        %2119 = vmatpush.bf16.xpose.msra.mxu0 %v2089
        %2120 = vmatmul.bf16.gmra.mxu0 %v2065
        %v2121 = vpop.f32.mrf.mxu0
        %v2122 = vadd.f32 0.0, %v2121
        %v2123 = vpop.f32.mrf.mxu0
        %v2124 = vadd.f32 0.0, %v2123
        %2125 = vmatmul.bf16.gmra.mxu0 %v2068
        %v2126 = vpop.f32.mrf.mxu0
        %v2127 = vadd.f32 0.0, %v2126
        %v2128 = vpop.f32.mrf.mxu0
        %v2129 = vadd.f32 0.0, %v2128
        %2130 = vmatmul.bf16.gmra.mxu0 %v2071
        %v2131 = vpop.f32.mrf.mxu0
        %v2132 = vadd.f32 0.0, %v2131
        %v2133 = vpop.f32.mrf.mxu0
        %v2134 = vadd.f32 0.0, %v2133
        %2135 = vmatmul.bf16.gmra.mxu0 %v2074
        %v2136 = vpop.f32.mrf.mxu0
        %v2137 = vadd.f32 0.0, %v2136
        %v2138 = vpop.f32.mrf.mxu0
        %v2139 = vadd.f32 0.0, %v2138
        %2140 = vmatmul.bf16.gmra.mxu0 %v2077
        %v2141 = vpop.f32.mrf.mxu0
        %v2142 = vadd.f32 0.0, %v2141
        %v2143 = vpop.f32.mrf.mxu0
        %v2144 = vadd.f32 0.0, %v2143
        %2145 = vmatmul.bf16.gmra.mxu0 %v2080
        %v2146 = vpop.f32.mrf.mxu0
        %v2147 = vadd.f32 0.0, %v2146
        %v2148 = vpop.f32.mrf.mxu0
        %v2149 = vadd.f32 0.0, %v2148
        %2150 = vmatmul.bf16.gmra.mxu0 %v2083
        %v2151 = vpop.f32.mrf.mxu0
        %v2152 = vadd.f32 0.0, %v2151
        %v2153 = vpop.f32.mrf.mxu0
        %v2154 = vadd.f32 0.0, %v2153
        %2155 = vmatmul.bf16.gmra.mxu0 %v2086
        %v2156 = vpop.f32.mrf.mxu0
        %v2157 = vadd.f32 0.0, %v2156
        %v2158 = vpop.f32.mrf.mxu0
        %v2159 = vadd.f32 0.0, %v2158
        %2160 = vdwg.mxu0
        %v2177 = vunpack.c.l.b16 %v1871
        %v2178 = vunpack.c.l.b16 %v1872
        %v2179 = vunpack.c.l.b16 %v1873
        %v2180 = vunpack.c.l.b16 %v1874
        %v2181 = vunpack.c.l.b16 %v1875
        %v2182 = vunpack.c.l.b16 %v1876
        %v2183 = vunpack.c.l.b16 %v1877
        %v2184 = vunpack.c.l.b16 %v1878
        %v2185 = vunpack.c.l.b16 %v1879
        %v2186 = vunpack.c.l.b16 %v1880
        %v2187 = vunpack.c.l.b16 %v1881
        %v2188 = vunpack.c.l.b16 %v1882
        %v2189 = vunpack.c.l.b16 %v1883
        %v2190 = vunpack.c.l.b16 %v1884
        %v2191 = vunpack.c.l.b16 %v1885
        %v2192 = vunpack.c.l.b16 %v1886
        %v2193 = vpack.c.b16 %v2178, %v2177
        %v2194 = vpack.c.b16 %v2180, %v2179
        %v2195 = vpack.c.b16 %v2182, %v2181
        %v2196 = vpack.c.b16 %v2184, %v2183
        %v2197 = vpack.c.b16 %v2186, %v2185
        %v2198 = vpack.c.b16 %v2188, %v2187
        %v2199 = vpack.c.b16 %v2190, %v2189
        %v2200 = vpack.c.b16 %v2192, %v2191
        %v2217 = vunpack.c.l.b16 %v1935
        %v2218 = vunpack.c.l.b16 %v1936
        %v2219 = vunpack.c.l.b16 %v1937
        %v2220 = vunpack.c.l.b16 %v1938
        %v2221 = vunpack.c.l.b16 %v1939
        %v2222 = vunpack.c.l.b16 %v1940
        %v2223 = vunpack.c.l.b16 %v1941
        %v2224 = vunpack.c.l.b16 %v1942
        %v2225 = vunpack.c.l.b16 %v1943
        %v2226 = vunpack.c.l.b16 %v1944
        %v2227 = vunpack.c.l.b16 %v1945
        %v2228 = vunpack.c.l.b16 %v1946
        %v2229 = vunpack.c.l.b16 %v1947
        %v2230 = vunpack.c.l.b16 %v1948
        %v2231 = vunpack.c.l.b16 %v1949
        %v2232 = vunpack.c.l.b16 %v1950
        %v2233 = vpack.c.b16 %v2218, %v2217
        %v2234 = vpack.c.b16 %v2220, %v2219
        %v2235 = vpack.c.b16 %v2222, %v2221
        %v2236 = vpack.c.b16 %v2224, %v2223
        %v2237 = vpack.c.b16 %v2226, %v2225
        %v2238 = vpack.c.b16 %v2228, %v2227
        %v2239 = vpack.c.b16 %v2230, %v2229
        %v2240 = vpack.c.b16 %v2232, %v2231
        %v2242 = vsel %vm2063, %v2193, 0
        %v2245 = vsel %vm2063, %v2194, 0
        %v2248 = vsel %vm2063, %v2195, 0
        %v2251 = vsel %vm2063, %v2196, 0
        %v2254 = vsel %vm2063, %v2197, 0
        %v2257 = vsel %vm2063, %v2198, 0
        %v2260 = vsel %vm2063, %v2199, 0
        %v2263 = vsel %vm2063, %v2200, 0
        %v2266 = vsel %vm2063, %v2233, 0
        %v2269 = vsel %vm2063, %v2234, 0
        %v2272 = vsel %vm2063, %v2235, 0
        %v2275 = vsel %vm2063, %v2236, 0
        %v2278 = vsel %vm2063, %v2237, 0
        %v2281 = vsel %vm2063, %v2238, 0
        %v2284 = vsel %vm2063, %v2239, 0
        %v2287 = vsel %vm2063, %v2240, 0
        %2289 = vmatpush.bf16.xpose.msra.mxu0 %v2287
        %2290 = vmatpush.bf16.xpose.msra.mxu0 %v2284
        %2291 = vmatpush.bf16.xpose.msra.mxu0 %v2281
        %2292 = vmatpush.bf16.xpose.msra.mxu0 %v2278
        %2293 = vmatpush.bf16.xpose.msra.mxu0 %v2275
        %2294 = vmatpush.bf16.xpose.msra.mxu0 %v2272
        %2295 = vmatpush.bf16.xpose.msra.mxu0 %v2269
        %2296 = vmatpush.bf16.xpose.msra.mxu0 %v2266
        %2297 = vmatmul.bf16.gmra.mxu0 %v2242
        %v2298 = vpop.f32.mrf.mxu0
        %v2299 = vadd.f32 0.0, %v2298
        %v2300 = vpop.f32.mrf.mxu0
        %v2301 = vadd.f32 0.0, %v2300
        %2302 = vmatmul.bf16.gmra.mxu0 %v2245
        %v2303 = vpop.f32.mrf.mxu0
        %v2304 = vadd.f32 0.0, %v2303
        %v2305 = vpop.f32.mrf.mxu0
        %v2306 = vadd.f32 0.0, %v2305
        %2307 = vmatmul.bf16.gmra.mxu0 %v2248
        %v2308 = vpop.f32.mrf.mxu0
        %v2309 = vadd.f32 0.0, %v2308
        %v2310 = vpop.f32.mrf.mxu0
        %v2311 = vadd.f32 0.0, %v2310
        %2312 = vmatmul.bf16.gmra.mxu0 %v2251
        %v2313 = vpop.f32.mrf.mxu0
        %v2314 = vadd.f32 0.0, %v2313
        %v2315 = vpop.f32.mrf.mxu0
        %v2316 = vadd.f32 0.0, %v2315
        %2317 = vmatmul.bf16.gmra.mxu0 %v2254
        %v2318 = vpop.f32.mrf.mxu0
        %v2319 = vadd.f32 0.0, %v2318
        %v2320 = vpop.f32.mrf.mxu0
        %v2321 = vadd.f32 0.0, %v2320
        %2322 = vmatmul.bf16.gmra.mxu0 %v2257
        %v2323 = vpop.f32.mrf.mxu0
        %v2324 = vadd.f32 0.0, %v2323
        %v2325 = vpop.f32.mrf.mxu0
        %v2326 = vadd.f32 0.0, %v2325
        %2327 = vmatmul.bf16.gmra.mxu0 %v2260
        %v2328 = vpop.f32.mrf.mxu0
        %v2329 = vadd.f32 0.0, %v2328
        %v2330 = vpop.f32.mrf.mxu0
        %v2331 = vadd.f32 0.0, %v2330
        %2332 = vmatmul.bf16.gmra.mxu0 %v2263
        %v2333 = vpop.f32.mrf.mxu0
        %v2334 = vadd.f32 0.0, %v2333
        %v2335 = vpop.f32.mrf.mxu0
        %v2336 = vadd.f32 0.0, %v2335
        %2337 = vdwg.mxu0
        %v2354 = vunpack.c.l.b16 %v1887
        %v2355 = vunpack.c.l.b16 %v1888
        %v2356 = vunpack.c.l.b16 %v1889
        %v2357 = vunpack.c.l.b16 %v1890
        %v2358 = vunpack.c.l.b16 %v1891
        %v2359 = vunpack.c.l.b16 %v1892
        %v2360 = vunpack.c.l.b16 %v1893
        %v2361 = vunpack.c.l.b16 %v1894
        %v2362 = vunpack.c.l.b16 %v1895
        %v2363 = vunpack.c.l.b16 %v1896
        %v2364 = vunpack.c.l.b16 %v1897
        %v2365 = vunpack.c.l.b16 %v1898
        %v2366 = vunpack.c.l.b16 %v1899
        %v2367 = vunpack.c.l.b16 %v1900
        %v2368 = vunpack.c.l.b16 %v1901
        %v2369 = vunpack.c.l.b16 %v1902
        %v2370 = vpack.c.b16 %v2355, %v2354
        %v2371 = vpack.c.b16 %v2357, %v2356
        %v2372 = vpack.c.b16 %v2359, %v2358
        %v2373 = vpack.c.b16 %v2361, %v2360
        %v2374 = vpack.c.b16 %v2363, %v2362
        %v2375 = vpack.c.b16 %v2365, %v2364
        %v2376 = vpack.c.b16 %v2367, %v2366
        %v2377 = vpack.c.b16 %v2369, %v2368
        %v2394 = vunpack.c.l.b16 %v1951
        %v2395 = vunpack.c.l.b16 %v1952
        %v2396 = vunpack.c.l.b16 %v1953
        %v2397 = vunpack.c.l.b16 %v1954
        %v2398 = vunpack.c.l.b16 %v1955
        %v2399 = vunpack.c.l.b16 %v1956
        %v2400 = vunpack.c.l.b16 %v1957
        %v2401 = vunpack.c.l.b16 %v1958
        %v2402 = vunpack.c.l.b16 %v1959
        %v2403 = vunpack.c.l.b16 %v1960
        %v2404 = vunpack.c.l.b16 %v1961
        %v2405 = vunpack.c.l.b16 %v1962
        %v2406 = vunpack.c.l.b16 %v1963
        %v2407 = vunpack.c.l.b16 %v1964
        %v2408 = vunpack.c.l.b16 %v1965
        %v2409 = vunpack.c.l.b16 %v1966
        %v2410 = vpack.c.b16 %v2395, %v2394
        %v2411 = vpack.c.b16 %v2397, %v2396
        %v2412 = vpack.c.b16 %v2399, %v2398
        %v2413 = vpack.c.b16 %v2401, %v2400
        %v2414 = vpack.c.b16 %v2403, %v2402
        %v2415 = vpack.c.b16 %v2405, %v2404
        %v2416 = vpack.c.b16 %v2407, %v2406
        %v2417 = vpack.c.b16 %v2409, %v2408
        %v2419 = vsel %vm2063, %v2370, 0
        %v2422 = vsel %vm2063, %v2371, 0
        %v2425 = vsel %vm2063, %v2372, 0
        %v2428 = vsel %vm2063, %v2373, 0
        %v2431 = vsel %vm2063, %v2374, 0
        %v2434 = vsel %vm2063, %v2375, 0
        %v2437 = vsel %vm2063, %v2376, 0
        %v2440 = vsel %vm2063, %v2377, 0
        %v2443 = vsel %vm2063, %v2410, 0
        %v2446 = vsel %vm2063, %v2411, 0
        %v2449 = vsel %vm2063, %v2412, 0
        %v2452 = vsel %vm2063, %v2413, 0
        %v2455 = vsel %vm2063, %v2414, 0
        %v2458 = vsel %vm2063, %v2415, 0
        %v2461 = vsel %vm2063, %v2416, 0
        %v2464 = vsel %vm2063, %v2417, 0
        %2466 = vmatpush.bf16.xpose.msra.mxu0 %v2464
        %2467 = vmatpush.bf16.xpose.msra.mxu0 %v2461
        %2468 = vmatpush.bf16.xpose.msra.mxu0 %v2458
        %2469 = vmatpush.bf16.xpose.msra.mxu0 %v2455
        %2470 = vmatpush.bf16.xpose.msra.mxu0 %v2452
        %2471 = vmatpush.bf16.xpose.msra.mxu0 %v2449
        %2472 = vmatpush.bf16.xpose.msra.mxu0 %v2446
        %2473 = vmatpush.bf16.xpose.msra.mxu0 %v2443
        %2474 = vmatmul.bf16.gmra.mxu0 %v2419
        %v2475 = vpop.f32.mrf.mxu0
        %v2476 = vadd.f32 0.0, %v2475
        %v2477 = vpop.f32.mrf.mxu0
        %v2478 = vadd.f32 0.0, %v2477
        %2479 = vmatmul.bf16.gmra.mxu0 %v2422
        %v2480 = vpop.f32.mrf.mxu0
        %v2481 = vadd.f32 0.0, %v2480
        %v2482 = vpop.f32.mrf.mxu0
        %v2483 = vadd.f32 0.0, %v2482
        %2484 = vmatmul.bf16.gmra.mxu0 %v2425
        %v2485 = vpop.f32.mrf.mxu0
        %v2486 = vadd.f32 0.0, %v2485
        %v2487 = vpop.f32.mrf.mxu0
        %v2488 = vadd.f32 0.0, %v2487
        %2489 = vmatmul.bf16.gmra.mxu0 %v2428
        %v2490 = vpop.f32.mrf.mxu0
        %v2491 = vadd.f32 0.0, %v2490
        %v2492 = vpop.f32.mrf.mxu0
        %v2493 = vadd.f32 0.0, %v2492
        %2494 = vmatmul.bf16.gmra.mxu0 %v2431
        %v2495 = vpop.f32.mrf.mxu0
        %v2496 = vadd.f32 0.0, %v2495
        %v2497 = vpop.f32.mrf.mxu0
        %v2498 = vadd.f32 0.0, %v2497
        %2499 = vmatmul.bf16.gmra.mxu0 %v2434
        %v2500 = vpop.f32.mrf.mxu0
        %v2501 = vadd.f32 0.0, %v2500
        %v2502 = vpop.f32.mrf.mxu0
        %v2503 = vadd.f32 0.0, %v2502
        %2504 = vmatmul.bf16.gmra.mxu0 %v2437
        %v2505 = vpop.f32.mrf.mxu0
        %v2506 = vadd.f32 0.0, %v2505
        %v2507 = vpop.f32.mrf.mxu0
        %v2508 = vadd.f32 0.0, %v2507
        %2509 = vmatmul.bf16.gmra.mxu0 %v2440
        %v2510 = vpop.f32.mrf.mxu0
        %v2511 = vadd.f32 0.0, %v2510
        %v2512 = vpop.f32.mrf.mxu0
        %v2513 = vadd.f32 0.0, %v2512
        %2514 = vdwg.mxu0
        %v2531 = vunpack.c.l.b16 %v1903
        %v2532 = vunpack.c.l.b16 %v1904
        %v2533 = vunpack.c.l.b16 %v1905
        %v2534 = vunpack.c.l.b16 %v1906
        %v2535 = vunpack.c.l.b16 %v1907
        %v2536 = vunpack.c.l.b16 %v1908
        %v2537 = vunpack.c.l.b16 %v1909
        %v2538 = vunpack.c.l.b16 %v1910
        %v2539 = vunpack.c.l.b16 %v1911
        %v2540 = vunpack.c.l.b16 %v1912
        %v2541 = vunpack.c.l.b16 %v1913
        %v2542 = vunpack.c.l.b16 %v1914
        %v2543 = vunpack.c.l.b16 %v1915
        %v2544 = vunpack.c.l.b16 %v1916
        %v2545 = vunpack.c.l.b16 %v1917
        %v2546 = vunpack.c.l.b16 %v1918
        %v2547 = vpack.c.b16 %v2532, %v2531
        %v2548 = vpack.c.b16 %v2534, %v2533
        %v2549 = vpack.c.b16 %v2536, %v2535
        %v2550 = vpack.c.b16 %v2538, %v2537
        %v2551 = vpack.c.b16 %v2540, %v2539
        %v2552 = vpack.c.b16 %v2542, %v2541
        %v2553 = vpack.c.b16 %v2544, %v2543
        %v2554 = vpack.c.b16 %v2546, %v2545
        %v2571 = vunpack.c.l.b16 %v1967
        %v2572 = vunpack.c.l.b16 %v1968
        %v2573 = vunpack.c.l.b16 %v1969
        %v2574 = vunpack.c.l.b16 %v1970
        %v2575 = vunpack.c.l.b16 %v1971
        %v2576 = vunpack.c.l.b16 %v1972
        %v2577 = vunpack.c.l.b16 %v1973
        %v2578 = vunpack.c.l.b16 %v1974
        %v2579 = vunpack.c.l.b16 %v1975
        %v2580 = vunpack.c.l.b16 %v1976
        %v2581 = vunpack.c.l.b16 %v1977
        %v2582 = vunpack.c.l.b16 %v1978
        %v2583 = vunpack.c.l.b16 %v1979
        %v2584 = vunpack.c.l.b16 %v1980
        %v2585 = vunpack.c.l.b16 %v1981
        %v2586 = vunpack.c.l.b16 %v1982
        %v2587 = vpack.c.b16 %v2572, %v2571
        %v2588 = vpack.c.b16 %v2574, %v2573
        %v2589 = vpack.c.b16 %v2576, %v2575
        %v2590 = vpack.c.b16 %v2578, %v2577
        %v2591 = vpack.c.b16 %v2580, %v2579
        %v2592 = vpack.c.b16 %v2582, %v2581
        %v2593 = vpack.c.b16 %v2584, %v2583
        %v2594 = vpack.c.b16 %v2586, %v2585
        %v2596 = vsel %vm2063, %v2547, 0
        %v2599 = vsel %vm2063, %v2548, 0
        %v2602 = vsel %vm2063, %v2549, 0
        %v2605 = vsel %vm2063, %v2550, 0
        %v2608 = vsel %vm2063, %v2551, 0
        %v2611 = vsel %vm2063, %v2552, 0
        %v2614 = vsel %vm2063, %v2553, 0
        %v2617 = vsel %vm2063, %v2554, 0
        %v2620 = vsel %vm2063, %v2587, 0
        %v2623 = vsel %vm2063, %v2588, 0
        %v2626 = vsel %vm2063, %v2589, 0
        %v2629 = vsel %vm2063, %v2590, 0
        %v2632 = vsel %vm2063, %v2591, 0
        %v2635 = vsel %vm2063, %v2592, 0
        %v2638 = vsel %vm2063, %v2593, 0
        %v2641 = vsel %vm2063, %v2594, 0
        %2643 = vmatpush.bf16.xpose.msra.mxu0 %v2641
        %2644 = vmatpush.bf16.xpose.msra.mxu0 %v2638
        %2645 = vmatpush.bf16.xpose.msra.mxu0 %v2635
        %2646 = vmatpush.bf16.xpose.msra.mxu0 %v2632
        %2647 = vmatpush.bf16.xpose.msra.mxu0 %v2629
        %2648 = vmatpush.bf16.xpose.msra.mxu0 %v2626
        %2649 = vmatpush.bf16.xpose.msra.mxu0 %v2623
        %2650 = vmatpush.bf16.xpose.msra.mxu0 %v2620
        %2651 = vmatmul.bf16.gmra.mxu0 %v2596
        %v2652 = vpop.f32.mrf.mxu0
        %v2653 = vadd.f32 0.0, %v2652
        %v2654 = vpop.f32.mrf.mxu0
        %v2655 = vadd.f32 0.0, %v2654
        %2656 = vmatmul.bf16.gmra.mxu0 %v2599
        %v2657 = vpop.f32.mrf.mxu0
        %v2658 = vadd.f32 0.0, %v2657
        %v2659 = vpop.f32.mrf.mxu0
        %v2660 = vadd.f32 0.0, %v2659
        %2661 = vmatmul.bf16.gmra.mxu0 %v2602
        %v2662 = vpop.f32.mrf.mxu0
        %v2663 = vadd.f32 0.0, %v2662
        %v2664 = vpop.f32.mrf.mxu0
        %v2665 = vadd.f32 0.0, %v2664
        %2666 = vmatmul.bf16.gmra.mxu0 %v2605
        %v2667 = vpop.f32.mrf.mxu0
        %v2668 = vadd.f32 0.0, %v2667
        %v2669 = vpop.f32.mrf.mxu0
        %v2670 = vadd.f32 0.0, %v2669
        %2671 = vmatmul.bf16.gmra.mxu0 %v2608
        %v2672 = vpop.f32.mrf.mxu0
        %v2673 = vadd.f32 0.0, %v2672
        %v2674 = vpop.f32.mrf.mxu0
        %v2675 = vadd.f32 0.0, %v2674
        %2676 = vmatmul.bf16.gmra.mxu0 %v2611
        %v2677 = vpop.f32.mrf.mxu0
        %v2678 = vadd.f32 0.0, %v2677
        %v2679 = vpop.f32.mrf.mxu0
        %v2680 = vadd.f32 0.0, %v2679
        %2681 = vmatmul.bf16.gmra.mxu0 %v2614
        %v2682 = vpop.f32.mrf.mxu0
        %v2683 = vadd.f32 0.0, %v2682
        %v2684 = vpop.f32.mrf.mxu0
        %v2685 = vadd.f32 0.0, %v2684
        %2686 = vmatmul.bf16.gmra.mxu0 %v2617
        %v2687 = vpop.f32.mrf.mxu0
        %v2688 = vadd.f32 0.0, %v2687
        %v2689 = vpop.f32.mrf.mxu0
        %v2690 = vadd.f32 0.0, %v2689
        %2691 = vdwg.mxu0
        %v2692 = vlaneseq
        %v2693 = vshrl.u32 %v2692, 7
        %v2694 = vadd.s32 %v2693, 8
        %v2695 = vadd.s32 %v2693, 16
        %v2696 = vadd.s32 %v2693, 24
        %v2697 = vadd.s32 %v2693, 32
        %v2698 = vadd.s32 %v2693, 40
        %v2699 = vadd.s32 %v2693, 48
        %v2700 = vadd.s32 %v2693, 56
        %v2701 = vadd.s32 %v2693, 64
        %v2702 = vadd.s32 %v2693, 72
        %v2703 = vadd.s32 %v2693, 80
        %v2704 = vadd.s32 %v2693, 88
        %v2705 = vadd.s32 %v2693, 96
        %v2706 = vadd.s32 %v2693, 104
        %v2707 = vadd.s32 %v2693, 112
        %v2708 = vadd.s32 %v2693, 120
        %v2709 = vlaneseq
        %v2710 = vand.u32 %v2709, 127
        %vm2711 = vcmp.eq.s32.totalorder %v2693, 127
        %vm2712 = vcmp.eq.s32.totalorder %v2694, 127
        %vm2713 = vcmp.eq.s32.totalorder %v2695, 127
        %vm2714 = vcmp.eq.s32.totalorder %v2696, 127
        %vm2715 = vcmp.eq.s32.totalorder %v2697, 127
        %vm2716 = vcmp.eq.s32.totalorder %v2698, 127
        %vm2717 = vcmp.eq.s32.totalorder %v2699, 127
        %vm2718 = vcmp.eq.s32.totalorder %v2700, 127
        %vm2719 = vcmp.eq.s32.totalorder %v2701, 127
        %vm2720 = vcmp.eq.s32.totalorder %v2702, 127
        %vm2721 = vcmp.eq.s32.totalorder %v2703, 127
        %vm2722 = vcmp.eq.s32.totalorder %v2704, 127
        %vm2723 = vcmp.eq.s32.totalorder %v2705, 127
        %vm2724 = vcmp.eq.s32.totalorder %v2706, 127
        %vm2725 = vcmp.eq.s32.totalorder %v2707, 127
        %vm2726 = vcmp.eq.s32.totalorder %v2708, 127
        %v2727 = vadd.s32 %v2693, 1
        %v2728 = vadd.s32 %v2694, 1
        %v2729 = vadd.s32 %v2695, 1
        %v2730 = vadd.s32 %v2696, 1
        %v2731 = vadd.s32 %v2697, 1
        %v2732 = vadd.s32 %v2698, 1
        %v2733 = vadd.s32 %v2699, 1
        %v2734 = vadd.s32 %v2700, 1
        %v2735 = vadd.s32 %v2701, 1
        %v2736 = vadd.s32 %v2702, 1
        %v2737 = vadd.s32 %v2703, 1
        %v2738 = vadd.s32 %v2704, 1
        %v2739 = vadd.s32 %v2705, 1
        %v2740 = vadd.s32 %v2706, 1
        %v2741 = vadd.s32 %v2707, 1
        %v2742 = vadd.s32 %v2708, 1
        %v2743 = vsel %vm2711, 0, %v2727
        %v2744 = vsel %vm2712, 0, %v2728
        %v2745 = vsel %vm2713, 0, %v2729
        %v2746 = vsel %vm2714, 0, %v2730
        %v2747 = vsel %vm2715, 0, %v2731
        %v2748 = vsel %vm2716, 0, %v2732
        %v2749 = vsel %vm2717, 0, %v2733
        %v2750 = vsel %vm2718, 0, %v2734
        %v2751 = vsel %vm2719, 0, %v2735
        %v2752 = vsel %vm2720, 0, %v2736
        %v2753 = vsel %vm2721, 0, %v2737
        %v2754 = vsel %vm2722, 0, %v2738
        %v2755 = vsel %vm2723, 0, %v2739
        %v2756 = vsel %vm2724, 0, %v2740
        %v2757 = vsel %vm2725, 0, %v2741
        %v2758 = vsel %vm2726, 0, %v2742
        %2759 = vrot.lane.b32.xlu0 %v2122, 1
        %v2760 = vpop.permute.xlu0 %2759
        %2761 = vrot.lane.b32.xlu0 %v2124, 1
        %v2762 = vpop.permute.xlu0 %2761
        %2763 = vrot.lane.b32.xlu0 %v2127, 1
        %v2764 = vpop.permute.xlu0 %2763
        %2765 = vrot.lane.b32.xlu0 %v2129, 1
        %v2766 = vpop.permute.xlu0 %2765
        %2767 = vrot.lane.b32.xlu0 %v2132, 1
        %v2768 = vpop.permute.xlu0 %2767
        %2769 = vrot.lane.b32.xlu0 %v2134, 1
        %v2770 = vpop.permute.xlu0 %2769
        %2771 = vrot.lane.b32.xlu0 %v2137, 1
        %v2772 = vpop.permute.xlu0 %2771
        %2773 = vrot.lane.b32.xlu0 %v2139, 1
        %v2774 = vpop.permute.xlu0 %2773
        %2775 = vrot.lane.b32.xlu0 %v2142, 1
        %v2776 = vpop.permute.xlu0 %2775
        %2777 = vrot.lane.b32.xlu0 %v2144, 1
        %v2778 = vpop.permute.xlu0 %2777
        %2779 = vrot.lane.b32.xlu0 %v2147, 1
        %v2780 = vpop.permute.xlu0 %2779
        %2781 = vrot.lane.b32.xlu0 %v2149, 1
        %v2782 = vpop.permute.xlu0 %2781
        %2783 = vrot.lane.b32.xlu0 %v2152, 1
        %v2784 = vpop.permute.xlu0 %2783
        %2785 = vrot.lane.b32.xlu0 %v2154, 1
        %v2786 = vpop.permute.xlu0 %2785
        %2787 = vrot.lane.b32.xlu0 %v2157, 1
        %v2788 = vpop.permute.xlu0 %2787
        %2789 = vrot.lane.b32.xlu0 %v2159, 1
        %v2790 = vpop.permute.xlu0 %2789
        %2791 = vrot.lane.b32.xlu0 %v2299, 1
        %v2792 = vpop.permute.xlu0 %2791
        %2793 = vrot.lane.b32.xlu0 %v2301, 1
        %v2794 = vpop.permute.xlu0 %2793
        %2795 = vrot.lane.b32.xlu0 %v2304, 1
        %v2796 = vpop.permute.xlu0 %2795
        %2797 = vrot.lane.b32.xlu0 %v2306, 1
        %v2798 = vpop.permute.xlu0 %2797
        %2799 = vrot.lane.b32.xlu0 %v2309, 1
        %v2800 = vpop.permute.xlu0 %2799
        %2801 = vrot.lane.b32.xlu0 %v2311, 1
        %v2802 = vpop.permute.xlu0 %2801
        %2803 = vrot.lane.b32.xlu0 %v2314, 1
        %v2804 = vpop.permute.xlu0 %2803
        %2805 = vrot.lane.b32.xlu0 %v2316, 1
        %v2806 = vpop.permute.xlu0 %2805
        %2807 = vrot.lane.b32.xlu0 %v2319, 1
        %v2808 = vpop.permute.xlu0 %2807
        %2809 = vrot.lane.b32.xlu0 %v2321, 1
        %v2810 = vpop.permute.xlu0 %2809
        %2811 = vrot.lane.b32.xlu0 %v2324, 1
        %v2812 = vpop.permute.xlu0 %2811
        %2813 = vrot.lane.b32.xlu0 %v2326, 1
        %v2814 = vpop.permute.xlu0 %2813
        %2815 = vrot.lane.b32.xlu0 %v2329, 1
        %v2816 = vpop.permute.xlu0 %2815
        %2817 = vrot.lane.b32.xlu0 %v2331, 1
        %v2818 = vpop.permute.xlu0 %2817
        %2819 = vrot.lane.b32.xlu0 %v2334, 1
        %v2820 = vpop.permute.xlu0 %2819
        %2821 = vrot.lane.b32.xlu0 %v2336, 1
        %v2822 = vpop.permute.xlu0 %2821
        %2823 = vrot.lane.b32.xlu0 %v2476, 1
        %v2824 = vpop.permute.xlu0 %2823
        %2825 = vrot.lane.b32.xlu0 %v2478, 1
        %v2826 = vpop.permute.xlu0 %2825
        %2827 = vrot.lane.b32.xlu0 %v2481, 1
        %v2828 = vpop.permute.xlu0 %2827
        %2829 = vrot.lane.b32.xlu0 %v2483, 1
        %v2830 = vpop.permute.xlu0 %2829
        %2831 = vrot.lane.b32.xlu0 %v2486, 1
        %v2832 = vpop.permute.xlu0 %2831
        %2833 = vrot.lane.b32.xlu0 %v2488, 1
        %v2834 = vpop.permute.xlu0 %2833
        %2835 = vrot.lane.b32.xlu0 %v2491, 1
        %v2836 = vpop.permute.xlu0 %2835
        %2837 = vrot.lane.b32.xlu0 %v2493, 1
        %v2838 = vpop.permute.xlu0 %2837
        %2839 = vrot.lane.b32.xlu0 %v2496, 1
        %v2840 = vpop.permute.xlu0 %2839
        %2841 = vrot.lane.b32.xlu0 %v2498, 1
        %v2842 = vpop.permute.xlu0 %2841
        %2843 = vrot.lane.b32.xlu0 %v2501, 1
        %v2844 = vpop.permute.xlu0 %2843
        %2845 = vrot.lane.b32.xlu0 %v2503, 1
        %v2846 = vpop.permute.xlu0 %2845
        %2847 = vrot.lane.b32.xlu0 %v2506, 1
        %v2848 = vpop.permute.xlu0 %2847
        %2849 = vrot.lane.b32.xlu0 %v2508, 1
        %v2850 = vpop.permute.xlu0 %2849
        %2851 = vrot.lane.b32.xlu0 %v2511, 1
        %v2852 = vpop.permute.xlu0 %2851
        %2853 = vrot.lane.b32.xlu0 %v2513, 1
        %v2854 = vpop.permute.xlu0 %2853
        %2855 = vrot.lane.b32.xlu0 %v2653, 1
        %v2856 = vpop.permute.xlu0 %2855
        %2857 = vrot.lane.b32.xlu0 %v2655, 1
        %v2858 = vpop.permute.xlu0 %2857
        %2859 = vrot.lane.b32.xlu0 %v2658, 1
        %v2860 = vpop.permute.xlu0 %2859
        %2861 = vrot.lane.b32.xlu0 %v2660, 1
        %v2862 = vpop.permute.xlu0 %2861
        %2863 = vrot.lane.b32.xlu0 %v2663, 1
        %v2864 = vpop.permute.xlu0 %2863
        %2865 = vrot.lane.b32.xlu0 %v2665, 1
        %v2866 = vpop.permute.xlu0 %2865
        %2867 = vrot.lane.b32.xlu0 %v2668, 1
        %v2868 = vpop.permute.xlu0 %2867
        %2869 = vrot.lane.b32.xlu0 %v2670, 1
        %v2870 = vpop.permute.xlu0 %2869
        %2871 = vrot.lane.b32.xlu0 %v2673, 1
        %v2872 = vpop.permute.xlu0 %2871
        %2873 = vrot.lane.b32.xlu0 %v2675, 1
        %v2874 = vpop.permute.xlu0 %2873
        %2875 = vrot.lane.b32.xlu0 %v2678, 1
        %v2876 = vpop.permute.xlu0 %2875
        %2877 = vrot.lane.b32.xlu0 %v2680, 1
        %v2878 = vpop.permute.xlu0 %2877
        %2879 = vrot.lane.b32.xlu0 %v2683, 1
        %v2880 = vpop.permute.xlu0 %2879
        %2881 = vrot.lane.b32.xlu0 %v2685, 1
        %v2882 = vpop.permute.xlu0 %2881
        %2883 = vrot.lane.b32.xlu0 %v2688, 1
        %v2884 = vpop.permute.xlu0 %2883
        %2885 = vrot.lane.b32.xlu0 %v2690, 1
        %v2886 = vpop.permute.xlu0 %2885
        %v2887 = vand.u32 %v2743, 1
        %v2888 = vand.u32 %v2744, 1
        %v2889 = vand.u32 %v2745, 1
        %v2890 = vand.u32 %v2746, 1
        %v2891 = vand.u32 %v2747, 1
        %v2892 = vand.u32 %v2748, 1
        %v2893 = vand.u32 %v2749, 1
        %v2894 = vand.u32 %v2750, 1
        %v2895 = vand.u32 %v2751, 1
        %v2896 = vand.u32 %v2752, 1
        %v2897 = vand.u32 %v2753, 1
        %v2898 = vand.u32 %v2754, 1
        %v2899 = vand.u32 %v2755, 1
        %v2900 = vand.u32 %v2756, 1
        %v2901 = vand.u32 %v2757, 1
        %v2902 = vand.u32 %v2758, 1
        %vm2903 = vcmp.eq.s32.totalorder %v2887, 1
        %vm2904 = vcmp.eq.s32.totalorder %v2888, 1
        %vm2905 = vcmp.eq.s32.totalorder %v2889, 1
        %vm2906 = vcmp.eq.s32.totalorder %v2890, 1
        %vm2907 = vcmp.eq.s32.totalorder %v2891, 1
        %vm2908 = vcmp.eq.s32.totalorder %v2892, 1
        %vm2909 = vcmp.eq.s32.totalorder %v2893, 1
        %vm2910 = vcmp.eq.s32.totalorder %v2894, 1
        %vm2911 = vcmp.eq.s32.totalorder %v2895, 1
        %vm2912 = vcmp.eq.s32.totalorder %v2896, 1
        %vm2913 = vcmp.eq.s32.totalorder %v2897, 1
        %vm2914 = vcmp.eq.s32.totalorder %v2898, 1
        %vm2915 = vcmp.eq.s32.totalorder %v2899, 1
        %vm2916 = vcmp.eq.s32.totalorder %v2900, 1
        %vm2917 = vcmp.eq.s32.totalorder %v2901, 1
        %vm2918 = vcmp.eq.s32.totalorder %v2902, 1
        %v2919 = vsel %vm2903, 1, 0
        %v2920 = vsel %vm2904, 1, 0
        %v2921 = vsel %vm2905, 1, 0
        %v2922 = vsel %vm2906, 1, 0
        %v2923 = vsel %vm2907, 1, 0
        %v2924 = vsel %vm2908, 1, 0
        %v2925 = vsel %vm2909, 1, 0
        %v2926 = vsel %vm2910, 1, 0
        %v2927 = vsel %vm2911, 1, 0
        %v2928 = vsel %vm2912, 1, 0
        %v2929 = vsel %vm2913, 1, 0
        %v2930 = vsel %vm2914, 1, 0
        %v2931 = vsel %vm2915, 1, 0
        %v2932 = vsel %vm2916, 1, 0
        %v2933 = vsel %vm2917, 1, 0
        %v2934 = vsel %vm2918, 1, 0
        %vm2935 = vcmp.eq.s32.totalorder %v2919, 1
        %vm2936 = vcmp.eq.s32.totalorder %v2920, 1
        %vm2937 = vcmp.eq.s32.totalorder %v2921, 1
        %vm2938 = vcmp.eq.s32.totalorder %v2922, 1
        %vm2939 = vcmp.eq.s32.totalorder %v2923, 1
        %vm2940 = vcmp.eq.s32.totalorder %v2924, 1
        %vm2941 = vcmp.eq.s32.totalorder %v2925, 1
        %vm2942 = vcmp.eq.s32.totalorder %v2926, 1
        %vm2943 = vcmp.eq.s32.totalorder %v2927, 1
        %vm2944 = vcmp.eq.s32.totalorder %v2928, 1
        %vm2945 = vcmp.eq.s32.totalorder %v2929, 1
        %vm2946 = vcmp.eq.s32.totalorder %v2930, 1
        %vm2947 = vcmp.eq.s32.totalorder %v2931, 1
        %vm2948 = vcmp.eq.s32.totalorder %v2932, 1
        %vm2949 = vcmp.eq.s32.totalorder %v2933, 1
        %vm2950 = vcmp.eq.s32.totalorder %v2934, 1
        %v2951 = vsel %vm2935, %v2760, %v2122
        %v2952 = vsel %vm2936, %v2762, %v2124
        %v2953 = vsel %vm2937, %v2764, %v2127
        %v2954 = vsel %vm2938, %v2766, %v2129
        %v2955 = vsel %vm2939, %v2768, %v2132
        %v2956 = vsel %vm2940, %v2770, %v2134
        %v2957 = vsel %vm2941, %v2772, %v2137
        %v2958 = vsel %vm2942, %v2774, %v2139
        %v2959 = vsel %vm2943, %v2776, %v2142
        %v2960 = vsel %vm2944, %v2778, %v2144
        %v2961 = vsel %vm2945, %v2780, %v2147
        %v2962 = vsel %vm2946, %v2782, %v2149
        %v2963 = vsel %vm2947, %v2784, %v2152
        %v2964 = vsel %vm2948, %v2786, %v2154
        %v2965 = vsel %vm2949, %v2788, %v2157
        %v2966 = vsel %vm2950, %v2790, %v2159
        %v2967 = vsel %vm2935, %v2792, %v2299
        %v2968 = vsel %vm2936, %v2794, %v2301
        %v2969 = vsel %vm2937, %v2796, %v2304
        %v2970 = vsel %vm2938, %v2798, %v2306
        %v2971 = vsel %vm2939, %v2800, %v2309
        %v2972 = vsel %vm2940, %v2802, %v2311
        %v2973 = vsel %vm2941, %v2804, %v2314
        %v2974 = vsel %vm2942, %v2806, %v2316
        %v2975 = vsel %vm2943, %v2808, %v2319
        %v2976 = vsel %vm2944, %v2810, %v2321
        %v2977 = vsel %vm2945, %v2812, %v2324
        %v2978 = vsel %vm2946, %v2814, %v2326
        %v2979 = vsel %vm2947, %v2816, %v2329
        %v2980 = vsel %vm2948, %v2818, %v2331
        %v2981 = vsel %vm2949, %v2820, %v2334
        %v2982 = vsel %vm2950, %v2822, %v2336
        %v2983 = vsel %vm2935, %v2824, %v2476
        %v2984 = vsel %vm2936, %v2826, %v2478
        %v2985 = vsel %vm2937, %v2828, %v2481
        %v2986 = vsel %vm2938, %v2830, %v2483
        %v2987 = vsel %vm2939, %v2832, %v2486
        %v2988 = vsel %vm2940, %v2834, %v2488
        %v2989 = vsel %vm2941, %v2836, %v2491
        %v2990 = vsel %vm2942, %v2838, %v2493
        %v2991 = vsel %vm2943, %v2840, %v2496
        %v2992 = vsel %vm2944, %v2842, %v2498
        %v2993 = vsel %vm2945, %v2844, %v2501
        %v2994 = vsel %vm2946, %v2846, %v2503
        %v2995 = vsel %vm2947, %v2848, %v2506
        %v2996 = vsel %vm2948, %v2850, %v2508
        %v2997 = vsel %vm2949, %v2852, %v2511
        %v2998 = vsel %vm2950, %v2854, %v2513
        %v2999 = vsel %vm2935, %v2856, %v2653
        %v3000 = vsel %vm2936, %v2858, %v2655
        %v3001 = vsel %vm2937, %v2860, %v2658
        %v3002 = vsel %vm2938, %v2862, %v2660
        %v3003 = vsel %vm2939, %v2864, %v2663
        %v3004 = vsel %vm2940, %v2866, %v2665
        %v3005 = vsel %vm2941, %v2868, %v2668
        %v3006 = vsel %vm2942, %v2870, %v2670
        %v3007 = vsel %vm2943, %v2872, %v2673
        %v3008 = vsel %vm2944, %v2874, %v2675
        %v3009 = vsel %vm2945, %v2876, %v2678
        %v3010 = vsel %vm2946, %v2878, %v2680
        %v3011 = vsel %vm2947, %v2880, %v2683
        %v3012 = vsel %vm2948, %v2882, %v2685
        %v3013 = vsel %vm2949, %v2884, %v2688
        %v3014 = vsel %vm2950, %v2886, %v2690
        %3015 = vrot.lane.b32.xlu0 %v2951, 2
        %v3016 = vpop.permute.xlu0 %3015
        %3017 = vrot.lane.b32.xlu0 %v2952, 2
        %v3018 = vpop.permute.xlu0 %3017
        %3019 = vrot.lane.b32.xlu0 %v2953, 2
        %v3020 = vpop.permute.xlu0 %3019
        %3021 = vrot.lane.b32.xlu0 %v2954, 2
        %v3022 = vpop.permute.xlu0 %3021
        %3023 = vrot.lane.b32.xlu0 %v2955, 2
        %v3024 = vpop.permute.xlu0 %3023
        %3025 = vrot.lane.b32.xlu0 %v2956, 2
        %v3026 = vpop.permute.xlu0 %3025
        %3027 = vrot.lane.b32.xlu0 %v2957, 2
        %v3028 = vpop.permute.xlu0 %3027
        %3029 = vrot.lane.b32.xlu0 %v2958, 2
        %v3030 = vpop.permute.xlu0 %3029
        %3031 = vrot.lane.b32.xlu0 %v2959, 2
        %v3032 = vpop.permute.xlu0 %3031
        %3033 = vrot.lane.b32.xlu0 %v2960, 2
        %v3034 = vpop.permute.xlu0 %3033
        %3035 = vrot.lane.b32.xlu0 %v2961, 2
        %v3036 = vpop.permute.xlu0 %3035
        %3037 = vrot.lane.b32.xlu0 %v2962, 2
        %v3038 = vpop.permute.xlu0 %3037
        %3039 = vrot.lane.b32.xlu0 %v2963, 2
        %v3040 = vpop.permute.xlu0 %3039
        %3041 = vrot.lane.b32.xlu0 %v2964, 2
        %v3042 = vpop.permute.xlu0 %3041
        %3043 = vrot.lane.b32.xlu0 %v2965, 2
        %v3044 = vpop.permute.xlu0 %3043
        %3045 = vrot.lane.b32.xlu0 %v2966, 2
        %v3046 = vpop.permute.xlu0 %3045
        %3047 = vrot.lane.b32.xlu0 %v2967, 2
        %v3048 = vpop.permute.xlu0 %3047
        %3049 = vrot.lane.b32.xlu0 %v2968, 2
        %v3050 = vpop.permute.xlu0 %3049
        %3051 = vrot.lane.b32.xlu0 %v2969, 2
        %v3052 = vpop.permute.xlu0 %3051
        %3053 = vrot.lane.b32.xlu0 %v2970, 2
        %v3054 = vpop.permute.xlu0 %3053
        %3055 = vrot.lane.b32.xlu0 %v2971, 2
        %v3056 = vpop.permute.xlu0 %3055
        %3057 = vrot.lane.b32.xlu0 %v2972, 2
        %v3058 = vpop.permute.xlu0 %3057
        %3059 = vrot.lane.b32.xlu0 %v2973, 2
        %v3060 = vpop.permute.xlu0 %3059
        %3061 = vrot.lane.b32.xlu0 %v2974, 2
        %v3062 = vpop.permute.xlu0 %3061
        %3063 = vrot.lane.b32.xlu0 %v2975, 2
        %v3064 = vpop.permute.xlu0 %3063
        %3065 = vrot.lane.b32.xlu0 %v2976, 2
        %v3066 = vpop.permute.xlu0 %3065
        %3067 = vrot.lane.b32.xlu0 %v2977, 2
        %v3068 = vpop.permute.xlu0 %3067
        %3069 = vrot.lane.b32.xlu0 %v2978, 2
        %v3070 = vpop.permute.xlu0 %3069
        %3071 = vrot.lane.b32.xlu0 %v2979, 2
        %v3072 = vpop.permute.xlu0 %3071
        %3073 = vrot.lane.b32.xlu0 %v2980, 2
        %v3074 = vpop.permute.xlu0 %3073
        %3075 = vrot.lane.b32.xlu0 %v2981, 2
        %v3076 = vpop.permute.xlu0 %3075
        %3077 = vrot.lane.b32.xlu0 %v2982, 2
        %v3078 = vpop.permute.xlu0 %3077
        %3079 = vrot.lane.b32.xlu0 %v2983, 2
        %v3080 = vpop.permute.xlu0 %3079
        %3081 = vrot.lane.b32.xlu0 %v2984, 2
        %v3082 = vpop.permute.xlu0 %3081
        %3083 = vrot.lane.b32.xlu0 %v2985, 2
        %v3084 = vpop.permute.xlu0 %3083
        %3085 = vrot.lane.b32.xlu0 %v2986, 2
        %v3086 = vpop.permute.xlu0 %3085
        %3087 = vrot.lane.b32.xlu0 %v2987, 2
        %v3088 = vpop.permute.xlu0 %3087
        %3089 = vrot.lane.b32.xlu0 %v2988, 2
        %v3090 = vpop.permute.xlu0 %3089
        %3091 = vrot.lane.b32.xlu0 %v2989, 2
        %v3092 = vpop.permute.xlu0 %3091
        %3093 = vrot.lane.b32.xlu0 %v2990, 2
        %v3094 = vpop.permute.xlu0 %3093
        %3095 = vrot.lane.b32.xlu0 %v2991, 2
        %v3096 = vpop.permute.xlu0 %3095
        %3097 = vrot.lane.b32.xlu0 %v2992, 2
        %v3098 = vpop.permute.xlu0 %3097
        %3099 = vrot.lane.b32.xlu0 %v2993, 2
        %v3100 = vpop.permute.xlu0 %3099
        %3101 = vrot.lane.b32.xlu0 %v2994, 2
        %v3102 = vpop.permute.xlu0 %3101
        %3103 = vrot.lane.b32.xlu0 %v2995, 2
        %v3104 = vpop.permute.xlu0 %3103
        %3105 = vrot.lane.b32.xlu0 %v2996, 2
        %v3106 = vpop.permute.xlu0 %3105
        %3107 = vrot.lane.b32.xlu0 %v2997, 2
        %v3108 = vpop.permute.xlu0 %3107
        %3109 = vrot.lane.b32.xlu0 %v2998, 2
        %v3110 = vpop.permute.xlu0 %3109
        %3111 = vrot.lane.b32.xlu0 %v2999, 2
        %v3112 = vpop.permute.xlu0 %3111
        %3113 = vrot.lane.b32.xlu0 %v3000, 2
        %v3114 = vpop.permute.xlu0 %3113
        %3115 = vrot.lane.b32.xlu0 %v3001, 2
        %v3116 = vpop.permute.xlu0 %3115
        %3117 = vrot.lane.b32.xlu0 %v3002, 2
        %v3118 = vpop.permute.xlu0 %3117
        %3119 = vrot.lane.b32.xlu0 %v3003, 2
        %v3120 = vpop.permute.xlu0 %3119
        %3121 = vrot.lane.b32.xlu0 %v3004, 2
        %v3122 = vpop.permute.xlu0 %3121
        %3123 = vrot.lane.b32.xlu0 %v3005, 2
        %v3124 = vpop.permute.xlu0 %3123
        %3125 = vrot.lane.b32.xlu0 %v3006, 2
        %v3126 = vpop.permute.xlu0 %3125
        %3127 = vrot.lane.b32.xlu0 %v3007, 2
        %v3128 = vpop.permute.xlu0 %3127
        %3129 = vrot.lane.b32.xlu0 %v3008, 2
        %v3130 = vpop.permute.xlu0 %3129
        %3131 = vrot.lane.b32.xlu0 %v3009, 2
        %v3132 = vpop.permute.xlu0 %3131
        %3133 = vrot.lane.b32.xlu0 %v3010, 2
        %v3134 = vpop.permute.xlu0 %3133
        %3135 = vrot.lane.b32.xlu0 %v3011, 2
        %v3136 = vpop.permute.xlu0 %3135
        %3137 = vrot.lane.b32.xlu0 %v3012, 2
        %v3138 = vpop.permute.xlu0 %3137
        %3139 = vrot.lane.b32.xlu0 %v3013, 2
        %v3140 = vpop.permute.xlu0 %3139
        %3141 = vrot.lane.b32.xlu0 %v3014, 2
        %v3142 = vpop.permute.xlu0 %3141
        %v3143 = vshra.s32 %v2743, 1
        %v3144 = vshra.s32 %v2744, 1
        %v3145 = vshra.s32 %v2745, 1
        %v3146 = vshra.s32 %v2746, 1
        %v3147 = vshra.s32 %v2747, 1
        %v3148 = vshra.s32 %v2748, 1
        %v3149 = vshra.s32 %v2749, 1
        %v3150 = vshra.s32 %v2750, 1
        %v3151 = vshra.s32 %v2751, 1
        %v3152 = vshra.s32 %v2752, 1
        %v3153 = vshra.s32 %v2753, 1
        %v3154 = vshra.s32 %v2754, 1
        %v3155 = vshra.s32 %v2755, 1
        %v3156 = vshra.s32 %v2756, 1
        %v3157 = vshra.s32 %v2757, 1
        %v3158 = vshra.s32 %v2758, 1
        %v3159 = vand.u32 %v3143, 1
        %v3160 = vand.u32 %v3144, 1
        %v3161 = vand.u32 %v3145, 1
        %v3162 = vand.u32 %v3146, 1
        %v3163 = vand.u32 %v3147, 1
        %v3164 = vand.u32 %v3148, 1
        %v3165 = vand.u32 %v3149, 1
        %v3166 = vand.u32 %v3150, 1
        %v3167 = vand.u32 %v3151, 1
        %v3168 = vand.u32 %v3152, 1
        %v3169 = vand.u32 %v3153, 1
        %v3170 = vand.u32 %v3154, 1
        %v3171 = vand.u32 %v3155, 1
        %v3172 = vand.u32 %v3156, 1
        %v3173 = vand.u32 %v3157, 1
        %v3174 = vand.u32 %v3158, 1
        %vm3175 = vcmp.eq.s32.totalorder %v3159, 1
        %vm3176 = vcmp.eq.s32.totalorder %v3160, 1
        %vm3177 = vcmp.eq.s32.totalorder %v3161, 1
        %vm3178 = vcmp.eq.s32.totalorder %v3162, 1
        %vm3179 = vcmp.eq.s32.totalorder %v3163, 1
        %vm3180 = vcmp.eq.s32.totalorder %v3164, 1
        %vm3181 = vcmp.eq.s32.totalorder %v3165, 1
        %vm3182 = vcmp.eq.s32.totalorder %v3166, 1
        %vm3183 = vcmp.eq.s32.totalorder %v3167, 1
        %vm3184 = vcmp.eq.s32.totalorder %v3168, 1
        %vm3185 = vcmp.eq.s32.totalorder %v3169, 1
        %vm3186 = vcmp.eq.s32.totalorder %v3170, 1
        %vm3187 = vcmp.eq.s32.totalorder %v3171, 1
        %vm3188 = vcmp.eq.s32.totalorder %v3172, 1
        %vm3189 = vcmp.eq.s32.totalorder %v3173, 1
        %vm3190 = vcmp.eq.s32.totalorder %v3174, 1
        %v3191 = vsel %vm3175, 1, 0
        %v3192 = vsel %vm3176, 1, 0
        %v3193 = vsel %vm3177, 1, 0
        %v3194 = vsel %vm3178, 1, 0
        %v3195 = vsel %vm3179, 1, 0
        %v3196 = vsel %vm3180, 1, 0
        %v3197 = vsel %vm3181, 1, 0
        %v3198 = vsel %vm3182, 1, 0
        %v3199 = vsel %vm3183, 1, 0
        %v3200 = vsel %vm3184, 1, 0
        %v3201 = vsel %vm3185, 1, 0
        %v3202 = vsel %vm3186, 1, 0
        %v3203 = vsel %vm3187, 1, 0
        %v3204 = vsel %vm3188, 1, 0
        %v3205 = vsel %vm3189, 1, 0
        %v3206 = vsel %vm3190, 1, 0
        %vm3207 = vcmp.eq.s32.totalorder %v3191, 1
        %vm3208 = vcmp.eq.s32.totalorder %v3192, 1
        %vm3209 = vcmp.eq.s32.totalorder %v3193, 1
        %vm3210 = vcmp.eq.s32.totalorder %v3194, 1
        %vm3211 = vcmp.eq.s32.totalorder %v3195, 1
        %vm3212 = vcmp.eq.s32.totalorder %v3196, 1
        %vm3213 = vcmp.eq.s32.totalorder %v3197, 1
        %vm3214 = vcmp.eq.s32.totalorder %v3198, 1
        %vm3215 = vcmp.eq.s32.totalorder %v3199, 1
        %vm3216 = vcmp.eq.s32.totalorder %v3200, 1
        %vm3217 = vcmp.eq.s32.totalorder %v3201, 1
        %vm3218 = vcmp.eq.s32.totalorder %v3202, 1
        %vm3219 = vcmp.eq.s32.totalorder %v3203, 1
        %vm3220 = vcmp.eq.s32.totalorder %v3204, 1
        %vm3221 = vcmp.eq.s32.totalorder %v3205, 1
        %vm3222 = vcmp.eq.s32.totalorder %v3206, 1
        %v3223 = vsel %vm3207, %v3016, %v2951
        %v3224 = vsel %vm3208, %v3018, %v2952
        %v3225 = vsel %vm3209, %v3020, %v2953
        %v3226 = vsel %vm3210, %v3022, %v2954
        %v3227 = vsel %vm3211, %v3024, %v2955
        %v3228 = vsel %vm3212, %v3026, %v2956
        %v3229 = vsel %vm3213, %v3028, %v2957
        %v3230 = vsel %vm3214, %v3030, %v2958
        %v3231 = vsel %vm3215, %v3032, %v2959
        %v3232 = vsel %vm3216, %v3034, %v2960
        %v3233 = vsel %vm3217, %v3036, %v2961
        %v3234 = vsel %vm3218, %v3038, %v2962
        %v3235 = vsel %vm3219, %v3040, %v2963
        %v3236 = vsel %vm3220, %v3042, %v2964
        %v3237 = vsel %vm3221, %v3044, %v2965
        %v3238 = vsel %vm3222, %v3046, %v2966
        %v3239 = vsel %vm3207, %v3048, %v2967
        %v3240 = vsel %vm3208, %v3050, %v2968
        %v3241 = vsel %vm3209, %v3052, %v2969
        %v3242 = vsel %vm3210, %v3054, %v2970
        %v3243 = vsel %vm3211, %v3056, %v2971
        %v3244 = vsel %vm3212, %v3058, %v2972
        %v3245 = vsel %vm3213, %v3060, %v2973
        %v3246 = vsel %vm3214, %v3062, %v2974
        %v3247 = vsel %vm3215, %v3064, %v2975
        %v3248 = vsel %vm3216, %v3066, %v2976
        %v3249 = vsel %vm3217, %v3068, %v2977
        %v3250 = vsel %vm3218, %v3070, %v2978
        %v3251 = vsel %vm3219, %v3072, %v2979
        %v3252 = vsel %vm3220, %v3074, %v2980
        %v3253 = vsel %vm3221, %v3076, %v2981
        %v3254 = vsel %vm3222, %v3078, %v2982
        %v3255 = vsel %vm3207, %v3080, %v2983
        %v3256 = vsel %vm3208, %v3082, %v2984
        %v3257 = vsel %vm3209, %v3084, %v2985
        %v3258 = vsel %vm3210, %v3086, %v2986
        %v3259 = vsel %vm3211, %v3088, %v2987
        %v3260 = vsel %vm3212, %v3090, %v2988
        %v3261 = vsel %vm3213, %v3092, %v2989
        %v3262 = vsel %vm3214, %v3094, %v2990
        %v3263 = vsel %vm3215, %v3096, %v2991
        %v3264 = vsel %vm3216, %v3098, %v2992
        %v3265 = vsel %vm3217, %v3100, %v2993
        %v3266 = vsel %vm3218, %v3102, %v2994
        %v3267 = vsel %vm3219, %v3104, %v2995
        %v3268 = vsel %vm3220, %v3106, %v2996
        %v3269 = vsel %vm3221, %v3108, %v2997
        %v3270 = vsel %vm3222, %v3110, %v2998
        %v3271 = vsel %vm3207, %v3112, %v2999
        %v3272 = vsel %vm3208, %v3114, %v3000
        %v3273 = vsel %vm3209, %v3116, %v3001
        %v3274 = vsel %vm3210, %v3118, %v3002
        %v3275 = vsel %vm3211, %v3120, %v3003
        %v3276 = vsel %vm3212, %v3122, %v3004
        %v3277 = vsel %vm3213, %v3124, %v3005
        %v3278 = vsel %vm3214, %v3126, %v3006
        %v3279 = vsel %vm3215, %v3128, %v3007
        %v3280 = vsel %vm3216, %v3130, %v3008
        %v3281 = vsel %vm3217, %v3132, %v3009
        %v3282 = vsel %vm3218, %v3134, %v3010
        %v3283 = vsel %vm3219, %v3136, %v3011
        %v3284 = vsel %vm3220, %v3138, %v3012
        %v3285 = vsel %vm3221, %v3140, %v3013
        %v3286 = vsel %vm3222, %v3142, %v3014
        %3287 = vrot.lane.b32.xlu0 %v3223, 4
        %v3288 = vpop.permute.xlu0 %3287
        %3289 = vrot.lane.b32.xlu0 %v3224, 4
        %v3290 = vpop.permute.xlu0 %3289
        %3291 = vrot.lane.b32.xlu0 %v3225, 4
        %v3292 = vpop.permute.xlu0 %3291
        %3293 = vrot.lane.b32.xlu0 %v3226, 4
        %v3294 = vpop.permute.xlu0 %3293
        %3295 = vrot.lane.b32.xlu0 %v3227, 4
        %v3296 = vpop.permute.xlu0 %3295
        %3297 = vrot.lane.b32.xlu0 %v3228, 4
        %v3298 = vpop.permute.xlu0 %3297
        %3299 = vrot.lane.b32.xlu0 %v3229, 4
        %v3300 = vpop.permute.xlu0 %3299
        %3301 = vrot.lane.b32.xlu0 %v3230, 4
        %v3302 = vpop.permute.xlu0 %3301
        %3303 = vrot.lane.b32.xlu0 %v3231, 4
        %v3304 = vpop.permute.xlu0 %3303
        %3305 = vrot.lane.b32.xlu0 %v3232, 4
        %v3306 = vpop.permute.xlu0 %3305
        %3307 = vrot.lane.b32.xlu0 %v3233, 4
        %v3308 = vpop.permute.xlu0 %3307
        %3309 = vrot.lane.b32.xlu0 %v3234, 4
        %v3310 = vpop.permute.xlu0 %3309
        %3311 = vrot.lane.b32.xlu0 %v3235, 4
        %v3312 = vpop.permute.xlu0 %3311
        %3313 = vrot.lane.b32.xlu0 %v3236, 4
        %v3314 = vpop.permute.xlu0 %3313
        %3315 = vrot.lane.b32.xlu0 %v3237, 4
        %v3316 = vpop.permute.xlu0 %3315
        %3317 = vrot.lane.b32.xlu0 %v3238, 4
        %v3318 = vpop.permute.xlu0 %3317
        %3319 = vrot.lane.b32.xlu0 %v3239, 4
        %v3320 = vpop.permute.xlu0 %3319
        %3321 = vrot.lane.b32.xlu0 %v3240, 4
        %v3322 = vpop.permute.xlu0 %3321
        %3323 = vrot.lane.b32.xlu0 %v3241, 4
        %v3324 = vpop.permute.xlu0 %3323
        %3325 = vrot.lane.b32.xlu0 %v3242, 4
        %v3326 = vpop.permute.xlu0 %3325
        %3327 = vrot.lane.b32.xlu0 %v3243, 4
        %v3328 = vpop.permute.xlu0 %3327
        %3329 = vrot.lane.b32.xlu0 %v3244, 4
        %v3330 = vpop.permute.xlu0 %3329
        %3331 = vrot.lane.b32.xlu0 %v3245, 4
        %v3332 = vpop.permute.xlu0 %3331
        %3333 = vrot.lane.b32.xlu0 %v3246, 4
        %v3334 = vpop.permute.xlu0 %3333
        %3335 = vrot.lane.b32.xlu0 %v3247, 4
        %v3336 = vpop.permute.xlu0 %3335
        %3337 = vrot.lane.b32.xlu0 %v3248, 4
        %v3338 = vpop.permute.xlu0 %3337
        %3339 = vrot.lane.b32.xlu0 %v3249, 4
        %v3340 = vpop.permute.xlu0 %3339
        %3341 = vrot.lane.b32.xlu0 %v3250, 4
        %v3342 = vpop.permute.xlu0 %3341
        %3343 = vrot.lane.b32.xlu0 %v3251, 4
        %v3344 = vpop.permute.xlu0 %3343
        %3345 = vrot.lane.b32.xlu0 %v3252, 4
        %v3346 = vpop.permute.xlu0 %3345
        %3347 = vrot.lane.b32.xlu0 %v3253, 4
        %v3348 = vpop.permute.xlu0 %3347
        %3349 = vrot.lane.b32.xlu0 %v3254, 4
        %v3350 = vpop.permute.xlu0 %3349
        %3351 = vrot.lane.b32.xlu0 %v3255, 4
        %v3352 = vpop.permute.xlu0 %3351
        %3353 = vrot.lane.b32.xlu0 %v3256, 4
        %v3354 = vpop.permute.xlu0 %3353
        %3355 = vrot.lane.b32.xlu0 %v3257, 4
        %v3356 = vpop.permute.xlu0 %3355
        %3357 = vrot.lane.b32.xlu0 %v3258, 4
        %v3358 = vpop.permute.xlu0 %3357
        %3359 = vrot.lane.b32.xlu0 %v3259, 4
        %v3360 = vpop.permute.xlu0 %3359
        %3361 = vrot.lane.b32.xlu0 %v3260, 4
        %v3362 = vpop.permute.xlu0 %3361
        %3363 = vrot.lane.b32.xlu0 %v3261, 4
        %v3364 = vpop.permute.xlu0 %3363
        %3365 = vrot.lane.b32.xlu0 %v3262, 4
        %v3366 = vpop.permute.xlu0 %3365
        %3367 = vrot.lane.b32.xlu0 %v3263, 4
        %v3368 = vpop.permute.xlu0 %3367
        %3369 = vrot.lane.b32.xlu0 %v3264, 4
        %v3370 = vpop.permute.xlu0 %3369
        %3371 = vrot.lane.b32.xlu0 %v3265, 4
        %v3372 = vpop.permute.xlu0 %3371
        %3373 = vrot.lane.b32.xlu0 %v3266, 4
        %v3374 = vpop.permute.xlu0 %3373
        %3375 = vrot.lane.b32.xlu0 %v3267, 4
        %v3376 = vpop.permute.xlu0 %3375
        %3377 = vrot.lane.b32.xlu0 %v3268, 4
        %v3378 = vpop.permute.xlu0 %3377
        %3379 = vrot.lane.b32.xlu0 %v3269, 4
        %v3380 = vpop.permute.xlu0 %3379
        %3381 = vrot.lane.b32.xlu0 %v3270, 4
        %v3382 = vpop.permute.xlu0 %3381
        %3383 = vrot.lane.b32.xlu0 %v3271, 4
        %v3384 = vpop.permute.xlu0 %3383
        %3385 = vrot.lane.b32.xlu0 %v3272, 4
        %v3386 = vpop.permute.xlu0 %3385
        %3387 = vrot.lane.b32.xlu0 %v3273, 4
        %v3388 = vpop.permute.xlu0 %3387
        %3389 = vrot.lane.b32.xlu0 %v3274, 4
        %v3390 = vpop.permute.xlu0 %3389
        %3391 = vrot.lane.b32.xlu0 %v3275, 4
        %v3392 = vpop.permute.xlu0 %3391
        %3393 = vrot.lane.b32.xlu0 %v3276, 4
        %v3394 = vpop.permute.xlu0 %3393
        %3395 = vrot.lane.b32.xlu0 %v3277, 4
        %v3396 = vpop.permute.xlu0 %3395
        %3397 = vrot.lane.b32.xlu0 %v3278, 4
        %v3398 = vpop.permute.xlu0 %3397
        %3399 = vrot.lane.b32.xlu0 %v3279, 4
        %v3400 = vpop.permute.xlu0 %3399
        %3401 = vrot.lane.b32.xlu0 %v3280, 4
        %v3402 = vpop.permute.xlu0 %3401
        %3403 = vrot.lane.b32.xlu0 %v3281, 4
        %v3404 = vpop.permute.xlu0 %3403
        %3405 = vrot.lane.b32.xlu0 %v3282, 4
        %v3406 = vpop.permute.xlu0 %3405
        %3407 = vrot.lane.b32.xlu0 %v3283, 4
        %v3408 = vpop.permute.xlu0 %3407
        %3409 = vrot.lane.b32.xlu0 %v3284, 4
        %v3410 = vpop.permute.xlu0 %3409
        %3411 = vrot.lane.b32.xlu0 %v3285, 4
        %v3412 = vpop.permute.xlu0 %3411
        %3413 = vrot.lane.b32.xlu0 %v3286, 4
        %v3414 = vpop.permute.xlu0 %3413
        %v3415 = vshra.s32 %v2743, 2
        %v3416 = vshra.s32 %v2744, 2
        %v3417 = vshra.s32 %v2745, 2
        %v3418 = vshra.s32 %v2746, 2
        %v3419 = vshra.s32 %v2747, 2
        %v3420 = vshra.s32 %v2748, 2
        %v3421 = vshra.s32 %v2749, 2
        %v3422 = vshra.s32 %v2750, 2
        %v3423 = vshra.s32 %v2751, 2
        %v3424 = vshra.s32 %v2752, 2
        %v3425 = vshra.s32 %v2753, 2
        %v3426 = vshra.s32 %v2754, 2
        %v3427 = vshra.s32 %v2755, 2
        %v3428 = vshra.s32 %v2756, 2
        %v3429 = vshra.s32 %v2757, 2
        %v3430 = vshra.s32 %v2758, 2
        %v3431 = vand.u32 %v3415, 1
        %v3432 = vand.u32 %v3416, 1
        %v3433 = vand.u32 %v3417, 1
        %v3434 = vand.u32 %v3418, 1
        %v3435 = vand.u32 %v3419, 1
        %v3436 = vand.u32 %v3420, 1
        %v3437 = vand.u32 %v3421, 1
        %v3438 = vand.u32 %v3422, 1
        %v3439 = vand.u32 %v3423, 1
        %v3440 = vand.u32 %v3424, 1
        %v3441 = vand.u32 %v3425, 1
        %v3442 = vand.u32 %v3426, 1
        %v3443 = vand.u32 %v3427, 1
        %v3444 = vand.u32 %v3428, 1
        %v3445 = vand.u32 %v3429, 1
        %v3446 = vand.u32 %v3430, 1
        %vm3447 = vcmp.eq.s32.totalorder %v3431, 1
        %vm3448 = vcmp.eq.s32.totalorder %v3432, 1
        %vm3449 = vcmp.eq.s32.totalorder %v3433, 1
        %vm3450 = vcmp.eq.s32.totalorder %v3434, 1
        %vm3451 = vcmp.eq.s32.totalorder %v3435, 1
        %vm3452 = vcmp.eq.s32.totalorder %v3436, 1
        %vm3453 = vcmp.eq.s32.totalorder %v3437, 1
        %vm3454 = vcmp.eq.s32.totalorder %v3438, 1
        %vm3455 = vcmp.eq.s32.totalorder %v3439, 1
        %vm3456 = vcmp.eq.s32.totalorder %v3440, 1
        %vm3457 = vcmp.eq.s32.totalorder %v3441, 1
        %vm3458 = vcmp.eq.s32.totalorder %v3442, 1
        %vm3459 = vcmp.eq.s32.totalorder %v3443, 1
        %vm3460 = vcmp.eq.s32.totalorder %v3444, 1
        %vm3461 = vcmp.eq.s32.totalorder %v3445, 1
        %vm3462 = vcmp.eq.s32.totalorder %v3446, 1
        %v3463 = vsel %vm3447, 1, 0
        %v3464 = vsel %vm3448, 1, 0
        %v3465 = vsel %vm3449, 1, 0
        %v3466 = vsel %vm3450, 1, 0
        %v3467 = vsel %vm3451, 1, 0
        %v3468 = vsel %vm3452, 1, 0
        %v3469 = vsel %vm3453, 1, 0
        %v3470 = vsel %vm3454, 1, 0
        %v3471 = vsel %vm3455, 1, 0
        %v3472 = vsel %vm3456, 1, 0
        %v3473 = vsel %vm3457, 1, 0
        %v3474 = vsel %vm3458, 1, 0
        %v3475 = vsel %vm3459, 1, 0
        %v3476 = vsel %vm3460, 1, 0
        %v3477 = vsel %vm3461, 1, 0
        %v3478 = vsel %vm3462, 1, 0
        %vm3479 = vcmp.eq.s32.totalorder %v3463, 1
        %vm3480 = vcmp.eq.s32.totalorder %v3464, 1
        %vm3481 = vcmp.eq.s32.totalorder %v3465, 1
        %vm3482 = vcmp.eq.s32.totalorder %v3466, 1
        %vm3483 = vcmp.eq.s32.totalorder %v3467, 1
        %vm3484 = vcmp.eq.s32.totalorder %v3468, 1
        %vm3485 = vcmp.eq.s32.totalorder %v3469, 1
        %vm3486 = vcmp.eq.s32.totalorder %v3470, 1
        %vm3487 = vcmp.eq.s32.totalorder %v3471, 1
        %vm3488 = vcmp.eq.s32.totalorder %v3472, 1
        %vm3489 = vcmp.eq.s32.totalorder %v3473, 1
        %vm3490 = vcmp.eq.s32.totalorder %v3474, 1
        %vm3491 = vcmp.eq.s32.totalorder %v3475, 1
        %vm3492 = vcmp.eq.s32.totalorder %v3476, 1
        %vm3493 = vcmp.eq.s32.totalorder %v3477, 1
        %vm3494 = vcmp.eq.s32.totalorder %v3478, 1
        %v3495 = vsel %vm3479, %v3288, %v3223
        %v3496 = vsel %vm3480, %v3290, %v3224
        %v3497 = vsel %vm3481, %v3292, %v3225
        %v3498 = vsel %vm3482, %v3294, %v3226
        %v3499 = vsel %vm3483, %v3296, %v3227
        %v3500 = vsel %vm3484, %v3298, %v3228
        %v3501 = vsel %vm3485, %v3300, %v3229
        %v3502 = vsel %vm3486, %v3302, %v3230
        %v3503 = vsel %vm3487, %v3304, %v3231
        %v3504 = vsel %vm3488, %v3306, %v3232
        %v3505 = vsel %vm3489, %v3308, %v3233
        %v3506 = vsel %vm3490, %v3310, %v3234
        %v3507 = vsel %vm3491, %v3312, %v3235
        %v3508 = vsel %vm3492, %v3314, %v3236
        %v3509 = vsel %vm3493, %v3316, %v3237
        %v3510 = vsel %vm3494, %v3318, %v3238
        %v3511 = vsel %vm3479, %v3320, %v3239
        %v3512 = vsel %vm3480, %v3322, %v3240
        %v3513 = vsel %vm3481, %v3324, %v3241
        %v3514 = vsel %vm3482, %v3326, %v3242
        %v3515 = vsel %vm3483, %v3328, %v3243
        %v3516 = vsel %vm3484, %v3330, %v3244
        %v3517 = vsel %vm3485, %v3332, %v3245
        %v3518 = vsel %vm3486, %v3334, %v3246
        %v3519 = vsel %vm3487, %v3336, %v3247
        %v3520 = vsel %vm3488, %v3338, %v3248
        %v3521 = vsel %vm3489, %v3340, %v3249
        %v3522 = vsel %vm3490, %v3342, %v3250
        %v3523 = vsel %vm3491, %v3344, %v3251
        %v3524 = vsel %vm3492, %v3346, %v3252
        %v3525 = vsel %vm3493, %v3348, %v3253
        %v3526 = vsel %vm3494, %v3350, %v3254
        %v3527 = vsel %vm3479, %v3352, %v3255
        %v3528 = vsel %vm3480, %v3354, %v3256
        %v3529 = vsel %vm3481, %v3356, %v3257
        %v3530 = vsel %vm3482, %v3358, %v3258
        %v3531 = vsel %vm3483, %v3360, %v3259
        %v3532 = vsel %vm3484, %v3362, %v3260
        %v3533 = vsel %vm3485, %v3364, %v3261
        %v3534 = vsel %vm3486, %v3366, %v3262
        %v3535 = vsel %vm3487, %v3368, %v3263
        %v3536 = vsel %vm3488, %v3370, %v3264
        %v3537 = vsel %vm3489, %v3372, %v3265
        %v3538 = vsel %vm3490, %v3374, %v3266
        %v3539 = vsel %vm3491, %v3376, %v3267
        %v3540 = vsel %vm3492, %v3378, %v3268
        %v3541 = vsel %vm3493, %v3380, %v3269
        %v3542 = vsel %vm3494, %v3382, %v3270
        %v3543 = vsel %vm3479, %v3384, %v3271
        %v3544 = vsel %vm3480, %v3386, %v3272
        %v3545 = vsel %vm3481, %v3388, %v3273
        %v3546 = vsel %vm3482, %v3390, %v3274
        %v3547 = vsel %vm3483, %v3392, %v3275
        %v3548 = vsel %vm3484, %v3394, %v3276
        %v3549 = vsel %vm3485, %v3396, %v3277
        %v3550 = vsel %vm3486, %v3398, %v3278
        %v3551 = vsel %vm3487, %v3400, %v3279
        %v3552 = vsel %vm3488, %v3402, %v3280
        %v3553 = vsel %vm3489, %v3404, %v3281
        %v3554 = vsel %vm3490, %v3406, %v3282
        %v3555 = vsel %vm3491, %v3408, %v3283
        %v3556 = vsel %vm3492, %v3410, %v3284
        %v3557 = vsel %vm3493, %v3412, %v3285
        %v3558 = vsel %vm3494, %v3414, %v3286
        %3559 = vrot.lane.b32.xlu0 %v3495, 8
        %v3560 = vpop.permute.xlu0 %3559
        %3561 = vrot.lane.b32.xlu0 %v3496, 8
        %v3562 = vpop.permute.xlu0 %3561
        %3563 = vrot.lane.b32.xlu0 %v3497, 8
        %v3564 = vpop.permute.xlu0 %3563
        %3565 = vrot.lane.b32.xlu0 %v3498, 8
        %v3566 = vpop.permute.xlu0 %3565
        %3567 = vrot.lane.b32.xlu0 %v3499, 8
        %v3568 = vpop.permute.xlu0 %3567
        %3569 = vrot.lane.b32.xlu0 %v3500, 8
        %v3570 = vpop.permute.xlu0 %3569
        %3571 = vrot.lane.b32.xlu0 %v3501, 8
        %v3572 = vpop.permute.xlu0 %3571
        %3573 = vrot.lane.b32.xlu0 %v3502, 8
        %v3574 = vpop.permute.xlu0 %3573
        %3575 = vrot.lane.b32.xlu0 %v3503, 8
        %v3576 = vpop.permute.xlu0 %3575
        %3577 = vrot.lane.b32.xlu0 %v3504, 8
        %v3578 = vpop.permute.xlu0 %3577
        %3579 = vrot.lane.b32.xlu0 %v3505, 8
        %v3580 = vpop.permute.xlu0 %3579
        %3581 = vrot.lane.b32.xlu0 %v3506, 8
        %v3582 = vpop.permute.xlu0 %3581
        %3583 = vrot.lane.b32.xlu0 %v3507, 8
        %v3584 = vpop.permute.xlu0 %3583
        %3585 = vrot.lane.b32.xlu0 %v3508, 8
        %v3586 = vpop.permute.xlu0 %3585
        %3587 = vrot.lane.b32.xlu0 %v3509, 8
        %v3588 = vpop.permute.xlu0 %3587
        %3589 = vrot.lane.b32.xlu0 %v3510, 8
        %v3590 = vpop.permute.xlu0 %3589
        %3591 = vrot.lane.b32.xlu0 %v3511, 8
        %v3592 = vpop.permute.xlu0 %3591
        %3593 = vrot.lane.b32.xlu0 %v3512, 8
        %v3594 = vpop.permute.xlu0 %3593
        %3595 = vrot.lane.b32.xlu0 %v3513, 8
        %v3596 = vpop.permute.xlu0 %3595
        %3597 = vrot.lane.b32.xlu0 %v3514, 8
        %v3598 = vpop.permute.xlu0 %3597
        %3599 = vrot.lane.b32.xlu0 %v3515, 8
        %v3600 = vpop.permute.xlu0 %3599
        %3601 = vrot.lane.b32.xlu0 %v3516, 8
        %v3602 = vpop.permute.xlu0 %3601
        %3603 = vrot.lane.b32.xlu0 %v3517, 8
        %v3604 = vpop.permute.xlu0 %3603
        %3605 = vrot.lane.b32.xlu0 %v3518, 8
        %v3606 = vpop.permute.xlu0 %3605
        %3607 = vrot.lane.b32.xlu0 %v3519, 8
        %v3608 = vpop.permute.xlu0 %3607
        %3609 = vrot.lane.b32.xlu0 %v3520, 8
        %v3610 = vpop.permute.xlu0 %3609
        %3611 = vrot.lane.b32.xlu0 %v3521, 8
        %v3612 = vpop.permute.xlu0 %3611
        %3613 = vrot.lane.b32.xlu0 %v3522, 8
        %v3614 = vpop.permute.xlu0 %3613
        %3615 = vrot.lane.b32.xlu0 %v3523, 8
        %v3616 = vpop.permute.xlu0 %3615
        %3617 = vrot.lane.b32.xlu0 %v3524, 8
        %v3618 = vpop.permute.xlu0 %3617
        %3619 = vrot.lane.b32.xlu0 %v3525, 8
        %v3620 = vpop.permute.xlu0 %3619
        %3621 = vrot.lane.b32.xlu0 %v3526, 8
        %v3622 = vpop.permute.xlu0 %3621
        %3623 = vrot.lane.b32.xlu0 %v3527, 8
        %v3624 = vpop.permute.xlu0 %3623
        %3625 = vrot.lane.b32.xlu0 %v3528, 8
        %v3626 = vpop.permute.xlu0 %3625
        %3627 = vrot.lane.b32.xlu0 %v3529, 8
        %v3628 = vpop.permute.xlu0 %3627
        %3629 = vrot.lane.b32.xlu0 %v3530, 8
        %v3630 = vpop.permute.xlu0 %3629
        %3631 = vrot.lane.b32.xlu0 %v3531, 8
        %v3632 = vpop.permute.xlu0 %3631
        %3633 = vrot.lane.b32.xlu0 %v3532, 8
        %v3634 = vpop.permute.xlu0 %3633
        %3635 = vrot.lane.b32.xlu0 %v3533, 8
        %v3636 = vpop.permute.xlu0 %3635
        %3637 = vrot.lane.b32.xlu0 %v3534, 8
        %v3638 = vpop.permute.xlu0 %3637
        %3639 = vrot.lane.b32.xlu0 %v3535, 8
        %v3640 = vpop.permute.xlu0 %3639
        %3641 = vrot.lane.b32.xlu0 %v3536, 8
        %v3642 = vpop.permute.xlu0 %3641
        %3643 = vrot.lane.b32.xlu0 %v3537, 8
        %v3644 = vpop.permute.xlu0 %3643
        %3645 = vrot.lane.b32.xlu0 %v3538, 8
        %v3646 = vpop.permute.xlu0 %3645
        %3647 = vrot.lane.b32.xlu0 %v3539, 8
        %v3648 = vpop.permute.xlu0 %3647
        %3649 = vrot.lane.b32.xlu0 %v3540, 8
        %v3650 = vpop.permute.xlu0 %3649
        %3651 = vrot.lane.b32.xlu0 %v3541, 8
        %v3652 = vpop.permute.xlu0 %3651
        %3653 = vrot.lane.b32.xlu0 %v3542, 8
        %v3654 = vpop.permute.xlu0 %3653
        %3655 = vrot.lane.b32.xlu0 %v3543, 8
        %v3656 = vpop.permute.xlu0 %3655
        %3657 = vrot.lane.b32.xlu0 %v3544, 8
        %v3658 = vpop.permute.xlu0 %3657
        %3659 = vrot.lane.b32.xlu0 %v3545, 8
        %v3660 = vpop.permute.xlu0 %3659
        %3661 = vrot.lane.b32.xlu0 %v3546, 8
        %v3662 = vpop.permute.xlu0 %3661
        %3663 = vrot.lane.b32.xlu0 %v3547, 8
        %v3664 = vpop.permute.xlu0 %3663
        %3665 = vrot.lane.b32.xlu0 %v3548, 8
        %v3666 = vpop.permute.xlu0 %3665
        %3667 = vrot.lane.b32.xlu0 %v3549, 8
        %v3668 = vpop.permute.xlu0 %3667
        %3669 = vrot.lane.b32.xlu0 %v3550, 8
        %v3670 = vpop.permute.xlu0 %3669
        %3671 = vrot.lane.b32.xlu0 %v3551, 8
        %v3672 = vpop.permute.xlu0 %3671
        %3673 = vrot.lane.b32.xlu0 %v3552, 8
        %v3674 = vpop.permute.xlu0 %3673
        %3675 = vrot.lane.b32.xlu0 %v3553, 8
        %v3676 = vpop.permute.xlu0 %3675
        %3677 = vrot.lane.b32.xlu0 %v3554, 8
        %v3678 = vpop.permute.xlu0 %3677
        %3679 = vrot.lane.b32.xlu0 %v3555, 8
        %v3680 = vpop.permute.xlu0 %3679
        %3681 = vrot.lane.b32.xlu0 %v3556, 8
        %v3682 = vpop.permute.xlu0 %3681
        %3683 = vrot.lane.b32.xlu0 %v3557, 8
        %v3684 = vpop.permute.xlu0 %3683
        %3685 = vrot.lane.b32.xlu0 %v3558, 8
        %v3686 = vpop.permute.xlu0 %3685
        %v3687 = vshra.s32 %v2743, 3
        %v3688 = vshra.s32 %v2744, 3
        %v3689 = vshra.s32 %v2745, 3
        %v3690 = vshra.s32 %v2746, 3
        %v3691 = vshra.s32 %v2747, 3
        %v3692 = vshra.s32 %v2748, 3
        %v3693 = vshra.s32 %v2749, 3
        %v3694 = vshra.s32 %v2750, 3
        %v3695 = vshra.s32 %v2751, 3
        %v3696 = vshra.s32 %v2752, 3
        %v3697 = vshra.s32 %v2753, 3
        %v3698 = vshra.s32 %v2754, 3
        %v3699 = vshra.s32 %v2755, 3
        %v3700 = vshra.s32 %v2756, 3
        %v3701 = vshra.s32 %v2757, 3
        %v3702 = vshra.s32 %v2758, 3
        %v3703 = vand.u32 %v3687, 1
        %v3704 = vand.u32 %v3688, 1
        %v3705 = vand.u32 %v3689, 1
        %v3706 = vand.u32 %v3690, 1
        %v3707 = vand.u32 %v3691, 1
        %v3708 = vand.u32 %v3692, 1
        %v3709 = vand.u32 %v3693, 1
        %v3710 = vand.u32 %v3694, 1
        %v3711 = vand.u32 %v3695, 1
        %v3712 = vand.u32 %v3696, 1
        %v3713 = vand.u32 %v3697, 1
        %v3714 = vand.u32 %v3698, 1
        %v3715 = vand.u32 %v3699, 1
        %v3716 = vand.u32 %v3700, 1
        %v3717 = vand.u32 %v3701, 1
        %v3718 = vand.u32 %v3702, 1
        %vm3719 = vcmp.eq.s32.totalorder %v3703, 1
        %vm3720 = vcmp.eq.s32.totalorder %v3704, 1
        %vm3721 = vcmp.eq.s32.totalorder %v3705, 1
        %vm3722 = vcmp.eq.s32.totalorder %v3706, 1
        %vm3723 = vcmp.eq.s32.totalorder %v3707, 1
        %vm3724 = vcmp.eq.s32.totalorder %v3708, 1
        %vm3725 = vcmp.eq.s32.totalorder %v3709, 1
        %vm3726 = vcmp.eq.s32.totalorder %v3710, 1
        %vm3727 = vcmp.eq.s32.totalorder %v3711, 1
        %vm3728 = vcmp.eq.s32.totalorder %v3712, 1
        %vm3729 = vcmp.eq.s32.totalorder %v3713, 1
        %vm3730 = vcmp.eq.s32.totalorder %v3714, 1
        %vm3731 = vcmp.eq.s32.totalorder %v3715, 1
        %vm3732 = vcmp.eq.s32.totalorder %v3716, 1
        %vm3733 = vcmp.eq.s32.totalorder %v3717, 1
        %vm3734 = vcmp.eq.s32.totalorder %v3718, 1
        %v3735 = vsel %vm3719, 1, 0
        %v3736 = vsel %vm3720, 1, 0
        %v3737 = vsel %vm3721, 1, 0
        %v3738 = vsel %vm3722, 1, 0
        %v3739 = vsel %vm3723, 1, 0
        %v3740 = vsel %vm3724, 1, 0
        %v3741 = vsel %vm3725, 1, 0
        %v3742 = vsel %vm3726, 1, 0
        %v3743 = vsel %vm3727, 1, 0
        %v3744 = vsel %vm3728, 1, 0
        %v3745 = vsel %vm3729, 1, 0
        %v3746 = vsel %vm3730, 1, 0
        %v3747 = vsel %vm3731, 1, 0
        %v3748 = vsel %vm3732, 1, 0
        %v3749 = vsel %vm3733, 1, 0
        %v3750 = vsel %vm3734, 1, 0
        %vm3751 = vcmp.eq.s32.totalorder %v3735, 1
        %vm3752 = vcmp.eq.s32.totalorder %v3736, 1
        %vm3753 = vcmp.eq.s32.totalorder %v3737, 1
        %vm3754 = vcmp.eq.s32.totalorder %v3738, 1
        %vm3755 = vcmp.eq.s32.totalorder %v3739, 1
        %vm3756 = vcmp.eq.s32.totalorder %v3740, 1
        %vm3757 = vcmp.eq.s32.totalorder %v3741, 1
        %vm3758 = vcmp.eq.s32.totalorder %v3742, 1
        %vm3759 = vcmp.eq.s32.totalorder %v3743, 1
        %vm3760 = vcmp.eq.s32.totalorder %v3744, 1
        %vm3761 = vcmp.eq.s32.totalorder %v3745, 1
        %vm3762 = vcmp.eq.s32.totalorder %v3746, 1
        %vm3763 = vcmp.eq.s32.totalorder %v3747, 1
        %vm3764 = vcmp.eq.s32.totalorder %v3748, 1
        %vm3765 = vcmp.eq.s32.totalorder %v3749, 1
        %vm3766 = vcmp.eq.s32.totalorder %v3750, 1
        %v3767 = vsel %vm3751, %v3560, %v3495
        %v3768 = vsel %vm3752, %v3562, %v3496
        %v3769 = vsel %vm3753, %v3564, %v3497
        %v3770 = vsel %vm3754, %v3566, %v3498
        %v3771 = vsel %vm3755, %v3568, %v3499
        %v3772 = vsel %vm3756, %v3570, %v3500
        %v3773 = vsel %vm3757, %v3572, %v3501
        %v3774 = vsel %vm3758, %v3574, %v3502
        %v3775 = vsel %vm3759, %v3576, %v3503
        %v3776 = vsel %vm3760, %v3578, %v3504
        %v3777 = vsel %vm3761, %v3580, %v3505
        %v3778 = vsel %vm3762, %v3582, %v3506
        %v3779 = vsel %vm3763, %v3584, %v3507
        %v3780 = vsel %vm3764, %v3586, %v3508
        %v3781 = vsel %vm3765, %v3588, %v3509
        %v3782 = vsel %vm3766, %v3590, %v3510
        %v3783 = vsel %vm3751, %v3592, %v3511
        %v3784 = vsel %vm3752, %v3594, %v3512
        %v3785 = vsel %vm3753, %v3596, %v3513
        %v3786 = vsel %vm3754, %v3598, %v3514
        %v3787 = vsel %vm3755, %v3600, %v3515
        %v3788 = vsel %vm3756, %v3602, %v3516
        %v3789 = vsel %vm3757, %v3604, %v3517
        %v3790 = vsel %vm3758, %v3606, %v3518
        %v3791 = vsel %vm3759, %v3608, %v3519
        %v3792 = vsel %vm3760, %v3610, %v3520
        %v3793 = vsel %vm3761, %v3612, %v3521
        %v3794 = vsel %vm3762, %v3614, %v3522
        %v3795 = vsel %vm3763, %v3616, %v3523
        %v3796 = vsel %vm3764, %v3618, %v3524
        %v3797 = vsel %vm3765, %v3620, %v3525
        %v3798 = vsel %vm3766, %v3622, %v3526
        %v3799 = vsel %vm3751, %v3624, %v3527
        %v3800 = vsel %vm3752, %v3626, %v3528
        %v3801 = vsel %vm3753, %v3628, %v3529
        %v3802 = vsel %vm3754, %v3630, %v3530
        %v3803 = vsel %vm3755, %v3632, %v3531
        %v3804 = vsel %vm3756, %v3634, %v3532
        %v3805 = vsel %vm3757, %v3636, %v3533
        %v3806 = vsel %vm3758, %v3638, %v3534
        %v3807 = vsel %vm3759, %v3640, %v3535
        %v3808 = vsel %vm3760, %v3642, %v3536
        %v3809 = vsel %vm3761, %v3644, %v3537
        %v3810 = vsel %vm3762, %v3646, %v3538
        %v3811 = vsel %vm3763, %v3648, %v3539
        %v3812 = vsel %vm3764, %v3650, %v3540
        %v3813 = vsel %vm3765, %v3652, %v3541
        %v3814 = vsel %vm3766, %v3654, %v3542
        %v3815 = vsel %vm3751, %v3656, %v3543
        %v3816 = vsel %vm3752, %v3658, %v3544
        %v3817 = vsel %vm3753, %v3660, %v3545
        %v3818 = vsel %vm3754, %v3662, %v3546
        %v3819 = vsel %vm3755, %v3664, %v3547
        %v3820 = vsel %vm3756, %v3666, %v3548
        %v3821 = vsel %vm3757, %v3668, %v3549
        %v3822 = vsel %vm3758, %v3670, %v3550
        %v3823 = vsel %vm3759, %v3672, %v3551
        %v3824 = vsel %vm3760, %v3674, %v3552
        %v3825 = vsel %vm3761, %v3676, %v3553
        %v3826 = vsel %vm3762, %v3678, %v3554
        %v3827 = vsel %vm3763, %v3680, %v3555
        %v3828 = vsel %vm3764, %v3682, %v3556
        %v3829 = vsel %vm3765, %v3684, %v3557
        %v3830 = vsel %vm3766, %v3686, %v3558
        %3831 = vrot.lane.b32.xlu0 %v3767, 16
        %v3832 = vpop.permute.xlu0 %3831
        %3833 = vrot.lane.b32.xlu0 %v3768, 16
        %v3834 = vpop.permute.xlu0 %3833
        %3835 = vrot.lane.b32.xlu0 %v3769, 16
        %v3836 = vpop.permute.xlu0 %3835
        %3837 = vrot.lane.b32.xlu0 %v3770, 16
        %v3838 = vpop.permute.xlu0 %3837
        %3839 = vrot.lane.b32.xlu0 %v3771, 16
        %v3840 = vpop.permute.xlu0 %3839
        %3841 = vrot.lane.b32.xlu0 %v3772, 16
        %v3842 = vpop.permute.xlu0 %3841
        %3843 = vrot.lane.b32.xlu0 %v3773, 16
        %v3844 = vpop.permute.xlu0 %3843
        %3845 = vrot.lane.b32.xlu0 %v3774, 16
        %v3846 = vpop.permute.xlu0 %3845
        %3847 = vrot.lane.b32.xlu0 %v3775, 16
        %v3848 = vpop.permute.xlu0 %3847
        %3849 = vrot.lane.b32.xlu0 %v3776, 16
        %v3850 = vpop.permute.xlu0 %3849
        %3851 = vrot.lane.b32.xlu0 %v3777, 16
        %v3852 = vpop.permute.xlu0 %3851
        %3853 = vrot.lane.b32.xlu0 %v3778, 16
        %v3854 = vpop.permute.xlu0 %3853
        %3855 = vrot.lane.b32.xlu0 %v3779, 16
        %v3856 = vpop.permute.xlu0 %3855
        %3857 = vrot.lane.b32.xlu0 %v3780, 16
        %v3858 = vpop.permute.xlu0 %3857
        %3859 = vrot.lane.b32.xlu0 %v3781, 16
        %v3860 = vpop.permute.xlu0 %3859
        %3861 = vrot.lane.b32.xlu0 %v3782, 16
        %v3862 = vpop.permute.xlu0 %3861
        %3863 = vrot.lane.b32.xlu0 %v3783, 16
        %v3864 = vpop.permute.xlu0 %3863
        %3865 = vrot.lane.b32.xlu0 %v3784, 16
        %v3866 = vpop.permute.xlu0 %3865
        %3867 = vrot.lane.b32.xlu0 %v3785, 16
        %v3868 = vpop.permute.xlu0 %3867
        %3869 = vrot.lane.b32.xlu0 %v3786, 16
        %v3870 = vpop.permute.xlu0 %3869
        %3871 = vrot.lane.b32.xlu0 %v3787, 16
        %v3872 = vpop.permute.xlu0 %3871
        %3873 = vrot.lane.b32.xlu0 %v3788, 16
        %v3874 = vpop.permute.xlu0 %3873
        %3875 = vrot.lane.b32.xlu0 %v3789, 16
        %v3876 = vpop.permute.xlu0 %3875
        %3877 = vrot.lane.b32.xlu0 %v3790, 16
        %v3878 = vpop.permute.xlu0 %3877
        %3879 = vrot.lane.b32.xlu0 %v3791, 16
        %v3880 = vpop.permute.xlu0 %3879
        %3881 = vrot.lane.b32.xlu0 %v3792, 16
        %v3882 = vpop.permute.xlu0 %3881
        %3883 = vrot.lane.b32.xlu0 %v3793, 16
        %v3884 = vpop.permute.xlu0 %3883
        %3885 = vrot.lane.b32.xlu0 %v3794, 16
        %v3886 = vpop.permute.xlu0 %3885
        %3887 = vrot.lane.b32.xlu0 %v3795, 16
        %v3888 = vpop.permute.xlu0 %3887
        %3889 = vrot.lane.b32.xlu0 %v3796, 16
        %v3890 = vpop.permute.xlu0 %3889
        %3891 = vrot.lane.b32.xlu0 %v3797, 16
        %v3892 = vpop.permute.xlu0 %3891
        %3893 = vrot.lane.b32.xlu0 %v3798, 16
        %v3894 = vpop.permute.xlu0 %3893
        %3895 = vrot.lane.b32.xlu0 %v3799, 16
        %v3896 = vpop.permute.xlu0 %3895
        %3897 = vrot.lane.b32.xlu0 %v3800, 16
        %v3898 = vpop.permute.xlu0 %3897
        %3899 = vrot.lane.b32.xlu0 %v3801, 16
        %v3900 = vpop.permute.xlu0 %3899
        %3901 = vrot.lane.b32.xlu0 %v3802, 16
        %v3902 = vpop.permute.xlu0 %3901
        %3903 = vrot.lane.b32.xlu0 %v3803, 16
        %v3904 = vpop.permute.xlu0 %3903
        %3905 = vrot.lane.b32.xlu0 %v3804, 16
        %v3906 = vpop.permute.xlu0 %3905
        %3907 = vrot.lane.b32.xlu0 %v3805, 16
        %v3908 = vpop.permute.xlu0 %3907
        %3909 = vrot.lane.b32.xlu0 %v3806, 16
        %v3910 = vpop.permute.xlu0 %3909
        %3911 = vrot.lane.b32.xlu0 %v3807, 16
        %v3912 = vpop.permute.xlu0 %3911
        %3913 = vrot.lane.b32.xlu0 %v3808, 16
        %v3914 = vpop.permute.xlu0 %3913
        %3915 = vrot.lane.b32.xlu0 %v3809, 16
        %v3916 = vpop.permute.xlu0 %3915
        %3917 = vrot.lane.b32.xlu0 %v3810, 16
        %v3918 = vpop.permute.xlu0 %3917
        %3919 = vrot.lane.b32.xlu0 %v3811, 16
        %v3920 = vpop.permute.xlu0 %3919
        %3921 = vrot.lane.b32.xlu0 %v3812, 16
        %v3922 = vpop.permute.xlu0 %3921
        %3923 = vrot.lane.b32.xlu0 %v3813, 16
        %v3924 = vpop.permute.xlu0 %3923
        %3925 = vrot.lane.b32.xlu0 %v3814, 16
        %v3926 = vpop.permute.xlu0 %3925
        %3927 = vrot.lane.b32.xlu0 %v3815, 16
        %v3928 = vpop.permute.xlu0 %3927
        %3929 = vrot.lane.b32.xlu0 %v3816, 16
        %v3930 = vpop.permute.xlu0 %3929
        %3931 = vrot.lane.b32.xlu0 %v3817, 16
        %v3932 = vpop.permute.xlu0 %3931
        %3933 = vrot.lane.b32.xlu0 %v3818, 16
        %v3934 = vpop.permute.xlu0 %3933
        %3935 = vrot.lane.b32.xlu0 %v3819, 16
        %v3936 = vpop.permute.xlu0 %3935
        %3937 = vrot.lane.b32.xlu0 %v3820, 16
        %v3938 = vpop.permute.xlu0 %3937
        %3939 = vrot.lane.b32.xlu0 %v3821, 16
        %v3940 = vpop.permute.xlu0 %3939
        %3941 = vrot.lane.b32.xlu0 %v3822, 16
        %v3942 = vpop.permute.xlu0 %3941
        %3943 = vrot.lane.b32.xlu0 %v3823, 16
        %v3944 = vpop.permute.xlu0 %3943
        %3945 = vrot.lane.b32.xlu0 %v3824, 16
        %v3946 = vpop.permute.xlu0 %3945
        %3947 = vrot.lane.b32.xlu0 %v3825, 16
        %v3948 = vpop.permute.xlu0 %3947
        %3949 = vrot.lane.b32.xlu0 %v3826, 16
        %v3950 = vpop.permute.xlu0 %3949
        %3951 = vrot.lane.b32.xlu0 %v3827, 16
        %v3952 = vpop.permute.xlu0 %3951
        %3953 = vrot.lane.b32.xlu0 %v3828, 16
        %v3954 = vpop.permute.xlu0 %3953
        %3955 = vrot.lane.b32.xlu0 %v3829, 16
        %v3956 = vpop.permute.xlu0 %3955
        %3957 = vrot.lane.b32.xlu0 %v3830, 16
        %v3958 = vpop.permute.xlu0 %3957
        %v3959 = vshra.s32 %v2743, 4
        %v3960 = vshra.s32 %v2744, 4
        %v3961 = vshra.s32 %v2745, 4
        %v3962 = vshra.s32 %v2746, 4
        %v3963 = vshra.s32 %v2747, 4
        %v3964 = vshra.s32 %v2748, 4
        %v3965 = vshra.s32 %v2749, 4
        %v3966 = vshra.s32 %v2750, 4
        %v3967 = vshra.s32 %v2751, 4
        %v3968 = vshra.s32 %v2752, 4
        %v3969 = vshra.s32 %v2753, 4
        %v3970 = vshra.s32 %v2754, 4
        %v3971 = vshra.s32 %v2755, 4
        %v3972 = vshra.s32 %v2756, 4
        %v3973 = vshra.s32 %v2757, 4
        %v3974 = vshra.s32 %v2758, 4
        %v3975 = vand.u32 %v3959, 1
        %v3976 = vand.u32 %v3960, 1
        %v3977 = vand.u32 %v3961, 1
        %v3978 = vand.u32 %v3962, 1
        %v3979 = vand.u32 %v3963, 1
        %v3980 = vand.u32 %v3964, 1
        %v3981 = vand.u32 %v3965, 1
        %v3982 = vand.u32 %v3966, 1
        %v3983 = vand.u32 %v3967, 1
        %v3984 = vand.u32 %v3968, 1
        %v3985 = vand.u32 %v3969, 1
        %v3986 = vand.u32 %v3970, 1
        %v3987 = vand.u32 %v3971, 1
        %v3988 = vand.u32 %v3972, 1
        %v3989 = vand.u32 %v3973, 1
        %v3990 = vand.u32 %v3974, 1
        %vm3991 = vcmp.eq.s32.totalorder %v3975, 1
        %vm3992 = vcmp.eq.s32.totalorder %v3976, 1
        %vm3993 = vcmp.eq.s32.totalorder %v3977, 1
        %vm3994 = vcmp.eq.s32.totalorder %v3978, 1
        %vm3995 = vcmp.eq.s32.totalorder %v3979, 1
        %vm3996 = vcmp.eq.s32.totalorder %v3980, 1
        %vm3997 = vcmp.eq.s32.totalorder %v3981, 1
        %vm3998 = vcmp.eq.s32.totalorder %v3982, 1
        %vm3999 = vcmp.eq.s32.totalorder %v3983, 1
        %vm4000 = vcmp.eq.s32.totalorder %v3984, 1
        %vm4001 = vcmp.eq.s32.totalorder %v3985, 1
        %vm4002 = vcmp.eq.s32.totalorder %v3986, 1
        %vm4003 = vcmp.eq.s32.totalorder %v3987, 1
        %vm4004 = vcmp.eq.s32.totalorder %v3988, 1
        %vm4005 = vcmp.eq.s32.totalorder %v3989, 1
        %vm4006 = vcmp.eq.s32.totalorder %v3990, 1
        %v4007 = vsel %vm3991, 1, 0
        %v4008 = vsel %vm3992, 1, 0
        %v4009 = vsel %vm3993, 1, 0
        %v4010 = vsel %vm3994, 1, 0
        %v4011 = vsel %vm3995, 1, 0
        %v4012 = vsel %vm3996, 1, 0
        %v4013 = vsel %vm3997, 1, 0
        %v4014 = vsel %vm3998, 1, 0
        %v4015 = vsel %vm3999, 1, 0
        %v4016 = vsel %vm4000, 1, 0
        %v4017 = vsel %vm4001, 1, 0
        %v4018 = vsel %vm4002, 1, 0
        %v4019 = vsel %vm4003, 1, 0
        %v4020 = vsel %vm4004, 1, 0
        %v4021 = vsel %vm4005, 1, 0
        %v4022 = vsel %vm4006, 1, 0
        %vm4023 = vcmp.eq.s32.totalorder %v4007, 1
        %vm4024 = vcmp.eq.s32.totalorder %v4008, 1
        %vm4025 = vcmp.eq.s32.totalorder %v4009, 1
        %vm4026 = vcmp.eq.s32.totalorder %v4010, 1
        %vm4027 = vcmp.eq.s32.totalorder %v4011, 1
        %vm4028 = vcmp.eq.s32.totalorder %v4012, 1
        %vm4029 = vcmp.eq.s32.totalorder %v4013, 1
        %vm4030 = vcmp.eq.s32.totalorder %v4014, 1
        %vm4031 = vcmp.eq.s32.totalorder %v4015, 1
        %vm4032 = vcmp.eq.s32.totalorder %v4016, 1
        %vm4033 = vcmp.eq.s32.totalorder %v4017, 1
        %vm4034 = vcmp.eq.s32.totalorder %v4018, 1
        %vm4035 = vcmp.eq.s32.totalorder %v4019, 1
        %vm4036 = vcmp.eq.s32.totalorder %v4020, 1
        %vm4037 = vcmp.eq.s32.totalorder %v4021, 1
        %vm4038 = vcmp.eq.s32.totalorder %v4022, 1
        %v4039 = vsel %vm4023, %v3832, %v3767
        %v4040 = vsel %vm4024, %v3834, %v3768
        %v4041 = vsel %vm4025, %v3836, %v3769
        %v4042 = vsel %vm4026, %v3838, %v3770
        %v4043 = vsel %vm4027, %v3840, %v3771
        %v4044 = vsel %vm4028, %v3842, %v3772
        %v4045 = vsel %vm4029, %v3844, %v3773
        %v4046 = vsel %vm4030, %v3846, %v3774
        %v4047 = vsel %vm4031, %v3848, %v3775
        %v4048 = vsel %vm4032, %v3850, %v3776
        %v4049 = vsel %vm4033, %v3852, %v3777
        %v4050 = vsel %vm4034, %v3854, %v3778
        %v4051 = vsel %vm4035, %v3856, %v3779
        %v4052 = vsel %vm4036, %v3858, %v3780
        %v4053 = vsel %vm4037, %v3860, %v3781
        %v4054 = vsel %vm4038, %v3862, %v3782
        %v4055 = vsel %vm4023, %v3864, %v3783
        %v4056 = vsel %vm4024, %v3866, %v3784
        %v4057 = vsel %vm4025, %v3868, %v3785
        %v4058 = vsel %vm4026, %v3870, %v3786
        %v4059 = vsel %vm4027, %v3872, %v3787
        %v4060 = vsel %vm4028, %v3874, %v3788
        %v4061 = vsel %vm4029, %v3876, %v3789
        %v4062 = vsel %vm4030, %v3878, %v3790
        %v4063 = vsel %vm4031, %v3880, %v3791
        %v4064 = vsel %vm4032, %v3882, %v3792
        %v4065 = vsel %vm4033, %v3884, %v3793
        %v4066 = vsel %vm4034, %v3886, %v3794
        %v4067 = vsel %vm4035, %v3888, %v3795
        %v4068 = vsel %vm4036, %v3890, %v3796
        %v4069 = vsel %vm4037, %v3892, %v3797
        %v4070 = vsel %vm4038, %v3894, %v3798
        %v4071 = vsel %vm4023, %v3896, %v3799
        %v4072 = vsel %vm4024, %v3898, %v3800
        %v4073 = vsel %vm4025, %v3900, %v3801
        %v4074 = vsel %vm4026, %v3902, %v3802
        %v4075 = vsel %vm4027, %v3904, %v3803
        %v4076 = vsel %vm4028, %v3906, %v3804
        %v4077 = vsel %vm4029, %v3908, %v3805
        %v4078 = vsel %vm4030, %v3910, %v3806
        %v4079 = vsel %vm4031, %v3912, %v3807
        %v4080 = vsel %vm4032, %v3914, %v3808
        %v4081 = vsel %vm4033, %v3916, %v3809
        %v4082 = vsel %vm4034, %v3918, %v3810
        %v4083 = vsel %vm4035, %v3920, %v3811
        %v4084 = vsel %vm4036, %v3922, %v3812
        %v4085 = vsel %vm4037, %v3924, %v3813
        %v4086 = vsel %vm4038, %v3926, %v3814
        %v4087 = vsel %vm4023, %v3928, %v3815
        %v4088 = vsel %vm4024, %v3930, %v3816
        %v4089 = vsel %vm4025, %v3932, %v3817
        %v4090 = vsel %vm4026, %v3934, %v3818
        %v4091 = vsel %vm4027, %v3936, %v3819
        %v4092 = vsel %vm4028, %v3938, %v3820
        %v4093 = vsel %vm4029, %v3940, %v3821
        %v4094 = vsel %vm4030, %v3942, %v3822
        %v4095 = vsel %vm4031, %v3944, %v3823
        %v4096 = vsel %vm4032, %v3946, %v3824
        %v4097 = vsel %vm4033, %v3948, %v3825
        %v4098 = vsel %vm4034, %v3950, %v3826
        %v4099 = vsel %vm4035, %v3952, %v3827
        %v4100 = vsel %vm4036, %v3954, %v3828
        %v4101 = vsel %vm4037, %v3956, %v3829
        %v4102 = vsel %vm4038, %v3958, %v3830
        %4103 = vrot.lane.b32.xlu0 %v4039, 32
        %v4104 = vpop.permute.xlu0 %4103
        %4105 = vrot.lane.b32.xlu0 %v4040, 32
        %v4106 = vpop.permute.xlu0 %4105
        %4107 = vrot.lane.b32.xlu0 %v4041, 32
        %v4108 = vpop.permute.xlu0 %4107
        %4109 = vrot.lane.b32.xlu0 %v4042, 32
        %v4110 = vpop.permute.xlu0 %4109
        %4111 = vrot.lane.b32.xlu0 %v4043, 32
        %v4112 = vpop.permute.xlu0 %4111
        %4113 = vrot.lane.b32.xlu0 %v4044, 32
        %v4114 = vpop.permute.xlu0 %4113
        %4115 = vrot.lane.b32.xlu0 %v4045, 32
        %v4116 = vpop.permute.xlu0 %4115
        %4117 = vrot.lane.b32.xlu0 %v4046, 32
        %v4118 = vpop.permute.xlu0 %4117
        %4119 = vrot.lane.b32.xlu0 %v4047, 32
        %v4120 = vpop.permute.xlu0 %4119
        %4121 = vrot.lane.b32.xlu0 %v4048, 32
        %v4122 = vpop.permute.xlu0 %4121
        %4123 = vrot.lane.b32.xlu0 %v4049, 32
        %v4124 = vpop.permute.xlu0 %4123
        %4125 = vrot.lane.b32.xlu0 %v4050, 32
        %v4126 = vpop.permute.xlu0 %4125
        %4127 = vrot.lane.b32.xlu0 %v4051, 32
        %v4128 = vpop.permute.xlu0 %4127
        %4129 = vrot.lane.b32.xlu0 %v4052, 32
        %v4130 = vpop.permute.xlu0 %4129
        %4131 = vrot.lane.b32.xlu0 %v4053, 32
        %v4132 = vpop.permute.xlu0 %4131
        %4133 = vrot.lane.b32.xlu0 %v4054, 32
        %v4134 = vpop.permute.xlu0 %4133
        %4135 = vrot.lane.b32.xlu0 %v4055, 32
        %v4136 = vpop.permute.xlu0 %4135
        %4137 = vrot.lane.b32.xlu0 %v4056, 32
        %v4138 = vpop.permute.xlu0 %4137
        %4139 = vrot.lane.b32.xlu0 %v4057, 32
        %v4140 = vpop.permute.xlu0 %4139
        %4141 = vrot.lane.b32.xlu0 %v4058, 32
        %v4142 = vpop.permute.xlu0 %4141
        %4143 = vrot.lane.b32.xlu0 %v4059, 32
        %v4144 = vpop.permute.xlu0 %4143
        %4145 = vrot.lane.b32.xlu0 %v4060, 32
        %v4146 = vpop.permute.xlu0 %4145
        %4147 = vrot.lane.b32.xlu0 %v4061, 32
        %v4148 = vpop.permute.xlu0 %4147
        %4149 = vrot.lane.b32.xlu0 %v4062, 32
        %v4150 = vpop.permute.xlu0 %4149
        %4151 = vrot.lane.b32.xlu0 %v4063, 32
        %v4152 = vpop.permute.xlu0 %4151
        %4153 = vrot.lane.b32.xlu0 %v4064, 32
        %v4154 = vpop.permute.xlu0 %4153
        %4155 = vrot.lane.b32.xlu0 %v4065, 32
        %v4156 = vpop.permute.xlu0 %4155
        %4157 = vrot.lane.b32.xlu0 %v4066, 32
        %v4158 = vpop.permute.xlu0 %4157
        %4159 = vrot.lane.b32.xlu0 %v4067, 32
        %v4160 = vpop.permute.xlu0 %4159
        %4161 = vrot.lane.b32.xlu0 %v4068, 32
        %v4162 = vpop.permute.xlu0 %4161
        %4163 = vrot.lane.b32.xlu0 %v4069, 32
        %v4164 = vpop.permute.xlu0 %4163
        %4165 = vrot.lane.b32.xlu0 %v4070, 32
        %v4166 = vpop.permute.xlu0 %4165
        %4167 = vrot.lane.b32.xlu0 %v4071, 32
        %v4168 = vpop.permute.xlu0 %4167
        %4169 = vrot.lane.b32.xlu0 %v4072, 32
        %v4170 = vpop.permute.xlu0 %4169
        %4171 = vrot.lane.b32.xlu0 %v4073, 32
        %v4172 = vpop.permute.xlu0 %4171
        %4173 = vrot.lane.b32.xlu0 %v4074, 32
        %v4174 = vpop.permute.xlu0 %4173
        %4175 = vrot.lane.b32.xlu0 %v4075, 32
        %v4176 = vpop.permute.xlu0 %4175
        %4177 = vrot.lane.b32.xlu0 %v4076, 32
        %v4178 = vpop.permute.xlu0 %4177
        %4179 = vrot.lane.b32.xlu0 %v4077, 32
        %v4180 = vpop.permute.xlu0 %4179
        %4181 = vrot.lane.b32.xlu0 %v4078, 32
        %v4182 = vpop.permute.xlu0 %4181
        %4183 = vrot.lane.b32.xlu0 %v4079, 32
        %v4184 = vpop.permute.xlu0 %4183
        %4185 = vrot.lane.b32.xlu0 %v4080, 32
        %v4186 = vpop.permute.xlu0 %4185
        %4187 = vrot.lane.b32.xlu0 %v4081, 32
        %v4188 = vpop.permute.xlu0 %4187
        %4189 = vrot.lane.b32.xlu0 %v4082, 32
        %v4190 = vpop.permute.xlu0 %4189
        %4191 = vrot.lane.b32.xlu0 %v4083, 32
        %v4192 = vpop.permute.xlu0 %4191
        %4193 = vrot.lane.b32.xlu0 %v4084, 32
        %v4194 = vpop.permute.xlu0 %4193
        %4195 = vrot.lane.b32.xlu0 %v4085, 32
        %v4196 = vpop.permute.xlu0 %4195
        %4197 = vrot.lane.b32.xlu0 %v4086, 32
        %v4198 = vpop.permute.xlu0 %4197
        %4199 = vrot.lane.b32.xlu0 %v4087, 32
        %v4200 = vpop.permute.xlu0 %4199
        %4201 = vrot.lane.b32.xlu0 %v4088, 32
        %v4202 = vpop.permute.xlu0 %4201
        %4203 = vrot.lane.b32.xlu0 %v4089, 32
        %v4204 = vpop.permute.xlu0 %4203
        %4205 = vrot.lane.b32.xlu0 %v4090, 32
        %v4206 = vpop.permute.xlu0 %4205
        %4207 = vrot.lane.b32.xlu0 %v4091, 32
        %v4208 = vpop.permute.xlu0 %4207
        %4209 = vrot.lane.b32.xlu0 %v4092, 32
        %v4210 = vpop.permute.xlu0 %4209
        %4211 = vrot.lane.b32.xlu0 %v4093, 32
        %v4212 = vpop.permute.xlu0 %4211
        %4213 = vrot.lane.b32.xlu0 %v4094, 32
        %v4214 = vpop.permute.xlu0 %4213
        %4215 = vrot.lane.b32.xlu0 %v4095, 32
        %v4216 = vpop.permute.xlu0 %4215
        %4217 = vrot.lane.b32.xlu0 %v4096, 32
        %v4218 = vpop.permute.xlu0 %4217
        %4219 = vrot.lane.b32.xlu0 %v4097, 32
        %v4220 = vpop.permute.xlu0 %4219
        %4221 = vrot.lane.b32.xlu0 %v4098, 32
        %v4222 = vpop.permute.xlu0 %4221
        %4223 = vrot.lane.b32.xlu0 %v4099, 32
        %v4224 = vpop.permute.xlu0 %4223
        %4225 = vrot.lane.b32.xlu0 %v4100, 32
        %v4226 = vpop.permute.xlu0 %4225
        %4227 = vrot.lane.b32.xlu0 %v4101, 32
        %v4228 = vpop.permute.xlu0 %4227
        %4229 = vrot.lane.b32.xlu0 %v4102, 32
        %v4230 = vpop.permute.xlu0 %4229
        %v4231 = vshra.s32 %v2743, 5
        %v4232 = vshra.s32 %v2744, 5
        %v4233 = vshra.s32 %v2745, 5
        %v4234 = vshra.s32 %v2746, 5
        %v4235 = vshra.s32 %v2747, 5
        %v4236 = vshra.s32 %v2748, 5
        %v4237 = vshra.s32 %v2749, 5
        %v4238 = vshra.s32 %v2750, 5
        %v4239 = vshra.s32 %v2751, 5
        %v4240 = vshra.s32 %v2752, 5
        %v4241 = vshra.s32 %v2753, 5
        %v4242 = vshra.s32 %v2754, 5
        %v4243 = vshra.s32 %v2755, 5
        %v4244 = vshra.s32 %v2756, 5
        %v4245 = vshra.s32 %v2757, 5
        %v4246 = vshra.s32 %v2758, 5
        %v4247 = vand.u32 %v4231, 1
        %v4248 = vand.u32 %v4232, 1
        %v4249 = vand.u32 %v4233, 1
        %v4250 = vand.u32 %v4234, 1
        %v4251 = vand.u32 %v4235, 1
        %v4252 = vand.u32 %v4236, 1
        %v4253 = vand.u32 %v4237, 1
        %v4254 = vand.u32 %v4238, 1
        %v4255 = vand.u32 %v4239, 1
        %v4256 = vand.u32 %v4240, 1
        %v4257 = vand.u32 %v4241, 1
        %v4258 = vand.u32 %v4242, 1
        %v4259 = vand.u32 %v4243, 1
        %v4260 = vand.u32 %v4244, 1
        %v4261 = vand.u32 %v4245, 1
        %v4262 = vand.u32 %v4246, 1
        %vm4263 = vcmp.eq.s32.totalorder %v4247, 1
        %vm4264 = vcmp.eq.s32.totalorder %v4248, 1
        %vm4265 = vcmp.eq.s32.totalorder %v4249, 1
        %vm4266 = vcmp.eq.s32.totalorder %v4250, 1
        %vm4267 = vcmp.eq.s32.totalorder %v4251, 1
        %vm4268 = vcmp.eq.s32.totalorder %v4252, 1
        %vm4269 = vcmp.eq.s32.totalorder %v4253, 1
        %vm4270 = vcmp.eq.s32.totalorder %v4254, 1
        %vm4271 = vcmp.eq.s32.totalorder %v4255, 1
        %vm4272 = vcmp.eq.s32.totalorder %v4256, 1
        %vm4273 = vcmp.eq.s32.totalorder %v4257, 1
        %vm4274 = vcmp.eq.s32.totalorder %v4258, 1
        %vm4275 = vcmp.eq.s32.totalorder %v4259, 1
        %vm4276 = vcmp.eq.s32.totalorder %v4260, 1
        %vm4277 = vcmp.eq.s32.totalorder %v4261, 1
        %vm4278 = vcmp.eq.s32.totalorder %v4262, 1
        %v4279 = vsel %vm4263, 1, 0
        %v4280 = vsel %vm4264, 1, 0
        %v4281 = vsel %vm4265, 1, 0
        %v4282 = vsel %vm4266, 1, 0
        %v4283 = vsel %vm4267, 1, 0
        %v4284 = vsel %vm4268, 1, 0
        %v4285 = vsel %vm4269, 1, 0
        %v4286 = vsel %vm4270, 1, 0
        %v4287 = vsel %vm4271, 1, 0
        %v4288 = vsel %vm4272, 1, 0
        %v4289 = vsel %vm4273, 1, 0
        %v4290 = vsel %vm4274, 1, 0
        %v4291 = vsel %vm4275, 1, 0
        %v4292 = vsel %vm4276, 1, 0
        %v4293 = vsel %vm4277, 1, 0
        %v4294 = vsel %vm4278, 1, 0
        %vm4295 = vcmp.eq.s32.totalorder %v4279, 1
        %vm4296 = vcmp.eq.s32.totalorder %v4280, 1
        %vm4297 = vcmp.eq.s32.totalorder %v4281, 1
        %vm4298 = vcmp.eq.s32.totalorder %v4282, 1
        %vm4299 = vcmp.eq.s32.totalorder %v4283, 1
        %vm4300 = vcmp.eq.s32.totalorder %v4284, 1
        %vm4301 = vcmp.eq.s32.totalorder %v4285, 1
        %vm4302 = vcmp.eq.s32.totalorder %v4286, 1
        %vm4303 = vcmp.eq.s32.totalorder %v4287, 1
        %vm4304 = vcmp.eq.s32.totalorder %v4288, 1
        %vm4305 = vcmp.eq.s32.totalorder %v4289, 1
        %vm4306 = vcmp.eq.s32.totalorder %v4290, 1
        %vm4307 = vcmp.eq.s32.totalorder %v4291, 1
        %vm4308 = vcmp.eq.s32.totalorder %v4292, 1
        %vm4309 = vcmp.eq.s32.totalorder %v4293, 1
        %vm4310 = vcmp.eq.s32.totalorder %v4294, 1
        %v4311 = vsel %vm4295, %v4104, %v4039
        %v4312 = vsel %vm4296, %v4106, %v4040
        %v4313 = vsel %vm4297, %v4108, %v4041
        %v4314 = vsel %vm4298, %v4110, %v4042
        %v4315 = vsel %vm4299, %v4112, %v4043
        %v4316 = vsel %vm4300, %v4114, %v4044
        %v4317 = vsel %vm4301, %v4116, %v4045
        %v4318 = vsel %vm4302, %v4118, %v4046
        %v4319 = vsel %vm4303, %v4120, %v4047
        %v4320 = vsel %vm4304, %v4122, %v4048
        %v4321 = vsel %vm4305, %v4124, %v4049
        %v4322 = vsel %vm4306, %v4126, %v4050
        %v4323 = vsel %vm4307, %v4128, %v4051
        %v4324 = vsel %vm4308, %v4130, %v4052
        %v4325 = vsel %vm4309, %v4132, %v4053
        %v4326 = vsel %vm4310, %v4134, %v4054
        %v4327 = vsel %vm4295, %v4136, %v4055
        %v4328 = vsel %vm4296, %v4138, %v4056
        %v4329 = vsel %vm4297, %v4140, %v4057
        %v4330 = vsel %vm4298, %v4142, %v4058
        %v4331 = vsel %vm4299, %v4144, %v4059
        %v4332 = vsel %vm4300, %v4146, %v4060
        %v4333 = vsel %vm4301, %v4148, %v4061
        %v4334 = vsel %vm4302, %v4150, %v4062
        %v4335 = vsel %vm4303, %v4152, %v4063
        %v4336 = vsel %vm4304, %v4154, %v4064
        %v4337 = vsel %vm4305, %v4156, %v4065
        %v4338 = vsel %vm4306, %v4158, %v4066
        %v4339 = vsel %vm4307, %v4160, %v4067
        %v4340 = vsel %vm4308, %v4162, %v4068
        %v4341 = vsel %vm4309, %v4164, %v4069
        %v4342 = vsel %vm4310, %v4166, %v4070
        %v4343 = vsel %vm4295, %v4168, %v4071
        %v4344 = vsel %vm4296, %v4170, %v4072
        %v4345 = vsel %vm4297, %v4172, %v4073
        %v4346 = vsel %vm4298, %v4174, %v4074
        %v4347 = vsel %vm4299, %v4176, %v4075
        %v4348 = vsel %vm4300, %v4178, %v4076
        %v4349 = vsel %vm4301, %v4180, %v4077
        %v4350 = vsel %vm4302, %v4182, %v4078
        %v4351 = vsel %vm4303, %v4184, %v4079
        %v4352 = vsel %vm4304, %v4186, %v4080
        %v4353 = vsel %vm4305, %v4188, %v4081
        %v4354 = vsel %vm4306, %v4190, %v4082
        %v4355 = vsel %vm4307, %v4192, %v4083
        %v4356 = vsel %vm4308, %v4194, %v4084
        %v4357 = vsel %vm4309, %v4196, %v4085
        %v4358 = vsel %vm4310, %v4198, %v4086
        %v4359 = vsel %vm4295, %v4200, %v4087
        %v4360 = vsel %vm4296, %v4202, %v4088
        %v4361 = vsel %vm4297, %v4204, %v4089
        %v4362 = vsel %vm4298, %v4206, %v4090
        %v4363 = vsel %vm4299, %v4208, %v4091
        %v4364 = vsel %vm4300, %v4210, %v4092
        %v4365 = vsel %vm4301, %v4212, %v4093
        %v4366 = vsel %vm4302, %v4214, %v4094
        %v4367 = vsel %vm4303, %v4216, %v4095
        %v4368 = vsel %vm4304, %v4218, %v4096
        %v4369 = vsel %vm4305, %v4220, %v4097
        %v4370 = vsel %vm4306, %v4222, %v4098
        %v4371 = vsel %vm4307, %v4224, %v4099
        %v4372 = vsel %vm4308, %v4226, %v4100
        %v4373 = vsel %vm4309, %v4228, %v4101
        %v4374 = vsel %vm4310, %v4230, %v4102
        %4375 = vrot.lane.b32.xlu0 %v4311, 64
        %v4376 = vpop.permute.xlu0 %4375
        %4377 = vrot.lane.b32.xlu0 %v4312, 64
        %v4378 = vpop.permute.xlu0 %4377
        %4379 = vrot.lane.b32.xlu0 %v4313, 64
        %v4380 = vpop.permute.xlu0 %4379
        %4381 = vrot.lane.b32.xlu0 %v4314, 64
        %v4382 = vpop.permute.xlu0 %4381
        %4383 = vrot.lane.b32.xlu0 %v4315, 64
        %v4384 = vpop.permute.xlu0 %4383
        %4385 = vrot.lane.b32.xlu0 %v4316, 64
        %v4386 = vpop.permute.xlu0 %4385
        %4387 = vrot.lane.b32.xlu0 %v4317, 64
        %v4388 = vpop.permute.xlu0 %4387
        %4389 = vrot.lane.b32.xlu0 %v4318, 64
        %v4390 = vpop.permute.xlu0 %4389
        %4391 = vrot.lane.b32.xlu0 %v4319, 64
        %v4392 = vpop.permute.xlu0 %4391
        %4393 = vrot.lane.b32.xlu0 %v4320, 64
        %v4394 = vpop.permute.xlu0 %4393
        %4395 = vrot.lane.b32.xlu0 %v4321, 64
        %v4396 = vpop.permute.xlu0 %4395
        %4397 = vrot.lane.b32.xlu0 %v4322, 64
        %v4398 = vpop.permute.xlu0 %4397
        %4399 = vrot.lane.b32.xlu0 %v4323, 64
        %v4400 = vpop.permute.xlu0 %4399
        %4401 = vrot.lane.b32.xlu0 %v4324, 64
        %v4402 = vpop.permute.xlu0 %4401
        %4403 = vrot.lane.b32.xlu0 %v4325, 64
        %v4404 = vpop.permute.xlu0 %4403
        %4405 = vrot.lane.b32.xlu0 %v4326, 64
        %v4406 = vpop.permute.xlu0 %4405
        %4407 = vrot.lane.b32.xlu0 %v4327, 64
        %v4408 = vpop.permute.xlu0 %4407
        %4409 = vrot.lane.b32.xlu0 %v4328, 64
        %v4410 = vpop.permute.xlu0 %4409
        %4411 = vrot.lane.b32.xlu0 %v4329, 64
        %v4412 = vpop.permute.xlu0 %4411
        %4413 = vrot.lane.b32.xlu0 %v4330, 64
        %v4414 = vpop.permute.xlu0 %4413
        %4415 = vrot.lane.b32.xlu0 %v4331, 64
        %v4416 = vpop.permute.xlu0 %4415
        %4417 = vrot.lane.b32.xlu0 %v4332, 64
        %v4418 = vpop.permute.xlu0 %4417
        %4419 = vrot.lane.b32.xlu0 %v4333, 64
        %v4420 = vpop.permute.xlu0 %4419
        %4421 = vrot.lane.b32.xlu0 %v4334, 64
        %v4422 = vpop.permute.xlu0 %4421
        %4423 = vrot.lane.b32.xlu0 %v4335, 64
        %v4424 = vpop.permute.xlu0 %4423
        %4425 = vrot.lane.b32.xlu0 %v4336, 64
        %v4426 = vpop.permute.xlu0 %4425
        %4427 = vrot.lane.b32.xlu0 %v4337, 64
        %v4428 = vpop.permute.xlu0 %4427
        %4429 = vrot.lane.b32.xlu0 %v4338, 64
        %v4430 = vpop.permute.xlu0 %4429
        %4431 = vrot.lane.b32.xlu0 %v4339, 64
        %v4432 = vpop.permute.xlu0 %4431
        %4433 = vrot.lane.b32.xlu0 %v4340, 64
        %v4434 = vpop.permute.xlu0 %4433
        %4435 = vrot.lane.b32.xlu0 %v4341, 64
        %v4436 = vpop.permute.xlu0 %4435
        %4437 = vrot.lane.b32.xlu0 %v4342, 64
        %v4438 = vpop.permute.xlu0 %4437
        %4439 = vrot.lane.b32.xlu0 %v4343, 64
        %v4440 = vpop.permute.xlu0 %4439
        %4441 = vrot.lane.b32.xlu0 %v4344, 64
        %v4442 = vpop.permute.xlu0 %4441
        %4443 = vrot.lane.b32.xlu0 %v4345, 64
        %v4444 = vpop.permute.xlu0 %4443
        %4445 = vrot.lane.b32.xlu0 %v4346, 64
        %v4446 = vpop.permute.xlu0 %4445
        %4447 = vrot.lane.b32.xlu0 %v4347, 64
        %v4448 = vpop.permute.xlu0 %4447
        %4449 = vrot.lane.b32.xlu0 %v4348, 64
        %v4450 = vpop.permute.xlu0 %4449
        %4451 = vrot.lane.b32.xlu0 %v4349, 64
        %v4452 = vpop.permute.xlu0 %4451
        %4453 = vrot.lane.b32.xlu0 %v4350, 64
        %v4454 = vpop.permute.xlu0 %4453
        %4455 = vrot.lane.b32.xlu0 %v4351, 64
        %v4456 = vpop.permute.xlu0 %4455
        %4457 = vrot.lane.b32.xlu0 %v4352, 64
        %v4458 = vpop.permute.xlu0 %4457
        %4459 = vrot.lane.b32.xlu0 %v4353, 64
        %v4460 = vpop.permute.xlu0 %4459
        %4461 = vrot.lane.b32.xlu0 %v4354, 64
        %v4462 = vpop.permute.xlu0 %4461
        %4463 = vrot.lane.b32.xlu0 %v4355, 64
        %v4464 = vpop.permute.xlu0 %4463
        %4465 = vrot.lane.b32.xlu0 %v4356, 64
        %v4466 = vpop.permute.xlu0 %4465
        %4467 = vrot.lane.b32.xlu0 %v4357, 64
        %v4468 = vpop.permute.xlu0 %4467
        %4469 = vrot.lane.b32.xlu0 %v4358, 64
        %v4470 = vpop.permute.xlu0 %4469
        %4471 = vrot.lane.b32.xlu0 %v4359, 64
        %v4472 = vpop.permute.xlu0 %4471
        %4473 = vrot.lane.b32.xlu0 %v4360, 64
        %v4474 = vpop.permute.xlu0 %4473
        %4475 = vrot.lane.b32.xlu0 %v4361, 64
        %v4476 = vpop.permute.xlu0 %4475
        %4477 = vrot.lane.b32.xlu0 %v4362, 64
        %v4478 = vpop.permute.xlu0 %4477
        %4479 = vrot.lane.b32.xlu0 %v4363, 64
        %v4480 = vpop.permute.xlu0 %4479
        %4481 = vrot.lane.b32.xlu0 %v4364, 64
        %v4482 = vpop.permute.xlu0 %4481
        %4483 = vrot.lane.b32.xlu0 %v4365, 64
        %v4484 = vpop.permute.xlu0 %4483
        %4485 = vrot.lane.b32.xlu0 %v4366, 64
        %v4486 = vpop.permute.xlu0 %4485
        %4487 = vrot.lane.b32.xlu0 %v4367, 64
        %v4488 = vpop.permute.xlu0 %4487
        %4489 = vrot.lane.b32.xlu0 %v4368, 64
        %v4490 = vpop.permute.xlu0 %4489
        %4491 = vrot.lane.b32.xlu0 %v4369, 64
        %v4492 = vpop.permute.xlu0 %4491
        %4493 = vrot.lane.b32.xlu0 %v4370, 64
        %v4494 = vpop.permute.xlu0 %4493
        %4495 = vrot.lane.b32.xlu0 %v4371, 64
        %v4496 = vpop.permute.xlu0 %4495
        %4497 = vrot.lane.b32.xlu0 %v4372, 64
        %v4498 = vpop.permute.xlu0 %4497
        %4499 = vrot.lane.b32.xlu0 %v4373, 64
        %v4500 = vpop.permute.xlu0 %4499
        %4501 = vrot.lane.b32.xlu0 %v4374, 64
        %v4502 = vpop.permute.xlu0 %4501
        %v4503 = vshra.s32 %v2743, 6
        %v4504 = vshra.s32 %v2744, 6
        %v4505 = vshra.s32 %v2745, 6
        %v4506 = vshra.s32 %v2746, 6
        %v4507 = vshra.s32 %v2747, 6
        %v4508 = vshra.s32 %v2748, 6
        %v4509 = vshra.s32 %v2749, 6
        %v4510 = vshra.s32 %v2750, 6
        %v4511 = vshra.s32 %v2751, 6
        %v4512 = vshra.s32 %v2752, 6
        %v4513 = vshra.s32 %v2753, 6
        %v4514 = vshra.s32 %v2754, 6
        %v4515 = vshra.s32 %v2755, 6
        %v4516 = vshra.s32 %v2756, 6
        %v4517 = vshra.s32 %v2757, 6
        %v4518 = vshra.s32 %v2758, 6
        %v4519 = vand.u32 %v4503, 1
        %v4520 = vand.u32 %v4504, 1
        %v4521 = vand.u32 %v4505, 1
        %v4522 = vand.u32 %v4506, 1
        %v4523 = vand.u32 %v4507, 1
        %v4524 = vand.u32 %v4508, 1
        %v4525 = vand.u32 %v4509, 1
        %v4526 = vand.u32 %v4510, 1
        %v4527 = vand.u32 %v4511, 1
        %v4528 = vand.u32 %v4512, 1
        %v4529 = vand.u32 %v4513, 1
        %v4530 = vand.u32 %v4514, 1
        %v4531 = vand.u32 %v4515, 1
        %v4532 = vand.u32 %v4516, 1
        %v4533 = vand.u32 %v4517, 1
        %v4534 = vand.u32 %v4518, 1
        %vm4535 = vcmp.eq.s32.totalorder %v4519, 1
        %vm4536 = vcmp.eq.s32.totalorder %v4520, 1
        %vm4537 = vcmp.eq.s32.totalorder %v4521, 1
        %vm4538 = vcmp.eq.s32.totalorder %v4522, 1
        %vm4539 = vcmp.eq.s32.totalorder %v4523, 1
        %vm4540 = vcmp.eq.s32.totalorder %v4524, 1
        %vm4541 = vcmp.eq.s32.totalorder %v4525, 1
        %vm4542 = vcmp.eq.s32.totalorder %v4526, 1
        %vm4543 = vcmp.eq.s32.totalorder %v4527, 1
        %vm4544 = vcmp.eq.s32.totalorder %v4528, 1
        %vm4545 = vcmp.eq.s32.totalorder %v4529, 1
        %vm4546 = vcmp.eq.s32.totalorder %v4530, 1
        %vm4547 = vcmp.eq.s32.totalorder %v4531, 1
        %vm4548 = vcmp.eq.s32.totalorder %v4532, 1
        %vm4549 = vcmp.eq.s32.totalorder %v4533, 1
        %vm4550 = vcmp.eq.s32.totalorder %v4534, 1
        %v4551 = vsel %vm4535, 1, 0
        %v4552 = vsel %vm4536, 1, 0
        %v4553 = vsel %vm4537, 1, 0
        %v4554 = vsel %vm4538, 1, 0
        %v4555 = vsel %vm4539, 1, 0
        %v4556 = vsel %vm4540, 1, 0
        %v4557 = vsel %vm4541, 1, 0
        %v4558 = vsel %vm4542, 1, 0
        %v4559 = vsel %vm4543, 1, 0
        %v4560 = vsel %vm4544, 1, 0
        %v4561 = vsel %vm4545, 1, 0
        %v4562 = vsel %vm4546, 1, 0
        %v4563 = vsel %vm4547, 1, 0
        %v4564 = vsel %vm4548, 1, 0
        %v4565 = vsel %vm4549, 1, 0
        %v4566 = vsel %vm4550, 1, 0
        %vm4567 = vcmp.eq.s32.totalorder %v4551, 1
        %vm4568 = vcmp.eq.s32.totalorder %v4552, 1
        %vm4569 = vcmp.eq.s32.totalorder %v4553, 1
        %vm4570 = vcmp.eq.s32.totalorder %v4554, 1
        %vm4571 = vcmp.eq.s32.totalorder %v4555, 1
        %vm4572 = vcmp.eq.s32.totalorder %v4556, 1
        %vm4573 = vcmp.eq.s32.totalorder %v4557, 1
        %vm4574 = vcmp.eq.s32.totalorder %v4558, 1
        %vm4575 = vcmp.eq.s32.totalorder %v4559, 1
        %vm4576 = vcmp.eq.s32.totalorder %v4560, 1
        %vm4577 = vcmp.eq.s32.totalorder %v4561, 1
        %vm4578 = vcmp.eq.s32.totalorder %v4562, 1
        %vm4579 = vcmp.eq.s32.totalorder %v4563, 1
        %vm4580 = vcmp.eq.s32.totalorder %v4564, 1
        %vm4581 = vcmp.eq.s32.totalorder %v4565, 1
        %vm4582 = vcmp.eq.s32.totalorder %v4566, 1
        %v4583 = vsel %vm4567, %v4376, %v4311
        %v4584 = vsel %vm4568, %v4378, %v4312
        %v4585 = vsel %vm4569, %v4380, %v4313
        %v4586 = vsel %vm4570, %v4382, %v4314
        %v4587 = vsel %vm4571, %v4384, %v4315
        %v4588 = vsel %vm4572, %v4386, %v4316
        %v4589 = vsel %vm4573, %v4388, %v4317
        %v4590 = vsel %vm4574, %v4390, %v4318
        %v4591 = vsel %vm4575, %v4392, %v4319
        %v4592 = vsel %vm4576, %v4394, %v4320
        %v4593 = vsel %vm4577, %v4396, %v4321
        %v4594 = vsel %vm4578, %v4398, %v4322
        %v4595 = vsel %vm4579, %v4400, %v4323
        %v4596 = vsel %vm4580, %v4402, %v4324
        %v4597 = vsel %vm4581, %v4404, %v4325
        %v4598 = vsel %vm4582, %v4406, %v4326
        %v4599 = vsel %vm4567, %v4408, %v4327
        %v4600 = vsel %vm4568, %v4410, %v4328
        %v4601 = vsel %vm4569, %v4412, %v4329
        %v4602 = vsel %vm4570, %v4414, %v4330
        %v4603 = vsel %vm4571, %v4416, %v4331
        %v4604 = vsel %vm4572, %v4418, %v4332
        %v4605 = vsel %vm4573, %v4420, %v4333
        %v4606 = vsel %vm4574, %v4422, %v4334
        %v4607 = vsel %vm4575, %v4424, %v4335
        %v4608 = vsel %vm4576, %v4426, %v4336
        %v4609 = vsel %vm4577, %v4428, %v4337
        %v4610 = vsel %vm4578, %v4430, %v4338
        %v4611 = vsel %vm4579, %v4432, %v4339
        %v4612 = vsel %vm4580, %v4434, %v4340
        %v4613 = vsel %vm4581, %v4436, %v4341
        %v4614 = vsel %vm4582, %v4438, %v4342
        %v4615 = vsel %vm4567, %v4440, %v4343
        %v4616 = vsel %vm4568, %v4442, %v4344
        %v4617 = vsel %vm4569, %v4444, %v4345
        %v4618 = vsel %vm4570, %v4446, %v4346
        %v4619 = vsel %vm4571, %v4448, %v4347
        %v4620 = vsel %vm4572, %v4450, %v4348
        %v4621 = vsel %vm4573, %v4452, %v4349
        %v4622 = vsel %vm4574, %v4454, %v4350
        %v4623 = vsel %vm4575, %v4456, %v4351
        %v4624 = vsel %vm4576, %v4458, %v4352
        %v4625 = vsel %vm4577, %v4460, %v4353
        %v4626 = vsel %vm4578, %v4462, %v4354
        %v4627 = vsel %vm4579, %v4464, %v4355
        %v4628 = vsel %vm4580, %v4466, %v4356
        %v4629 = vsel %vm4581, %v4468, %v4357
        %v4630 = vsel %vm4582, %v4470, %v4358
        %v4631 = vsel %vm4567, %v4472, %v4359
        %v4632 = vsel %vm4568, %v4474, %v4360
        %v4633 = vsel %vm4569, %v4476, %v4361
        %v4634 = vsel %vm4570, %v4478, %v4362
        %v4635 = vsel %vm4571, %v4480, %v4363
        %v4636 = vsel %vm4572, %v4482, %v4364
        %v4637 = vsel %vm4573, %v4484, %v4365
        %v4638 = vsel %vm4574, %v4486, %v4366
        %v4639 = vsel %vm4575, %v4488, %v4367
        %v4640 = vsel %vm4576, %v4490, %v4368
        %v4641 = vsel %vm4577, %v4492, %v4369
        %v4642 = vsel %vm4578, %v4494, %v4370
        %v4643 = vsel %vm4579, %v4496, %v4371
        %v4644 = vsel %vm4580, %v4498, %v4372
        %v4645 = vsel %vm4581, %v4500, %v4373
        %v4646 = vsel %vm4582, %v4502, %v4374
        %v4647 = vrot.slane %v4583, 1
        %v4648 = vrot.slane %v4599, 1
        %v4649 = vrot.slane %v4615, 1
        %v4650 = vrot.slane %v4631, 1
        %v4651 = vrot.slane %v4584, 1
        %v4652 = vrot.slane %v4600, 1
        %v4653 = vrot.slane %v4616, 1
        %v4654 = vrot.slane %v4632, 1
        %v4655 = vrot.slane %v4585, 1
        %v4656 = vrot.slane %v4601, 1
        %v4657 = vrot.slane %v4617, 1
        %v4658 = vrot.slane %v4633, 1
        %v4659 = vrot.slane %v4586, 1
        %v4660 = vrot.slane %v4602, 1
        %v4661 = vrot.slane %v4618, 1
        %v4662 = vrot.slane %v4634, 1
        %v4663 = vrot.slane %v4587, 1
        %v4664 = vrot.slane %v4603, 1
        %v4665 = vrot.slane %v4619, 1
        %v4666 = vrot.slane %v4635, 1
        %v4667 = vrot.slane %v4588, 1
        %v4668 = vrot.slane %v4604, 1
        %v4669 = vrot.slane %v4620, 1
        %v4670 = vrot.slane %v4636, 1
        %v4671 = vrot.slane %v4589, 1
        %v4672 = vrot.slane %v4605, 1
        %v4673 = vrot.slane %v4621, 1
        %v4674 = vrot.slane %v4637, 1
        %v4675 = vrot.slane %v4590, 1
        %v4676 = vrot.slane %v4606, 1
        %v4677 = vrot.slane %v4622, 1
        %v4678 = vrot.slane %v4638, 1
        %v4679 = vrot.slane %v4591, 1
        %v4680 = vrot.slane %v4607, 1
        %v4681 = vrot.slane %v4623, 1
        %v4682 = vrot.slane %v4639, 1
        %v4683 = vrot.slane %v4592, 1
        %v4684 = vrot.slane %v4608, 1
        %v4685 = vrot.slane %v4624, 1
        %v4686 = vrot.slane %v4640, 1
        %v4687 = vrot.slane %v4593, 1
        %v4688 = vrot.slane %v4609, 1
        %v4689 = vrot.slane %v4625, 1
        %v4690 = vrot.slane %v4641, 1
        %v4691 = vrot.slane %v4594, 1
        %v4692 = vrot.slane %v4610, 1
        %v4693 = vrot.slane %v4626, 1
        %v4694 = vrot.slane %v4642, 1
        %v4695 = vrot.slane %v4595, 1
        %v4696 = vrot.slane %v4611, 1
        %v4697 = vrot.slane %v4627, 1
        %v4698 = vrot.slane %v4643, 1
        %v4699 = vrot.slane %v4596, 1
        %v4700 = vrot.slane %v4612, 1
        %v4701 = vrot.slane %v4628, 1
        %v4702 = vrot.slane %v4644, 1
        %v4703 = vrot.slane %v4597, 1
        %v4704 = vrot.slane %v4613, 1
        %v4705 = vrot.slane %v4629, 1
        %v4706 = vrot.slane %v4645, 1
        %v4707 = vrot.slane %v4598, 1
        %v4708 = vrot.slane %v4614, 1
        %v4709 = vrot.slane %v4630, 1
        %v4710 = vrot.slane %v4646, 1
        %vm4711 = vcmp.lt.s32.totalorder %v2693, 7
        %v4712 = vsel %vm4711, %v4703, %v4707
        %v4713 = vsel %vm4711, %v4704, %v4708
        %v4714 = vsel %vm4711, %v4705, %v4709
        %v4715 = vsel %vm4711, %v4706, %v4710
        %v4716 = vsel %vm4711, %v4699, %v4703
        %v4717 = vsel %vm4711, %v4700, %v4704
        %v4718 = vsel %vm4711, %v4701, %v4705
        %v4719 = vsel %vm4711, %v4702, %v4706
        %v4720 = vsel %vm4711, %v4695, %v4699
        %v4721 = vsel %vm4711, %v4696, %v4700
        %v4722 = vsel %vm4711, %v4697, %v4701
        %v4723 = vsel %vm4711, %v4698, %v4702
        %v4724 = vsel %vm4711, %v4691, %v4695
        %v4725 = vsel %vm4711, %v4692, %v4696
        %v4726 = vsel %vm4711, %v4693, %v4697
        %v4727 = vsel %vm4711, %v4694, %v4698
        %v4728 = vsel %vm4711, %v4687, %v4691
        %v4729 = vsel %vm4711, %v4688, %v4692
        %v4730 = vsel %vm4711, %v4689, %v4693
        %v4731 = vsel %vm4711, %v4690, %v4694
        %v4732 = vsel %vm4711, %v4683, %v4687
        %v4733 = vsel %vm4711, %v4684, %v4688
        %v4734 = vsel %vm4711, %v4685, %v4689
        %v4735 = vsel %vm4711, %v4686, %v4690
        %v4736 = vsel %vm4711, %v4679, %v4683
        %v4737 = vsel %vm4711, %v4680, %v4684
        %v4738 = vsel %vm4711, %v4681, %v4685
        %v4739 = vsel %vm4711, %v4682, %v4686
        %v4740 = vsel %vm4711, %v4675, %v4679
        %v4741 = vsel %vm4711, %v4676, %v4680
        %v4742 = vsel %vm4711, %v4677, %v4681
        %v4743 = vsel %vm4711, %v4678, %v4682
        %v4744 = vsel %vm4711, %v4671, %v4675
        %v4745 = vsel %vm4711, %v4672, %v4676
        %v4746 = vsel %vm4711, %v4673, %v4677
        %v4747 = vsel %vm4711, %v4674, %v4678
        %v4748 = vsel %vm4711, %v4667, %v4671
        %v4749 = vsel %vm4711, %v4668, %v4672
        %v4750 = vsel %vm4711, %v4669, %v4673
        %v4751 = vsel %vm4711, %v4670, %v4674
        %v4752 = vsel %vm4711, %v4663, %v4667
        %v4753 = vsel %vm4711, %v4664, %v4668
        %v4754 = vsel %vm4711, %v4665, %v4669
        %v4755 = vsel %vm4711, %v4666, %v4670
        %v4756 = vsel %vm4711, %v4659, %v4663
        %v4757 = vsel %vm4711, %v4660, %v4664
        %v4758 = vsel %vm4711, %v4661, %v4665
        %v4759 = vsel %vm4711, %v4662, %v4666
        %v4760 = vsel %vm4711, %v4655, %v4659
        %v4761 = vsel %vm4711, %v4656, %v4660
        %v4762 = vsel %vm4711, %v4657, %v4661
        %v4763 = vsel %vm4711, %v4658, %v4662
        %v4764 = vsel %vm4711, %v4651, %v4655
        %v4765 = vsel %vm4711, %v4652, %v4656
        %v4766 = vsel %vm4711, %v4653, %v4657
        %v4767 = vsel %vm4711, %v4654, %v4658
        %v4768 = vsel %vm4711, %v4647, %v4651
        %v4769 = vsel %vm4711, %v4648, %v4652
        %v4770 = vsel %vm4711, %v4649, %v4653
        %v4771 = vsel %vm4711, %v4650, %v4654
        %v4772 = vsel %vm4711, %v4707, %v4647
        %v4773 = vsel %vm4711, %v4708, %v4648
        %v4774 = vsel %vm4711, %v4709, %v4649
        %v4775 = vsel %vm4711, %v4710, %v4650
        %vm4776 = vcmp.le.s32.totalorder %v2710, %v2693
        %vm4777 = vcmp.le.s32.totalorder %v2710, %v2694
        %vm4778 = vcmp.le.s32.totalorder %v2710, %v2695
        %vm4779 = vcmp.le.s32.totalorder %v2710, %v2696
        %vm4780 = vcmp.le.s32.totalorder %v2710, %v2697
        %vm4781 = vcmp.le.s32.totalorder %v2710, %v2698
        %vm4782 = vcmp.le.s32.totalorder %v2710, %v2699
        %vm4783 = vcmp.le.s32.totalorder %v2710, %v2700
        %vm4784 = vcmp.le.s32.totalorder %v2710, %v2701
        %vm4785 = vcmp.le.s32.totalorder %v2710, %v2702
        %vm4786 = vcmp.le.s32.totalorder %v2710, %v2703
        %vm4787 = vcmp.le.s32.totalorder %v2710, %v2704
        %vm4788 = vcmp.le.s32.totalorder %v2710, %v2705
        %vm4789 = vcmp.le.s32.totalorder %v2710, %v2706
        %vm4790 = vcmp.le.s32.totalorder %v2710, %v2707
        %vm4791 = vcmp.le.s32.totalorder %v2710, %v2708
        %vm4792 = vcmp.eq.s32.totalorder %v2710, %v2727
        %vm4793 = vcmp.eq.s32.totalorder %v2710, %v2728
        %vm4794 = vcmp.eq.s32.totalorder %v2710, %v2729
        %vm4795 = vcmp.eq.s32.totalorder %v2710, %v2730
        %vm4796 = vcmp.eq.s32.totalorder %v2710, %v2731
        %vm4797 = vcmp.eq.s32.totalorder %v2710, %v2732
        %vm4798 = vcmp.eq.s32.totalorder %v2710, %v2733
        %vm4799 = vcmp.eq.s32.totalorder %v2710, %v2734
        %vm4800 = vcmp.eq.s32.totalorder %v2710, %v2735
        %vm4801 = vcmp.eq.s32.totalorder %v2710, %v2736
        %vm4802 = vcmp.eq.s32.totalorder %v2710, %v2737
        %vm4803 = vcmp.eq.s32.totalorder %v2710, %v2738
        %vm4804 = vcmp.eq.s32.totalorder %v2710, %v2739
        %vm4805 = vcmp.eq.s32.totalorder %v2710, %v2740
        %vm4806 = vcmp.eq.s32.totalorder %v2710, %v2741
        %vm4807 = vcmp.eq.s32.totalorder %v2710, %v2742
        %v4808 = vsel %vm4792, 1, 0
        %v4809 = vsel %vm4793, 1, 0
        %v4810 = vsel %vm4794, 1, 0
        %v4811 = vsel %vm4795, 1, 0
        %v4812 = vsel %vm4796, 1, 0
        %v4813 = vsel %vm4797, 1, 0
        %v4814 = vsel %vm4798, 1, 0
        %v4815 = vsel %vm4799, 1, 0
        %v4816 = vsel %vm4800, 1, 0
        %v4817 = vsel %vm4801, 1, 0
        %v4818 = vsel %vm4802, 1, 0
        %v4819 = vsel %vm4803, 1, 0
        %v4820 = vsel %vm4804, 1, 0
        %v4821 = vsel %vm4805, 1, 0
        %v4822 = vsel %vm4806, 1, 0
        %v4823 = vsel %vm4807, 1, 0
        %vm4824 = vcmp.eq.s32.totalorder %v4808, 1
        %vm4825 = vcmp.eq.s32.totalorder %v4809, 1
        %vm4826 = vcmp.eq.s32.totalorder %v4810, 1
        %vm4827 = vcmp.eq.s32.totalorder %v4811, 1
        %vm4828 = vcmp.eq.s32.totalorder %v4812, 1
        %vm4829 = vcmp.eq.s32.totalorder %v4813, 1
        %vm4830 = vcmp.eq.s32.totalorder %v4814, 1
        %vm4831 = vcmp.eq.s32.totalorder %v4815, 1
        %vm4832 = vcmp.eq.s32.totalorder %v4816, 1
        %vm4833 = vcmp.eq.s32.totalorder %v4817, 1
        %vm4834 = vcmp.eq.s32.totalorder %v4818, 1
        %vm4835 = vcmp.eq.s32.totalorder %v4819, 1
        %vm4836 = vcmp.eq.s32.totalorder %v4820, 1
        %vm4837 = vcmp.eq.s32.totalorder %v4821, 1
        %vm4838 = vcmp.eq.s32.totalorder %v4822, 1
        %vm4839 = vcmp.eq.s32.totalorder %v4823, 1
        %v4840 = vsel %vm4824, 0.0, %v4768
        %v4841 = vsel %vm4825, 0.0, %v4764
        %v4842 = vsel %vm4826, 0.0, %v4760
        %v4843 = vsel %vm4827, 0.0, %v4756
        %v4844 = vsel %vm4828, 0.0, %v4752
        %v4845 = vsel %vm4829, 0.0, %v4748
        %v4846 = vsel %vm4830, 0.0, %v4744
        %v4847 = vsel %vm4831, 0.0, %v4740
        %v4848 = vsel %vm4832, 0.0, %v4736
        %v4849 = vsel %vm4833, 0.0, %v4732
        %v4850 = vsel %vm4834, 0.0, %v4728
        %v4851 = vsel %vm4835, 0.0, %v4724
        %v4852 = vsel %vm4836, 0.0, %v4720
        %v4853 = vsel %vm4837, 0.0, %v4716
        %v4854 = vsel %vm4838, 0.0, %v4712
        %v4855 = vsel %vm4839, 0.0, %v4772
        %v4856 = vsel %vm4824, 0.0, %v4769
        %v4857 = vsel %vm4825, 0.0, %v4765
        %v4858 = vsel %vm4826, 0.0, %v4761
        %v4859 = vsel %vm4827, 0.0, %v4757
        %v4860 = vsel %vm4828, 0.0, %v4753
        %v4861 = vsel %vm4829, 0.0, %v4749
        %v4862 = vsel %vm4830, 0.0, %v4745
        %v4863 = vsel %vm4831, 0.0, %v4741
        %v4864 = vsel %vm4832, 0.0, %v4737
        %v4865 = vsel %vm4833, 0.0, %v4733
        %v4866 = vsel %vm4834, 0.0, %v4729
        %v4867 = vsel %vm4835, 0.0, %v4725
        %v4868 = vsel %vm4836, 0.0, %v4721
        %v4869 = vsel %vm4837, 0.0, %v4717
        %v4870 = vsel %vm4838, 0.0, %v4713
        %v4871 = vsel %vm4839, 0.0, %v4773
        %v4872 = vsel %vm4824, 0.0, %v4770
        %v4873 = vsel %vm4825, 0.0, %v4766
        %v4874 = vsel %vm4826, 0.0, %v4762
        %v4875 = vsel %vm4827, 0.0, %v4758
        %v4876 = vsel %vm4828, 0.0, %v4754
        %v4877 = vsel %vm4829, 0.0, %v4750
        %v4878 = vsel %vm4830, 0.0, %v4746
        %v4879 = vsel %vm4831, 0.0, %v4742
        %v4880 = vsel %vm4832, 0.0, %v4738
        %v4881 = vsel %vm4833, 0.0, %v4734
        %v4882 = vsel %vm4834, 0.0, %v4730
        %v4883 = vsel %vm4835, 0.0, %v4726
        %v4884 = vsel %vm4836, 0.0, %v4722
        %v4885 = vsel %vm4837, 0.0, %v4718
        %v4886 = vsel %vm4838, 0.0, %v4714
        %v4887 = vsel %vm4839, 0.0, %v4774
        %v4888 = vsel %vm4824, 0.0, %v4771
        %v4889 = vsel %vm4825, 0.0, %v4767
        %v4890 = vsel %vm4826, 0.0, %v4763
        %v4891 = vsel %vm4827, 0.0, %v4759
        %v4892 = vsel %vm4828, 0.0, %v4755
        %v4893 = vsel %vm4829, 0.0, %v4751
        %v4894 = vsel %vm4830, 0.0, %v4747
        %v4895 = vsel %vm4831, 0.0, %v4743
        %v4896 = vsel %vm4832, 0.0, %v4739
        %v4897 = vsel %vm4833, 0.0, %v4735
        %v4898 = vsel %vm4834, 0.0, %v4731
        %v4899 = vsel %vm4835, 0.0, %v4727
        %v4900 = vsel %vm4836, 0.0, %v4723
        %v4901 = vsel %vm4837, 0.0, %v4719
        %v4902 = vsel %vm4838, 0.0, %v4715
        %v4903 = vsel %vm4839, 0.0, %v4775
        %v4904 = vsel %vm4776, 1, 0
        %v4905 = vsel %vm4777, 1, 0
        %v4906 = vsel %vm4778, 1, 0
        %v4907 = vsel %vm4779, 1, 0
        %v4908 = vsel %vm4780, 1, 0
        %v4909 = vsel %vm4781, 1, 0
        %v4910 = vsel %vm4782, 1, 0
        %v4911 = vsel %vm4783, 1, 0
        %v4912 = vsel %vm4784, 1, 0
        %v4913 = vsel %vm4785, 1, 0
        %v4914 = vsel %vm4786, 1, 0
        %v4915 = vsel %vm4787, 1, 0
        %v4916 = vsel %vm4788, 1, 0
        %v4917 = vsel %vm4789, 1, 0
        %v4918 = vsel %vm4790, 1, 0
        %v4919 = vsel %vm4791, 1, 0
        %vm4920 = vcmp.eq.s32.totalorder %v4904, 1
        %vm4921 = vcmp.eq.s32.totalorder %v4905, 1
        %vm4922 = vcmp.eq.s32.totalorder %v4906, 1
        %vm4923 = vcmp.eq.s32.totalorder %v4907, 1
        %vm4924 = vcmp.eq.s32.totalorder %v4908, 1
        %vm4925 = vcmp.eq.s32.totalorder %v4909, 1
        %vm4926 = vcmp.eq.s32.totalorder %v4910, 1
        %vm4927 = vcmp.eq.s32.totalorder %v4911, 1
        %vm4928 = vcmp.eq.s32.totalorder %v4912, 1
        %vm4929 = vcmp.eq.s32.totalorder %v4913, 1
        %vm4930 = vcmp.eq.s32.totalorder %v4914, 1
        %vm4931 = vcmp.eq.s32.totalorder %v4915, 1
        %vm4932 = vcmp.eq.s32.totalorder %v4916, 1
        %vm4933 = vcmp.eq.s32.totalorder %v4917, 1
        %vm4934 = vcmp.eq.s32.totalorder %v4918, 1
        %vm4935 = vcmp.eq.s32.totalorder %v4919, 1
        %v4936 = vsel %vm4920, %v4583, %v4840
        %v4937 = vsel %vm4921, %v4584, %v4841
        %v4938 = vsel %vm4922, %v4585, %v4842
        %v4939 = vsel %vm4923, %v4586, %v4843
        %v4940 = vsel %vm4924, %v4587, %v4844
        %v4941 = vsel %vm4925, %v4588, %v4845
        %v4942 = vsel %vm4926, %v4589, %v4846
        %v4943 = vsel %vm4927, %v4590, %v4847
        %v4944 = vsel %vm4928, %v4591, %v4848
        %v4945 = vsel %vm4929, %v4592, %v4849
        %v4946 = vsel %vm4930, %v4593, %v4850
        %v4947 = vsel %vm4931, %v4594, %v4851
        %v4948 = vsel %vm4932, %v4595, %v4852
        %v4949 = vsel %vm4933, %v4596, %v4853
        %v4950 = vsel %vm4934, %v4597, %v4854
        %v4951 = vsel %vm4935, %v4598, %v4855
        %v4952 = vsel %vm4920, %v4599, %v4856
        %v4953 = vsel %vm4921, %v4600, %v4857
        %v4954 = vsel %vm4922, %v4601, %v4858
        %v4955 = vsel %vm4923, %v4602, %v4859
        %v4956 = vsel %vm4924, %v4603, %v4860
        %v4957 = vsel %vm4925, %v4604, %v4861
        %v4958 = vsel %vm4926, %v4605, %v4862
        %v4959 = vsel %vm4927, %v4606, %v4863
        %v4960 = vsel %vm4928, %v4607, %v4864
        %v4961 = vsel %vm4929, %v4608, %v4865
        %v4962 = vsel %vm4930, %v4609, %v4866
        %v4963 = vsel %vm4931, %v4610, %v4867
        %v4964 = vsel %vm4932, %v4611, %v4868
        %v4965 = vsel %vm4933, %v4612, %v4869
        %v4966 = vsel %vm4934, %v4613, %v4870
        %v4967 = vsel %vm4935, %v4614, %v4871
        %v4968 = vsel %vm4920, %v4615, %v4872
        %v4969 = vsel %vm4921, %v4616, %v4873
        %v4970 = vsel %vm4922, %v4617, %v4874
        %v4971 = vsel %vm4923, %v4618, %v4875
        %v4972 = vsel %vm4924, %v4619, %v4876
        %v4973 = vsel %vm4925, %v4620, %v4877
        %v4974 = vsel %vm4926, %v4621, %v4878
        %v4975 = vsel %vm4927, %v4622, %v4879
        %v4976 = vsel %vm4928, %v4623, %v4880
        %v4977 = vsel %vm4929, %v4624, %v4881
        %v4978 = vsel %vm4930, %v4625, %v4882
        %v4979 = vsel %vm4931, %v4626, %v4883
        %v4980 = vsel %vm4932, %v4627, %v4884
        %v4981 = vsel %vm4933, %v4628, %v4885
        %v4982 = vsel %vm4934, %v4629, %v4886
        %v4983 = vsel %vm4935, %v4630, %v4887
        %v4984 = vsel %vm4920, %v4631, %v4888
        %v4985 = vsel %vm4921, %v4632, %v4889
        %v4986 = vsel %vm4922, %v4633, %v4890
        %v4987 = vsel %vm4923, %v4634, %v4891
        %v4988 = vsel %vm4924, %v4635, %v4892
        %v4989 = vsel %vm4925, %v4636, %v4893
        %v4990 = vsel %vm4926, %v4637, %v4894
        %v4991 = vsel %vm4927, %v4638, %v4895
        %v4992 = vsel %vm4928, %v4639, %v4896
        %v4993 = vsel %vm4929, %v4640, %v4897
        %v4994 = vsel %vm4930, %v4641, %v4898
        %v4995 = vsel %vm4931, %v4642, %v4899
        %v4996 = vsel %vm4932, %v4643, %v4900
        %v4997 = vsel %vm4933, %v4644, %v4901
        %v4998 = vsel %vm4934, %v4645, %v4902
        %v4999 = vsel %vm4935, %v4646, %v4903
        %v5016 = vunpack.c.l.b16 %v1647
        %v5017 = vunpack.c.l.b16 %v1648
        %v5018 = vunpack.c.l.b16 %v1649
        %v5019 = vunpack.c.l.b16 %v1650
        %v5020 = vunpack.c.l.b16 %v1651
        %v5021 = vunpack.c.l.b16 %v1652
        %v5022 = vunpack.c.l.b16 %v1653
        %v5023 = vunpack.c.l.b16 %v1654
        %v5024 = vunpack.c.l.b16 %v1655
        %v5025 = vunpack.c.l.b16 %v1656
        %v5026 = vunpack.c.l.b16 %v1657
        %v5027 = vunpack.c.l.b16 %v1658
        %v5028 = vunpack.c.l.b16 %v1659
        %v5029 = vunpack.c.l.b16 %v1660
        %v5030 = vunpack.c.l.b16 %v1661
        %v5031 = vunpack.c.l.b16 %v1662
        %v5032 = vpack.c.b16 %v5017, %v5016
        %v5033 = vpack.c.b16 %v5019, %v5018
        %v5034 = vpack.c.b16 %v5021, %v5020
        %v5035 = vpack.c.b16 %v5023, %v5022
        %v5036 = vpack.c.b16 %v5025, %v5024
        %v5037 = vpack.c.b16 %v5027, %v5026
        %v5038 = vpack.c.b16 %v5029, %v5028
        %v5039 = vpack.c.b16 %v5031, %v5030
        %v5056 = vunpack.c.l.b16 %v1215
        %v5057 = vunpack.c.l.b16 %v1216
        %v5058 = vunpack.c.l.b16 %v1217
        %v5059 = vunpack.c.l.b16 %v1218
        %v5060 = vunpack.c.l.b16 %v1219
        %v5061 = vunpack.c.l.b16 %v1220
        %v5062 = vunpack.c.l.b16 %v1221
        %v5063 = vunpack.c.l.b16 %v1222
        %v5064 = vunpack.c.l.b16 %v1223
        %v5065 = vunpack.c.l.b16 %v1224
        %v5066 = vunpack.c.l.b16 %v1225
        %v5067 = vunpack.c.l.b16 %v1226
        %v5068 = vunpack.c.l.b16 %v1227
        %v5069 = vunpack.c.l.b16 %v1228
        %v5070 = vunpack.c.l.b16 %v1229
        %v5071 = vunpack.c.l.b16 %v1230
        %v5072 = vpack.c.b16 %v5057, %v5056
        %v5073 = vpack.c.b16 %v5059, %v5058
        %v5074 = vpack.c.b16 %v5061, %v5060
        %v5075 = vpack.c.b16 %v5063, %v5062
        %v5076 = vpack.c.b16 %v5065, %v5064
        %v5077 = vpack.c.b16 %v5067, %v5066
        %v5078 = vpack.c.b16 %v5069, %v5068
        %v5079 = vpack.c.b16 %v5071, %v5070
        %v5081 = vsel %vm2063, %v5032, 0
        %v5084 = vsel %vm2063, %v5033, 0
        %v5087 = vsel %vm2063, %v5034, 0
        %v5090 = vsel %vm2063, %v5035, 0
        %v5093 = vsel %vm2063, %v5036, 0
        %v5096 = vsel %vm2063, %v5037, 0
        %v5099 = vsel %vm2063, %v5038, 0
        %v5102 = vsel %vm2063, %v5039, 0
        %v5105 = vsel %vm2063, %v5072, 0
        %v5108 = vsel %vm2063, %v5073, 0
        %v5111 = vsel %vm2063, %v5074, 0
        %v5114 = vsel %vm2063, %v5075, 0
        %v5117 = vsel %vm2063, %v5076, 0
        %v5120 = vsel %vm2063, %v5077, 0
        %v5123 = vsel %vm2063, %v5078, 0
        %v5126 = vsel %vm2063, %v5079, 0
        %5128 = vmatpush.bf16.xpose.msra.mxu0 %v5126
        %5129 = vmatpush.bf16.xpose.msra.mxu0 %v5123
        %5130 = vmatpush.bf16.xpose.msra.mxu0 %v5120
        %5131 = vmatpush.bf16.xpose.msra.mxu0 %v5117
        %5132 = vmatpush.bf16.xpose.msra.mxu0 %v5114
        %5133 = vmatpush.bf16.xpose.msra.mxu0 %v5111
        %5134 = vmatpush.bf16.xpose.msra.mxu0 %v5108
        %5135 = vmatpush.bf16.xpose.msra.mxu0 %v5105
        %5136 = vmatmul.bf16.gmra.mxu0 %v5081
        %v5137 = vpop.f32.mrf.mxu0
        %v5138 = vadd.f32 %v4936, %v5137
        %v5139 = vpop.f32.mrf.mxu0
        %v5140 = vadd.f32 %v4937, %v5139
        %5141 = vmatmul.bf16.gmra.mxu0 %v5084
        %v5142 = vpop.f32.mrf.mxu0
        %v5143 = vadd.f32 %v4938, %v5142
        %v5144 = vpop.f32.mrf.mxu0
        %v5145 = vadd.f32 %v4939, %v5144
        %5146 = vmatmul.bf16.gmra.mxu0 %v5087
        %v5147 = vpop.f32.mrf.mxu0
        %v5148 = vadd.f32 %v4940, %v5147
        %v5149 = vpop.f32.mrf.mxu0
        %v5150 = vadd.f32 %v4941, %v5149
        %5151 = vmatmul.bf16.gmra.mxu0 %v5090
        %v5152 = vpop.f32.mrf.mxu0
        %v5153 = vadd.f32 %v4942, %v5152
        %v5154 = vpop.f32.mrf.mxu0
        %v5155 = vadd.f32 %v4943, %v5154
        %5156 = vmatmul.bf16.gmra.mxu0 %v5093
        %v5157 = vpop.f32.mrf.mxu0
        %v5158 = vadd.f32 %v4944, %v5157
        %v5159 = vpop.f32.mrf.mxu0
        %v5160 = vadd.f32 %v4945, %v5159
        %5161 = vmatmul.bf16.gmra.mxu0 %v5096
        %v5162 = vpop.f32.mrf.mxu0
        %v5163 = vadd.f32 %v4946, %v5162
        %v5164 = vpop.f32.mrf.mxu0
        %v5165 = vadd.f32 %v4947, %v5164
        %5166 = vmatmul.bf16.gmra.mxu0 %v5099
        %v5167 = vpop.f32.mrf.mxu0
        %v5168 = vadd.f32 %v4948, %v5167
        %v5169 = vpop.f32.mrf.mxu0
        %v5170 = vadd.f32 %v4949, %v5169
        %5171 = vmatmul.bf16.gmra.mxu0 %v5102
        %v5172 = vpop.f32.mrf.mxu0
        %v5173 = vadd.f32 %v4950, %v5172
        %v5174 = vpop.f32.mrf.mxu0
        %v5175 = vadd.f32 %v4951, %v5174
        %5176 = vdwg.mxu0
        %v5193 = vunpack.c.l.b16 %v1663
        %v5194 = vunpack.c.l.b16 %v1664
        %v5195 = vunpack.c.l.b16 %v1665
        %v5196 = vunpack.c.l.b16 %v1666
        %v5197 = vunpack.c.l.b16 %v1667
        %v5198 = vunpack.c.l.b16 %v1668
        %v5199 = vunpack.c.l.b16 %v1669
        %v5200 = vunpack.c.l.b16 %v1670
        %v5201 = vunpack.c.l.b16 %v1671
        %v5202 = vunpack.c.l.b16 %v1672
        %v5203 = vunpack.c.l.b16 %v1673
        %v5204 = vunpack.c.l.b16 %v1674
        %v5205 = vunpack.c.l.b16 %v1675
        %v5206 = vunpack.c.l.b16 %v1676
        %v5207 = vunpack.c.l.b16 %v1677
        %v5208 = vunpack.c.l.b16 %v1678
        %v5209 = vpack.c.b16 %v5194, %v5193
        %v5210 = vpack.c.b16 %v5196, %v5195
        %v5211 = vpack.c.b16 %v5198, %v5197
        %v5212 = vpack.c.b16 %v5200, %v5199
        %v5213 = vpack.c.b16 %v5202, %v5201
        %v5214 = vpack.c.b16 %v5204, %v5203
        %v5215 = vpack.c.b16 %v5206, %v5205
        %v5216 = vpack.c.b16 %v5208, %v5207
        %v5233 = vunpack.c.l.b16 %v1231
        %v5234 = vunpack.c.l.b16 %v1232
        %v5235 = vunpack.c.l.b16 %v1233
        %v5236 = vunpack.c.l.b16 %v1234
        %v5237 = vunpack.c.l.b16 %v1235
        %v5238 = vunpack.c.l.b16 %v1236
        %v5239 = vunpack.c.l.b16 %v1237
        %v5240 = vunpack.c.l.b16 %v1238
        %v5241 = vunpack.c.l.b16 %v1239
        %v5242 = vunpack.c.l.b16 %v1240
        %v5243 = vunpack.c.l.b16 %v1241
        %v5244 = vunpack.c.l.b16 %v1242
        %v5245 = vunpack.c.l.b16 %v1243
        %v5246 = vunpack.c.l.b16 %v1244
        %v5247 = vunpack.c.l.b16 %v1245
        %v5248 = vunpack.c.l.b16 %v1246
        %v5249 = vpack.c.b16 %v5234, %v5233
        %v5250 = vpack.c.b16 %v5236, %v5235
        %v5251 = vpack.c.b16 %v5238, %v5237
        %v5252 = vpack.c.b16 %v5240, %v5239
        %v5253 = vpack.c.b16 %v5242, %v5241
        %v5254 = vpack.c.b16 %v5244, %v5243
        %v5255 = vpack.c.b16 %v5246, %v5245
        %v5256 = vpack.c.b16 %v5248, %v5247
        %v5258 = vsel %vm2063, %v5209, 0
        %v5261 = vsel %vm2063, %v5210, 0
        %v5264 = vsel %vm2063, %v5211, 0
        %v5267 = vsel %vm2063, %v5212, 0
        %v5270 = vsel %vm2063, %v5213, 0
        %v5273 = vsel %vm2063, %v5214, 0
        %v5276 = vsel %vm2063, %v5215, 0
        %v5279 = vsel %vm2063, %v5216, 0
        %v5282 = vsel %vm2063, %v5249, 0
        %v5285 = vsel %vm2063, %v5250, 0
        %v5288 = vsel %vm2063, %v5251, 0
        %v5291 = vsel %vm2063, %v5252, 0
        %v5294 = vsel %vm2063, %v5253, 0
        %v5297 = vsel %vm2063, %v5254, 0
        %v5300 = vsel %vm2063, %v5255, 0
        %v5303 = vsel %vm2063, %v5256, 0
        %5305 = vmatpush.bf16.xpose.msra.mxu0 %v5303
        %5306 = vmatpush.bf16.xpose.msra.mxu0 %v5300
        %5307 = vmatpush.bf16.xpose.msra.mxu0 %v5297
        %5308 = vmatpush.bf16.xpose.msra.mxu0 %v5294
        %5309 = vmatpush.bf16.xpose.msra.mxu0 %v5291
        %5310 = vmatpush.bf16.xpose.msra.mxu0 %v5288
        %5311 = vmatpush.bf16.xpose.msra.mxu0 %v5285
        %5312 = vmatpush.bf16.xpose.msra.mxu0 %v5282
        %5313 = vmatmul.bf16.gmra.mxu0 %v5258
        %v5314 = vpop.f32.mrf.mxu0
        %v5315 = vadd.f32 %v4952, %v5314
        %v5316 = vpop.f32.mrf.mxu0
        %v5317 = vadd.f32 %v4953, %v5316
        %5318 = vmatmul.bf16.gmra.mxu0 %v5261
        %v5319 = vpop.f32.mrf.mxu0
        %v5320 = vadd.f32 %v4954, %v5319
        %v5321 = vpop.f32.mrf.mxu0
        %v5322 = vadd.f32 %v4955, %v5321
        %5323 = vmatmul.bf16.gmra.mxu0 %v5264
        %v5324 = vpop.f32.mrf.mxu0
        %v5325 = vadd.f32 %v4956, %v5324
        %v5326 = vpop.f32.mrf.mxu0
        %v5327 = vadd.f32 %v4957, %v5326
        %5328 = vmatmul.bf16.gmra.mxu0 %v5267
        %v5329 = vpop.f32.mrf.mxu0
        %v5330 = vadd.f32 %v4958, %v5329
        %v5331 = vpop.f32.mrf.mxu0
        %v5332 = vadd.f32 %v4959, %v5331
        %5333 = vmatmul.bf16.gmra.mxu0 %v5270
        %v5334 = vpop.f32.mrf.mxu0
        %v5335 = vadd.f32 %v4960, %v5334
        %v5336 = vpop.f32.mrf.mxu0
        %v5337 = vadd.f32 %v4961, %v5336
        %5338 = vmatmul.bf16.gmra.mxu0 %v5273
        %v5339 = vpop.f32.mrf.mxu0
        %v5340 = vadd.f32 %v4962, %v5339
        %v5341 = vpop.f32.mrf.mxu0
        %v5342 = vadd.f32 %v4963, %v5341
        %5343 = vmatmul.bf16.gmra.mxu0 %v5276
        %v5344 = vpop.f32.mrf.mxu0
        %v5345 = vadd.f32 %v4964, %v5344
        %v5346 = vpop.f32.mrf.mxu0
        %v5347 = vadd.f32 %v4965, %v5346
        %5348 = vmatmul.bf16.gmra.mxu0 %v5279
        %v5349 = vpop.f32.mrf.mxu0
        %v5350 = vadd.f32 %v4966, %v5349
        %v5351 = vpop.f32.mrf.mxu0
        %v5352 = vadd.f32 %v4967, %v5351
        %5353 = vdwg.mxu0
        %v5370 = vunpack.c.l.b16 %v1679
        %v5371 = vunpack.c.l.b16 %v1680
        %v5372 = vunpack.c.l.b16 %v1681
        %v5373 = vunpack.c.l.b16 %v1682
        %v5374 = vunpack.c.l.b16 %v1683
        %v5375 = vunpack.c.l.b16 %v1684
        %v5376 = vunpack.c.l.b16 %v1685
        %v5377 = vunpack.c.l.b16 %v1686
        %v5378 = vunpack.c.l.b16 %v1687
        %v5379 = vunpack.c.l.b16 %v1688
        %v5380 = vunpack.c.l.b16 %v1689
        %v5381 = vunpack.c.l.b16 %v1690
        %v5382 = vunpack.c.l.b16 %v1691
        %v5383 = vunpack.c.l.b16 %v1692
        %v5384 = vunpack.c.l.b16 %v1693
        %v5385 = vunpack.c.l.b16 %v1694
        %v5386 = vpack.c.b16 %v5371, %v5370
        %v5387 = vpack.c.b16 %v5373, %v5372
        %v5388 = vpack.c.b16 %v5375, %v5374
        %v5389 = vpack.c.b16 %v5377, %v5376
        %v5390 = vpack.c.b16 %v5379, %v5378
        %v5391 = vpack.c.b16 %v5381, %v5380
        %v5392 = vpack.c.b16 %v5383, %v5382
        %v5393 = vpack.c.b16 %v5385, %v5384
        %v5410 = vunpack.c.l.b16 %v1247
        %v5411 = vunpack.c.l.b16 %v1248
        %v5412 = vunpack.c.l.b16 %v1249
        %v5413 = vunpack.c.l.b16 %v1250
        %v5414 = vunpack.c.l.b16 %v1251
        %v5415 = vunpack.c.l.b16 %v1252
        %v5416 = vunpack.c.l.b16 %v1253
        %v5417 = vunpack.c.l.b16 %v1254
        %v5418 = vunpack.c.l.b16 %v1255
        %v5419 = vunpack.c.l.b16 %v1256
        %v5420 = vunpack.c.l.b16 %v1257
        %v5421 = vunpack.c.l.b16 %v1258
        %v5422 = vunpack.c.l.b16 %v1259
        %v5423 = vunpack.c.l.b16 %v1260
        %v5424 = vunpack.c.l.b16 %v1261
        %v5425 = vunpack.c.l.b16 %v1262
        %v5426 = vpack.c.b16 %v5411, %v5410
        %v5427 = vpack.c.b16 %v5413, %v5412
        %v5428 = vpack.c.b16 %v5415, %v5414
        %v5429 = vpack.c.b16 %v5417, %v5416
        %v5430 = vpack.c.b16 %v5419, %v5418
        %v5431 = vpack.c.b16 %v5421, %v5420
        %v5432 = vpack.c.b16 %v5423, %v5422
        %v5433 = vpack.c.b16 %v5425, %v5424
        %v5435 = vsel %vm2063, %v5386, 0
        %v5438 = vsel %vm2063, %v5387, 0
        %v5441 = vsel %vm2063, %v5388, 0
        %v5444 = vsel %vm2063, %v5389, 0
        %v5447 = vsel %vm2063, %v5390, 0
        %v5450 = vsel %vm2063, %v5391, 0
        %v5453 = vsel %vm2063, %v5392, 0
        %v5456 = vsel %vm2063, %v5393, 0
        %v5459 = vsel %vm2063, %v5426, 0
        %v5462 = vsel %vm2063, %v5427, 0
        %v5465 = vsel %vm2063, %v5428, 0
        %v5468 = vsel %vm2063, %v5429, 0
        %v5471 = vsel %vm2063, %v5430, 0
        %v5474 = vsel %vm2063, %v5431, 0
        %v5477 = vsel %vm2063, %v5432, 0
        %v5480 = vsel %vm2063, %v5433, 0
        %5482 = vmatpush.bf16.xpose.msra.mxu0 %v5480
        %5483 = vmatpush.bf16.xpose.msra.mxu0 %v5477
        %5484 = vmatpush.bf16.xpose.msra.mxu0 %v5474
        %5485 = vmatpush.bf16.xpose.msra.mxu0 %v5471
        %5486 = vmatpush.bf16.xpose.msra.mxu0 %v5468
        %5487 = vmatpush.bf16.xpose.msra.mxu0 %v5465
        %5488 = vmatpush.bf16.xpose.msra.mxu0 %v5462
        %5489 = vmatpush.bf16.xpose.msra.mxu0 %v5459
        %5490 = vmatmul.bf16.gmra.mxu0 %v5435
        %v5491 = vpop.f32.mrf.mxu0
        %v5492 = vadd.f32 %v4968, %v5491
        %v5493 = vpop.f32.mrf.mxu0
        %v5494 = vadd.f32 %v4969, %v5493
        %5495 = vmatmul.bf16.gmra.mxu0 %v5438
        %v5496 = vpop.f32.mrf.mxu0
        %v5497 = vadd.f32 %v4970, %v5496
        %v5498 = vpop.f32.mrf.mxu0
        %v5499 = vadd.f32 %v4971, %v5498
        %5500 = vmatmul.bf16.gmra.mxu0 %v5441
        %v5501 = vpop.f32.mrf.mxu0
        %v5502 = vadd.f32 %v4972, %v5501
        %v5503 = vpop.f32.mrf.mxu0
        %v5504 = vadd.f32 %v4973, %v5503
        %5505 = vmatmul.bf16.gmra.mxu0 %v5444
        %v5506 = vpop.f32.mrf.mxu0
        %v5507 = vadd.f32 %v4974, %v5506
        %v5508 = vpop.f32.mrf.mxu0
        %v5509 = vadd.f32 %v4975, %v5508
        %5510 = vmatmul.bf16.gmra.mxu0 %v5447
        %v5511 = vpop.f32.mrf.mxu0
        %v5512 = vadd.f32 %v4976, %v5511
        %v5513 = vpop.f32.mrf.mxu0
        %v5514 = vadd.f32 %v4977, %v5513
        %5515 = vmatmul.bf16.gmra.mxu0 %v5450
        %v5516 = vpop.f32.mrf.mxu0
        %v5517 = vadd.f32 %v4978, %v5516
        %v5518 = vpop.f32.mrf.mxu0
        %v5519 = vadd.f32 %v4979, %v5518
        %5520 = vmatmul.bf16.gmra.mxu0 %v5453
        %v5521 = vpop.f32.mrf.mxu0
        %v5522 = vadd.f32 %v4980, %v5521
        %v5523 = vpop.f32.mrf.mxu0
        %v5524 = vadd.f32 %v4981, %v5523
        %5525 = vmatmul.bf16.gmra.mxu0 %v5456
        %v5526 = vpop.f32.mrf.mxu0
        %v5527 = vadd.f32 %v4982, %v5526
        %v5528 = vpop.f32.mrf.mxu0
        %v5529 = vadd.f32 %v4983, %v5528
        %5530 = vdwg.mxu0
        %v5547 = vunpack.c.l.b16 %v1695
        %v5548 = vunpack.c.l.b16 %v1696
        %v5549 = vunpack.c.l.b16 %v1697
        %v5550 = vunpack.c.l.b16 %v1698
        %v5551 = vunpack.c.l.b16 %v1699
        %v5552 = vunpack.c.l.b16 %v1700
        %v5553 = vunpack.c.l.b16 %v1701
        %v5554 = vunpack.c.l.b16 %v1702
        %v5555 = vunpack.c.l.b16 %v1703
        %v5556 = vunpack.c.l.b16 %v1704
        %v5557 = vunpack.c.l.b16 %v1705
        %v5558 = vunpack.c.l.b16 %v1706
        %v5559 = vunpack.c.l.b16 %v1707
        %v5560 = vunpack.c.l.b16 %v1708
        %v5561 = vunpack.c.l.b16 %v1709
        %v5562 = vunpack.c.l.b16 %v1710
        %v5563 = vpack.c.b16 %v5548, %v5547
        %v5564 = vpack.c.b16 %v5550, %v5549
        %v5565 = vpack.c.b16 %v5552, %v5551
        %v5566 = vpack.c.b16 %v5554, %v5553
        %v5567 = vpack.c.b16 %v5556, %v5555
        %v5568 = vpack.c.b16 %v5558, %v5557
        %v5569 = vpack.c.b16 %v5560, %v5559
        %v5570 = vpack.c.b16 %v5562, %v5561
        %v5587 = vunpack.c.l.b16 %v1263
        %v5588 = vunpack.c.l.b16 %v1264
        %v5589 = vunpack.c.l.b16 %v1265
        %v5590 = vunpack.c.l.b16 %v1266
        %v5591 = vunpack.c.l.b16 %v1267
        %v5592 = vunpack.c.l.b16 %v1268
        %v5593 = vunpack.c.l.b16 %v1269
        %v5594 = vunpack.c.l.b16 %v1270
        %v5595 = vunpack.c.l.b16 %v1271
        %v5596 = vunpack.c.l.b16 %v1272
        %v5597 = vunpack.c.l.b16 %v1273
        %v5598 = vunpack.c.l.b16 %v1274
        %v5599 = vunpack.c.l.b16 %v1275
        %v5600 = vunpack.c.l.b16 %v1276
        %v5601 = vunpack.c.l.b16 %v1277
        %v5602 = vunpack.c.l.b16 %v1278
        %v5603 = vpack.c.b16 %v5588, %v5587
        %v5604 = vpack.c.b16 %v5590, %v5589
        %v5605 = vpack.c.b16 %v5592, %v5591
        %v5606 = vpack.c.b16 %v5594, %v5593
        %v5607 = vpack.c.b16 %v5596, %v5595
        %v5608 = vpack.c.b16 %v5598, %v5597
        %v5609 = vpack.c.b16 %v5600, %v5599
        %v5610 = vpack.c.b16 %v5602, %v5601
        %v5612 = vsel %vm2063, %v5563, 0
        %v5615 = vsel %vm2063, %v5564, 0
        %v5618 = vsel %vm2063, %v5565, 0
        %v5621 = vsel %vm2063, %v5566, 0
        %v5624 = vsel %vm2063, %v5567, 0
        %v5627 = vsel %vm2063, %v5568, 0
        %v5630 = vsel %vm2063, %v5569, 0
        %v5633 = vsel %vm2063, %v5570, 0
        %v5636 = vsel %vm2063, %v5603, 0
        %v5639 = vsel %vm2063, %v5604, 0
        %v5642 = vsel %vm2063, %v5605, 0
        %v5645 = vsel %vm2063, %v5606, 0
        %v5648 = vsel %vm2063, %v5607, 0
        %v5651 = vsel %vm2063, %v5608, 0
        %v5654 = vsel %vm2063, %v5609, 0
        %v5657 = vsel %vm2063, %v5610, 0
        %5659 = vmatpush.bf16.xpose.msra.mxu0 %v5657
        %5660 = vmatpush.bf16.xpose.msra.mxu0 %v5654
        %5661 = vmatpush.bf16.xpose.msra.mxu0 %v5651
        %5662 = vmatpush.bf16.xpose.msra.mxu0 %v5648
        %5663 = vmatpush.bf16.xpose.msra.mxu0 %v5645
        %5664 = vmatpush.bf16.xpose.msra.mxu0 %v5642
        %5665 = vmatpush.bf16.xpose.msra.mxu0 %v5639
        %5666 = vmatpush.bf16.xpose.msra.mxu0 %v5636
        %5667 = vmatmul.bf16.gmra.mxu0 %v5612
        %v5668 = vpop.f32.mrf.mxu0
        %v5669 = vadd.f32 %v4984, %v5668
        %v5670 = vpop.f32.mrf.mxu0
        %v5671 = vadd.f32 %v4985, %v5670
        %5672 = vmatmul.bf16.gmra.mxu0 %v5615
        %v5673 = vpop.f32.mrf.mxu0
        %v5674 = vadd.f32 %v4986, %v5673
        %v5675 = vpop.f32.mrf.mxu0
        %v5676 = vadd.f32 %v4987, %v5675
        %5677 = vmatmul.bf16.gmra.mxu0 %v5618
        %v5678 = vpop.f32.mrf.mxu0
        %v5679 = vadd.f32 %v4988, %v5678
        %v5680 = vpop.f32.mrf.mxu0
        %v5681 = vadd.f32 %v4989, %v5680
        %5682 = vmatmul.bf16.gmra.mxu0 %v5621
        %v5683 = vpop.f32.mrf.mxu0
        %v5684 = vadd.f32 %v4990, %v5683
        %v5685 = vpop.f32.mrf.mxu0
        %v5686 = vadd.f32 %v4991, %v5685
        %5687 = vmatmul.bf16.gmra.mxu0 %v5624
        %v5688 = vpop.f32.mrf.mxu0
        %v5689 = vadd.f32 %v4992, %v5688
        %v5690 = vpop.f32.mrf.mxu0
        %v5691 = vadd.f32 %v4993, %v5690
        %5692 = vmatmul.bf16.gmra.mxu0 %v5627
        %v5693 = vpop.f32.mrf.mxu0
        %v5694 = vadd.f32 %v4994, %v5693
        %v5695 = vpop.f32.mrf.mxu0
        %v5696 = vadd.f32 %v4995, %v5695
        %5697 = vmatmul.bf16.gmra.mxu0 %v5630
        %v5698 = vpop.f32.mrf.mxu0
        %v5699 = vadd.f32 %v4996, %v5698
        %v5700 = vpop.f32.mrf.mxu0
        %v5701 = vadd.f32 %v4997, %v5700
        %5702 = vmatmul.bf16.gmra.mxu0 %v5633
        %v5703 = vpop.f32.mrf.mxu0
        %v5704 = vadd.f32 %v4998, %v5703
        %v5705 = vpop.f32.mrf.mxu0
        %v5706 = vadd.f32 %v4999, %v5705
        %5707 = vdwg.mxu0
        %5708 = vmax.xlane.f32.xlu0 %v5138
        %v5709 = vpop.xlane.xlu0 %5708
        %5710 = vmax.xlane.f32.xlu0 %v5140
        %v5711 = vpop.xlane.xlu0 %5710
        %5712 = vmax.xlane.f32.xlu0 %v5143
        %v5713 = vpop.xlane.xlu0 %5712
        %5714 = vmax.xlane.f32.xlu0 %v5145
        %v5715 = vpop.xlane.xlu0 %5714
        %5716 = vmax.xlane.f32.xlu0 %v5148
        %v5717 = vpop.xlane.xlu0 %5716
        %5718 = vmax.xlane.f32.xlu0 %v5150
        %v5719 = vpop.xlane.xlu0 %5718
        %5720 = vmax.xlane.f32.xlu0 %v5153
        %v5721 = vpop.xlane.xlu0 %5720
        %5722 = vmax.xlane.f32.xlu0 %v5155
        %v5723 = vpop.xlane.xlu0 %5722
        %5724 = vmax.xlane.f32.xlu0 %v5158
        %v5725 = vpop.xlane.xlu0 %5724
        %5726 = vmax.xlane.f32.xlu0 %v5160
        %v5727 = vpop.xlane.xlu0 %5726
        %5728 = vmax.xlane.f32.xlu0 %v5163
        %v5729 = vpop.xlane.xlu0 %5728
        %5730 = vmax.xlane.f32.xlu0 %v5165
        %v5731 = vpop.xlane.xlu0 %5730
        %5732 = vmax.xlane.f32.xlu0 %v5168
        %v5733 = vpop.xlane.xlu0 %5732
        %5734 = vmax.xlane.f32.xlu0 %v5170
        %v5735 = vpop.xlane.xlu0 %5734
        %5736 = vmax.xlane.f32.xlu0 %v5173
        %v5737 = vpop.xlane.xlu0 %5736
        %5738 = vmax.xlane.f32.xlu0 %v5175
        %v5739 = vpop.xlane.xlu0 %5738
        %5740 = vmax.xlane.f32.xlu0 %v5315
        %v5741 = vpop.xlane.xlu0 %5740
        %5742 = vmax.xlane.f32.xlu0 %v5317
        %v5743 = vpop.xlane.xlu0 %5742
        %5744 = vmax.xlane.f32.xlu0 %v5320
        %v5745 = vpop.xlane.xlu0 %5744
        %5746 = vmax.xlane.f32.xlu0 %v5322
        %v5747 = vpop.xlane.xlu0 %5746
        %5748 = vmax.xlane.f32.xlu0 %v5325
        %v5749 = vpop.xlane.xlu0 %5748
        %5750 = vmax.xlane.f32.xlu0 %v5327
        %v5751 = vpop.xlane.xlu0 %5750
        %5752 = vmax.xlane.f32.xlu0 %v5330
        %v5753 = vpop.xlane.xlu0 %5752
        %5754 = vmax.xlane.f32.xlu0 %v5332
        %v5755 = vpop.xlane.xlu0 %5754
        %5756 = vmax.xlane.f32.xlu0 %v5335
        %v5757 = vpop.xlane.xlu0 %5756
        %5758 = vmax.xlane.f32.xlu0 %v5337
        %v5759 = vpop.xlane.xlu0 %5758
        %5760 = vmax.xlane.f32.xlu0 %v5340
        %v5761 = vpop.xlane.xlu0 %5760
        %5762 = vmax.xlane.f32.xlu0 %v5342
        %v5763 = vpop.xlane.xlu0 %5762
        %5764 = vmax.xlane.f32.xlu0 %v5345
        %v5765 = vpop.xlane.xlu0 %5764
        %5766 = vmax.xlane.f32.xlu0 %v5347
        %v5767 = vpop.xlane.xlu0 %5766
        %5768 = vmax.xlane.f32.xlu0 %v5350
        %v5769 = vpop.xlane.xlu0 %5768
        %5770 = vmax.xlane.f32.xlu0 %v5352
        %v5771 = vpop.xlane.xlu0 %5770
        %5772 = vmax.xlane.f32.xlu0 %v5492
        %v5773 = vpop.xlane.xlu0 %5772
        %5774 = vmax.xlane.f32.xlu0 %v5494
        %v5775 = vpop.xlane.xlu0 %5774
        %5776 = vmax.xlane.f32.xlu0 %v5497
        %v5777 = vpop.xlane.xlu0 %5776
        %5778 = vmax.xlane.f32.xlu0 %v5499
        %v5779 = vpop.xlane.xlu0 %5778
        %5780 = vmax.xlane.f32.xlu0 %v5502
        %v5781 = vpop.xlane.xlu0 %5780
        %5782 = vmax.xlane.f32.xlu0 %v5504
        %v5783 = vpop.xlane.xlu0 %5782
        %5784 = vmax.xlane.f32.xlu0 %v5507
        %v5785 = vpop.xlane.xlu0 %5784
        %5786 = vmax.xlane.f32.xlu0 %v5509
        %v5787 = vpop.xlane.xlu0 %5786
        %5788 = vmax.xlane.f32.xlu0 %v5512
        %v5789 = vpop.xlane.xlu0 %5788
        %5790 = vmax.xlane.f32.xlu0 %v5514
        %v5791 = vpop.xlane.xlu0 %5790
        %5792 = vmax.xlane.f32.xlu0 %v5517
        %v5793 = vpop.xlane.xlu0 %5792
        %5794 = vmax.xlane.f32.xlu0 %v5519
        %v5795 = vpop.xlane.xlu0 %5794
        %5796 = vmax.xlane.f32.xlu0 %v5522
        %v5797 = vpop.xlane.xlu0 %5796
        %5798 = vmax.xlane.f32.xlu0 %v5524
        %v5799 = vpop.xlane.xlu0 %5798
        %5800 = vmax.xlane.f32.xlu0 %v5527
        %v5801 = vpop.xlane.xlu0 %5800
        %5802 = vmax.xlane.f32.xlu0 %v5529
        %v5803 = vpop.xlane.xlu0 %5802
        %5804 = vmax.xlane.f32.xlu0 %v5669
        %v5805 = vpop.xlane.xlu0 %5804
        %5806 = vmax.xlane.f32.xlu0 %v5671
        %v5807 = vpop.xlane.xlu0 %5806
        %5808 = vmax.xlane.f32.xlu0 %v5674
        %v5809 = vpop.xlane.xlu0 %5808
        %5810 = vmax.xlane.f32.xlu0 %v5676
        %v5811 = vpop.xlane.xlu0 %5810
        %5812 = vmax.xlane.f32.xlu0 %v5679
        %v5813 = vpop.xlane.xlu0 %5812
        %5814 = vmax.xlane.f32.xlu0 %v5681
        %v5815 = vpop.xlane.xlu0 %5814
        %5816 = vmax.xlane.f32.xlu0 %v5684
        %v5817 = vpop.xlane.xlu0 %5816
        %5818 = vmax.xlane.f32.xlu0 %v5686
        %v5819 = vpop.xlane.xlu0 %5818
        %5820 = vmax.xlane.f32.xlu0 %v5689
        %v5821 = vpop.xlane.xlu0 %5820
        %5822 = vmax.xlane.f32.xlu0 %v5691
        %v5823 = vpop.xlane.xlu0 %5822
        %5824 = vmax.xlane.f32.xlu0 %v5694
        %v5825 = vpop.xlane.xlu0 %5824
        %5826 = vmax.xlane.f32.xlu0 %v5696
        %v5827 = vpop.xlane.xlu0 %5826
        %5828 = vmax.xlane.f32.xlu0 %v5699
        %v5829 = vpop.xlane.xlu0 %5828
        %5830 = vmax.xlane.f32.xlu0 %v5701
        %v5831 = vpop.xlane.xlu0 %5830
        %5832 = vmax.xlane.f32.xlu0 %v5704
        %v5833 = vpop.xlane.xlu0 %5832
        %5834 = vmax.xlane.f32.xlu0 %v5706
        %v5835 = vpop.xlane.xlu0 %5834
        %v5836 = vsub.f32 %v5138, %v5709
        %v5837 = vsub.f32 %v5140, %v5711
        %v5838 = vsub.f32 %v5143, %v5713
        %v5839 = vsub.f32 %v5145, %v5715
        %v5840 = vsub.f32 %v5148, %v5717
        %v5841 = vsub.f32 %v5150, %v5719
        %v5842 = vsub.f32 %v5153, %v5721
        %v5843 = vsub.f32 %v5155, %v5723
        %v5844 = vsub.f32 %v5158, %v5725
        %v5845 = vsub.f32 %v5160, %v5727
        %v5846 = vsub.f32 %v5163, %v5729
        %v5847 = vsub.f32 %v5165, %v5731
        %v5848 = vsub.f32 %v5168, %v5733
        %v5849 = vsub.f32 %v5170, %v5735
        %v5850 = vsub.f32 %v5173, %v5737
        %v5851 = vsub.f32 %v5175, %v5739
        %v5852 = vsub.f32 %v5315, %v5741
        %v5853 = vsub.f32 %v5317, %v5743
        %v5854 = vsub.f32 %v5320, %v5745
        %v5855 = vsub.f32 %v5322, %v5747
        %v5856 = vsub.f32 %v5325, %v5749
        %v5857 = vsub.f32 %v5327, %v5751
        %v5858 = vsub.f32 %v5330, %v5753
        %v5859 = vsub.f32 %v5332, %v5755
        %v5860 = vsub.f32 %v5335, %v5757
        %v5861 = vsub.f32 %v5337, %v5759
        %v5862 = vsub.f32 %v5340, %v5761
        %v5863 = vsub.f32 %v5342, %v5763
        %v5864 = vsub.f32 %v5345, %v5765
        %v5865 = vsub.f32 %v5347, %v5767
        %v5866 = vsub.f32 %v5350, %v5769
        %v5867 = vsub.f32 %v5352, %v5771
        %v5868 = vsub.f32 %v5492, %v5773
        %v5869 = vsub.f32 %v5494, %v5775
        %v5870 = vsub.f32 %v5497, %v5777
        %v5871 = vsub.f32 %v5499, %v5779
        %v5872 = vsub.f32 %v5502, %v5781
        %v5873 = vsub.f32 %v5504, %v5783
        %v5874 = vsub.f32 %v5507, %v5785
        %v5875 = vsub.f32 %v5509, %v5787
        %v5876 = vsub.f32 %v5512, %v5789
        %v5877 = vsub.f32 %v5514, %v5791
        %v5878 = vsub.f32 %v5517, %v5793
        %v5879 = vsub.f32 %v5519, %v5795
        %v5880 = vsub.f32 %v5522, %v5797
        %v5881 = vsub.f32 %v5524, %v5799
        %v5882 = vsub.f32 %v5527, %v5801
        %v5883 = vsub.f32 %v5529, %v5803
        %v5884 = vsub.f32 %v5669, %v5805
        %v5885 = vsub.f32 %v5671, %v5807
        %v5886 = vsub.f32 %v5674, %v5809
        %v5887 = vsub.f32 %v5676, %v5811
        %v5888 = vsub.f32 %v5679, %v5813
        %v5889 = vsub.f32 %v5681, %v5815
        %v5890 = vsub.f32 %v5684, %v5817
        %v5891 = vsub.f32 %v5686, %v5819
        %v5892 = vsub.f32 %v5689, %v5821
        %v5893 = vsub.f32 %v5691, %v5823
        %v5894 = vsub.f32 %v5694, %v5825
        %v5895 = vsub.f32 %v5696, %v5827
        %v5896 = vsub.f32 %v5699, %v5829
        %v5897 = vsub.f32 %v5701, %v5831
        %v5898 = vsub.f32 %v5704, %v5833
        %v5899 = vsub.f32 %v5706, %v5835
        %v5900 = vmul.f32 %v5836, 1.442695
        %v5901 = vpow.pop %v5900
        %v5902 = vmul.f32 %v5837, 1.442695
        %v5903 = vpow.pop %v5902
        %v5904 = vmul.f32 %v5838, 1.442695
        %v5905 = vpow.pop %v5904
        %v5906 = vmul.f32 %v5839, 1.442695
        %v5907 = vpow.pop %v5906
        %v5908 = vmul.f32 %v5840, 1.442695
        %v5909 = vpow.pop %v5908
        %v5910 = vmul.f32 %v5841, 1.442695
        %v5911 = vpow.pop %v5910
        %v5912 = vmul.f32 %v5842, 1.442695
        %v5913 = vpow.pop %v5912
        %v5914 = vmul.f32 %v5843, 1.442695
        %v5915 = vpow.pop %v5914
        %v5916 = vmul.f32 %v5844, 1.442695
        %v5917 = vpow.pop %v5916
        %v5918 = vmul.f32 %v5845, 1.442695
        %v5919 = vpow.pop %v5918
        %v5920 = vmul.f32 %v5846, 1.442695
        %v5921 = vpow.pop %v5920
        %v5922 = vmul.f32 %v5847, 1.442695
        %v5923 = vpow.pop %v5922
        %v5924 = vmul.f32 %v5848, 1.442695
        %v5925 = vpow.pop %v5924
        %v5926 = vmul.f32 %v5849, 1.442695
        %v5927 = vpow.pop %v5926
        %v5928 = vmul.f32 %v5850, 1.442695
        %v5929 = vpow.pop %v5928
        %v5930 = vmul.f32 %v5851, 1.442695
        %v5931 = vpow.pop %v5930
        %v5932 = vmul.f32 %v5852, 1.442695
        %v5933 = vpow.pop %v5932
        %v5934 = vmul.f32 %v5853, 1.442695
        %v5935 = vpow.pop %v5934
        %v5936 = vmul.f32 %v5854, 1.442695
        %v5937 = vpow.pop %v5936
        %v5938 = vmul.f32 %v5855, 1.442695
        %v5939 = vpow.pop %v5938
        %v5940 = vmul.f32 %v5856, 1.442695
        %v5941 = vpow.pop %v5940
        %v5942 = vmul.f32 %v5857, 1.442695
        %v5943 = vpow.pop %v5942
        %v5944 = vmul.f32 %v5858, 1.442695
        %v5945 = vpow.pop %v5944
        %v5946 = vmul.f32 %v5859, 1.442695
        %v5947 = vpow.pop %v5946
        %v5948 = vmul.f32 %v5860, 1.442695
        %v5949 = vpow.pop %v5948
        %v5950 = vmul.f32 %v5861, 1.442695
        %v5951 = vpow.pop %v5950
        %v5952 = vmul.f32 %v5862, 1.442695
        %v5953 = vpow.pop %v5952
        %v5954 = vmul.f32 %v5863, 1.442695
        %v5955 = vpow.pop %v5954
        %v5956 = vmul.f32 %v5864, 1.442695
        %v5957 = vpow.pop %v5956
        %v5958 = vmul.f32 %v5865, 1.442695
        %v5959 = vpow.pop %v5958
        %v5960 = vmul.f32 %v5866, 1.442695
        %v5961 = vpow.pop %v5960
        %v5962 = vmul.f32 %v5867, 1.442695
        %v5963 = vpow.pop %v5962
        %v5964 = vmul.f32 %v5868, 1.442695
        %v5965 = vpow.pop %v5964
        %v5966 = vmul.f32 %v5869, 1.442695
        %v5967 = vpow.pop %v5966
        %v5968 = vmul.f32 %v5870, 1.442695
        %v5969 = vpow.pop %v5968
        %v5970 = vmul.f32 %v5871, 1.442695
        %v5971 = vpow.pop %v5970
        %v5972 = vmul.f32 %v5872, 1.442695
        %v5973 = vpow.pop %v5972
        %v5974 = vmul.f32 %v5873, 1.442695
        %v5975 = vpow.pop %v5974
        %v5976 = vmul.f32 %v5874, 1.442695
        %v5977 = vpow.pop %v5976
        %v5978 = vmul.f32 %v5875, 1.442695
        %v5979 = vpow.pop %v5978
        %v5980 = vmul.f32 %v5876, 1.442695
        %v5981 = vpow.pop %v5980
        %v5982 = vmul.f32 %v5877, 1.442695
        %v5983 = vpow.pop %v5982
        %v5984 = vmul.f32 %v5878, 1.442695
        %v5985 = vpow.pop %v5984
        %v5986 = vmul.f32 %v5879, 1.442695
        %v5987 = vpow.pop %v5986
        %v5988 = vmul.f32 %v5880, 1.442695
        %v5989 = vpow.pop %v5988
        %v5990 = vmul.f32 %v5881, 1.442695
        %v5991 = vpow.pop %v5990
        %v5992 = vmul.f32 %v5882, 1.442695
        %v5993 = vpow.pop %v5992
        %v5994 = vmul.f32 %v5883, 1.442695
        %v5995 = vpow.pop %v5994
        %v5996 = vmul.f32 %v5884, 1.442695
        %v5997 = vpow.pop %v5996
        %v5998 = vmul.f32 %v5885, 1.442695
        %v5999 = vpow.pop %v5998
        %v6000 = vmul.f32 %v5886, 1.442695
        %v6001 = vpow.pop %v6000
        %v6002 = vmul.f32 %v5887, 1.442695
        %v6003 = vpow.pop %v6002
        %v6004 = vmul.f32 %v5888, 1.442695
        %v6005 = vpow.pop %v6004
        %v6006 = vmul.f32 %v5889, 1.442695
        %v6007 = vpow.pop %v6006
        %v6008 = vmul.f32 %v5890, 1.442695
        %v6009 = vpow.pop %v6008
        %v6010 = vmul.f32 %v5891, 1.442695
        %v6011 = vpow.pop %v6010
        %v6012 = vmul.f32 %v5892, 1.442695
        %v6013 = vpow.pop %v6012
        %v6014 = vmul.f32 %v5893, 1.442695
        %v6015 = vpow.pop %v6014
        %v6016 = vmul.f32 %v5894, 1.442695
        %v6017 = vpow.pop %v6016
        %v6018 = vmul.f32 %v5895, 1.442695
        %v6019 = vpow.pop %v6018
        %v6020 = vmul.f32 %v5896, 1.442695
        %v6021 = vpow.pop %v6020
        %v6022 = vmul.f32 %v5897, 1.442695
        %v6023 = vpow.pop %v6022
        %v6024 = vmul.f32 %v5898, 1.442695
        %v6025 = vpow.pop %v6024
        %v6026 = vmul.f32 %v5899, 1.442695
        %v6027 = vpow.pop %v6026
        %6028 = vadd.xlane.f32.xlu0 %v5901
        %v6029 = vpop.xlane.xlu0 %6028
        %6030 = vadd.xlane.f32.xlu0 %v5903
        %v6031 = vpop.xlane.xlu0 %6030
        %6032 = vadd.xlane.f32.xlu0 %v5905
        %v6033 = vpop.xlane.xlu0 %6032
        %6034 = vadd.xlane.f32.xlu0 %v5907
        %v6035 = vpop.xlane.xlu0 %6034
        %6036 = vadd.xlane.f32.xlu0 %v5909
        %v6037 = vpop.xlane.xlu0 %6036
        %6038 = vadd.xlane.f32.xlu0 %v5911
        %v6039 = vpop.xlane.xlu0 %6038
        %6040 = vadd.xlane.f32.xlu0 %v5913
        %v6041 = vpop.xlane.xlu0 %6040
        %6042 = vadd.xlane.f32.xlu0 %v5915
        %v6043 = vpop.xlane.xlu0 %6042
        %6044 = vadd.xlane.f32.xlu0 %v5917
        %v6045 = vpop.xlane.xlu0 %6044
        %6046 = vadd.xlane.f32.xlu0 %v5919
        %v6047 = vpop.xlane.xlu0 %6046
        %6048 = vadd.xlane.f32.xlu0 %v5921
        %v6049 = vpop.xlane.xlu0 %6048
        %6050 = vadd.xlane.f32.xlu0 %v5923
        %v6051 = vpop.xlane.xlu0 %6050
        %6052 = vadd.xlane.f32.xlu0 %v5925
        %v6053 = vpop.xlane.xlu0 %6052
        %6054 = vadd.xlane.f32.xlu0 %v5927
        %v6055 = vpop.xlane.xlu0 %6054
        %6056 = vadd.xlane.f32.xlu0 %v5929
        %v6057 = vpop.xlane.xlu0 %6056
        %6058 = vadd.xlane.f32.xlu0 %v5931
        %v6059 = vpop.xlane.xlu0 %6058
        %6060 = vadd.xlane.f32.xlu0 %v5933
        %v6061 = vpop.xlane.xlu0 %6060
        %6062 = vadd.xlane.f32.xlu0 %v5935
        %v6063 = vpop.xlane.xlu0 %6062
        %6064 = vadd.xlane.f32.xlu0 %v5937
        %v6065 = vpop.xlane.xlu0 %6064
        %6066 = vadd.xlane.f32.xlu0 %v5939
        %v6067 = vpop.xlane.xlu0 %6066
        %6068 = vadd.xlane.f32.xlu0 %v5941
        %v6069 = vpop.xlane.xlu0 %6068
        %6070 = vadd.xlane.f32.xlu0 %v5943
        %v6071 = vpop.xlane.xlu0 %6070
        %6072 = vadd.xlane.f32.xlu0 %v5945
        %v6073 = vpop.xlane.xlu0 %6072
        %6074 = vadd.xlane.f32.xlu0 %v5947
        %v6075 = vpop.xlane.xlu0 %6074
        %6076 = vadd.xlane.f32.xlu0 %v5949
        %v6077 = vpop.xlane.xlu0 %6076
        %6078 = vadd.xlane.f32.xlu0 %v5951
        %v6079 = vpop.xlane.xlu0 %6078
        %6080 = vadd.xlane.f32.xlu0 %v5953
        %v6081 = vpop.xlane.xlu0 %6080
        %6082 = vadd.xlane.f32.xlu0 %v5955
        %v6083 = vpop.xlane.xlu0 %6082
        %6084 = vadd.xlane.f32.xlu0 %v5957
        %v6085 = vpop.xlane.xlu0 %6084
        %6086 = vadd.xlane.f32.xlu0 %v5959
        %v6087 = vpop.xlane.xlu0 %6086
        %6088 = vadd.xlane.f32.xlu0 %v5961
        %v6089 = vpop.xlane.xlu0 %6088
        %6090 = vadd.xlane.f32.xlu0 %v5963
        %v6091 = vpop.xlane.xlu0 %6090
        %6092 = vadd.xlane.f32.xlu0 %v5965
        %v6093 = vpop.xlane.xlu0 %6092
        %6094 = vadd.xlane.f32.xlu0 %v5967
        %v6095 = vpop.xlane.xlu0 %6094
        %6096 = vadd.xlane.f32.xlu0 %v5969
        %v6097 = vpop.xlane.xlu0 %6096
        %6098 = vadd.xlane.f32.xlu0 %v5971
        %v6099 = vpop.xlane.xlu0 %6098
        %6100 = vadd.xlane.f32.xlu0 %v5973
        %v6101 = vpop.xlane.xlu0 %6100
        %6102 = vadd.xlane.f32.xlu0 %v5975
        %v6103 = vpop.xlane.xlu0 %6102
        %6104 = vadd.xlane.f32.xlu0 %v5977
        %v6105 = vpop.xlane.xlu0 %6104
        %6106 = vadd.xlane.f32.xlu0 %v5979
        %v6107 = vpop.xlane.xlu0 %6106
        %6108 = vadd.xlane.f32.xlu0 %v5981
        %v6109 = vpop.xlane.xlu0 %6108
        %6110 = vadd.xlane.f32.xlu0 %v5983
        %v6111 = vpop.xlane.xlu0 %6110
        %6112 = vadd.xlane.f32.xlu0 %v5985
        %v6113 = vpop.xlane.xlu0 %6112
        %6114 = vadd.xlane.f32.xlu0 %v5987
        %v6115 = vpop.xlane.xlu0 %6114
        %6116 = vadd.xlane.f32.xlu0 %v5989
        %v6117 = vpop.xlane.xlu0 %6116
        %6118 = vadd.xlane.f32.xlu0 %v5991
        %v6119 = vpop.xlane.xlu0 %6118
        %6120 = vadd.xlane.f32.xlu0 %v5993
        %v6121 = vpop.xlane.xlu0 %6120
        %6122 = vadd.xlane.f32.xlu0 %v5995
        %v6123 = vpop.xlane.xlu0 %6122
        %6124 = vadd.xlane.f32.xlu0 %v5997
        %v6125 = vpop.xlane.xlu0 %6124
        %6126 = vadd.xlane.f32.xlu0 %v5999
        %v6127 = vpop.xlane.xlu0 %6126
        %6128 = vadd.xlane.f32.xlu0 %v6001
        %v6129 = vpop.xlane.xlu0 %6128
        %6130 = vadd.xlane.f32.xlu0 %v6003
        %v6131 = vpop.xlane.xlu0 %6130
        %6132 = vadd.xlane.f32.xlu0 %v6005
        %v6133 = vpop.xlane.xlu0 %6132
        %6134 = vadd.xlane.f32.xlu0 %v6007
        %v6135 = vpop.xlane.xlu0 %6134
        %6136 = vadd.xlane.f32.xlu0 %v6009
        %v6137 = vpop.xlane.xlu0 %6136
        %6138 = vadd.xlane.f32.xlu0 %v6011
        %v6139 = vpop.xlane.xlu0 %6138
        %6140 = vadd.xlane.f32.xlu0 %v6013
        %v6141 = vpop.xlane.xlu0 %6140
        %6142 = vadd.xlane.f32.xlu0 %v6015
        %v6143 = vpop.xlane.xlu0 %6142
        %6144 = vadd.xlane.f32.xlu0 %v6017
        %v6145 = vpop.xlane.xlu0 %6144
        %6146 = vadd.xlane.f32.xlu0 %v6019
        %v6147 = vpop.xlane.xlu0 %6146
        %6148 = vadd.xlane.f32.xlu0 %v6021
        %v6149 = vpop.xlane.xlu0 %6148
        %6150 = vadd.xlane.f32.xlu0 %v6023
        %v6151 = vpop.xlane.xlu0 %6150
        %6152 = vadd.xlane.f32.xlu0 %v6025
        %v6153 = vpop.xlane.xlu0 %6152
        %6154 = vadd.xlane.f32.xlu0 %v6027
        %v6155 = vpop.xlane.xlu0 %6154
        %v6156 = vrcp.pop %v6029
        %v6157 = vrcp.pop %v6031
        %v6158 = vrcp.pop %v6033
        %v6159 = vrcp.pop %v6035
        %v6160 = vrcp.pop %v6037
        %v6161 = vrcp.pop %v6039
        %v6162 = vrcp.pop %v6041
        %v6163 = vrcp.pop %v6043
        %v6164 = vrcp.pop %v6045
        %v6165 = vrcp.pop %v6047
        %v6166 = vrcp.pop %v6049
        %v6167 = vrcp.pop %v6051
        %v6168 = vrcp.pop %v6053
        %v6169 = vrcp.pop %v6055
        %v6170 = vrcp.pop %v6057
        %v6171 = vrcp.pop %v6059
        %v6172 = vrcp.pop %v6061
        %v6173 = vrcp.pop %v6063
        %v6174 = vrcp.pop %v6065
        %v6175 = vrcp.pop %v6067
        %v6176 = vrcp.pop %v6069
        %v6177 = vrcp.pop %v6071
        %v6178 = vrcp.pop %v6073
        %v6179 = vrcp.pop %v6075
        %v6180 = vrcp.pop %v6077
        %v6181 = vrcp.pop %v6079
        %v6182 = vrcp.pop %v6081
        %v6183 = vrcp.pop %v6083
        %v6184 = vrcp.pop %v6085
        %v6185 = vrcp.pop %v6087
        %v6186 = vrcp.pop %v6089
        %v6187 = vrcp.pop %v6091
        %v6188 = vrcp.pop %v6093
        %v6189 = vrcp.pop %v6095
        %v6190 = vrcp.pop %v6097
        %v6191 = vrcp.pop %v6099
        %v6192 = vrcp.pop %v6101
        %v6193 = vrcp.pop %v6103
        %v6194 = vrcp.pop %v6105
        %v6195 = vrcp.pop %v6107
        %v6196 = vrcp.pop %v6109
        %v6197 = vrcp.pop %v6111
        %v6198 = vrcp.pop %v6113
        %v6199 = vrcp.pop %v6115
        %v6200 = vrcp.pop %v6117
        %v6201 = vrcp.pop %v6119
        %v6202 = vrcp.pop %v6121
        %v6203 = vrcp.pop %v6123
        %v6204 = vrcp.pop %v6125
        %v6205 = vrcp.pop %v6127
        %v6206 = vrcp.pop %v6129
        %v6207 = vrcp.pop %v6131
        %v6208 = vrcp.pop %v6133
        %v6209 = vrcp.pop %v6135
        %v6210 = vrcp.pop %v6137
        %v6211 = vrcp.pop %v6139
        %v6212 = vrcp.pop %v6141
        %v6213 = vrcp.pop %v6143
        %v6214 = vrcp.pop %v6145
        %v6215 = vrcp.pop %v6147
        %v6216 = vrcp.pop %v6149
        %v6217 = vrcp.pop %v6151
        %v6218 = vrcp.pop %v6153
        %v6219 = vrcp.pop %v6155
        %v6220 = vmul.f32 %v5901, %v6156
        %v6221 = vmul.f32 %v5903, %v6157
        %v6222 = vmul.f32 %v5905, %v6158
        %v6223 = vmul.f32 %v5907, %v6159
        %v6224 = vmul.f32 %v5909, %v6160
        %v6225 = vmul.f32 %v5911, %v6161
        %v6226 = vmul.f32 %v5913, %v6162
        %v6227 = vmul.f32 %v5915, %v6163
        %v6228 = vmul.f32 %v5917, %v6164
        %v6229 = vmul.f32 %v5919, %v6165
        %v6230 = vmul.f32 %v5921, %v6166
        %v6231 = vmul.f32 %v5923, %v6167
        %v6232 = vmul.f32 %v5925, %v6168
        %v6233 = vmul.f32 %v5927, %v6169
        %v6234 = vmul.f32 %v5929, %v6170
        %v6235 = vmul.f32 %v5931, %v6171
        %v6236 = vmul.f32 %v5933, %v6172
        %v6237 = vmul.f32 %v5935, %v6173
        %v6238 = vmul.f32 %v5937, %v6174
        %v6239 = vmul.f32 %v5939, %v6175
        %v6240 = vmul.f32 %v5941, %v6176
        %v6241 = vmul.f32 %v5943, %v6177
        %v6242 = vmul.f32 %v5945, %v6178
        %v6243 = vmul.f32 %v5947, %v6179
        %v6244 = vmul.f32 %v5949, %v6180
        %v6245 = vmul.f32 %v5951, %v6181
        %v6246 = vmul.f32 %v5953, %v6182
        %v6247 = vmul.f32 %v5955, %v6183
        %v6248 = vmul.f32 %v5957, %v6184
        %v6249 = vmul.f32 %v5959, %v6185
        %v6250 = vmul.f32 %v5961, %v6186
        %v6251 = vmul.f32 %v5963, %v6187
        %v6252 = vmul.f32 %v5965, %v6188
        %v6253 = vmul.f32 %v5967, %v6189
        %v6254 = vmul.f32 %v5969, %v6190
        %v6255 = vmul.f32 %v5971, %v6191
        %v6256 = vmul.f32 %v5973, %v6192
        %v6257 = vmul.f32 %v5975, %v6193
        %v6258 = vmul.f32 %v5977, %v6194
        %v6259 = vmul.f32 %v5979, %v6195
        %v6260 = vmul.f32 %v5981, %v6196
        %v6261 = vmul.f32 %v5983, %v6197
        %v6262 = vmul.f32 %v5985, %v6198
        %v6263 = vmul.f32 %v5987, %v6199
        %v6264 = vmul.f32 %v5989, %v6200
        %v6265 = vmul.f32 %v5991, %v6201
        %v6266 = vmul.f32 %v5993, %v6202
        %v6267 = vmul.f32 %v5995, %v6203
        %v6268 = vmul.f32 %v5997, %v6204
        %v6269 = vmul.f32 %v5999, %v6205
        %v6270 = vmul.f32 %v6001, %v6206
        %v6271 = vmul.f32 %v6003, %v6207
        %v6272 = vmul.f32 %v6005, %v6208
        %v6273 = vmul.f32 %v6007, %v6209
        %v6274 = vmul.f32 %v6009, %v6210
        %v6275 = vmul.f32 %v6011, %v6211
        %v6276 = vmul.f32 %v6013, %v6212
        %v6277 = vmul.f32 %v6015, %v6213
        %v6278 = vmul.f32 %v6017, %v6214
        %v6279 = vmul.f32 %v6019, %v6215
        %v6280 = vmul.f32 %v6021, %v6216
        %v6281 = vmul.f32 %v6023, %v6217
        %v6282 = vmul.f32 %v6025, %v6218
        %v6283 = vmul.f32 %v6027, %v6219
        %v6284 = vpack.c.bf16 %v6220, %v6220
        %v6285 = vpack.c.bf16 %v6221, %v6221
        %v6286 = vpack.c.bf16 %v6222, %v6222
        %v6287 = vpack.c.bf16 %v6223, %v6223
        %v6288 = vpack.c.bf16 %v6224, %v6224
        %v6289 = vpack.c.bf16 %v6225, %v6225
        %v6290 = vpack.c.bf16 %v6226, %v6226
        %v6291 = vpack.c.bf16 %v6227, %v6227
        %v6292 = vpack.c.bf16 %v6228, %v6228
        %v6293 = vpack.c.bf16 %v6229, %v6229
        %v6294 = vpack.c.bf16 %v6230, %v6230
        %v6295 = vpack.c.bf16 %v6231, %v6231
        %v6296 = vpack.c.bf16 %v6232, %v6232
        %v6297 = vpack.c.bf16 %v6233, %v6233
        %v6298 = vpack.c.bf16 %v6234, %v6234
        %v6299 = vpack.c.bf16 %v6235, %v6235
        %v6300 = vpack.c.bf16 %v6236, %v6236
        %v6301 = vpack.c.bf16 %v6237, %v6237
        %v6302 = vpack.c.bf16 %v6238, %v6238
        %v6303 = vpack.c.bf16 %v6239, %v6239
        %v6304 = vpack.c.bf16 %v6240, %v6240
        %v6305 = vpack.c.bf16 %v6241, %v6241
        %v6306 = vpack.c.bf16 %v6242, %v6242
        %v6307 = vpack.c.bf16 %v6243, %v6243
        %v6308 = vpack.c.bf16 %v6244, %v6244
        %v6309 = vpack.c.bf16 %v6245, %v6245
        %v6310 = vpack.c.bf16 %v6246, %v6246
        %v6311 = vpack.c.bf16 %v6247, %v6247
        %v6312 = vpack.c.bf16 %v6248, %v6248
        %v6313 = vpack.c.bf16 %v6249, %v6249
        %v6314 = vpack.c.bf16 %v6250, %v6250
        %v6315 = vpack.c.bf16 %v6251, %v6251
        %v6316 = vpack.c.bf16 %v6252, %v6252
        %v6317 = vpack.c.bf16 %v6253, %v6253
        %v6318 = vpack.c.bf16 %v6254, %v6254
        %v6319 = vpack.c.bf16 %v6255, %v6255
        %v6320 = vpack.c.bf16 %v6256, %v6256
        %v6321 = vpack.c.bf16 %v6257, %v6257
        %v6322 = vpack.c.bf16 %v6258, %v6258
        %v6323 = vpack.c.bf16 %v6259, %v6259
        %v6324 = vpack.c.bf16 %v6260, %v6260
        %v6325 = vpack.c.bf16 %v6261, %v6261
        %v6326 = vpack.c.bf16 %v6262, %v6262
        %v6327 = vpack.c.bf16 %v6263, %v6263
        %v6328 = vpack.c.bf16 %v6264, %v6264
        %v6329 = vpack.c.bf16 %v6265, %v6265
        %v6330 = vpack.c.bf16 %v6266, %v6266
        %v6331 = vpack.c.bf16 %v6267, %v6267
        %v6332 = vpack.c.bf16 %v6268, %v6268
        %v6333 = vpack.c.bf16 %v6269, %v6269
        %v6334 = vpack.c.bf16 %v6270, %v6270
        %v6335 = vpack.c.bf16 %v6271, %v6271
        %v6336 = vpack.c.bf16 %v6272, %v6272
        %v6337 = vpack.c.bf16 %v6273, %v6273
        %v6338 = vpack.c.bf16 %v6274, %v6274
        %v6339 = vpack.c.bf16 %v6275, %v6275
        %v6340 = vpack.c.bf16 %v6276, %v6276
        %v6341 = vpack.c.bf16 %v6277, %v6277
        %v6342 = vpack.c.bf16 %v6278, %v6278
        %v6343 = vpack.c.bf16 %v6279, %v6279
        %v6344 = vpack.c.bf16 %v6280, %v6280
        %v6345 = vpack.c.bf16 %v6281, %v6281
        %v6346 = vpack.c.bf16 %v6282, %v6282
        %v6347 = vpack.c.bf16 %v6283, %v6283
        %v6364 = vunpack.c.l.b16 %v6284
        %v6365 = vunpack.c.l.b16 %v6285
        %v6366 = vunpack.c.l.b16 %v6286
        %v6367 = vunpack.c.l.b16 %v6287
        %v6368 = vunpack.c.l.b16 %v6288
        %v6369 = vunpack.c.l.b16 %v6289
        %v6370 = vunpack.c.l.b16 %v6290
        %v6371 = vunpack.c.l.b16 %v6291
        %v6372 = vunpack.c.l.b16 %v6292
        %v6373 = vunpack.c.l.b16 %v6293
        %v6374 = vunpack.c.l.b16 %v6294
        %v6375 = vunpack.c.l.b16 %v6295
        %v6376 = vunpack.c.l.b16 %v6296
        %v6377 = vunpack.c.l.b16 %v6297
        %v6378 = vunpack.c.l.b16 %v6298
        %v6379 = vunpack.c.l.b16 %v6299
        %v6380 = vpack.c.b16 %v6365, %v6364
        %v6381 = vpack.c.b16 %v6367, %v6366
        %v6382 = vpack.c.b16 %v6369, %v6368
        %v6383 = vpack.c.b16 %v6371, %v6370
        %v6384 = vpack.c.b16 %v6373, %v6372
        %v6385 = vpack.c.b16 %v6375, %v6374
        %v6386 = vpack.c.b16 %v6377, %v6376
        %v6387 = vpack.c.b16 %v6379, %v6378
        %v6412 = vunpack.c.l.b16 %v1439
        %v6413 = vunpack.c.l.b16 %v1440
        %v6414 = vunpack.c.l.b16 %v1441
        %v6415 = vunpack.c.l.b16 %v1442
        %v6416 = vunpack.c.l.b16 %v1443
        %v6417 = vunpack.c.l.b16 %v1444
        %v6418 = vunpack.c.l.b16 %v1445
        %v6419 = vunpack.c.l.b16 %v1446
        %v6420 = vunpack.c.l.b16 %v1447
        %v6421 = vunpack.c.l.b16 %v1448
        %v6422 = vunpack.c.l.b16 %v1449
        %v6423 = vunpack.c.l.b16 %v1450
        %v6424 = vunpack.c.l.b16 %v1451
        %v6425 = vunpack.c.l.b16 %v1452
        %v6426 = vunpack.c.l.b16 %v1453
        %v6427 = vunpack.c.l.b16 %v1454
        %v6428 = vpack.c.b16 %v6413, %v6412
        %v6429 = vpack.c.b16 %v6415, %v6414
        %v6430 = vpack.c.b16 %v6417, %v6416
        %v6431 = vpack.c.b16 %v6419, %v6418
        %v6432 = vpack.c.b16 %v6421, %v6420
        %v6433 = vpack.c.b16 %v6423, %v6422
        %v6434 = vpack.c.b16 %v6425, %v6424
        %v6435 = vpack.c.b16 %v6427, %v6426
        %6444 = vmatpush.bf16.msra.mxu0 %v6435
        %6445 = vmatpush.bf16.msra.mxu0 %v6434
        %6446 = vmatpush.bf16.msra.mxu0 %v6433
        %6447 = vmatpush.bf16.msra.mxu0 %v6432
        %6448 = vmatpush.bf16.msra.mxu0 %v6431
        %6449 = vmatpush.bf16.msra.mxu0 %v6430
        %6450 = vmatpush.bf16.msra.mxu0 %v6429
        %6451 = vmatpush.bf16.msra.mxu0 %v6428
        %6452 = vmatmul.bf16.gmra.mxu0 %v6380
        %v6453 = vpop.f32.mrf.mxu0
        %v6454 = vadd.f32 0.0, %v6453
        %v6455 = vpop.f32.mrf.mxu0
        %v6456 = vadd.f32 0.0, %v6455
        %6457 = vmatmul.bf16.gmra.mxu0 %v6381
        %v6458 = vpop.f32.mrf.mxu0
        %v6459 = vadd.f32 0.0, %v6458
        %v6460 = vpop.f32.mrf.mxu0
        %v6461 = vadd.f32 0.0, %v6460
        %6462 = vmatmul.bf16.gmra.mxu0 %v6382
        %v6463 = vpop.f32.mrf.mxu0
        %v6464 = vadd.f32 0.0, %v6463
        %v6465 = vpop.f32.mrf.mxu0
        %v6466 = vadd.f32 0.0, %v6465
        %6467 = vmatmul.bf16.gmra.mxu0 %v6383
        %v6468 = vpop.f32.mrf.mxu0
        %v6469 = vadd.f32 0.0, %v6468
        %v6470 = vpop.f32.mrf.mxu0
        %v6471 = vadd.f32 0.0, %v6470
        %6472 = vmatmul.bf16.gmra.mxu0 %v6384
        %v6473 = vpop.f32.mrf.mxu0
        %v6474 = vadd.f32 0.0, %v6473
        %v6475 = vpop.f32.mrf.mxu0
        %v6476 = vadd.f32 0.0, %v6475
        %6477 = vmatmul.bf16.gmra.mxu0 %v6385
        %v6478 = vpop.f32.mrf.mxu0
        %v6479 = vadd.f32 0.0, %v6478
        %v6480 = vpop.f32.mrf.mxu0
        %v6481 = vadd.f32 0.0, %v6480
        %6482 = vmatmul.bf16.gmra.mxu0 %v6386
        %v6483 = vpop.f32.mrf.mxu0
        %v6484 = vadd.f32 0.0, %v6483
        %v6485 = vpop.f32.mrf.mxu0
        %v6486 = vadd.f32 0.0, %v6485
        %6487 = vmatmul.bf16.gmra.mxu0 %v6387
        %v6488 = vpop.f32.mrf.mxu0
        %v6489 = vadd.f32 0.0, %v6488
        %v6490 = vpop.f32.mrf.mxu0
        %v6491 = vadd.f32 0.0, %v6490
        %6492 = vdwg.mxu0
        %v6509 = vunpack.c.l.b16 %v6300
        %v6510 = vunpack.c.l.b16 %v6301
        %v6511 = vunpack.c.l.b16 %v6302
        %v6512 = vunpack.c.l.b16 %v6303
        %v6513 = vunpack.c.l.b16 %v6304
        %v6514 = vunpack.c.l.b16 %v6305
        %v6515 = vunpack.c.l.b16 %v6306
        %v6516 = vunpack.c.l.b16 %v6307
        %v6517 = vunpack.c.l.b16 %v6308
        %v6518 = vunpack.c.l.b16 %v6309
        %v6519 = vunpack.c.l.b16 %v6310
        %v6520 = vunpack.c.l.b16 %v6311
        %v6521 = vunpack.c.l.b16 %v6312
        %v6522 = vunpack.c.l.b16 %v6313
        %v6523 = vunpack.c.l.b16 %v6314
        %v6524 = vunpack.c.l.b16 %v6315
        %v6525 = vpack.c.b16 %v6510, %v6509
        %v6526 = vpack.c.b16 %v6512, %v6511
        %v6527 = vpack.c.b16 %v6514, %v6513
        %v6528 = vpack.c.b16 %v6516, %v6515
        %v6529 = vpack.c.b16 %v6518, %v6517
        %v6530 = vpack.c.b16 %v6520, %v6519
        %v6531 = vpack.c.b16 %v6522, %v6521
        %v6532 = vpack.c.b16 %v6524, %v6523
        %v6557 = vunpack.c.l.b16 %v1455
        %v6558 = vunpack.c.l.b16 %v1456
        %v6559 = vunpack.c.l.b16 %v1457
        %v6560 = vunpack.c.l.b16 %v1458
        %v6561 = vunpack.c.l.b16 %v1459
        %v6562 = vunpack.c.l.b16 %v1460
        %v6563 = vunpack.c.l.b16 %v1461
        %v6564 = vunpack.c.l.b16 %v1462
        %v6565 = vunpack.c.l.b16 %v1463
        %v6566 = vunpack.c.l.b16 %v1464
        %v6567 = vunpack.c.l.b16 %v1465
        %v6568 = vunpack.c.l.b16 %v1466
        %v6569 = vunpack.c.l.b16 %v1467
        %v6570 = vunpack.c.l.b16 %v1468
        %v6571 = vunpack.c.l.b16 %v1469
        %v6572 = vunpack.c.l.b16 %v1470
        %v6573 = vpack.c.b16 %v6558, %v6557
        %v6574 = vpack.c.b16 %v6560, %v6559
        %v6575 = vpack.c.b16 %v6562, %v6561
        %v6576 = vpack.c.b16 %v6564, %v6563
        %v6577 = vpack.c.b16 %v6566, %v6565
        %v6578 = vpack.c.b16 %v6568, %v6567
        %v6579 = vpack.c.b16 %v6570, %v6569
        %v6580 = vpack.c.b16 %v6572, %v6571
        %6589 = vmatpush.bf16.msra.mxu0 %v6580
        %6590 = vmatpush.bf16.msra.mxu0 %v6579
        %6591 = vmatpush.bf16.msra.mxu0 %v6578
        %6592 = vmatpush.bf16.msra.mxu0 %v6577
        %6593 = vmatpush.bf16.msra.mxu0 %v6576
        %6594 = vmatpush.bf16.msra.mxu0 %v6575
        %6595 = vmatpush.bf16.msra.mxu0 %v6574
        %6596 = vmatpush.bf16.msra.mxu0 %v6573
        %6597 = vmatmul.bf16.gmra.mxu0 %v6525
        %v6598 = vpop.f32.mrf.mxu0
        %v6599 = vadd.f32 0.0, %v6598
        %v6600 = vpop.f32.mrf.mxu0
        %v6601 = vadd.f32 0.0, %v6600
        %6602 = vmatmul.bf16.gmra.mxu0 %v6526
        %v6603 = vpop.f32.mrf.mxu0
        %v6604 = vadd.f32 0.0, %v6603
        %v6605 = vpop.f32.mrf.mxu0
        %v6606 = vadd.f32 0.0, %v6605
        %6607 = vmatmul.bf16.gmra.mxu0 %v6527
        %v6608 = vpop.f32.mrf.mxu0
        %v6609 = vadd.f32 0.0, %v6608
        %v6610 = vpop.f32.mrf.mxu0
        %v6611 = vadd.f32 0.0, %v6610
        %6612 = vmatmul.bf16.gmra.mxu0 %v6528
        %v6613 = vpop.f32.mrf.mxu0
        %v6614 = vadd.f32 0.0, %v6613
        %v6615 = vpop.f32.mrf.mxu0
        %v6616 = vadd.f32 0.0, %v6615
        %6617 = vmatmul.bf16.gmra.mxu0 %v6529
        %v6618 = vpop.f32.mrf.mxu0
        %v6619 = vadd.f32 0.0, %v6618
        %v6620 = vpop.f32.mrf.mxu0
        %v6621 = vadd.f32 0.0, %v6620
        %6622 = vmatmul.bf16.gmra.mxu0 %v6530
        %v6623 = vpop.f32.mrf.mxu0
        %v6624 = vadd.f32 0.0, %v6623
        %v6625 = vpop.f32.mrf.mxu0
        %v6626 = vadd.f32 0.0, %v6625
        %6627 = vmatmul.bf16.gmra.mxu0 %v6531
        %v6628 = vpop.f32.mrf.mxu0
        %v6629 = vadd.f32 0.0, %v6628
        %v6630 = vpop.f32.mrf.mxu0
        %v6631 = vadd.f32 0.0, %v6630
        %6632 = vmatmul.bf16.gmra.mxu0 %v6532
        %v6633 = vpop.f32.mrf.mxu0
        %v6634 = vadd.f32 0.0, %v6633
        %v6635 = vpop.f32.mrf.mxu0
        %v6636 = vadd.f32 0.0, %v6635
        %6637 = vdwg.mxu0
        %v6654 = vunpack.c.l.b16 %v6316
        %v6655 = vunpack.c.l.b16 %v6317
        %v6656 = vunpack.c.l.b16 %v6318
        %v6657 = vunpack.c.l.b16 %v6319
        %v6658 = vunpack.c.l.b16 %v6320
        %v6659 = vunpack.c.l.b16 %v6321
        %v6660 = vunpack.c.l.b16 %v6322
        %v6661 = vunpack.c.l.b16 %v6323
        %v6662 = vunpack.c.l.b16 %v6324
        %v6663 = vunpack.c.l.b16 %v6325
        %v6664 = vunpack.c.l.b16 %v6326
        %v6665 = vunpack.c.l.b16 %v6327
        %v6666 = vunpack.c.l.b16 %v6328
        %v6667 = vunpack.c.l.b16 %v6329
        %v6668 = vunpack.c.l.b16 %v6330
        %v6669 = vunpack.c.l.b16 %v6331
        %v6670 = vpack.c.b16 %v6655, %v6654
        %v6671 = vpack.c.b16 %v6657, %v6656
        %v6672 = vpack.c.b16 %v6659, %v6658
        %v6673 = vpack.c.b16 %v6661, %v6660
        %v6674 = vpack.c.b16 %v6663, %v6662
        %v6675 = vpack.c.b16 %v6665, %v6664
        %v6676 = vpack.c.b16 %v6667, %v6666
        %v6677 = vpack.c.b16 %v6669, %v6668
        %v6702 = vunpack.c.l.b16 %v1471
        %v6703 = vunpack.c.l.b16 %v1472
        %v6704 = vunpack.c.l.b16 %v1473
        %v6705 = vunpack.c.l.b16 %v1474
        %v6706 = vunpack.c.l.b16 %v1475
        %v6707 = vunpack.c.l.b16 %v1476
        %v6708 = vunpack.c.l.b16 %v1477
        %v6709 = vunpack.c.l.b16 %v1478
        %v6710 = vunpack.c.l.b16 %v1479
        %v6711 = vunpack.c.l.b16 %v1480
        %v6712 = vunpack.c.l.b16 %v1481
        %v6713 = vunpack.c.l.b16 %v1482
        %v6714 = vunpack.c.l.b16 %v1483
        %v6715 = vunpack.c.l.b16 %v1484
        %v6716 = vunpack.c.l.b16 %v1485
        %v6717 = vunpack.c.l.b16 %v1486
        %v6718 = vpack.c.b16 %v6703, %v6702
        %v6719 = vpack.c.b16 %v6705, %v6704
        %v6720 = vpack.c.b16 %v6707, %v6706
        %v6721 = vpack.c.b16 %v6709, %v6708
        %v6722 = vpack.c.b16 %v6711, %v6710
        %v6723 = vpack.c.b16 %v6713, %v6712
        %v6724 = vpack.c.b16 %v6715, %v6714
        %v6725 = vpack.c.b16 %v6717, %v6716
        %6734 = vmatpush.bf16.msra.mxu0 %v6725
        %6735 = vmatpush.bf16.msra.mxu0 %v6724
        %6736 = vmatpush.bf16.msra.mxu0 %v6723
        %6737 = vmatpush.bf16.msra.mxu0 %v6722
        %6738 = vmatpush.bf16.msra.mxu0 %v6721
        %6739 = vmatpush.bf16.msra.mxu0 %v6720
        %6740 = vmatpush.bf16.msra.mxu0 %v6719
        %6741 = vmatpush.bf16.msra.mxu0 %v6718
        %6742 = vmatmul.bf16.gmra.mxu0 %v6670
        %v6743 = vpop.f32.mrf.mxu0
        %v6744 = vadd.f32 0.0, %v6743
        %v6745 = vpop.f32.mrf.mxu0
        %v6746 = vadd.f32 0.0, %v6745
        %6747 = vmatmul.bf16.gmra.mxu0 %v6671
        %v6748 = vpop.f32.mrf.mxu0
        %v6749 = vadd.f32 0.0, %v6748
        %v6750 = vpop.f32.mrf.mxu0
        %v6751 = vadd.f32 0.0, %v6750
        %6752 = vmatmul.bf16.gmra.mxu0 %v6672
        %v6753 = vpop.f32.mrf.mxu0
        %v6754 = vadd.f32 0.0, %v6753
        %v6755 = vpop.f32.mrf.mxu0
        %v6756 = vadd.f32 0.0, %v6755
        %6757 = vmatmul.bf16.gmra.mxu0 %v6673
        %v6758 = vpop.f32.mrf.mxu0
        %v6759 = vadd.f32 0.0, %v6758
        %v6760 = vpop.f32.mrf.mxu0
        %v6761 = vadd.f32 0.0, %v6760
        %6762 = vmatmul.bf16.gmra.mxu0 %v6674
        %v6763 = vpop.f32.mrf.mxu0
        %v6764 = vadd.f32 0.0, %v6763
        %v6765 = vpop.f32.mrf.mxu0
        %v6766 = vadd.f32 0.0, %v6765
        %6767 = vmatmul.bf16.gmra.mxu0 %v6675
        %v6768 = vpop.f32.mrf.mxu0
        %v6769 = vadd.f32 0.0, %v6768
        %v6770 = vpop.f32.mrf.mxu0
        %v6771 = vadd.f32 0.0, %v6770
        %6772 = vmatmul.bf16.gmra.mxu0 %v6676
        %v6773 = vpop.f32.mrf.mxu0
        %v6774 = vadd.f32 0.0, %v6773
        %v6775 = vpop.f32.mrf.mxu0
        %v6776 = vadd.f32 0.0, %v6775
        %6777 = vmatmul.bf16.gmra.mxu0 %v6677
        %v6778 = vpop.f32.mrf.mxu0
        %v6779 = vadd.f32 0.0, %v6778
        %v6780 = vpop.f32.mrf.mxu0
        %v6781 = vadd.f32 0.0, %v6780
        %6782 = vdwg.mxu0
        %v6799 = vunpack.c.l.b16 %v6332
        %v6800 = vunpack.c.l.b16 %v6333
        %v6801 = vunpack.c.l.b16 %v6334
        %v6802 = vunpack.c.l.b16 %v6335
        %v6803 = vunpack.c.l.b16 %v6336
        %v6804 = vunpack.c.l.b16 %v6337
        %v6805 = vunpack.c.l.b16 %v6338
        %v6806 = vunpack.c.l.b16 %v6339
        %v6807 = vunpack.c.l.b16 %v6340
        %v6808 = vunpack.c.l.b16 %v6341
        %v6809 = vunpack.c.l.b16 %v6342
        %v6810 = vunpack.c.l.b16 %v6343
        %v6811 = vunpack.c.l.b16 %v6344
        %v6812 = vunpack.c.l.b16 %v6345
        %v6813 = vunpack.c.l.b16 %v6346
        %v6814 = vunpack.c.l.b16 %v6347
        %v6815 = vpack.c.b16 %v6800, %v6799
        %v6816 = vpack.c.b16 %v6802, %v6801
        %v6817 = vpack.c.b16 %v6804, %v6803
        %v6818 = vpack.c.b16 %v6806, %v6805
        %v6819 = vpack.c.b16 %v6808, %v6807
        %v6820 = vpack.c.b16 %v6810, %v6809
        %v6821 = vpack.c.b16 %v6812, %v6811
        %v6822 = vpack.c.b16 %v6814, %v6813
        %v6847 = vunpack.c.l.b16 %v1487
        %v6848 = vunpack.c.l.b16 %v1488
        %v6849 = vunpack.c.l.b16 %v1489
        %v6850 = vunpack.c.l.b16 %v1490
        %v6851 = vunpack.c.l.b16 %v1491
        %v6852 = vunpack.c.l.b16 %v1492
        %v6853 = vunpack.c.l.b16 %v1493
        %v6854 = vunpack.c.l.b16 %v1494
        %v6855 = vunpack.c.l.b16 %v1495
        %v6856 = vunpack.c.l.b16 %v1496
        %v6857 = vunpack.c.l.b16 %v1497
        %v6858 = vunpack.c.l.b16 %v1498
        %v6859 = vunpack.c.l.b16 %v1499
        %v6860 = vunpack.c.l.b16 %v1500
        %v6861 = vunpack.c.l.b16 %v1501
        %v6862 = vunpack.c.l.b16 %v1502
        %v6863 = vpack.c.b16 %v6848, %v6847
        %v6864 = vpack.c.b16 %v6850, %v6849
        %v6865 = vpack.c.b16 %v6852, %v6851
        %v6866 = vpack.c.b16 %v6854, %v6853
        %v6867 = vpack.c.b16 %v6856, %v6855
        %v6868 = vpack.c.b16 %v6858, %v6857
        %v6869 = vpack.c.b16 %v6860, %v6859
        %v6870 = vpack.c.b16 %v6862, %v6861
        %6879 = vmatpush.bf16.msra.mxu0 %v6870
        %6880 = vmatpush.bf16.msra.mxu0 %v6869
        %6881 = vmatpush.bf16.msra.mxu0 %v6868
        %6882 = vmatpush.bf16.msra.mxu0 %v6867
        %6883 = vmatpush.bf16.msra.mxu0 %v6866
        %6884 = vmatpush.bf16.msra.mxu0 %v6865
        %6885 = vmatpush.bf16.msra.mxu0 %v6864
        %6886 = vmatpush.bf16.msra.mxu0 %v6863
        %6887 = vmatmul.bf16.gmra.mxu0 %v6815
        %v6888 = vpop.f32.mrf.mxu0
        %v6889 = vadd.f32 0.0, %v6888
        %v6890 = vpop.f32.mrf.mxu0
        %v6891 = vadd.f32 0.0, %v6890
        %6892 = vmatmul.bf16.gmra.mxu0 %v6816
        %v6893 = vpop.f32.mrf.mxu0
        %v6894 = vadd.f32 0.0, %v6893
        %v6895 = vpop.f32.mrf.mxu0
        %v6896 = vadd.f32 0.0, %v6895
        %6897 = vmatmul.bf16.gmra.mxu0 %v6817
        %v6898 = vpop.f32.mrf.mxu0
        %v6899 = vadd.f32 0.0, %v6898
        %v6900 = vpop.f32.mrf.mxu0
        %v6901 = vadd.f32 0.0, %v6900
        %6902 = vmatmul.bf16.gmra.mxu0 %v6818
        %v6903 = vpop.f32.mrf.mxu0
        %v6904 = vadd.f32 0.0, %v6903
        %v6905 = vpop.f32.mrf.mxu0
        %v6906 = vadd.f32 0.0, %v6905
        %6907 = vmatmul.bf16.gmra.mxu0 %v6819
        %v6908 = vpop.f32.mrf.mxu0
        %v6909 = vadd.f32 0.0, %v6908
        %v6910 = vpop.f32.mrf.mxu0
        %v6911 = vadd.f32 0.0, %v6910
        %6912 = vmatmul.bf16.gmra.mxu0 %v6820
        %v6913 = vpop.f32.mrf.mxu0
        %v6914 = vadd.f32 0.0, %v6913
        %v6915 = vpop.f32.mrf.mxu0
        %v6916 = vadd.f32 0.0, %v6915
        %6917 = vmatmul.bf16.gmra.mxu0 %v6821
        %v6918 = vpop.f32.mrf.mxu0
        %v6919 = vadd.f32 0.0, %v6918
        %v6920 = vpop.f32.mrf.mxu0
        %v6921 = vadd.f32 0.0, %v6920
        %6922 = vmatmul.bf16.gmra.mxu0 %v6822
        %v6923 = vpop.f32.mrf.mxu0
        %v6924 = vadd.f32 0.0, %v6923
        %v6925 = vpop.f32.mrf.mxu0
        %v6926 = vadd.f32 0.0, %v6925
        %6927 = vdwg.mxu0
        %v6928 = vpack.c.bf16 %v6454, %v6454
        %v6929 = vpack.c.bf16 %v6456, %v6456
        %v6930 = vpack.c.bf16 %v6459, %v6459
        %v6931 = vpack.c.bf16 %v6461, %v6461
        %v6932 = vpack.c.bf16 %v6464, %v6464
        %v6933 = vpack.c.bf16 %v6466, %v6466
        %v6934 = vpack.c.bf16 %v6469, %v6469
        %v6935 = vpack.c.bf16 %v6471, %v6471
        %v6936 = vpack.c.bf16 %v6474, %v6474
        %v6937 = vpack.c.bf16 %v6476, %v6476
        %v6938 = vpack.c.bf16 %v6479, %v6479
        %v6939 = vpack.c.bf16 %v6481, %v6481
        %v6940 = vpack.c.bf16 %v6484, %v6484
        %v6941 = vpack.c.bf16 %v6486, %v6486
        %v6942 = vpack.c.bf16 %v6489, %v6489
        %v6943 = vpack.c.bf16 %v6491, %v6491
        %v6944 = vpack.c.bf16 %v6599, %v6599
        %v6945 = vpack.c.bf16 %v6601, %v6601
        %v6946 = vpack.c.bf16 %v6604, %v6604
        %v6947 = vpack.c.bf16 %v6606, %v6606
        %v6948 = vpack.c.bf16 %v6609, %v6609
        %v6949 = vpack.c.bf16 %v6611, %v6611
        %v6950 = vpack.c.bf16 %v6614, %v6614
        %v6951 = vpack.c.bf16 %v6616, %v6616
        %v6952 = vpack.c.bf16 %v6619, %v6619
        %v6953 = vpack.c.bf16 %v6621, %v6621
        %v6954 = vpack.c.bf16 %v6624, %v6624
        %v6955 = vpack.c.bf16 %v6626, %v6626
        %v6956 = vpack.c.bf16 %v6629, %v6629
        %v6957 = vpack.c.bf16 %v6631, %v6631
        %v6958 = vpack.c.bf16 %v6634, %v6634
        %v6959 = vpack.c.bf16 %v6636, %v6636
        %v6960 = vpack.c.bf16 %v6744, %v6744
        %v6961 = vpack.c.bf16 %v6746, %v6746
        %v6962 = vpack.c.bf16 %v6749, %v6749
        %v6963 = vpack.c.bf16 %v6751, %v6751
        %v6964 = vpack.c.bf16 %v6754, %v6754
        %v6965 = vpack.c.bf16 %v6756, %v6756
        %v6966 = vpack.c.bf16 %v6759, %v6759
        %v6967 = vpack.c.bf16 %v6761, %v6761
        %v6968 = vpack.c.bf16 %v6764, %v6764
        %v6969 = vpack.c.bf16 %v6766, %v6766
        %v6970 = vpack.c.bf16 %v6769, %v6769
        %v6971 = vpack.c.bf16 %v6771, %v6771
        %v6972 = vpack.c.bf16 %v6774, %v6774
        %v6973 = vpack.c.bf16 %v6776, %v6776
        %v6974 = vpack.c.bf16 %v6779, %v6779
        %v6975 = vpack.c.bf16 %v6781, %v6781
        %v6976 = vpack.c.bf16 %v6889, %v6889
        %v6977 = vpack.c.bf16 %v6891, %v6891
        %v6978 = vpack.c.bf16 %v6894, %v6894
        %v6979 = vpack.c.bf16 %v6896, %v6896
        %v6980 = vpack.c.bf16 %v6899, %v6899
        %v6981 = vpack.c.bf16 %v6901, %v6901
        %v6982 = vpack.c.bf16 %v6904, %v6904
        %v6983 = vpack.c.bf16 %v6906, %v6906
        %v6984 = vpack.c.bf16 %v6909, %v6909
        %v6985 = vpack.c.bf16 %v6911, %v6911
        %v6986 = vpack.c.bf16 %v6914, %v6914
        %v6987 = vpack.c.bf16 %v6916, %v6916
        %v6988 = vpack.c.bf16 %v6919, %v6919
        %v6989 = vpack.c.bf16 %v6921, %v6921
        %v6990 = vpack.c.bf16 %v6924, %v6924
        %v6991 = vpack.c.bf16 %v6926, %v6926
        %v7008 = vunpack.c.l.b16 %v6928
        %v7009 = vunpack.c.l.b16 %v6929
        %v7010 = vunpack.c.l.b16 %v6930
        %v7011 = vunpack.c.l.b16 %v6931
        %v7012 = vunpack.c.l.b16 %v6932
        %v7013 = vunpack.c.l.b16 %v6933
        %v7014 = vunpack.c.l.b16 %v6934
        %v7015 = vunpack.c.l.b16 %v6935
        %v7016 = vunpack.c.l.b16 %v6936
        %v7017 = vunpack.c.l.b16 %v6937
        %v7018 = vunpack.c.l.b16 %v6938
        %v7019 = vunpack.c.l.b16 %v6939
        %v7020 = vunpack.c.l.b16 %v6940
        %v7021 = vunpack.c.l.b16 %v6941
        %v7022 = vunpack.c.l.b16 %v6942
        %v7023 = vunpack.c.l.b16 %v6943
        %v7024 = vpack.c.b16 %v7009, %v7008
        %v7025 = vpack.c.b16 %v7011, %v7010
        %v7026 = vpack.c.b16 %v7013, %v7012
        %v7027 = vpack.c.b16 %v7015, %v7014
        %v7028 = vpack.c.b16 %v7017, %v7016
        %v7029 = vpack.c.b16 %v7019, %v7018
        %v7030 = vpack.c.b16 %v7021, %v7020
        %v7031 = vpack.c.b16 %v7023, %v7022
        %v7048 = vunpack.c.l.b16 %v6944
        %v7049 = vunpack.c.l.b16 %v6945
        %v7050 = vunpack.c.l.b16 %v6946
        %v7051 = vunpack.c.l.b16 %v6947
        %v7052 = vunpack.c.l.b16 %v6948
        %v7053 = vunpack.c.l.b16 %v6949
        %v7054 = vunpack.c.l.b16 %v6950
        %v7055 = vunpack.c.l.b16 %v6951
        %v7056 = vunpack.c.l.b16 %v6952
        %v7057 = vunpack.c.l.b16 %v6953
        %v7058 = vunpack.c.l.b16 %v6954
        %v7059 = vunpack.c.l.b16 %v6955
        %v7060 = vunpack.c.l.b16 %v6956
        %v7061 = vunpack.c.l.b16 %v6957
        %v7062 = vunpack.c.l.b16 %v6958
        %v7063 = vunpack.c.l.b16 %v6959
        %v7064 = vpack.c.b16 %v7049, %v7048
        %v7065 = vpack.c.b16 %v7051, %v7050
        %v7066 = vpack.c.b16 %v7053, %v7052
        %v7067 = vpack.c.b16 %v7055, %v7054
        %v7068 = vpack.c.b16 %v7057, %v7056
        %v7069 = vpack.c.b16 %v7059, %v7058
        %v7070 = vpack.c.b16 %v7061, %v7060
        %v7071 = vpack.c.b16 %v7063, %v7062
        %7072 = vrot.lane.b32.xlu0 %v7064, 32
        %v7073 = vpop.permute.xlu0 %7072
        %7074 = vrot.lane.b32.xlu0 %v7065, 32
        %v7075 = vpop.permute.xlu0 %7074
        %7076 = vrot.lane.b32.xlu0 %v7066, 32
        %v7077 = vpop.permute.xlu0 %7076
        %7078 = vrot.lane.b32.xlu0 %v7067, 32
        %v7079 = vpop.permute.xlu0 %7078
        %7080 = vrot.lane.b32.xlu0 %v7068, 32
        %v7081 = vpop.permute.xlu0 %7080
        %7082 = vrot.lane.b32.xlu0 %v7069, 32
        %v7083 = vpop.permute.xlu0 %7082
        %7084 = vrot.lane.b32.xlu0 %v7070, 32
        %v7085 = vpop.permute.xlu0 %7084
        %7086 = vrot.lane.b32.xlu0 %v7071, 32
        %v7087 = vpop.permute.xlu0 %7086
        %v7104 = vunpack.c.l.b16 %v6960
        %v7105 = vunpack.c.l.b16 %v6961
        %v7106 = vunpack.c.l.b16 %v6962
        %v7107 = vunpack.c.l.b16 %v6963
        %v7108 = vunpack.c.l.b16 %v6964
        %v7109 = vunpack.c.l.b16 %v6965
        %v7110 = vunpack.c.l.b16 %v6966
        %v7111 = vunpack.c.l.b16 %v6967
        %v7112 = vunpack.c.l.b16 %v6968
        %v7113 = vunpack.c.l.b16 %v6969
        %v7114 = vunpack.c.l.b16 %v6970
        %v7115 = vunpack.c.l.b16 %v6971
        %v7116 = vunpack.c.l.b16 %v6972
        %v7117 = vunpack.c.l.b16 %v6973
        %v7118 = vunpack.c.l.b16 %v6974
        %v7119 = vunpack.c.l.b16 %v6975
        %v7120 = vpack.c.b16 %v7105, %v7104
        %v7121 = vpack.c.b16 %v7107, %v7106
        %v7122 = vpack.c.b16 %v7109, %v7108
        %v7123 = vpack.c.b16 %v7111, %v7110
        %v7124 = vpack.c.b16 %v7113, %v7112
        %v7125 = vpack.c.b16 %v7115, %v7114
        %v7126 = vpack.c.b16 %v7117, %v7116
        %v7127 = vpack.c.b16 %v7119, %v7118
        %7128 = vrot.lane.b32.xlu0 %v7120, 64
        %v7129 = vpop.permute.xlu0 %7128
        %7130 = vrot.lane.b32.xlu0 %v7121, 64
        %v7131 = vpop.permute.xlu0 %7130
        %7132 = vrot.lane.b32.xlu0 %v7122, 64
        %v7133 = vpop.permute.xlu0 %7132
        %7134 = vrot.lane.b32.xlu0 %v7123, 64
        %v7135 = vpop.permute.xlu0 %7134
        %7136 = vrot.lane.b32.xlu0 %v7124, 64
        %v7137 = vpop.permute.xlu0 %7136
        %7138 = vrot.lane.b32.xlu0 %v7125, 64
        %v7139 = vpop.permute.xlu0 %7138
        %7140 = vrot.lane.b32.xlu0 %v7126, 64
        %v7141 = vpop.permute.xlu0 %7140
        %7142 = vrot.lane.b32.xlu0 %v7127, 64
        %v7143 = vpop.permute.xlu0 %7142
        %v7160 = vunpack.c.l.b16 %v6976
        %v7161 = vunpack.c.l.b16 %v6977
        %v7162 = vunpack.c.l.b16 %v6978
        %v7163 = vunpack.c.l.b16 %v6979
        %v7164 = vunpack.c.l.b16 %v6980
        %v7165 = vunpack.c.l.b16 %v6981
        %v7166 = vunpack.c.l.b16 %v6982
        %v7167 = vunpack.c.l.b16 %v6983
        %v7168 = vunpack.c.l.b16 %v6984
        %v7169 = vunpack.c.l.b16 %v6985
        %v7170 = vunpack.c.l.b16 %v6986
        %v7171 = vunpack.c.l.b16 %v6987
        %v7172 = vunpack.c.l.b16 %v6988
        %v7173 = vunpack.c.l.b16 %v6989
        %v7174 = vunpack.c.l.b16 %v6990
        %v7175 = vunpack.c.l.b16 %v6991
        %v7176 = vpack.c.b16 %v7161, %v7160
        %v7177 = vpack.c.b16 %v7163, %v7162
        %v7178 = vpack.c.b16 %v7165, %v7164
        %v7179 = vpack.c.b16 %v7167, %v7166
        %v7180 = vpack.c.b16 %v7169, %v7168
        %v7181 = vpack.c.b16 %v7171, %v7170
        %v7182 = vpack.c.b16 %v7173, %v7172
        %v7183 = vpack.c.b16 %v7175, %v7174
        %7184 = vrot.lane.b32.xlu0 %v7176, 96
        %v7185 = vpop.permute.xlu0 %7184
        %7186 = vrot.lane.b32.xlu0 %v7177, 96
        %v7187 = vpop.permute.xlu0 %7186
        %7188 = vrot.lane.b32.xlu0 %v7178, 96
        %v7189 = vpop.permute.xlu0 %7188
        %7190 = vrot.lane.b32.xlu0 %v7179, 96
        %v7191 = vpop.permute.xlu0 %7190
        %7192 = vrot.lane.b32.xlu0 %v7180, 96
        %v7193 = vpop.permute.xlu0 %7192
        %7194 = vrot.lane.b32.xlu0 %v7181, 96
        %v7195 = vpop.permute.xlu0 %7194
        %7196 = vrot.lane.b32.xlu0 %v7182, 96
        %v7197 = vpop.permute.xlu0 %7196
        %7198 = vrot.lane.b32.xlu0 %v7183, 96
        %v7199 = vpop.permute.xlu0 %7198
        %v7202 = vsel %vm2063, %v7024, %v7073
        %v7205 = vsel %vm2063, %v7025, %v7075
        %v7208 = vsel %vm2063, %v7026, %v7077
        %v7211 = vsel %vm2063, %v7027, %v7079
        %v7214 = vsel %vm2063, %v7028, %v7081
        %v7217 = vsel %vm2063, %v7029, %v7083
        %v7220 = vsel %vm2063, %v7030, %v7085
        %v7223 = vsel %vm2063, %v7031, %v7087
        %vm7224 = vcmask 523264
        %v7226 = vsel %vm7224, %v7202, %v7129
        %v7228 = vsel %vm7224, %v7205, %v7131
        %v7230 = vsel %vm7224, %v7208, %v7133
        %v7232 = vsel %vm7224, %v7211, %v7135
        %v7234 = vsel %vm7224, %v7214, %v7137
        %v7236 = vsel %vm7224, %v7217, %v7139
        %v7238 = vsel %vm7224, %v7220, %v7141
        %v7240 = vsel %vm7224, %v7223, %v7143
        %vm7241 = vcmask 785408
        %v7243 = vsel %vm7241, %v7226, %v7185
        %v7246 = vsel %vm7241, %v7228, %v7187
        %v7249 = vsel %vm7241, %v7230, %v7189
        %v7252 = vsel %vm7241, %v7232, %v7191
        %v7255 = vsel %vm7241, %v7234, %v7193
        %v7258 = vsel %vm7241, %v7236, %v7195
        %v7261 = vsel %vm7241, %v7238, %v7197
        %v7264 = vsel %vm7241, %v7240, %v7199
        %v7266 = vld [vmem:[%s5] sm:$0xf]
        %v7267 = vld [vmem:[%s5 + $0x4] sm:$0xf]
        %v7268 = vld [vmem:[%s5 + $0x8] sm:$0xf]
        %v7269 = vld [vmem:[%s5 + $0xc] sm:$0xf]
        %v7270 = vld [vmem:[%s5 + $0x10] sm:$0xf]
        %v7271 = vld [vmem:[%s5 + $0x14] sm:$0xf]
        %v7272 = vld [vmem:[%s5 + $0x18] sm:$0xf]
        %v7273 = vld [vmem:[%s5 + $0x1c] sm:$0xf]
        %v7274 = vld [vmem:[%s5 + $0x20] sm:$0xf]
        %v7275 = vld [vmem:[%s5 + $0x24] sm:$0xf]
        %v7276 = vld [vmem:[%s5 + $0x28] sm:$0xf]
        %v7277 = vld [vmem:[%s5 + $0x2c] sm:$0xf]
        %v7278 = vld [vmem:[%s5 + $0x30] sm:$0xf]
        %v7279 = vld [vmem:[%s5 + $0x34] sm:$0xf]
        %v7280 = vld [vmem:[%s5 + $0x38] sm:$0xf]
        %v7281 = vld [vmem:[%s5 + $0x3c] sm:$0xf]
        %v7298 = vunpack.c.l.b16 %v7266
        %v7299 = vunpack.c.l.b16 %v7267
        %v7300 = vunpack.c.l.b16 %v7268
        %v7301 = vunpack.c.l.b16 %v7269
        %v7302 = vunpack.c.l.b16 %v7270
        %v7303 = vunpack.c.l.b16 %v7271
        %v7304 = vunpack.c.l.b16 %v7272
        %v7305 = vunpack.c.l.b16 %v7273
        %v7306 = vunpack.c.l.b16 %v7274
        %v7307 = vunpack.c.l.b16 %v7275
        %v7308 = vunpack.c.l.b16 %v7276
        %v7309 = vunpack.c.l.b16 %v7277
        %v7310 = vunpack.c.l.b16 %v7278
        %v7311 = vunpack.c.l.b16 %v7279
        %v7312 = vunpack.c.l.b16 %v7280
        %v7313 = vunpack.c.l.b16 %v7281
        %v7314 = vpack.c.b16 %v7299, %v7298
        %v7315 = vpack.c.b16 %v7301, %v7300
        %v7316 = vpack.c.b16 %v7303, %v7302
        %v7317 = vpack.c.b16 %v7305, %v7304
        %v7318 = vpack.c.b16 %v7307, %v7306
        %v7319 = vpack.c.b16 %v7309, %v7308
        %v7320 = vpack.c.b16 %v7311, %v7310
        %v7321 = vpack.c.b16 %v7313, %v7312
        %7330 = vmatpush.bf16.msra.mxu0 %v7321
        %7331 = vmatpush.bf16.msra.mxu0 %v7320
        %7332 = vmatpush.bf16.msra.mxu0 %v7319
        %7333 = vmatpush.bf16.msra.mxu0 %v7318
        %7334 = vmatpush.bf16.msra.mxu0 %v7317
        %7335 = vmatpush.bf16.msra.mxu0 %v7316
        %7336 = vmatpush.bf16.msra.mxu0 %v7315
        %7337 = vmatpush.bf16.msra.mxu0 %v7314
        %7338 = vmatmul.bf16.gmra.mxu0 %v7243
        %v7339 = vpop.f32.mrf.mxu0
        %v7340 = vadd.f32 0.0, %v7339
        %v7341 = vpop.f32.mrf.mxu0
        %v7342 = vadd.f32 0.0, %v7341
        %7343 = vmatmul.bf16.gmra.mxu0 %v7246
        %v7344 = vpop.f32.mrf.mxu0
        %v7345 = vadd.f32 0.0, %v7344
        %v7346 = vpop.f32.mrf.mxu0
        %v7347 = vadd.f32 0.0, %v7346
        %7348 = vmatmul.bf16.gmra.mxu0 %v7249
        %v7349 = vpop.f32.mrf.mxu0
        %v7350 = vadd.f32 0.0, %v7349
        %v7351 = vpop.f32.mrf.mxu0
        %v7352 = vadd.f32 0.0, %v7351
        %7353 = vmatmul.bf16.gmra.mxu0 %v7252
        %v7354 = vpop.f32.mrf.mxu0
        %v7355 = vadd.f32 0.0, %v7354
        %v7356 = vpop.f32.mrf.mxu0
        %v7357 = vadd.f32 0.0, %v7356
        %7358 = vmatmul.bf16.gmra.mxu0 %v7255
        %v7359 = vpop.f32.mrf.mxu0
        %v7360 = vadd.f32 0.0, %v7359
        %v7361 = vpop.f32.mrf.mxu0
        %v7362 = vadd.f32 0.0, %v7361
        %7363 = vmatmul.bf16.gmra.mxu0 %v7258
        %v7364 = vpop.f32.mrf.mxu0
        %v7365 = vadd.f32 0.0, %v7364
        %v7366 = vpop.f32.mrf.mxu0
        %v7367 = vadd.f32 0.0, %v7366
        %7368 = vmatmul.bf16.gmra.mxu0 %v7261
        %v7369 = vpop.f32.mrf.mxu0
        %v7370 = vadd.f32 0.0, %v7369
        %v7371 = vpop.f32.mrf.mxu0
        %v7372 = vadd.f32 0.0, %v7371
        %7373 = vmatmul.bf16.gmra.mxu0 %v7264
        %v7374 = vpop.f32.mrf.mxu0
        %v7375 = vadd.f32 0.0, %v7374
        %v7376 = vpop.f32.mrf.mxu0
        %v7377 = vadd.f32 0.0, %v7376
        %7378 = vdwg.mxu0
        %v7379 = vadd.f32 %v564, %v7340
        %v7380 = vadd.f32 %v565, %v7342
        %v7381 = vadd.f32 %v566, %v7345
        %v7382 = vadd.f32 %v567, %v7347
        %v7383 = vadd.f32 %v568, %v7350
        %v7384 = vadd.f32 %v569, %v7352
        %v7385 = vadd.f32 %v570, %v7355
        %v7386 = vadd.f32 %v571, %v7357
        %v7387 = vadd.f32 %v572, %v7360
        %v7388 = vadd.f32 %v573, %v7362
        %v7389 = vadd.f32 %v574, %v7365
        %v7390 = vadd.f32 %v575, %v7367
        %v7391 = vadd.f32 %v576, %v7370
        %v7392 = vadd.f32 %v577, %v7372
        %v7393 = vadd.f32 %v578, %v7375
        %v7394 = vadd.f32 %v579, %v7377
        %v7395 = vld [vmem:[%s6] sm:$0x1]
        %v7396 = vld [vmem:[#allocation8] sm:$0x1]
        %7397 = vadd.xlane.f32.xlu0 %v7379
        %v7398 = vpop.xlane.xlu0 %7397
        %7399 = vadd.xlane.f32.xlu0 %v7380
        %v7400 = vpop.xlane.xlu0 %7399
        %7401 = vadd.xlane.f32.xlu0 %v7381
        %v7402 = vpop.xlane.xlu0 %7401
        %7403 = vadd.xlane.f32.xlu0 %v7382
        %v7404 = vpop.xlane.xlu0 %7403
        %7405 = vadd.xlane.f32.xlu0 %v7383
        %v7406 = vpop.xlane.xlu0 %7405
        %7407 = vadd.xlane.f32.xlu0 %v7384
        %v7408 = vpop.xlane.xlu0 %7407
        %7409 = vadd.xlane.f32.xlu0 %v7385
        %v7410 = vpop.xlane.xlu0 %7409
        %7411 = vadd.xlane.f32.xlu0 %v7386
        %v7412 = vpop.xlane.xlu0 %7411
        %7413 = vadd.xlane.f32.xlu0 %v7387
        %v7414 = vpop.xlane.xlu0 %7413
        %7415 = vadd.xlane.f32.xlu0 %v7388
        %v7416 = vpop.xlane.xlu0 %7415
        %7417 = vadd.xlane.f32.xlu0 %v7389
        %v7418 = vpop.xlane.xlu0 %7417
        %7419 = vadd.xlane.f32.xlu0 %v7390
        %v7420 = vpop.xlane.xlu0 %7419
        %7421 = vadd.xlane.f32.xlu0 %v7391
        %v7422 = vpop.xlane.xlu0 %7421
        %7423 = vadd.xlane.f32.xlu0 %v7392
        %v7424 = vpop.xlane.xlu0 %7423
        %7425 = vadd.xlane.f32.xlu0 %v7393
        %v7426 = vpop.xlane.xlu0 %7425
        %7427 = vadd.xlane.f32.xlu0 %v7394
        %v7428 = vpop.xlane.xlu0 %7427
        %v7429 = vrcp.pop 128.0
        %v7430 = vmul.f32 128.0, %v7429
        %v7431 = vsub.f32 1.0, %v7430
        %v7432 = vmul.f32 %v7429, %v7431
        %v7433 = vadd.f32 %v7429, %v7432
        %vm7434 = vweird.f32 %v7429
        %v7435 = vsel %vm7434, %v7429, %v7433
        %v7436 = vmul.f32 %v7398, %v7435
        %v7437 = vmul.f32 %v7400, %v7435
        %v7438 = vmul.f32 %v7402, %v7435
        %v7439 = vmul.f32 %v7404, %v7435
        %v7440 = vmul.f32 %v7406, %v7435
        %v7441 = vmul.f32 %v7408, %v7435
        %v7442 = vmul.f32 %v7410, %v7435
        %v7443 = vmul.f32 %v7412, %v7435
        %v7444 = vmul.f32 %v7414, %v7435
        %v7445 = vmul.f32 %v7416, %v7435
        %v7446 = vmul.f32 %v7418, %v7435
        %v7447 = vmul.f32 %v7420, %v7435
        %v7448 = vmul.f32 %v7422, %v7435
        %v7449 = vmul.f32 %v7424, %v7435
        %v7450 = vmul.f32 %v7426, %v7435
        %v7451 = vmul.f32 %v7428, %v7435
        %v7452 = vsub.f32 %v7379, %v7436
        %v7453 = vsub.f32 %v7380, %v7437
        %v7454 = vsub.f32 %v7381, %v7438
        %v7455 = vsub.f32 %v7382, %v7439
        %v7456 = vsub.f32 %v7383, %v7440
        %v7457 = vsub.f32 %v7384, %v7441
        %v7458 = vsub.f32 %v7385, %v7442
        %v7459 = vsub.f32 %v7386, %v7443
        %v7460 = vsub.f32 %v7387, %v7444
        %v7461 = vsub.f32 %v7388, %v7445
        %v7462 = vsub.f32 %v7389, %v7446
        %v7463 = vsub.f32 %v7390, %v7447
        %v7464 = vsub.f32 %v7391, %v7448
        %v7465 = vsub.f32 %v7392, %v7449
        %v7466 = vsub.f32 %v7393, %v7450
        %v7467 = vsub.f32 %v7394, %v7451
        %v7468 = vmul.f32 %v7452, %v7452
        %v7469 = vmul.f32 %v7453, %v7453
        %v7470 = vmul.f32 %v7454, %v7454
        %v7471 = vmul.f32 %v7455, %v7455
        %v7472 = vmul.f32 %v7456, %v7456
        %v7473 = vmul.f32 %v7457, %v7457
        %v7474 = vmul.f32 %v7458, %v7458
        %v7475 = vmul.f32 %v7459, %v7459
        %v7476 = vmul.f32 %v7460, %v7460
        %v7477 = vmul.f32 %v7461, %v7461
        %v7478 = vmul.f32 %v7462, %v7462
        %v7479 = vmul.f32 %v7463, %v7463
        %v7480 = vmul.f32 %v7464, %v7464
        %v7481 = vmul.f32 %v7465, %v7465
        %v7482 = vmul.f32 %v7466, %v7466
        %v7483 = vmul.f32 %v7467, %v7467
        %7484 = vadd.xlane.f32.xlu0 %v7468
        %v7485 = vpop.xlane.xlu0 %7484
        %7486 = vadd.xlane.f32.xlu0 %v7469
        %v7487 = vpop.xlane.xlu0 %7486
        %7488 = vadd.xlane.f32.xlu0 %v7470
        %v7489 = vpop.xlane.xlu0 %7488
        %7490 = vadd.xlane.f32.xlu0 %v7471
        %v7491 = vpop.xlane.xlu0 %7490
        %7492 = vadd.xlane.f32.xlu0 %v7472
        %v7493 = vpop.xlane.xlu0 %7492
        %7494 = vadd.xlane.f32.xlu0 %v7473
        %v7495 = vpop.xlane.xlu0 %7494
        %7496 = vadd.xlane.f32.xlu0 %v7474
        %v7497 = vpop.xlane.xlu0 %7496
        %7498 = vadd.xlane.f32.xlu0 %v7475
        %v7499 = vpop.xlane.xlu0 %7498
        %7500 = vadd.xlane.f32.xlu0 %v7476
        %v7501 = vpop.xlane.xlu0 %7500
        %7502 = vadd.xlane.f32.xlu0 %v7477
        %v7503 = vpop.xlane.xlu0 %7502
        %7504 = vadd.xlane.f32.xlu0 %v7478
        %v7505 = vpop.xlane.xlu0 %7504
        %7506 = vadd.xlane.f32.xlu0 %v7479
        %v7507 = vpop.xlane.xlu0 %7506
        %7508 = vadd.xlane.f32.xlu0 %v7480
        %v7509 = vpop.xlane.xlu0 %7508
        %7510 = vadd.xlane.f32.xlu0 %v7481
        %v7511 = vpop.xlane.xlu0 %7510
        %7512 = vadd.xlane.f32.xlu0 %v7482
        %v7513 = vpop.xlane.xlu0 %7512
        %7514 = vadd.xlane.f32.xlu0 %v7483
        %v7515 = vpop.xlane.xlu0 %7514
        %v7516 = vmul.f32 %v7485, %v7435
        %v7517 = vmul.f32 %v7487, %v7435
        %v7518 = vmul.f32 %v7489, %v7435
        %v7519 = vmul.f32 %v7491, %v7435
        %v7520 = vmul.f32 %v7493, %v7435
        %v7521 = vmul.f32 %v7495, %v7435
        %v7522 = vmul.f32 %v7497, %v7435
        %v7523 = vmul.f32 %v7499, %v7435
        %v7524 = vmul.f32 %v7501, %v7435
        %v7525 = vmul.f32 %v7503, %v7435
        %v7526 = vmul.f32 %v7505, %v7435
        %v7527 = vmul.f32 %v7507, %v7435
        %v7528 = vmul.f32 %v7509, %v7435
        %v7529 = vmul.f32 %v7511, %v7435
        %v7530 = vmul.f32 %v7513, %v7435
        %v7531 = vmul.f32 %v7515, %v7435
        %v7532 = vadd.f32 %v7516, 1e-05
        %v7533 = vadd.f32 %v7517, 1e-05
        %v7534 = vadd.f32 %v7518, 1e-05
        %v7535 = vadd.f32 %v7519, 1e-05
        %v7536 = vadd.f32 %v7520, 1e-05
        %v7537 = vadd.f32 %v7521, 1e-05
        %v7538 = vadd.f32 %v7522, 1e-05
        %v7539 = vadd.f32 %v7523, 1e-05
        %v7540 = vadd.f32 %v7524, 1e-05
        %v7541 = vadd.f32 %v7525, 1e-05
        %v7542 = vadd.f32 %v7526, 1e-05
        %v7543 = vadd.f32 %v7527, 1e-05
        %v7544 = vadd.f32 %v7528, 1e-05
        %v7545 = vadd.f32 %v7529, 1e-05
        %v7546 = vadd.f32 %v7530, 1e-05
        %v7547 = vadd.f32 %v7531, 1e-05
        %v7548 = vrsqrt.pop %v7532
        %v7549 = vmul.f32 %v7548, %v7532
        %v7550 = vmul.f32 %v7549, %v7548
        %v7551 = vmul.f32 0.5, %v7550
        %v7552 = vsub.f32 1.5, %v7551
        %v7553 = vmul.f32 %v7548, %v7552
        %vm7554 = vweird.f32 %v7532
        %vm7555 = vweird.f32 %v7548
        %vm7556 = vmor %vm7554, %vm7555
        %v7557 = vsel %vm7556, %v7548, %v7553
        %v7558 = vrsqrt.pop %v7533
        %v7559 = vmul.f32 %v7558, %v7533
        %v7560 = vmul.f32 %v7559, %v7558
        %v7561 = vmul.f32 0.5, %v7560
        %v7562 = vsub.f32 1.5, %v7561
        %v7563 = vmul.f32 %v7558, %v7562
        %vm7564 = vweird.f32 %v7533
        %vm7565 = vweird.f32 %v7558
        %vm7566 = vmor %vm7564, %vm7565
        %v7567 = vsel %vm7566, %v7558, %v7563
        %v7568 = vrsqrt.pop %v7534
        %v7569 = vmul.f32 %v7568, %v7534
        %v7570 = vmul.f32 %v7569, %v7568
        %v7571 = vmul.f32 0.5, %v7570
        %v7572 = vsub.f32 1.5, %v7571
        %v7573 = vmul.f32 %v7568, %v7572
        %vm7574 = vweird.f32 %v7534
        %vm7575 = vweird.f32 %v7568
        %vm7576 = vmor %vm7574, %vm7575
        %v7577 = vsel %vm7576, %v7568, %v7573
        %v7578 = vrsqrt.pop %v7535
        %v7579 = vmul.f32 %v7578, %v7535
        %v7580 = vmul.f32 %v7579, %v7578
        %v7581 = vmul.f32 0.5, %v7580
        %v7582 = vsub.f32 1.5, %v7581
        %v7583 = vmul.f32 %v7578, %v7582
        %vm7584 = vweird.f32 %v7535
        %vm7585 = vweird.f32 %v7578
        %vm7586 = vmor %vm7584, %vm7585
        %v7587 = vsel %vm7586, %v7578, %v7583
        %v7588 = vrsqrt.pop %v7536
        %v7589 = vmul.f32 %v7588, %v7536
        %v7590 = vmul.f32 %v7589, %v7588
        %v7591 = vmul.f32 0.5, %v7590
        %v7592 = vsub.f32 1.5, %v7591
        %v7593 = vmul.f32 %v7588, %v7592
        %vm7594 = vweird.f32 %v7536
        %vm7595 = vweird.f32 %v7588
        %vm7596 = vmor %vm7594, %vm7595
        %v7597 = vsel %vm7596, %v7588, %v7593
        %v7598 = vrsqrt.pop %v7537
        %v7599 = vmul.f32 %v7598, %v7537
        %v7600 = vmul.f32 %v7599, %v7598
        %v7601 = vmul.f32 0.5, %v7600
        %v7602 = vsub.f32 1.5, %v7601
        %v7603 = vmul.f32 %v7598, %v7602
        %vm7604 = vweird.f32 %v7537
        %vm7605 = vweird.f32 %v7598
        %vm7606 = vmor %vm7604, %vm7605
        %v7607 = vsel %vm7606, %v7598, %v7603
        %v7608 = vrsqrt.pop %v7538
        %v7609 = vmul.f32 %v7608, %v7538
        %v7610 = vmul.f32 %v7609, %v7608
        %v7611 = vmul.f32 0.5, %v7610
        %v7612 = vsub.f32 1.5, %v7611
        %v7613 = vmul.f32 %v7608, %v7612
        %vm7614 = vweird.f32 %v7538
        %vm7615 = vweird.f32 %v7608
        %vm7616 = vmor %vm7614, %vm7615
        %v7617 = vsel %vm7616, %v7608, %v7613
        %v7618 = vrsqrt.pop %v7539
        %v7619 = vmul.f32 %v7618, %v7539
        %v7620 = vmul.f32 %v7619, %v7618
        %v7621 = vmul.f32 0.5, %v7620
        %v7622 = vsub.f32 1.5, %v7621
        %v7623 = vmul.f32 %v7618, %v7622
        %vm7624 = vweird.f32 %v7539
        %vm7625 = vweird.f32 %v7618
        %vm7626 = vmor %vm7624, %vm7625
        %v7627 = vsel %vm7626, %v7618, %v7623
        %v7628 = vrsqrt.pop %v7540
        %v7629 = vmul.f32 %v7628, %v7540
        %v7630 = vmul.f32 %v7629, %v7628
        %v7631 = vmul.f32 0.5, %v7630
        %v7632 = vsub.f32 1.5, %v7631
        %v7633 = vmul.f32 %v7628, %v7632
        %vm7634 = vweird.f32 %v7540
        %vm7635 = vweird.f32 %v7628
        %vm7636 = vmor %vm7634, %vm7635
        %v7637 = vsel %vm7636, %v7628, %v7633
        %v7638 = vrsqrt.pop %v7541
        %v7639 = vmul.f32 %v7638, %v7541
        %v7640 = vmul.f32 %v7639, %v7638
        %v7641 = vmul.f32 0.5, %v7640
        %v7642 = vsub.f32 1.5, %v7641
        %v7643 = vmul.f32 %v7638, %v7642
        %vm7644 = vweird.f32 %v7541
        %vm7645 = vweird.f32 %v7638
        %vm7646 = vmor %vm7644, %vm7645
        %v7647 = vsel %vm7646, %v7638, %v7643
        %v7648 = vrsqrt.pop %v7542
        %v7649 = vmul.f32 %v7648, %v7542
        %v7650 = vmul.f32 %v7649, %v7648
        %v7651 = vmul.f32 0.5, %v7650
        %v7652 = vsub.f32 1.5, %v7651
        %v7653 = vmul.f32 %v7648, %v7652
        %vm7654 = vweird.f32 %v7542
        %vm7655 = vweird.f32 %v7648
        %vm7656 = vmor %vm7654, %vm7655
        %v7657 = vsel %vm7656, %v7648, %v7653
        %v7658 = vrsqrt.pop %v7543
        %v7659 = vmul.f32 %v7658, %v7543
        %v7660 = vmul.f32 %v7659, %v7658
        %v7661 = vmul.f32 0.5, %v7660
        %v7662 = vsub.f32 1.5, %v7661
        %v7663 = vmul.f32 %v7658, %v7662
        %vm7664 = vweird.f32 %v7543
        %vm7665 = vweird.f32 %v7658
        %vm7666 = vmor %vm7664, %vm7665
        %v7667 = vsel %vm7666, %v7658, %v7663
        %v7668 = vrsqrt.pop %v7544
        %v7669 = vmul.f32 %v7668, %v7544
        %v7670 = vmul.f32 %v7669, %v7668
        %v7671 = vmul.f32 0.5, %v7670
        %v7672 = vsub.f32 1.5, %v7671
        %v7673 = vmul.f32 %v7668, %v7672
        %vm7674 = vweird.f32 %v7544
        %vm7675 = vweird.f32 %v7668
        %vm7676 = vmor %vm7674, %vm7675
        %v7677 = vsel %vm7676, %v7668, %v7673
        %v7678 = vrsqrt.pop %v7545
        %v7679 = vmul.f32 %v7678, %v7545
        %v7680 = vmul.f32 %v7679, %v7678
        %v7681 = vmul.f32 0.5, %v7680
        %v7682 = vsub.f32 1.5, %v7681
        %v7683 = vmul.f32 %v7678, %v7682
        %vm7684 = vweird.f32 %v7545
        %vm7685 = vweird.f32 %v7678
        %vm7686 = vmor %vm7684, %vm7685
        %v7687 = vsel %vm7686, %v7678, %v7683
        %v7688 = vrsqrt.pop %v7546
        %v7689 = vmul.f32 %v7688, %v7546
        %v7690 = vmul.f32 %v7689, %v7688
        %v7691 = vmul.f32 0.5, %v7690
        %v7692 = vsub.f32 1.5, %v7691
        %v7693 = vmul.f32 %v7688, %v7692
        %vm7694 = vweird.f32 %v7546
        %vm7695 = vweird.f32 %v7688
        %vm7696 = vmor %vm7694, %vm7695
        %v7697 = vsel %vm7696, %v7688, %v7693
        %v7698 = vrsqrt.pop %v7547
        %v7699 = vmul.f32 %v7698, %v7547
        %v7700 = vmul.f32 %v7699, %v7698
        %v7701 = vmul.f32 0.5, %v7700
        %v7702 = vsub.f32 1.5, %v7701
        %v7703 = vmul.f32 %v7698, %v7702
        %vm7704 = vweird.f32 %v7547
        %vm7705 = vweird.f32 %v7698
        %vm7706 = vmor %vm7704, %vm7705
        %v7707 = vsel %vm7706, %v7698, %v7703
        %v7708 = vmul.f32 %v7452, %v7557
        %v7709 = vmul.f32 %v7453, %v7567
        %v7710 = vmul.f32 %v7454, %v7577
        %v7711 = vmul.f32 %v7455, %v7587
        %v7712 = vmul.f32 %v7456, %v7597
        %v7713 = vmul.f32 %v7457, %v7607
        %v7714 = vmul.f32 %v7458, %v7617
        %v7715 = vmul.f32 %v7459, %v7627
        %v7716 = vmul.f32 %v7460, %v7637
        %v7717 = vmul.f32 %v7461, %v7647
        %v7718 = vmul.f32 %v7462, %v7657
        %v7719 = vmul.f32 %v7463, %v7667
        %v7720 = vmul.f32 %v7464, %v7677
        %v7721 = vmul.f32 %v7465, %v7687
        %v7722 = vmul.f32 %v7466, %v7697
        %v7723 = vmul.f32 %v7467, %v7707
        %v7725 = vperm.slane %v7395, 0
        %v7727 = vmul.f32 %v7708, %v7725
        %v7728 = vmul.f32 %v7709, %v7725
        %v7729 = vmul.f32 %v7710, %v7725
        %v7730 = vmul.f32 %v7711, %v7725
        %v7731 = vmul.f32 %v7712, %v7725
        %v7732 = vmul.f32 %v7713, %v7725
        %v7733 = vmul.f32 %v7714, %v7725
        %v7734 = vmul.f32 %v7715, %v7725
        %v7735 = vmul.f32 %v7716, %v7725
        %v7736 = vmul.f32 %v7717, %v7725
        %v7737 = vmul.f32 %v7718, %v7725
        %v7738 = vmul.f32 %v7719, %v7725
        %v7739 = vmul.f32 %v7720, %v7725
        %v7740 = vmul.f32 %v7721, %v7725
        %v7741 = vmul.f32 %v7722, %v7725
        %v7742 = vmul.f32 %v7723, %v7725
        %v7744 = vperm.slane %v7396, 0
        %v7746 = vadd.f32 %v7727, %v7744
        %v7747 = vadd.f32 %v7728, %v7744
        %v7748 = vadd.f32 %v7729, %v7744
        %v7749 = vadd.f32 %v7730, %v7744
        %v7750 = vadd.f32 %v7731, %v7744
        %v7751 = vadd.f32 %v7732, %v7744
        %v7752 = vadd.f32 %v7733, %v7744
        %v7753 = vadd.f32 %v7734, %v7744
        %v7754 = vadd.f32 %v7735, %v7744
        %v7755 = vadd.f32 %v7736, %v7744
        %v7756 = vadd.f32 %v7737, %v7744
        %v7757 = vadd.f32 %v7738, %v7744
        %v7758 = vadd.f32 %v7739, %v7744
        %v7759 = vadd.f32 %v7740, %v7744
        %v7760 = vadd.f32 %v7741, %v7744
        %v7761 = vadd.f32 %v7742, %v7744
        %v7762 = vpack.c.bf16 %v7747, %v7746
        %v7763 = vpack.c.bf16 %v7749, %v7748
        %v7764 = vpack.c.bf16 %v7751, %v7750
        %v7765 = vpack.c.bf16 %v7753, %v7752
        %v7766 = vpack.c.bf16 %v7755, %v7754
        %v7767 = vpack.c.bf16 %v7757, %v7756
        %v7768 = vpack.c.bf16 %v7759, %v7758
        %v7769 = vpack.c.bf16 %v7761, %v7760
        %v7770 = vld [vmem:[#allocation10] sm:$0xff]
        %v7771 = vld [vmem:[#allocation10 + $0x8] sm:$0xff]
        %v7772 = vld [vmem:[#allocation10 + $0x10] sm:$0xff]
        %v7773 = vld [vmem:[#allocation10 + $0x18] sm:$0xff]
        %v7774 = vld [vmem:[#allocation10 + $0x20] sm:$0xff]
        %v7775 = vld [vmem:[#allocation10 + $0x28] sm:$0xff]
        %v7776 = vld [vmem:[#allocation10 + $0x30] sm:$0xff]
        %v7777 = vld [vmem:[#allocation10 + $0x38] sm:$0xff]
        %v7778 = vld [vmem:[#allocation10 + $0x40] sm:$0xff]
        %v7779 = vld [vmem:[#allocation10 + $0x48] sm:$0xff]
        %v7780 = vld [vmem:[#allocation10 + $0x50] sm:$0xff]
        %v7781 = vld [vmem:[#allocation10 + $0x58] sm:$0xff]
        %v7782 = vld [vmem:[#allocation10 + $0x60] sm:$0xff]
        %v7783 = vld [vmem:[#allocation10 + $0x68] sm:$0xff]
        %v7784 = vld [vmem:[#allocation10 + $0x70] sm:$0xff]
        %v7785 = vld [vmem:[#allocation10 + $0x78] sm:$0xff]
        %v7786 = vld [vmem:[%s9] sm:$0x3]
        %v7788 = vperm.slane %v7786, 0
        %v7789 = vperm.slane %v7786, 1
        %v7808 = vunpack.c.l.b16 %v7770
        %v7809 = vunpack.c.h.b16 %v7770
        %v7810 = vunpack.c.l.b16 %v7771
        %v7811 = vunpack.c.h.b16 %v7771
        %v7812 = vunpack.c.l.b16 %v7772
        %v7813 = vunpack.c.h.b16 %v7772
        %v7814 = vunpack.c.l.b16 %v7773
        %v7815 = vunpack.c.h.b16 %v7773
        %v7816 = vunpack.c.l.b16 %v7774
        %v7817 = vunpack.c.h.b16 %v7774
        %v7818 = vunpack.c.l.b16 %v7775
        %v7819 = vunpack.c.h.b16 %v7775
        %v7820 = vunpack.c.l.b16 %v7776
        %v7821 = vunpack.c.h.b16 %v7776
        %v7822 = vunpack.c.l.b16 %v7777
        %v7823 = vunpack.c.h.b16 %v7777
        %v7824 = vunpack.c.l.b16 %v7778
        %v7825 = vunpack.c.h.b16 %v7778
        %v7826 = vunpack.c.l.b16 %v7779
        %v7827 = vunpack.c.h.b16 %v7779
        %v7828 = vunpack.c.l.b16 %v7780
        %v7829 = vunpack.c.h.b16 %v7780
        %v7830 = vunpack.c.l.b16 %v7781
        %v7831 = vunpack.c.h.b16 %v7781
        %v7832 = vunpack.c.l.b16 %v7782
        %v7833 = vunpack.c.h.b16 %v7782
        %v7834 = vunpack.c.l.b16 %v7783
        %v7835 = vunpack.c.h.b16 %v7783
        %v7836 = vunpack.c.l.b16 %v7784
        %v7837 = vunpack.c.h.b16 %v7784
        %v7838 = vunpack.c.l.b16 %v7785
        %v7839 = vunpack.c.h.b16 %v7785
        %v7840 = vpack.c.b16 %v7810, %v7808
        %v7841 = vpack.c.b16 %v7811, %v7809
        %v7842 = vpack.c.b16 %v7814, %v7812
        %v7843 = vpack.c.b16 %v7815, %v7813
        %v7844 = vpack.c.b16 %v7818, %v7816
        %v7845 = vpack.c.b16 %v7819, %v7817
        %v7846 = vpack.c.b16 %v7822, %v7820
        %v7847 = vpack.c.b16 %v7823, %v7821
        %v7848 = vpack.c.b16 %v7826, %v7824
        %v7849 = vpack.c.b16 %v7827, %v7825
        %v7850 = vpack.c.b16 %v7830, %v7828
        %v7851 = vpack.c.b16 %v7831, %v7829
        %v7852 = vpack.c.b16 %v7834, %v7832
        %v7853 = vpack.c.b16 %v7835, %v7833
        %v7854 = vpack.c.b16 %v7838, %v7836
        %v7855 = vpack.c.b16 %v7839, %v7837
        %7872 = vmatpush.bf16.msra.mxu0 %v7854
        %7873 = vmatpush.bf16.msra.mxu0 %v7852
        %7874 = vmatpush.bf16.msra.mxu0 %v7850
        %7875 = vmatpush.bf16.msra.mxu0 %v7848
        %7876 = vmatpush.bf16.msra.mxu0 %v7846
        %7877 = vmatpush.bf16.msra.mxu0 %v7844
        %7878 = vmatpush.bf16.msra.mxu0 %v7842
        %7879 = vmatpush.bf16.msra.mxu0 %v7840
        %7880 = vmatmul.bf16.gmra.mxu0 %v7762
        %v7881 = vpop.f32.mrf.mxu0
        %v7882 = vadd.f32 %v7788, %v7881
        %v7883 = vpop.f32.mrf.mxu0
        %v7884 = vadd.f32 %v7788, %v7883
        %7885 = vmatmul.bf16.gmra.mxu0 %v7763
        %v7886 = vpop.f32.mrf.mxu0
        %v7887 = vadd.f32 %v7788, %v7886
        %v7888 = vpop.f32.mrf.mxu0
        %v7889 = vadd.f32 %v7788, %v7888
        %7890 = vmatmul.bf16.gmra.mxu0 %v7764
        %v7891 = vpop.f32.mrf.mxu0
        %v7892 = vadd.f32 %v7788, %v7891
        %v7893 = vpop.f32.mrf.mxu0
        %v7894 = vadd.f32 %v7788, %v7893
        %7895 = vmatmul.bf16.gmra.mxu0 %v7765
        %v7896 = vpop.f32.mrf.mxu0
        %v7897 = vadd.f32 %v7788, %v7896
        %v7898 = vpop.f32.mrf.mxu0
        %v7899 = vadd.f32 %v7788, %v7898
        %7900 = vmatmul.bf16.gmra.mxu0 %v7766
        %v7901 = vpop.f32.mrf.mxu0
        %v7902 = vadd.f32 %v7788, %v7901
        %v7903 = vpop.f32.mrf.mxu0
        %v7904 = vadd.f32 %v7788, %v7903
        %7905 = vmatmul.bf16.gmra.mxu0 %v7767
        %v7906 = vpop.f32.mrf.mxu0
        %v7907 = vadd.f32 %v7788, %v7906
        %v7908 = vpop.f32.mrf.mxu0
        %v7909 = vadd.f32 %v7788, %v7908
        %7910 = vmatmul.bf16.gmra.mxu0 %v7768
        %v7911 = vpop.f32.mrf.mxu0
        %v7912 = vadd.f32 %v7788, %v7911
        %v7913 = vpop.f32.mrf.mxu0
        %v7914 = vadd.f32 %v7788, %v7913
        %7915 = vmatmul.bf16.gmra.mxu0 %v7769
        %v7916 = vpop.f32.mrf.mxu0
        %v7917 = vadd.f32 %v7788, %v7916
        %v7918 = vpop.f32.mrf.mxu0
        %v7919 = vadd.f32 %v7788, %v7918
        %7920 = vdwg.mxu0
        %7921 = vmatpush.bf16.msra.mxu0 %v7855
        %7922 = vmatpush.bf16.msra.mxu0 %v7853
        %7923 = vmatpush.bf16.msra.mxu0 %v7851
        %7924 = vmatpush.bf16.msra.mxu0 %v7849
        %7925 = vmatpush.bf16.msra.mxu0 %v7847
        %7926 = vmatpush.bf16.msra.mxu0 %v7845
        %7927 = vmatpush.bf16.msra.mxu0 %v7843
        %7928 = vmatpush.bf16.msra.mxu0 %v7841
        %7929 = vmatmul.bf16.gmra.mxu0 %v7762
        %v7930 = vpop.f32.mrf.mxu0
        %v7931 = vadd.f32 %v7789, %v7930
        %v7932 = vpop.f32.mrf.mxu0
        %v7933 = vadd.f32 %v7789, %v7932
        %7934 = vmatmul.bf16.gmra.mxu0 %v7763
        %v7935 = vpop.f32.mrf.mxu0
        %v7936 = vadd.f32 %v7789, %v7935
        %v7937 = vpop.f32.mrf.mxu0
        %v7938 = vadd.f32 %v7789, %v7937
        %7939 = vmatmul.bf16.gmra.mxu0 %v7764
        %v7940 = vpop.f32.mrf.mxu0
        %v7941 = vadd.f32 %v7789, %v7940
        %v7942 = vpop.f32.mrf.mxu0
        %v7943 = vadd.f32 %v7789, %v7942
        %7944 = vmatmul.bf16.gmra.mxu0 %v7765
        %v7945 = vpop.f32.mrf.mxu0
        %v7946 = vadd.f32 %v7789, %v7945
        %v7947 = vpop.f32.mrf.mxu0
        %v7948 = vadd.f32 %v7789, %v7947
        %7949 = vmatmul.bf16.gmra.mxu0 %v7766
        %v7950 = vpop.f32.mrf.mxu0
        %v7951 = vadd.f32 %v7789, %v7950
        %v7952 = vpop.f32.mrf.mxu0
        %v7953 = vadd.f32 %v7789, %v7952
        %7954 = vmatmul.bf16.gmra.mxu0 %v7767
        %v7955 = vpop.f32.mrf.mxu0
        %v7956 = vadd.f32 %v7789, %v7955
        %v7957 = vpop.f32.mrf.mxu0
        %v7958 = vadd.f32 %v7789, %v7957
        %7959 = vmatmul.bf16.gmra.mxu0 %v7768
        %v7960 = vpop.f32.mrf.mxu0
        %v7961 = vadd.f32 %v7789, %v7960
        %v7962 = vpop.f32.mrf.mxu0
        %v7963 = vadd.f32 %v7789, %v7962
        %7964 = vmatmul.bf16.gmra.mxu0 %v7769
        %v7965 = vpop.f32.mrf.mxu0
        %v7966 = vadd.f32 %v7789, %v7965
        %v7967 = vpop.f32.mrf.mxu0
        %v7968 = vadd.f32 %v7789, %v7967
        %7969 = vdwg.mxu0
        %v7970 = vmax.f32 %v7882, 0.0
        %v7971 = vmax.f32 %v7931, 0.0
        %v7972 = vmax.f32 %v7884, 0.0
        %v7973 = vmax.f32 %v7933, 0.0
        %v7974 = vmax.f32 %v7887, 0.0
        %v7975 = vmax.f32 %v7936, 0.0
        %v7976 = vmax.f32 %v7889, 0.0
        %v7977 = vmax.f32 %v7938, 0.0
        %v7978 = vmax.f32 %v7892, 0.0
        %v7979 = vmax.f32 %v7941, 0.0
        %v7980 = vmax.f32 %v7894, 0.0
        %v7981 = vmax.f32 %v7943, 0.0
        %v7982 = vmax.f32 %v7897, 0.0
        %v7983 = vmax.f32 %v7946, 0.0
        %v7984 = vmax.f32 %v7899, 0.0
        %v7985 = vmax.f32 %v7948, 0.0
        %v7986 = vmax.f32 %v7902, 0.0
        %v7987 = vmax.f32 %v7951, 0.0
        %v7988 = vmax.f32 %v7904, 0.0
        %v7989 = vmax.f32 %v7953, 0.0
        %v7990 = vmax.f32 %v7907, 0.0
        %v7991 = vmax.f32 %v7956, 0.0
        %v7992 = vmax.f32 %v7909, 0.0
        %v7993 = vmax.f32 %v7958, 0.0
        %v7994 = vmax.f32 %v7912, 0.0
        %v7995 = vmax.f32 %v7961, 0.0
        %v7996 = vmax.f32 %v7914, 0.0
        %v7997 = vmax.f32 %v7963, 0.0
        %v7998 = vmax.f32 %v7917, 0.0
        %v7999 = vmax.f32 %v7966, 0.0
        %v8000 = vmax.f32 %v7919, 0.0
        %v8001 = vmax.f32 %v7968, 0.0
        %v8002 = vpack.c.bf16 %v7972, %v7970
        %v8003 = vpack.c.bf16 %v7973, %v7971
        %v8004 = vpack.c.bf16 %v7976, %v7974
        %v8005 = vpack.c.bf16 %v7977, %v7975
        %v8006 = vpack.c.bf16 %v7980, %v7978
        %v8007 = vpack.c.bf16 %v7981, %v7979
        %v8008 = vpack.c.bf16 %v7984, %v7982
        %v8009 = vpack.c.bf16 %v7985, %v7983
        %v8010 = vpack.c.bf16 %v7988, %v7986
        %v8011 = vpack.c.bf16 %v7989, %v7987
        %v8012 = vpack.c.bf16 %v7992, %v7990
        %v8013 = vpack.c.bf16 %v7993, %v7991
        %v8014 = vpack.c.bf16 %v7996, %v7994
        %v8015 = vpack.c.bf16 %v7997, %v7995
        %v8016 = vpack.c.bf16 %v8000, %v7998
        %v8017 = vpack.c.bf16 %v8001, %v7999
        %v8018 = vld [vmem:[#allocation11] sm:$0xf]
        %v8019 = vld [vmem:[#allocation11 + $0x4] sm:$0xf]
        %v8020 = vld [vmem:[#allocation11 + $0x8] sm:$0xf]
        %v8021 = vld [vmem:[#allocation11 + $0xc] sm:$0xf]
        %v8022 = vld [vmem:[#allocation11 + $0x10] sm:$0xf]
        %v8023 = vld [vmem:[#allocation11 + $0x14] sm:$0xf]
        %v8024 = vld [vmem:[#allocation11 + $0x18] sm:$0xf]
        %v8025 = vld [vmem:[#allocation11 + $0x1c] sm:$0xf]
        %v8026 = vld [vmem:[#allocation11 + $0x20] sm:$0xf]
        %v8027 = vld [vmem:[#allocation11 + $0x24] sm:$0xf]
        %v8028 = vld [vmem:[#allocation11 + $0x28] sm:$0xf]
        %v8029 = vld [vmem:[#allocation11 + $0x2c] sm:$0xf]
        %v8030 = vld [vmem:[#allocation11 + $0x30] sm:$0xf]
        %v8031 = vld [vmem:[#allocation11 + $0x34] sm:$0xf]
        %v8032 = vld [vmem:[#allocation11 + $0x38] sm:$0xf]
        %v8033 = vld [vmem:[#allocation11 + $0x3c] sm:$0xf]
        %v8034 = vld [vmem:[#allocation11 + $0x40] sm:$0xf]
        %v8035 = vld [vmem:[#allocation11 + $0x44] sm:$0xf]
        %v8036 = vld [vmem:[#allocation11 + $0x48] sm:$0xf]
        %v8037 = vld [vmem:[#allocation11 + $0x4c] sm:$0xf]
        %v8038 = vld [vmem:[#allocation11 + $0x50] sm:$0xf]
        %v8039 = vld [vmem:[#allocation11 + $0x54] sm:$0xf]
        %v8040 = vld [vmem:[#allocation11 + $0x58] sm:$0xf]
        %v8041 = vld [vmem:[#allocation11 + $0x5c] sm:$0xf]
        %v8042 = vld [vmem:[#allocation11 + $0x60] sm:$0xf]
        %v8043 = vld [vmem:[#allocation11 + $0x64] sm:$0xf]
        %v8044 = vld [vmem:[#allocation11 + $0x68] sm:$0xf]
        %v8045 = vld [vmem:[#allocation11 + $0x6c] sm:$0xf]
        %v8046 = vld [vmem:[#allocation11 + $0x70] sm:$0xf]
        %v8047 = vld [vmem:[#allocation11 + $0x74] sm:$0xf]
        %v8048 = vld [vmem:[#allocation11 + $0x78] sm:$0xf]
        %v8049 = vld [vmem:[#allocation11 + $0x7c] sm:$0xf]
        %v8050 = vld [vmem:[%s11] sm:$0x1]
        %v8052 = vperm.slane %v8050, 0
        %v8086 = vunpack.c.l.b16 %v8018
        %v8087 = vunpack.c.l.b16 %v8019
        %v8088 = vunpack.c.l.b16 %v8020
        %v8089 = vunpack.c.l.b16 %v8021
        %v8090 = vunpack.c.l.b16 %v8022
        %v8091 = vunpack.c.l.b16 %v8023
        %v8092 = vunpack.c.l.b16 %v8024
        %v8093 = vunpack.c.l.b16 %v8025
        %v8094 = vunpack.c.l.b16 %v8026
        %v8095 = vunpack.c.l.b16 %v8027
        %v8096 = vunpack.c.l.b16 %v8028
        %v8097 = vunpack.c.l.b16 %v8029
        %v8098 = vunpack.c.l.b16 %v8030
        %v8099 = vunpack.c.l.b16 %v8031
        %v8100 = vunpack.c.l.b16 %v8032
        %v8101 = vunpack.c.l.b16 %v8033
        %v8102 = vunpack.c.l.b16 %v8034
        %v8103 = vunpack.c.l.b16 %v8035
        %v8104 = vunpack.c.l.b16 %v8036
        %v8105 = vunpack.c.l.b16 %v8037
        %v8106 = vunpack.c.l.b16 %v8038
        %v8107 = vunpack.c.l.b16 %v8039
        %v8108 = vunpack.c.l.b16 %v8040
        %v8109 = vunpack.c.l.b16 %v8041
        %v8110 = vunpack.c.l.b16 %v8042
        %v8111 = vunpack.c.l.b16 %v8043
        %v8112 = vunpack.c.l.b16 %v8044
        %v8113 = vunpack.c.l.b16 %v8045
        %v8114 = vunpack.c.l.b16 %v8046
        %v8115 = vunpack.c.l.b16 %v8047
        %v8116 = vunpack.c.l.b16 %v8048
        %v8117 = vunpack.c.l.b16 %v8049
        %v8118 = vpack.c.b16 %v8087, %v8086
        %v8119 = vpack.c.b16 %v8089, %v8088
        %v8120 = vpack.c.b16 %v8091, %v8090
        %v8121 = vpack.c.b16 %v8093, %v8092
        %v8122 = vpack.c.b16 %v8095, %v8094
        %v8123 = vpack.c.b16 %v8097, %v8096
        %v8124 = vpack.c.b16 %v8099, %v8098
        %v8125 = vpack.c.b16 %v8101, %v8100
        %v8126 = vpack.c.b16 %v8103, %v8102
        %v8127 = vpack.c.b16 %v8105, %v8104
        %v8128 = vpack.c.b16 %v8107, %v8106
        %v8129 = vpack.c.b16 %v8109, %v8108
        %v8130 = vpack.c.b16 %v8111, %v8110
        %v8131 = vpack.c.b16 %v8113, %v8112
        %v8132 = vpack.c.b16 %v8115, %v8114
        %v8133 = vpack.c.b16 %v8117, %v8116
        %8150 = vmatpush.bf16.msra.mxu0 %v8125
        %8151 = vmatpush.bf16.msra.mxu0 %v8124
        %8152 = vmatpush.bf16.msra.mxu0 %v8123
        %8153 = vmatpush.bf16.msra.mxu0 %v8122
        %8154 = vmatpush.bf16.msra.mxu0 %v8121
        %8155 = vmatpush.bf16.msra.mxu0 %v8120
        %8156 = vmatpush.bf16.msra.mxu0 %v8119
        %8157 = vmatpush.bf16.msra.mxu0 %v8118
        %8158 = vmatmul.bf16.gmra.mxu0 %v8002
        %v8159 = vpop.f32.mrf.mxu0
        %v8160 = vadd.f32 %v8052, %v8159
        %v8161 = vpop.f32.mrf.mxu0
        %v8162 = vadd.f32 %v8052, %v8161
        %8163 = vmatmul.bf16.gmra.mxu0 %v8004
        %v8164 = vpop.f32.mrf.mxu0
        %v8165 = vadd.f32 %v8052, %v8164
        %v8166 = vpop.f32.mrf.mxu0
        %v8167 = vadd.f32 %v8052, %v8166
        %8168 = vmatmul.bf16.gmra.mxu0 %v8006
        %v8169 = vpop.f32.mrf.mxu0
        %v8170 = vadd.f32 %v8052, %v8169
        %v8171 = vpop.f32.mrf.mxu0
        %v8172 = vadd.f32 %v8052, %v8171
        %8173 = vmatmul.bf16.gmra.mxu0 %v8008
        %v8174 = vpop.f32.mrf.mxu0
        %v8175 = vadd.f32 %v8052, %v8174
        %v8176 = vpop.f32.mrf.mxu0
        %v8177 = vadd.f32 %v8052, %v8176
        %8178 = vmatmul.bf16.gmra.mxu0 %v8010
        %v8179 = vpop.f32.mrf.mxu0
        %v8180 = vadd.f32 %v8052, %v8179
        %v8181 = vpop.f32.mrf.mxu0
        %v8182 = vadd.f32 %v8052, %v8181
        %8183 = vmatmul.bf16.gmra.mxu0 %v8012
        %v8184 = vpop.f32.mrf.mxu0
        %v8185 = vadd.f32 %v8052, %v8184
        %v8186 = vpop.f32.mrf.mxu0
        %v8187 = vadd.f32 %v8052, %v8186
        %8188 = vmatmul.bf16.gmra.mxu0 %v8014
        %v8189 = vpop.f32.mrf.mxu0
        %v8190 = vadd.f32 %v8052, %v8189
        %v8191 = vpop.f32.mrf.mxu0
        %v8192 = vadd.f32 %v8052, %v8191
        %8193 = vmatmul.bf16.gmra.mxu0 %v8016
        %v8194 = vpop.f32.mrf.mxu0
        %v8195 = vadd.f32 %v8052, %v8194
        %v8196 = vpop.f32.mrf.mxu0
        %v8197 = vadd.f32 %v8052, %v8196
        %8198 = vdwg.mxu0
        %8199 = vmatpush.bf16.msra.mxu0 %v8133
        %8200 = vmatpush.bf16.msra.mxu0 %v8132
        %8201 = vmatpush.bf16.msra.mxu0 %v8131
        %8202 = vmatpush.bf16.msra.mxu0 %v8130
        %8203 = vmatpush.bf16.msra.mxu0 %v8129
        %8204 = vmatpush.bf16.msra.mxu0 %v8128
        %8205 = vmatpush.bf16.msra.mxu0 %v8127
        %8206 = vmatpush.bf16.msra.mxu0 %v8126
        %8207 = vmatmul.bf16.gmra.mxu0 %v8003
        %v8208 = vpop.f32.mrf.mxu0
        %v8209 = vadd.f32 %v8160, %v8208
        %v8210 = vpop.f32.mrf.mxu0
        %v8211 = vadd.f32 %v8162, %v8210
        %8212 = vmatmul.bf16.gmra.mxu0 %v8005
        %v8213 = vpop.f32.mrf.mxu0
        %v8214 = vadd.f32 %v8165, %v8213
        %v8215 = vpop.f32.mrf.mxu0
        %v8216 = vadd.f32 %v8167, %v8215
        %8217 = vmatmul.bf16.gmra.mxu0 %v8007
        %v8218 = vpop.f32.mrf.mxu0
        %v8219 = vadd.f32 %v8170, %v8218
        %v8220 = vpop.f32.mrf.mxu0
        %v8221 = vadd.f32 %v8172, %v8220
        %8222 = vmatmul.bf16.gmra.mxu0 %v8009
        %v8223 = vpop.f32.mrf.mxu0
        %v8224 = vadd.f32 %v8175, %v8223
        %v8225 = vpop.f32.mrf.mxu0
        %v8226 = vadd.f32 %v8177, %v8225
        %8227 = vmatmul.bf16.gmra.mxu0 %v8011
        %v8228 = vpop.f32.mrf.mxu0
        %v8229 = vadd.f32 %v8180, %v8228
        %v8230 = vpop.f32.mrf.mxu0
        %v8231 = vadd.f32 %v8182, %v8230
        %8232 = vmatmul.bf16.gmra.mxu0 %v8013
        %v8233 = vpop.f32.mrf.mxu0
        %v8234 = vadd.f32 %v8185, %v8233
        %v8235 = vpop.f32.mrf.mxu0
        %v8236 = vadd.f32 %v8187, %v8235
        %8237 = vmatmul.bf16.gmra.mxu0 %v8015
        %v8238 = vpop.f32.mrf.mxu0
        %v8239 = vadd.f32 %v8190, %v8238
        %v8240 = vpop.f32.mrf.mxu0
        %v8241 = vadd.f32 %v8192, %v8240
        %8242 = vmatmul.bf16.gmra.mxu0 %v8017
        %v8243 = vpop.f32.mrf.mxu0
        %v8244 = vadd.f32 %v8195, %v8243
        %v8245 = vpop.f32.mrf.mxu0
        %v8246 = vadd.f32 %v8197, %v8245
        %8247 = vdwg.mxu0
        %v8248 = vadd.f32 %v7746, %v8209
        %v8249 = vadd.f32 %v7747, %v8211
        %v8250 = vadd.f32 %v7748, %v8214
        %v8251 = vadd.f32 %v7749, %v8216
        %v8252 = vadd.f32 %v7750, %v8219
        %v8253 = vadd.f32 %v7751, %v8221
        %v8254 = vadd.f32 %v7752, %v8224
        %v8255 = vadd.f32 %v7753, %v8226
        %v8256 = vadd.f32 %v7754, %v8229
        %v8257 = vadd.f32 %v7755, %v8231
        %v8258 = vadd.f32 %v7756, %v8234
        %v8259 = vadd.f32 %v7757, %v8236
        %v8260 = vadd.f32 %v7758, %v8239
        %v8261 = vadd.f32 %v7759, %v8241
        %v8262 = vadd.f32 %v7760, %v8244
        %v8263 = vadd.f32 %v7761, %v8246
        %v8264 = vld [vmem:[%s12] sm:$0x1]
        %v8265 = vld [vmem:[%s13] sm:$0x1]
        %8266 = vadd.xlane.f32.xlu0 %v8248
        %v8267 = vpop.xlane.xlu0 %8266
        %8268 = vadd.xlane.f32.xlu0 %v8249
        %v8269 = vpop.xlane.xlu0 %8268
        %8270 = vadd.xlane.f32.xlu0 %v8250
        %v8271 = vpop.xlane.xlu0 %8270
        %8272 = vadd.xlane.f32.xlu0 %v8251
        %v8273 = vpop.xlane.xlu0 %8272
        %8274 = vadd.xlane.f32.xlu0 %v8252
        %v8275 = vpop.xlane.xlu0 %8274
        %8276 = vadd.xlane.f32.xlu0 %v8253
        %v8277 = vpop.xlane.xlu0 %8276
        %8278 = vadd.xlane.f32.xlu0 %v8254
        %v8279 = vpop.xlane.xlu0 %8278
        %8280 = vadd.xlane.f32.xlu0 %v8255
        %v8281 = vpop.xlane.xlu0 %8280
        %8282 = vadd.xlane.f32.xlu0 %v8256
        %v8283 = vpop.xlane.xlu0 %8282
        %8284 = vadd.xlane.f32.xlu0 %v8257
        %v8285 = vpop.xlane.xlu0 %8284
        %8286 = vadd.xlane.f32.xlu0 %v8258
        %v8287 = vpop.xlane.xlu0 %8286
        %8288 = vadd.xlane.f32.xlu0 %v8259
        %v8289 = vpop.xlane.xlu0 %8288
        %8290 = vadd.xlane.f32.xlu0 %v8260
        %v8291 = vpop.xlane.xlu0 %8290
        %8292 = vadd.xlane.f32.xlu0 %v8261
        %v8293 = vpop.xlane.xlu0 %8292
        %8294 = vadd.xlane.f32.xlu0 %v8262
        %v8295 = vpop.xlane.xlu0 %8294
        %8296 = vadd.xlane.f32.xlu0 %v8263
        %v8297 = vpop.xlane.xlu0 %8296
        %v8298 = vmul.f32 %v8267, %v7435
        %v8299 = vmul.f32 %v8269, %v7435
        %v8300 = vmul.f32 %v8271, %v7435
        %v8301 = vmul.f32 %v8273, %v7435
        %v8302 = vmul.f32 %v8275, %v7435
        %v8303 = vmul.f32 %v8277, %v7435
        %v8304 = vmul.f32 %v8279, %v7435
        %v8305 = vmul.f32 %v8281, %v7435
        %v8306 = vmul.f32 %v8283, %v7435
        %v8307 = vmul.f32 %v8285, %v7435
        %v8308 = vmul.f32 %v8287, %v7435
        %v8309 = vmul.f32 %v8289, %v7435
        %v8310 = vmul.f32 %v8291, %v7435
        %v8311 = vmul.f32 %v8293, %v7435
        %v8312 = vmul.f32 %v8295, %v7435
        %v8313 = vmul.f32 %v8297, %v7435
        %v8314 = vsub.f32 %v8248, %v8298
        %v8315 = vsub.f32 %v8249, %v8299
        %v8316 = vsub.f32 %v8250, %v8300
        %v8317 = vsub.f32 %v8251, %v8301
        %v8318 = vsub.f32 %v8252, %v8302
        %v8319 = vsub.f32 %v8253, %v8303
        %v8320 = vsub.f32 %v8254, %v8304
        %v8321 = vsub.f32 %v8255, %v8305
        %v8322 = vsub.f32 %v8256, %v8306
        %v8323 = vsub.f32 %v8257, %v8307
        %v8324 = vsub.f32 %v8258, %v8308
        %v8325 = vsub.f32 %v8259, %v8309
        %v8326 = vsub.f32 %v8260, %v8310
        %v8327 = vsub.f32 %v8261, %v8311
        %v8328 = vsub.f32 %v8262, %v8312
        %v8329 = vsub.f32 %v8263, %v8313
        %v8330 = vmul.f32 %v8314, %v8314
        %v8331 = vmul.f32 %v8315, %v8315
        %v8332 = vmul.f32 %v8316, %v8316
        %v8333 = vmul.f32 %v8317, %v8317
        %v8334 = vmul.f32 %v8318, %v8318
        %v8335 = vmul.f32 %v8319, %v8319
        %v8336 = vmul.f32 %v8320, %v8320
        %v8337 = vmul.f32 %v8321, %v8321
        %v8338 = vmul.f32 %v8322, %v8322
        %v8339 = vmul.f32 %v8323, %v8323
        %v8340 = vmul.f32 %v8324, %v8324
        %v8341 = vmul.f32 %v8325, %v8325
        %v8342 = vmul.f32 %v8326, %v8326
        %v8343 = vmul.f32 %v8327, %v8327
        %v8344 = vmul.f32 %v8328, %v8328
        %v8345 = vmul.f32 %v8329, %v8329
        %8346 = vadd.xlane.f32.xlu0 %v8330
        %v8347 = vpop.xlane.xlu0 %8346
        %8348 = vadd.xlane.f32.xlu0 %v8331
        %v8349 = vpop.xlane.xlu0 %8348
        %8350 = vadd.xlane.f32.xlu0 %v8332
        %v8351 = vpop.xlane.xlu0 %8350
        %8352 = vadd.xlane.f32.xlu0 %v8333
        %v8353 = vpop.xlane.xlu0 %8352
        %8354 = vadd.xlane.f32.xlu0 %v8334
        %v8355 = vpop.xlane.xlu0 %8354
        %8356 = vadd.xlane.f32.xlu0 %v8335
        %v8357 = vpop.xlane.xlu0 %8356
        %8358 = vadd.xlane.f32.xlu0 %v8336
        %v8359 = vpop.xlane.xlu0 %8358
        %8360 = vadd.xlane.f32.xlu0 %v8337
        %v8361 = vpop.xlane.xlu0 %8360
        %8362 = vadd.xlane.f32.xlu0 %v8338
        %v8363 = vpop.xlane.xlu0 %8362
        %8364 = vadd.xlane.f32.xlu0 %v8339
        %v8365 = vpop.xlane.xlu0 %8364
        %8366 = vadd.xlane.f32.xlu0 %v8340
        %v8367 = vpop.xlane.xlu0 %8366
        %8368 = vadd.xlane.f32.xlu0 %v8341
        %v8369 = vpop.xlane.xlu0 %8368
        %8370 = vadd.xlane.f32.xlu0 %v8342
        %v8371 = vpop.xlane.xlu0 %8370
        %8372 = vadd.xlane.f32.xlu0 %v8343
        %v8373 = vpop.xlane.xlu0 %8372
        %8374 = vadd.xlane.f32.xlu0 %v8344
        %v8375 = vpop.xlane.xlu0 %8374
        %8376 = vadd.xlane.f32.xlu0 %v8345
        %v8377 = vpop.xlane.xlu0 %8376
        %v8378 = vmul.f32 %v8347, %v7435
        %v8379 = vmul.f32 %v8349, %v7435
        %v8380 = vmul.f32 %v8351, %v7435
        %v8381 = vmul.f32 %v8353, %v7435
        %v8382 = vmul.f32 %v8355, %v7435
        %v8383 = vmul.f32 %v8357, %v7435
        %v8384 = vmul.f32 %v8359, %v7435
        %v8385 = vmul.f32 %v8361, %v7435
        %v8386 = vmul.f32 %v8363, %v7435
        %v8387 = vmul.f32 %v8365, %v7435
        %v8388 = vmul.f32 %v8367, %v7435
        %v8389 = vmul.f32 %v8369, %v7435
        %v8390 = vmul.f32 %v8371, %v7435
        %v8391 = vmul.f32 %v8373, %v7435
        %v8392 = vmul.f32 %v8375, %v7435
        %v8393 = vmul.f32 %v8377, %v7435
        %v8394 = vadd.f32 %v8378, 1e-05
        %v8395 = vadd.f32 %v8379, 1e-05
        %v8396 = vadd.f32 %v8380, 1e-05
        %v8397 = vadd.f32 %v8381, 1e-05
        %v8398 = vadd.f32 %v8382, 1e-05
        %v8399 = vadd.f32 %v8383, 1e-05
        %v8400 = vadd.f32 %v8384, 1e-05
        %v8401 = vadd.f32 %v8385, 1e-05
        %v8402 = vadd.f32 %v8386, 1e-05
        %v8403 = vadd.f32 %v8387, 1e-05
        %v8404 = vadd.f32 %v8388, 1e-05
        %v8405 = vadd.f32 %v8389, 1e-05
        %v8406 = vadd.f32 %v8390, 1e-05
        %v8407 = vadd.f32 %v8391, 1e-05
        %v8408 = vadd.f32 %v8392, 1e-05
        %v8409 = vadd.f32 %v8393, 1e-05
        %v8410 = vrsqrt.pop %v8394
        %v8411 = vmul.f32 %v8410, %v8394
        %v8412 = vmul.f32 %v8411, %v8410
        %v8413 = vmul.f32 0.5, %v8412
        %v8414 = vsub.f32 1.5, %v8413
        %v8415 = vmul.f32 %v8410, %v8414
        %vm8416 = vweird.f32 %v8394
        %vm8417 = vweird.f32 %v8410
        %vm8418 = vmor %vm8416, %vm8417
        %v8419 = vsel %vm8418, %v8410, %v8415
        %v8420 = vrsqrt.pop %v8395
        %v8421 = vmul.f32 %v8420, %v8395
        %v8422 = vmul.f32 %v8421, %v8420
        %v8423 = vmul.f32 0.5, %v8422
        %v8424 = vsub.f32 1.5, %v8423
        %v8425 = vmul.f32 %v8420, %v8424
        %vm8426 = vweird.f32 %v8395
        %vm8427 = vweird.f32 %v8420
        %vm8428 = vmor %vm8426, %vm8427
        %v8429 = vsel %vm8428, %v8420, %v8425
        %v8430 = vrsqrt.pop %v8396
        %v8431 = vmul.f32 %v8430, %v8396
        %v8432 = vmul.f32 %v8431, %v8430
        %v8433 = vmul.f32 0.5, %v8432
        %v8434 = vsub.f32 1.5, %v8433
        %v8435 = vmul.f32 %v8430, %v8434
        %vm8436 = vweird.f32 %v8396
        %vm8437 = vweird.f32 %v8430
        %vm8438 = vmor %vm8436, %vm8437
        %v8439 = vsel %vm8438, %v8430, %v8435
        %v8440 = vrsqrt.pop %v8397
        %v8441 = vmul.f32 %v8440, %v8397
        %v8442 = vmul.f32 %v8441, %v8440
        %v8443 = vmul.f32 0.5, %v8442
        %v8444 = vsub.f32 1.5, %v8443
        %v8445 = vmul.f32 %v8440, %v8444
        %vm8446 = vweird.f32 %v8397
        %vm8447 = vweird.f32 %v8440
        %vm8448 = vmor %vm8446, %vm8447
        %v8449 = vsel %vm8448, %v8440, %v8445
        %v8450 = vrsqrt.pop %v8398
        %v8451 = vmul.f32 %v8450, %v8398
        %v8452 = vmul.f32 %v8451, %v8450
        %v8453 = vmul.f32 0.5, %v8452
        %v8454 = vsub.f32 1.5, %v8453
        %v8455 = vmul.f32 %v8450, %v8454
        %vm8456 = vweird.f32 %v8398
        %vm8457 = vweird.f32 %v8450
        %vm8458 = vmor %vm8456, %vm8457
        %v8459 = vsel %vm8458, %v8450, %v8455
        %v8460 = vrsqrt.pop %v8399
        %v8461 = vmul.f32 %v8460, %v8399
        %v8462 = vmul.f32 %v8461, %v8460
        %v8463 = vmul.f32 0.5, %v8462
        %v8464 = vsub.f32 1.5, %v8463
        %v8465 = vmul.f32 %v8460, %v8464
        %vm8466 = vweird.f32 %v8399
        %vm8467 = vweird.f32 %v8460
        %vm8468 = vmor %vm8466, %vm8467
        %v8469 = vsel %vm8468, %v8460, %v8465
        %v8470 = vrsqrt.pop %v8400
        %v8471 = vmul.f32 %v8470, %v8400
        %v8472 = vmul.f32 %v8471, %v8470
        %v8473 = vmul.f32 0.5, %v8472
        %v8474 = vsub.f32 1.5, %v8473
        %v8475 = vmul.f32 %v8470, %v8474
        %vm8476 = vweird.f32 %v8400
        %vm8477 = vweird.f32 %v8470
        %vm8478 = vmor %vm8476, %vm8477
        %v8479 = vsel %vm8478, %v8470, %v8475
        %v8480 = vrsqrt.pop %v8401
        %v8481 = vmul.f32 %v8480, %v8401
        %v8482 = vmul.f32 %v8481, %v8480
        %v8483 = vmul.f32 0.5, %v8482
        %v8484 = vsub.f32 1.5, %v8483
        %v8485 = vmul.f32 %v8480, %v8484
        %vm8486 = vweird.f32 %v8401
        %vm8487 = vweird.f32 %v8480
        %vm8488 = vmor %vm8486, %vm8487
        %v8489 = vsel %vm8488, %v8480, %v8485
        %v8490 = vrsqrt.pop %v8402
        %v8491 = vmul.f32 %v8490, %v8402
        %v8492 = vmul.f32 %v8491, %v8490
        %v8493 = vmul.f32 0.5, %v8492
        %v8494 = vsub.f32 1.5, %v8493
        %v8495 = vmul.f32 %v8490, %v8494
        %vm8496 = vweird.f32 %v8402
        %vm8497 = vweird.f32 %v8490
        %vm8498 = vmor %vm8496, %vm8497
        %v8499 = vsel %vm8498, %v8490, %v8495
        %v8500 = vrsqrt.pop %v8403
        %v8501 = vmul.f32 %v8500, %v8403
        %v8502 = vmul.f32 %v8501, %v8500
        %v8503 = vmul.f32 0.5, %v8502
        %v8504 = vsub.f32 1.5, %v8503
        %v8505 = vmul.f32 %v8500, %v8504
        %vm8506 = vweird.f32 %v8403
        %vm8507 = vweird.f32 %v8500
        %vm8508 = vmor %vm8506, %vm8507
        %v8509 = vsel %vm8508, %v8500, %v8505
        %v8510 = vrsqrt.pop %v8404
        %v8511 = vmul.f32 %v8510, %v8404
        %v8512 = vmul.f32 %v8511, %v8510
        %v8513 = vmul.f32 0.5, %v8512
        %v8514 = vsub.f32 1.5, %v8513
        %v8515 = vmul.f32 %v8510, %v8514
        %vm8516 = vweird.f32 %v8404
        %vm8517 = vweird.f32 %v8510
        %vm8518 = vmor %vm8516, %vm8517
        %v8519 = vsel %vm8518, %v8510, %v8515
        %v8520 = vrsqrt.pop %v8405
        %v8521 = vmul.f32 %v8520, %v8405
        %v8522 = vmul.f32 %v8521, %v8520
        %v8523 = vmul.f32 0.5, %v8522
        %v8524 = vsub.f32 1.5, %v8523
        %v8525 = vmul.f32 %v8520, %v8524
        %vm8526 = vweird.f32 %v8405
        %vm8527 = vweird.f32 %v8520
        %vm8528 = vmor %vm8526, %vm8527
        %v8529 = vsel %vm8528, %v8520, %v8525
        %v8530 = vrsqrt.pop %v8406
        %v8531 = vmul.f32 %v8530, %v8406
        %v8532 = vmul.f32 %v8531, %v8530
        %v8533 = vmul.f32 0.5, %v8532
        %v8534 = vsub.f32 1.5, %v8533
        %v8535 = vmul.f32 %v8530, %v8534
        %vm8536 = vweird.f32 %v8406
        %vm8537 = vweird.f32 %v8530
        %vm8538 = vmor %vm8536, %vm8537
        %v8539 = vsel %vm8538, %v8530, %v8535
        %v8540 = vrsqrt.pop %v8407
        %v8541 = vmul.f32 %v8540, %v8407
        %v8542 = vmul.f32 %v8541, %v8540
        %v8543 = vmul.f32 0.5, %v8542
        %v8544 = vsub.f32 1.5, %v8543
        %v8545 = vmul.f32 %v8540, %v8544
        %vm8546 = vweird.f32 %v8407
        %vm8547 = vweird.f32 %v8540
        %vm8548 = vmor %vm8546, %vm8547
        %v8549 = vsel %vm8548, %v8540, %v8545
        %v8550 = vrsqrt.pop %v8408
        %v8551 = vmul.f32 %v8550, %v8408
        %v8552 = vmul.f32 %v8551, %v8550
        %v8553 = vmul.f32 0.5, %v8552
        %v8554 = vsub.f32 1.5, %v8553
        %v8555 = vmul.f32 %v8550, %v8554
        %vm8556 = vweird.f32 %v8408
        %vm8557 = vweird.f32 %v8550
        %vm8558 = vmor %vm8556, %vm8557
        %v8559 = vsel %vm8558, %v8550, %v8555
        %v8560 = vrsqrt.pop %v8409
        %v8561 = vmul.f32 %v8560, %v8409
        %v8562 = vmul.f32 %v8561, %v8560
        %v8563 = vmul.f32 0.5, %v8562
        %v8564 = vsub.f32 1.5, %v8563
        %v8565 = vmul.f32 %v8560, %v8564
        %vm8566 = vweird.f32 %v8409
        %vm8567 = vweird.f32 %v8560
        %vm8568 = vmor %vm8566, %vm8567
        %v8569 = vsel %vm8568, %v8560, %v8565
        %v8570 = vmul.f32 %v8314, %v8419
        %v8571 = vmul.f32 %v8315, %v8429
        %v8572 = vmul.f32 %v8316, %v8439
        %v8573 = vmul.f32 %v8317, %v8449
        %v8574 = vmul.f32 %v8318, %v8459
        %v8575 = vmul.f32 %v8319, %v8469
        %v8576 = vmul.f32 %v8320, %v8479
        %v8577 = vmul.f32 %v8321, %v8489
        %v8578 = vmul.f32 %v8322, %v8499
        %v8579 = vmul.f32 %v8323, %v8509
        %v8580 = vmul.f32 %v8324, %v8519
        %v8581 = vmul.f32 %v8325, %v8529
        %v8582 = vmul.f32 %v8326, %v8539
        %v8583 = vmul.f32 %v8327, %v8549
        %v8584 = vmul.f32 %v8328, %v8559
        %v8585 = vmul.f32 %v8329, %v8569
        %v8587 = vperm.slane %v8264, 0
        %v8589 = vmul.f32 %v8570, %v8587
        %v8590 = vmul.f32 %v8571, %v8587
        %v8591 = vmul.f32 %v8572, %v8587
        %v8592 = vmul.f32 %v8573, %v8587
        %v8593 = vmul.f32 %v8574, %v8587
        %v8594 = vmul.f32 %v8575, %v8587
        %v8595 = vmul.f32 %v8576, %v8587
        %v8596 = vmul.f32 %v8577, %v8587
        %v8597 = vmul.f32 %v8578, %v8587
        %v8598 = vmul.f32 %v8579, %v8587
        %v8599 = vmul.f32 %v8580, %v8587
        %v8600 = vmul.f32 %v8581, %v8587
        %v8601 = vmul.f32 %v8582, %v8587
        %v8602 = vmul.f32 %v8583, %v8587
        %v8603 = vmul.f32 %v8584, %v8587
        %v8604 = vmul.f32 %v8585, %v8587
        %v8606 = vperm.slane %v8265, 0
        %v8608 = vadd.f32 %v8589, %v8606
        %v8609 = vadd.f32 %v8590, %v8606
        %v8610 = vadd.f32 %v8591, %v8606
        %v8611 = vadd.f32 %v8592, %v8606
        %v8612 = vadd.f32 %v8593, %v8606
        %v8613 = vadd.f32 %v8594, %v8606
        %v8614 = vadd.f32 %v8595, %v8606
        %v8615 = vadd.f32 %v8596, %v8606
        %v8616 = vadd.f32 %v8597, %v8606
        %v8617 = vadd.f32 %v8598, %v8606
        %v8618 = vadd.f32 %v8599, %v8606
        %v8619 = vadd.f32 %v8600, %v8606
        %v8620 = vadd.f32 %v8601, %v8606
        %v8621 = vadd.f32 %v8602, %v8606
        %v8622 = vadd.f32 %v8603, %v8606
        %v8623 = vadd.f32 %v8604, %v8606
        %8624 = vst [vmem:[%s558] sm:$0xff] %v8608
        %8625 = vst [vmem:[%s558 + $0x8] sm:$0xff] %v8609
        %8626 = vst [vmem:[%s558 + $0x10] sm:$0xff] %v8610
        %8627 = vst [vmem:[%s558 + $0x18] sm:$0xff] %v8611
        %8628 = vst [vmem:[%s558 + $0x20] sm:$0xff] %v8612
        %8629 = vst [vmem:[%s558 + $0x28] sm:$0xff] %v8613
        %8630 = vst [vmem:[%s558 + $0x30] sm:$0xff] %v8614
        %8631 = vst [vmem:[%s558 + $0x38] sm:$0xff] %v8615
        %8632 = vst [vmem:[%s558 + $0x40] sm:$0xff] %v8616
        %8633 = vst [vmem:[%s558 + $0x48] sm:$0xff] %v8617
        %8634 = vst [vmem:[%s558 + $0x50] sm:$0xff] %v8618
        %8635 = vst [vmem:[%s558 + $0x58] sm:$0xff] %v8619
        %8636 = vst [vmem:[%s558 + $0x60] sm:$0xff] %v8620
        %8637 = vst [vmem:[%s558 + $0x68] sm:$0xff] %v8621
        %8638 = vst [vmem:[%s558 + $0x70] sm:$0xff] %v8622
        %8639 = vst [vmem:[%s558 + $0x78] sm:$0xff] %v8623
        %s8640 = sand.u32 %s339, 1
        %s8641 = scalar_lea.sflag [#allocation4], %s8640
        %s8642 = sand.u32 %s339, 1
        %s8643 = smul.addr %s8642, 128
        %s8644 = scalar_lea.vmem [#allocation13], %s8643
        // Predicated region
        $region101: #{tpu_custom_call.1} parent=75 // pred_check
          %p8645 = pneg %p349
        $region102: #{tpu_custom_call.1} parent=75 // pred_check_branch
          %8647 = sbr.rel (%p8645) target = $region104
        $region103: #{tpu_custom_call.1} parent=75 // pred_region
          %8649 = vsyncadd %s8641, 0
          %s8650 = smul.addr %s32, 16
          %s8651 = smul.addr %s8650, 8
          %s8652 = scalar_lea.hbm %s14, %s8651
          %s8653 = sshll.u32 %s8644, 4
          %s8654 = int_to_ptr.vmem [resolvable:$true] %s8653
          %s8655 = sshll.u32 %s8652, 4
          %s8656 = int_to_ptr.hbm [resolvable:$true] %s8655
          %8661 = dma.vmem_to_hbm [thread:$0]  %s8654, 2048, %s8656, %s8641, 128, 128, 8
        $region104: #{tpu_custom_call.1} parent=75 // pred_fallthru
          _
      $region76: #{tpu_custom_call.1} parent=5 // pred_fallthru
        _
      %p8662 = scmp.le.s32.totalorder 2, %s27
      // Predicated region
      $region105: #{tpu_custom_call.1} parent=5 // pred_check
        %p8663 = pneg %p8662
      $region106: #{tpu_custom_call.1} parent=5 // pred_check_branch
        %8665 = sbr.rel (%p8663) target = $region108
      $region107: #{tpu_custom_call.1} parent=5 // pred_region
        %s8666 = ssub.s32 %s27, 2
        // Predicated region
        $region109: #{tpu_custom_call.1} parent=107 // pred_check
          %p8667 = pneg %p355
        $region110: #{tpu_custom_call.1} parent=107 // pred_check_branch
          %8669 = sbr.rel (%p8667) target = $region112
        $region111: #{tpu_custom_call.1} parent=107 // pred_region
          %s8670 = sand.u32 %s340, 1
          %s8671 = scalar_lea.sflag [#allocation4], %s8670
          %s8672 = sand.u32 %s340, 1
          %s8673 = smul.addr %s8672, 128
          %s8674 = scalar_lea.vmem [#allocation13], %s8673
          %8676 = dma.done %s8671, 2048
        $region112: #{tpu_custom_call.1} parent=107 // pred_fallthru
          _
      $region108: #{tpu_custom_call.1} parent=5 // pred_fallthru
        _
    $region6: #{tpu_custom_call.1} parent=1 // loop_footer
      %s31 = sadd.s32 1, %s27
    $region7: #{tpu_custom_call.1} parent=1 // loop_footer_branch
      %26 = sbr.rel target = $region3
    $region8: #{tpu_custom_call.1} parent=1 // loop_exit
      _
    %8677 = vsyncpa [#allocation3], 1
    %s8678 = scalar_lea.sflag [#allocation3], 1
    %8679 = vsyncpa %s8678, 1
    %8680 = vsyncpa [#allocation6], 1
    %8681 = vsyncpa [#allocation9], 1
    %8682 = vsyncpa [#allocation12], 1
    %8683 = vsyncpa [#allocation4], 1
    %s8684 = scalar_lea.sflag [#allocation4], 1
    %8685 = vsyncpa %s8684, 1

</llo_original>
